<compile_context>
chip_gen: v6e
topology: v6e:2x2x1
jax: 0.10.0
libtpu: 0.0.40
codegen_flags: <defaults>
</compile_context>

<pallas_src>
import jax
import jax.numpy as jnp
from jax import lax
from jax.experimental import pallas as pl
from jax.experimental.pallas import tpu as pltpu

n_embeds = 384
block_size = 56
n_heads = 6
head_size = n_embeds // n_heads      # 64 inside Block
dropout_p = 0.2                      # identity in eval mode
LN_EPS = 1e-5                        # torch.nn.LayerNorm default eps
NEG_BIG = -1e30


def _layernorm(x, gamma, beta):
    mu = jnp.mean(x, axis=-1, keepdims=True)
    xc = x - mu
    var = jnp.mean(xc * xc, axis=-1, keepdims=True)
    return xc * lax.rsqrt(var + LN_EPS) * gamma + beta


def _block_kernel(x_ref, g1_ref, b1_ref, wqkv_ref, wproj_ref, bproj_ref,
                  g2_ref, b2_ref, w1_ref, b_ff1_ref, w2_ref, b_ff2_ref, o_ref):
    C = n_embeds
    H = head_size
    x = x_ref[0]                                      # (T, C) f32
    T = x.shape[0]

    # ---- LayerNorm 1 (f32, VPU) ----
    xn = _layernorm(x, g1_ref[...], b1_ref[...])

    # ---- fused QKV projection for ALL heads: one (T,C)@(C,3C) MXU matmul ----
    qkv = jnp.dot(xn.astype(jnp.bfloat16), wqkv_ref[...],
                  preferred_element_type=jnp.float32)            # (T, 3C) f32

    # PyTorch module scales the scores by C**-0.5 (embedding dim, not
    # head_size); apply it to q (T*C elems) instead of every (T,T) tile.
    scale = float(C) ** -0.5
    q = (qkv[:, :C] * scale).astype(jnp.bfloat16)                # (T, C)
    k = qkv[:, C:2 * C].astype(jnp.bfloat16)                     # (T, C)
    v = qkv[:, 2 * C:].astype(jnp.bfloat16)                      # (T, C)

    # causal (tril) mask — finite large negative avoids inf-inf NaN hazards
    row = lax.broadcasted_iota(jnp.int32, (T, T), 0)
    col = lax.broadcasted_iota(jnp.int32, (T, T), 1)
    causal = col <= row

    # ---- per-head attention (statically unrolled over the 6 heads) ----
    heads = []
    for h in range(n_heads):
        sl = slice(h * H, (h + 1) * H)
        qh, kh, vh = q[:, sl], k[:, sl], v[:, sl]                # (T, H) bf16
        # q @ k^T without materializing a transpose: contract last dims.
        s = lax.dot_general(qh, kh, (((1,), (1,)), ((), ())),
                            preferred_element_type=jnp.float32)  # (T, T) f32
        s = jnp.where(causal, s, NEG_BIG)
        s = s - jnp.max(s, axis=-1, keepdims=True)
        p = jnp.exp(s)
        p = p * pl.reciprocal(jnp.sum(p, axis=-1, keepdims=True), approx=True)
        # TODO(synk): attention-weight dropout is identity (eval mode); training
        # mode would draw a mask via pltpu.prng_seed / pltpu.prng_random_bits.
        heads.append(jnp.dot(p.astype(jnp.bfloat16), vh,
                             preferred_element_type=jnp.float32))  # (T, H)
    attn = jnp.concatenate(heads, axis=-1)                         # (T, C)

    # ---- output projection (+ bias) + residual ----
    y = jnp.dot(attn.astype(jnp.bfloat16), wproj_ref[...],
                preferred_element_type=jnp.float32) + bproj_ref[...]
    x_sa = y + x                                                   # (T, C)

    # ---- LayerNorm 2 + FeedForward (Linear-ReLU-Linear) + residual ----
    xn2 = _layernorm(x_sa, g2_ref[...], b2_ref[...])
    hdn = jnp.dot(xn2.astype(jnp.bfloat16), w1_ref[...],
                  preferred_element_type=jnp.float32) + b_ff1_ref[...]  # (T,4C)
    hdn = jnp.maximum(hdn, 0.0)
    ff = jnp.dot(hdn.astype(jnp.bfloat16), w2_ref[...],
                 preferred_element_type=jnp.float32) + b_ff2_ref[...]   # (T, C)

    # both Dropout layers are identity in eval mode
    o_ref[0] = (ff + x_sa).astype(o_ref.dtype)


def transformer_block(x, params):
    """x: (B, T, C) f32; params = (g1, b1, wqkv, wproj, bproj, g2, b2,
    w1, b_ff1, w2, b_ff2). All params 2-D; matmul weights in bf16
    (f32 accumulation happens in-kernel)."""
    B, T, C = x.shape
    Hf = 4 * C

    def param_spec(p):
        # Every param is 2-D and fully resident; same block every grid step,
        # so Pallas skips the re-DMA across the batch loop.
        return pl.BlockSpec(p.shape, lambda b: (0, 0))

    flops = B * (2 * T * C * (3 * C)                        # fused QKV
                 + n_heads * 2 * (2 * T * T * head_size)    # q@k^T and p@v
                 + 2 * T * C * C                            # out projection
                 + 2 * T * C * Hf + 2 * T * Hf * C)         # feed-forward
    bytes_accessed = 2 * x.size * x.dtype.itemsize \
        + sum(int(p.size) * p.dtype.itemsize for p in params)

    return pl.pallas_call(
        _block_kernel,
        out_shape=jax.ShapeDtypeStruct((B, T, C), x.dtype),
        grid_spec=pltpu.PrefetchScalarGridSpec(
            num_scalar_prefetch=0,
            grid=(B,),
            in_specs=[pl.BlockSpec((1, T, C), lambda b: (b, 0, 0))]
                     + [param_spec(p) for p in params],
            out_specs=pl.BlockSpec((1, T, C), lambda b: (b, 0, 0)),
        ),
        compiler_params=pltpu.CompilerParams(
            dimension_semantics=("parallel",),
            vmem_limit_bytes=32 * 1024 * 1024,
        ),
        cost_estimate=pl.CostEstimate(
            flops=int(flops),
            transcendentals=int(B * n_heads * T * T),
            bytes_accessed=int(bytes_accessed),
        ),
    )(x, *params)


def _reference(x, params):
    """Pure-JAX f32 reference matching the PyTorch Block forward (eval mode)."""
    g1, b1, wqkv, wproj, bproj, g2, b2, w1, b_ff1, w2, b_ff2 = [
        p.astype(jnp.float32) for p in params]
    B, T, C = x.shape
    H = head_size

    def ln(z, g, b):
        mu = jnp.mean(z, axis=-1, keepdims=True)
        var = jnp.mean((z - mu) ** 2, axis=-1, keepdims=True)
        return (z - mu) / jnp.sqrt(var + LN_EPS) * g + b

    xn = ln(x, g1, b1)
    qkv = xn @ wqkv
    q, k, v = qkv[..., :C], qkv[..., C:2 * C], qkv[..., 2 * C:]
    mask = jnp.tril(jnp.ones((T, T), dtype=bool))
    outs = []
    for h in range(n_heads):
        sl = slice(h * H, (h + 1) * H)
        s = (q[..., sl] @ jnp.swapaxes(k[..., sl], -2, -1)) * (C ** -0.5)
        s = jnp.where(mask, s, -jnp.inf)
        p = jax.nn.softmax(s, axis=-1)
        outs.append(p @ v[..., sl])
    attn = jnp.concatenate(outs, axis=-1)
    x_sa = attn @ wproj + bproj + x
    xn2 = ln(x_sa, g2, b2)
    ff = jnp.maximum(xn2 @ w1 + b_ff1, 0.0) @ w2 + b_ff2
    return ff + x_sa


if __name__ == "__main__":
    key = jax.random.PRNGKey(0)
    keys = jax.random.split(key, 12)

    B, T, C = 2, block_size, n_embeds
    Hf = 4 * C

    x = jax.random.normal(keys[0], (B, T, C), dtype=jnp.float32)

    def linear_w(k, fan_in, shape):
        bound = 1.0 / (fan_in ** 0.5)
        return jax.random.uniform(k, shape, jnp.float32, -bound, bound)

    # LayerNorm affine params (perturbed from ones/zeros so the affine path
    # is actually exercised).
    g1 = 1.0 + 0.1 * jax.random.normal(keys[1], (1, C), jnp.float32)
    b1 = 0.1 * jax.random.normal(keys[2], (1, C), jnp.float32)
    g2 = 1.0 + 0.1 * jax.random.normal(keys[3], (1, C), jnp.float32)
    b2 = 0.1 * jax.random.normal(keys[4], (1, C), jnp.float32)

    # Fused QKV weight stored transposed: columns [0:C]=Q, [C:2C]=K, [2C:3C]=V,
    # each the 6 heads' (C, 64) weights concatenated. Matmul weights are passed
    # in bf16 (f32 accumulation happens in-kernel); biases stay f32.
    wqkv = linear_w(keys[5], C, (C, 3 * C)).astype(jnp.bfloat16)
    wproj = linear_w(keys[6], C, (C, C)).astype(jnp.bfloat16)
    bproj = linear_w(keys[7], C, (1, C))
    w1 = linear_w(keys[8], C, (C, Hf)).astype(jnp.bfloat16)
    b_ff1 = linear_w(keys[9], C, (1, Hf))
    w2 = linear_w(keys[10], Hf, (Hf, C)).astype(jnp.bfloat16)
    b_ff2 = linear_w(keys[11], Hf, (1, C))

    params = (g1, b1, wqkv, wproj, bproj, g2, b2, w1, b_ff1, w2, b_ff2)

    out = transformer_block(x, params)
    out = jax.block_until_ready(out)

    ref = _reference(x, params)
    assert out.shape == (B, T, C)
    # bf16 MXU matmuls with f32 accumulation vs f32 reference.
    max_err = float(jnp.max(jnp.abs(out - ref)))
    assert jnp.allclose(out, ref, rtol=5e-2, atol=5e-2), max_err

    print("KERNEL_OK")
</pallas_src>

<mosaic_0001>
module attributes {stable_mosaic.version = 11 : i64} {
  func.func @_block_kernel(%arg0: i32, %arg1: memref<1x56x384xf32, #tpu.memory_space<vmem>>, %arg2: memref<1x384xf32, #tpu.memory_space<vmem>>, %arg3: memref<1x384xf32, #tpu.memory_space<vmem>>, %arg4: memref<384x1152xbf16, #tpu.memory_space<vmem>>, %arg5: memref<384x384xbf16, #tpu.memory_space<vmem>>, %arg6: memref<1x384xf32, #tpu.memory_space<vmem>>, %arg7: memref<1x384xf32, #tpu.memory_space<vmem>>, %arg8: memref<1x384xf32, #tpu.memory_space<vmem>>, %arg9: memref<384x1536xbf16, #tpu.memory_space<vmem>>, %arg10: memref<1x1536xf32, #tpu.memory_space<vmem>>, %arg11: memref<1536x384xbf16, #tpu.memory_space<vmem>>, %arg12: memref<1x384xf32, #tpu.memory_space<vmem>>, %arg13: memref<1x56x384xf32, #tpu.memory_space<vmem>>) attributes {dimension_semantics = [#tpu.dimension_semantics<parallel>], iteration_bounds = array<i64: 2>, scalar_prefetch = 0 : i64, scratch_operands = 0 : i64, tpu.core_type = #tpu.core_type<tc>, window_params = [{transform_indices = @transform_0, window_bounds = array<i64: 1, 56, 384>}, {pipeline_mode = #tpu.pipeline_mode<synchronous>, transform_indices = @transform_1, window_bounds = array<i64: 1, 384>}, {pipeline_mode = #tpu.pipeline_mode<synchronous>, transform_indices = @transform_2, window_bounds = array<i64: 1, 384>}, {pipeline_mode = #tpu.pipeline_mode<synchronous>, transform_indices = @transform_3, window_bounds = array<i64: 384, 1152>}, {pipeline_mode = #tpu.pipeline_mode<synchronous>, transform_indices = @transform_4, window_bounds = array<i64: 384, 384>}, {pipeline_mode = #tpu.pipeline_mode<synchronous>, transform_indices = @transform_5, window_bounds = array<i64: 1, 384>}, {pipeline_mode = #tpu.pipeline_mode<synchronous>, transform_indices = @transform_6, window_bounds = array<i64: 1, 384>}, {pipeline_mode = #tpu.pipeline_mode<synchronous>, transform_indices = @transform_7, window_bounds = array<i64: 1, 384>}, {pipeline_mode = #tpu.pipeline_mode<synchronous>, transform_indices = @transform_8, window_bounds = array<i64: 384, 1536>}, {pipeline_mode = #tpu.pipeline_mode<synchronous>, transform_indices = @transform_9, window_bounds = array<i64: 1, 1536>}, {pipeline_mode = #tpu.pipeline_mode<synchronous>, transform_indices = @transform_10, window_bounds = array<i64: 1536, 384>}, {pipeline_mode = #tpu.pipeline_mode<synchronous>, transform_indices = @transform_11, window_bounds = array<i64: 1, 384>}, {transform_indices = @transform_12, window_bounds = array<i64: 1, 56, 384>}]} {
    %c0 = arith.constant 0 : index
    %c0_0 = arith.constant 0 : index
    %c0_1 = arith.constant 0 : index
    %0 = vector.load %arg1[%c0, %c0_0, %c0_1] : memref<1x56x384xf32, #tpu.memory_space<vmem>>, vector<1x56x384xf32>
    %1 = vector.shape_cast %0 : vector<1x56x384xf32> to vector<56x384xf32>
    %c0_2 = arith.constant 0 : index
    %c0_3 = arith.constant 0 : index
    %2 = vector.load %arg2[%c0_2, %c0_3] : memref<1x384xf32, #tpu.memory_space<vmem>>, vector<1x384xf32>
    %c0_4 = arith.constant 0 : index
    %c0_5 = arith.constant 0 : index
    %3 = vector.load %arg3[%c0_4, %c0_5] : memref<1x384xf32, #tpu.memory_space<vmem>>, vector<1x384xf32>
    %cst = arith.constant dense<0.000000e+00> : vector<56xf32>
    %4 = vector.multi_reduction <add>, %1, %cst [1] : vector<56x384xf32> to vector<56xf32>
    %5 = vector.shape_cast %4 : vector<56xf32> to vector<56x1xf32>
    %cst_6 = arith.constant 3.840000e+02 : f32
    %6 = vector.broadcast %cst_6 : f32 to vector<56x1xf32>
    %7 = arith.divf %5, %6 : vector<56x1xf32>
    %8 = vector.broadcast %7 : vector<56x1xf32> to vector<56x384xf32>
    %9 = arith.subf %1, %8 : vector<56x384xf32>
    %10 = arith.mulf %9, %9 : vector<56x384xf32>
    %cst_7 = arith.constant dense<0.000000e+00> : vector<56xf32>
    %11 = vector.multi_reduction <add>, %10, %cst_7 [1] : vector<56x384xf32> to vector<56xf32>
    %12 = vector.shape_cast %11 : vector<56xf32> to vector<56x1xf32>
    %cst_8 = arith.constant 3.840000e+02 : f32
    %13 = vector.broadcast %cst_8 : f32 to vector<56x1xf32>
    %14 = arith.divf %12, %13 : vector<56x1xf32>
    %cst_9 = arith.constant 9.99999974E-6 : f32
    %15 = vector.broadcast %cst_9 : f32 to vector<56x1xf32>
    %16 = arith.addf %14, %15 : vector<56x1xf32>
    %17 = math.rsqrt %16 : vector<56x1xf32>
    %18 = vector.broadcast %17 : vector<56x1xf32> to vector<56x384xf32>
    %19 = arith.mulf %9, %18 : vector<56x384xf32>
    %20 = vector.broadcast %2 : vector<1x384xf32> to vector<56x384xf32>
    %21 = arith.mulf %19, %20 : vector<56x384xf32>
    %22 = vector.broadcast %3 : vector<1x384xf32> to vector<56x384xf32>
    %23 = arith.addf %21, %22 : vector<56x384xf32>
    %24 = arith.truncf %23 : vector<56x384xf32> to vector<56x384xbf16>
    %c0_10 = arith.constant 0 : index
    %c0_11 = arith.constant 0 : index
    %25 = vector.load %arg4[%c0_10, %c0_11] : memref<384x1152xbf16, #tpu.memory_space<vmem>>, vector<384x1152xbf16>
    %cst_12 = arith.constant dense<0.000000e+00> : vector<56x1152xf32>
    %26 = tpu.matmul %24, %25, %cst_12 {dimension_numbers = #tpu.dot_dimension_numbers<[1], [0], [0], [1], [0, 0, 1, 1], [], []>} : vector<56x384xbf16>, vector<384x1152xbf16>, vector<56x1152xf32> -> vector<56x1152xf32>
    %27 = vector.extract_strided_slice %26 {offsets = [0, 0], sizes = [56, 384], strides = [1, 1]} : vector<56x1152xf32> to vector<56x384xf32>
    %cst_13 = arith.constant 0.0510310382 : f32
    %28 = vector.broadcast %cst_13 : f32 to vector<56x384xf32>
    %29 = arith.mulf %27, %28 : vector<56x384xf32>
    %30 = arith.truncf %29 : vector<56x384xf32> to vector<56x384xbf16>
    %31 = vector.extract_strided_slice %26 {offsets = [0, 384], sizes = [56, 384], strides = [1, 1]} : vector<56x1152xf32> to vector<56x384xf32>
    %32 = arith.truncf %31 : vector<56x384xf32> to vector<56x384xbf16>
    %33 = vector.extract_strided_slice %26 {offsets = [0, 768], sizes = [56, 384], strides = [1, 1]} : vector<56x1152xf32> to vector<56x384xf32>
    %34 = arith.truncf %33 : vector<56x384xf32> to vector<56x384xbf16>
    %35 = tpu.iota {dimensions = array<i32: 0>} : vector<56x56xi32>
    %36 = tpu.iota {dimensions = array<i32: 1>} : vector<56x56xi32>
    %37 = arith.cmpi sle, %36, %35 : vector<56x56xi32>
    %38 = vector.extract_strided_slice %30 {offsets = [0, 0], sizes = [56, 64], strides = [1, 1]} : vector<56x384xbf16> to vector<56x64xbf16>
    %39 = vector.extract_strided_slice %32 {offsets = [0, 0], sizes = [56, 64], strides = [1, 1]} : vector<56x384xbf16> to vector<56x64xbf16>
    %40 = vector.extract_strided_slice %34 {offsets = [0, 0], sizes = [56, 64], strides = [1, 1]} : vector<56x384xbf16> to vector<56x64xbf16>
    %cst_14 = arith.constant dense<0.000000e+00> : vector<56x56xf32>
    %41 = tpu.matmul %38, %39, %cst_14 {dimension_numbers = #tpu.dot_dimension_numbers<[1], [1], [0], [0], [0, 0, 1, 0], [], []>} : vector<56x64xbf16>, vector<56x64xbf16>, vector<56x56xf32> -> vector<56x56xf32>
    %cst_15 = arith.constant -1.000000e+30 : f32
    %42 = vector.broadcast %cst_15 : f32 to vector<56x56xf32>
    %43 = arith.select %37, %41, %42 : vector<56x56xi1>, vector<56x56xf32>
    %cst_16 = arith.constant dense<0xFF800000> : vector<56xf32>
    %44 = vector.multi_reduction <maximumf>, %43, %cst_16 [1] : vector<56x56xf32> to vector<56xf32>
    %45 = vector.shape_cast %44 : vector<56xf32> to vector<56x1xf32>
    %46 = vector.broadcast %45 : vector<56x1xf32> to vector<56x56xf32>
    %47 = arith.subf %43, %46 : vector<56x56xf32>
    %48 = math.exp %47 : vector<56x56xf32>
    %cst_17 = arith.constant dense<0.000000e+00> : vector<56xf32>
    %49 = vector.multi_reduction <add>, %48, %cst_17 [1] : vector<56x56xf32> to vector<56xf32>
    %50 = vector.shape_cast %49 : vector<56xf32> to vector<56x1xf32>
    %51 = tpu.reciprocal %50 {approx = true} : vector<56x1xf32> -> vector<56x1xf32>
    %52 = vector.broadcast %51 : vector<56x1xf32> to vector<56x56xf32>
    %53 = arith.mulf %48, %52 : vector<56x56xf32>
    %54 = arith.truncf %53 : vector<56x56xf32> to vector<56x56xbf16>
    %cst_18 = arith.constant dense<0.000000e+00> : vector<56x64xf32>
    %55 = tpu.matmul %54, %40, %cst_18 {dimension_numbers = #tpu.dot_dimension_numbers<[1], [0], [0], [1], [0, 0, 1, 1], [], []>} : vector<56x56xbf16>, vector<56x64xbf16>, vector<56x64xf32> -> vector<56x64xf32>
    %56 = vector.extract_strided_slice %30 {offsets = [0, 64], sizes = [56, 64], strides = [1, 1]} : vector<56x384xbf16> to vector<56x64xbf16>
    %57 = vector.extract_strided_slice %32 {offsets = [0, 64], sizes = [56, 64], strides = [1, 1]} : vector<56x384xbf16> to vector<56x64xbf16>
    %58 = vector.extract_strided_slice %34 {offsets = [0, 64], sizes = [56, 64], strides = [1, 1]} : vector<56x384xbf16> to vector<56x64xbf16>
    %cst_19 = arith.constant dense<0.000000e+00> : vector<56x56xf32>
    %59 = tpu.matmul %56, %57, %cst_19 {dimension_numbers = #tpu.dot_dimension_numbers<[1], [1], [0], [0], [0, 0, 1, 0], [], []>} : vector<56x64xbf16>, vector<56x64xbf16>, vector<56x56xf32> -> vector<56x56xf32>
    %cst_20 = arith.constant -1.000000e+30 : f32
    %60 = vector.broadcast %cst_20 : f32 to vector<56x56xf32>
    %61 = arith.select %37, %59, %60 : vector<56x56xi1>, vector<56x56xf32>
    %cst_21 = arith.constant dense<0xFF800000> : vector<56xf32>
    %62 = vector.multi_reduction <maximumf>, %61, %cst_21 [1] : vector<56x56xf32> to vector<56xf32>
    %63 = vector.shape_cast %62 : vector<56xf32> to vector<56x1xf32>
    %64 = vector.broadcast %63 : vector<56x1xf32> to vector<56x56xf32>
    %65 = arith.subf %61, %64 : vector<56x56xf32>
    %66 = math.exp %65 : vector<56x56xf32>
    %cst_22 = arith.constant dense<0.000000e+00> : vector<56xf32>
    %67 = vector.multi_reduction <add>, %66, %cst_22 [1] : vector<56x56xf32> to vector<56xf32>
    %68 = vector.shape_cast %67 : vector<56xf32> to vector<56x1xf32>
    %69 = tpu.reciprocal %68 {approx = true} : vector<56x1xf32> -> vector<56x1xf32>
    %70 = vector.broadcast %69 : vector<56x1xf32> to vector<56x56xf32>
    %71 = arith.mulf %66, %70 : vector<56x56xf32>
    %72 = arith.truncf %71 : vector<56x56xf32> to vector<56x56xbf16>
    %cst_23 = arith.constant dense<0.000000e+00> : vector<56x64xf32>
    %73 = tpu.matmul %72, %58, %cst_23 {dimension_numbers = #tpu.dot_dimension_numbers<[1], [0], [0], [1], [0, 0, 1, 1], [], []>} : vector<56x56xbf16>, vector<56x64xbf16>, vector<56x64xf32> -> vector<56x64xf32>
    %74 = vector.extract_strided_slice %30 {offsets = [0, 128], sizes = [56, 64], strides = [1, 1]} : vector<56x384xbf16> to vector<56x64xbf16>
    %75 = vector.extract_strided_slice %32 {offsets = [0, 128], sizes = [56, 64], strides = [1, 1]} : vector<56x384xbf16> to vector<56x64xbf16>
    %76 = vector.extract_strided_slice %34 {offsets = [0, 128], sizes = [56, 64], strides = [1, 1]} : vector<56x384xbf16> to vector<56x64xbf16>
    %cst_24 = arith.constant dense<0.000000e+00> : vector<56x56xf32>
    %77 = tpu.matmul %74, %75, %cst_24 {dimension_numbers = #tpu.dot_dimension_numbers<[1], [1], [0], [0], [0, 0, 1, 0], [], []>} : vector<56x64xbf16>, vector<56x64xbf16>, vector<56x56xf32> -> vector<56x56xf32>
    %cst_25 = arith.constant -1.000000e+30 : f32
    %78 = vector.broadcast %cst_25 : f32 to vector<56x56xf32>
    %79 = arith.select %37, %77, %78 : vector<56x56xi1>, vector<56x56xf32>
    %cst_26 = arith.constant dense<0xFF800000> : vector<56xf32>
    %80 = vector.multi_reduction <maximumf>, %79, %cst_26 [1] : vector<56x56xf32> to vector<56xf32>
    %81 = vector.shape_cast %80 : vector<56xf32> to vector<56x1xf32>
    %82 = vector.broadcast %81 : vector<56x1xf32> to vector<56x56xf32>
    %83 = arith.subf %79, %82 : vector<56x56xf32>
    %84 = math.exp %83 : vector<56x56xf32>
    %cst_27 = arith.constant dense<0.000000e+00> : vector<56xf32>
    %85 = vector.multi_reduction <add>, %84, %cst_27 [1] : vector<56x56xf32> to vector<56xf32>
    %86 = vector.shape_cast %85 : vector<56xf32> to vector<56x1xf32>
    %87 = tpu.reciprocal %86 {approx = true} : vector<56x1xf32> -> vector<56x1xf32>
    %88 = vector.broadcast %87 : vector<56x1xf32> to vector<56x56xf32>
    %89 = arith.mulf %84, %88 : vector<56x56xf32>
    %90 = arith.truncf %89 : vector<56x56xf32> to vector<56x56xbf16>
    %cst_28 = arith.constant dense<0.000000e+00> : vector<56x64xf32>
    %91 = tpu.matmul %90, %76, %cst_28 {dimension_numbers = #tpu.dot_dimension_numbers<[1], [0], [0], [1], [0, 0, 1, 1], [], []>} : vector<56x56xbf16>, vector<56x64xbf16>, vector<56x64xf32> -> vector<56x64xf32>
    %92 = vector.extract_strided_slice %30 {offsets = [0, 192], sizes = [56, 64], strides = [1, 1]} : vector<56x384xbf16> to vector<56x64xbf16>
    %93 = vector.extract_strided_slice %32 {offsets = [0, 192], sizes = [56, 64], strides = [1, 1]} : vector<56x384xbf16> to vector<56x64xbf16>
    %94 = vector.extract_strided_slice %34 {offsets = [0, 192], sizes = [56, 64], strides = [1, 1]} : vector<56x384xbf16> to vector<56x64xbf16>
    %cst_29 = arith.constant dense<0.000000e+00> : vector<56x56xf32>
    %95 = tpu.matmul %92, %93, %cst_29 {dimension_numbers = #tpu.dot_dimension_numbers<[1], [1], [0], [0], [0, 0, 1, 0], [], []>} : vector<56x64xbf16>, vector<56x64xbf16>, vector<56x56xf32> -> vector<56x56xf32>
    %cst_30 = arith.constant -1.000000e+30 : f32
    %96 = vector.broadcast %cst_30 : f32 to vector<56x56xf32>
    %97 = arith.select %37, %95, %96 : vector<56x56xi1>, vector<56x56xf32>
    %cst_31 = arith.constant dense<0xFF800000> : vector<56xf32>
    %98 = vector.multi_reduction <maximumf>, %97, %cst_31 [1] : vector<56x56xf32> to vector<56xf32>
    %99 = vector.shape_cast %98 : vector<56xf32> to vector<56x1xf32>
    %100 = vector.broadcast %99 : vector<56x1xf32> to vector<56x56xf32>
    %101 = arith.subf %97, %100 : vector<56x56xf32>
    %102 = math.exp %101 : vector<56x56xf32>
    %cst_32 = arith.constant dense<0.000000e+00> : vector<56xf32>
    %103 = vector.multi_reduction <add>, %102, %cst_32 [1] : vector<56x56xf32> to vector<56xf32>
    %104 = vector.shape_cast %103 : vector<56xf32> to vector<56x1xf32>
    %105 = tpu.reciprocal %104 {approx = true} : vector<56x1xf32> -> vector<56x1xf32>
    %106 = vector.broadcast %105 : vector<56x1xf32> to vector<56x56xf32>
    %107 = arith.mulf %102, %106 : vector<56x56xf32>
    %108 = arith.truncf %107 : vector<56x56xf32> to vector<56x56xbf16>
    %cst_33 = arith.constant dense<0.000000e+00> : vector<56x64xf32>
    %109 = tpu.matmul %108, %94, %cst_33 {dimension_numbers = #tpu.dot_dimension_numbers<[1], [0], [0], [1], [0, 0, 1, 1], [], []>} : vector<56x56xbf16>, vector<56x64xbf16>, vector<56x64xf32> -> vector<56x64xf32>
    %110 = vector.extract_strided_slice %30 {offsets = [0, 256], sizes = [56, 64], strides = [1, 1]} : vector<56x384xbf16> to vector<56x64xbf16>
    %111 = vector.extract_strided_slice %32 {offsets = [0, 256], sizes = [56, 64], strides = [1, 1]} : vector<56x384xbf16> to vector<56x64xbf16>
    %112 = vector.extract_strided_slice %34 {offsets = [0, 256], sizes = [56, 64], strides = [1, 1]} : vector<56x384xbf16> to vector<56x64xbf16>
    %cst_34 = arith.constant dense<0.000000e+00> : vector<56x56xf32>
    %113 = tpu.matmul %110, %111, %cst_34 {dimension_numbers = #tpu.dot_dimension_numbers<[1], [1], [0], [0], [0, 0, 1, 0], [], []>} : vector<56x64xbf16>, vector<56x64xbf16>, vector<56x56xf32> -> vector<56x56xf32>
    %cst_35 = arith.constant -1.000000e+30 : f32
    %114 = vector.broadcast %cst_35 : f32 to vector<56x56xf32>
    %115 = arith.select %37, %113, %114 : vector<56x56xi1>, vector<56x56xf32>
    %cst_36 = arith.constant dense<0xFF800000> : vector<56xf32>
    %116 = vector.multi_reduction <maximumf>, %115, %cst_36 [1] : vector<56x56xf32> to vector<56xf32>
    %117 = vector.shape_cast %116 : vector<56xf32> to vector<56x1xf32>
    %118 = vector.broadcast %117 : vector<56x1xf32> to vector<56x56xf32>
    %119 = arith.subf %115, %118 : vector<56x56xf32>
    %120 = math.exp %119 : vector<56x56xf32>
    %cst_37 = arith.constant dense<0.000000e+00> : vector<56xf32>
    %121 = vector.multi_reduction <add>, %120, %cst_37 [1] : vector<56x56xf32> to vector<56xf32>
    %122 = vector.shape_cast %121 : vector<56xf32> to vector<56x1xf32>
    %123 = tpu.reciprocal %122 {approx = true} : vector<56x1xf32> -> vector<56x1xf32>
    %124 = vector.broadcast %123 : vector<56x1xf32> to vector<56x56xf32>
    %125 = arith.mulf %120, %124 : vector<56x56xf32>
    %126 = arith.truncf %125 : vector<56x56xf32> to vector<56x56xbf16>
    %cst_38 = arith.constant dense<0.000000e+00> : vector<56x64xf32>
    %127 = tpu.matmul %126, %112, %cst_38 {dimension_numbers = #tpu.dot_dimension_numbers<[1], [0], [0], [1], [0, 0, 1, 1], [], []>} : vector<56x56xbf16>, vector<56x64xbf16>, vector<56x64xf32> -> vector<56x64xf32>
    %128 = vector.extract_strided_slice %30 {offsets = [0, 320], sizes = [56, 64], strides = [1, 1]} : vector<56x384xbf16> to vector<56x64xbf16>
    %129 = vector.extract_strided_slice %32 {offsets = [0, 320], sizes = [56, 64], strides = [1, 1]} : vector<56x384xbf16> to vector<56x64xbf16>
    %130 = vector.extract_strided_slice %34 {offsets = [0, 320], sizes = [56, 64], strides = [1, 1]} : vector<56x384xbf16> to vector<56x64xbf16>
    %cst_39 = arith.constant dense<0.000000e+00> : vector<56x56xf32>
    %131 = tpu.matmul %128, %129, %cst_39 {dimension_numbers = #tpu.dot_dimension_numbers<[1], [1], [0], [0], [0, 0, 1, 0], [], []>} : vector<56x64xbf16>, vector<56x64xbf16>, vector<56x56xf32> -> vector<56x56xf32>
    %cst_40 = arith.constant -1.000000e+30 : f32
    %132 = vector.broadcast %cst_40 : f32 to vector<56x56xf32>
    %133 = arith.select %37, %131, %132 : vector<56x56xi1>, vector<56x56xf32>
    %cst_41 = arith.constant dense<0xFF800000> : vector<56xf32>
    %134 = vector.multi_reduction <maximumf>, %133, %cst_41 [1] : vector<56x56xf32> to vector<56xf32>
    %135 = vector.shape_cast %134 : vector<56xf32> to vector<56x1xf32>
    %136 = vector.broadcast %135 : vector<56x1xf32> to vector<56x56xf32>
    %137 = arith.subf %133, %136 : vector<56x56xf32>
    %138 = math.exp %137 : vector<56x56xf32>
    %cst_42 = arith.constant dense<0.000000e+00> : vector<56xf32>
    %139 = vector.multi_reduction <add>, %138, %cst_42 [1] : vector<56x56xf32> to vector<56xf32>
    %140 = vector.shape_cast %139 : vector<56xf32> to vector<56x1xf32>
    %141 = tpu.reciprocal %140 {approx = true} : vector<56x1xf32> -> vector<56x1xf32>
    %142 = vector.broadcast %141 : vector<56x1xf32> to vector<56x56xf32>
    %143 = arith.mulf %138, %142 : vector<56x56xf32>
    %144 = arith.truncf %143 : vector<56x56xf32> to vector<56x56xbf16>
    %cst_43 = arith.constant dense<0.000000e+00> : vector<56x64xf32>
    %145 = tpu.matmul %144, %130, %cst_43 {dimension_numbers = #tpu.dot_dimension_numbers<[1], [0], [0], [1], [0, 0, 1, 1], [], []>} : vector<56x56xbf16>, vector<56x64xbf16>, vector<56x64xf32> -> vector<56x64xf32>
    %146 = tpu.concatenate %55, %73, %91, %109, %127, %145 in 1 : vector<56x64xf32>, vector<56x64xf32>, vector<56x64xf32>, vector<56x64xf32>, vector<56x64xf32>, vector<56x64xf32> -> vector<56x384xf32>
    %147 = arith.truncf %146 : vector<56x384xf32> to vector<56x384xbf16>
    %c0_44 = arith.constant 0 : index
    %c0_45 = arith.constant 0 : index
    %148 = vector.load %arg5[%c0_44, %c0_45] : memref<384x384xbf16, #tpu.memory_space<vmem>>, vector<384x384xbf16>
    %cst_46 = arith.constant dense<0.000000e+00> : vector<56x384xf32>
    %149 = tpu.matmul %147, %148, %cst_46 {dimension_numbers = #tpu.dot_dimension_numbers<[1], [0], [0], [1], [0, 0, 1, 1], [], []>} : vector<56x384xbf16>, vector<384x384xbf16>, vector<56x384xf32> -> vector<56x384xf32>
    %c0_47 = arith.constant 0 : index
    %c0_48 = arith.constant 0 : index
    %150 = vector.load %arg6[%c0_47, %c0_48] : memref<1x384xf32, #tpu.memory_space<vmem>>, vector<1x384xf32>
    %151 = vector.broadcast %150 : vector<1x384xf32> to vector<56x384xf32>
    %152 = arith.addf %149, %151 : vector<56x384xf32>
    %153 = arith.addf %152, %1 : vector<56x384xf32>
    %c0_49 = arith.constant 0 : index
    %c0_50 = arith.constant 0 : index
    %154 = vector.load %arg7[%c0_49, %c0_50] : memref<1x384xf32, #tpu.memory_space<vmem>>, vector<1x384xf32>
    %c0_51 = arith.constant 0 : index
    %c0_52 = arith.constant 0 : index
    %155 = vector.load %arg8[%c0_51, %c0_52] : memref<1x384xf32, #tpu.memory_space<vmem>>, vector<1x384xf32>
    %cst_53 = arith.constant dense<0.000000e+00> : vector<56xf32>
    %156 = vector.multi_reduction <add>, %153, %cst_53 [1] : vector<56x384xf32> to vector<56xf32>
    %157 = vector.shape_cast %156 : vector<56xf32> to vector<56x1xf32>
    %cst_54 = arith.constant 3.840000e+02 : f32
    %158 = vector.broadcast %cst_54 : f32 to vector<56x1xf32>
    %159 = arith.divf %157, %158 : vector<56x1xf32>
    %160 = vector.broadcast %159 : vector<56x1xf32> to vector<56x384xf32>
    %161 = arith.subf %153, %160 : vector<56x384xf32>
    %162 = arith.mulf %161, %161 : vector<56x384xf32>
    %cst_55 = arith.constant dense<0.000000e+00> : vector<56xf32>
    %163 = vector.multi_reduction <add>, %162, %cst_55 [1] : vector<56x384xf32> to vector<56xf32>
    %164 = vector.shape_cast %163 : vector<56xf32> to vector<56x1xf32>
    %cst_56 = arith.constant 3.840000e+02 : f32
    %165 = vector.broadcast %cst_56 : f32 to vector<56x1xf32>
    %166 = arith.divf %164, %165 : vector<56x1xf32>
    %cst_57 = arith.constant 9.99999974E-6 : f32
    %167 = vector.broadcast %cst_57 : f32 to vector<56x1xf32>
    %168 = arith.addf %166, %167 : vector<56x1xf32>
    %169 = math.rsqrt %168 : vector<56x1xf32>
    %170 = vector.broadcast %169 : vector<56x1xf32> to vector<56x384xf32>
    %171 = arith.mulf %161, %170 : vector<56x384xf32>
    %172 = vector.broadcast %154 : vector<1x384xf32> to vector<56x384xf32>
    %173 = arith.mulf %171, %172 : vector<56x384xf32>
    %174 = vector.broadcast %155 : vector<1x384xf32> to vector<56x384xf32>
    %175 = arith.addf %173, %174 : vector<56x384xf32>
    %176 = arith.truncf %175 : vector<56x384xf32> to vector<56x384xbf16>
    %c0_58 = arith.constant 0 : index
    %c0_59 = arith.constant 0 : index
    %177 = vector.load %arg9[%c0_58, %c0_59] : memref<384x1536xbf16, #tpu.memory_space<vmem>>, vector<384x1536xbf16>
    %cst_60 = arith.constant dense<0.000000e+00> : vector<56x1536xf32>
    %178 = tpu.matmul %176, %177, %cst_60 {dimension_numbers = #tpu.dot_dimension_numbers<[1], [0], [0], [1], [0, 0, 1, 1], [], []>} : vector<56x384xbf16>, vector<384x1536xbf16>, vector<56x1536xf32> -> vector<56x1536xf32>
    %c0_61 = arith.constant 0 : index
    %c0_62 = arith.constant 0 : index
    %179 = vector.load %arg10[%c0_61, %c0_62] : memref<1x1536xf32, #tpu.memory_space<vmem>>, vector<1x1536xf32>
    %180 = vector.broadcast %179 : vector<1x1536xf32> to vector<56x1536xf32>
    %181 = arith.addf %178, %180 : vector<56x1536xf32>
    %cst_63 = arith.constant 0.000000e+00 : f32
    %182 = vector.broadcast %cst_63 : f32 to vector<56x1536xf32>
    %183 = arith.maximumf %181, %182 : vector<56x1536xf32>
    %184 = arith.truncf %183 : vector<56x1536xf32> to vector<56x1536xbf16>
    %c0_64 = arith.constant 0 : index
    %c0_65 = arith.constant 0 : index
    %185 = vector.load %arg11[%c0_64, %c0_65] : memref<1536x384xbf16, #tpu.memory_space<vmem>>, vector<1536x384xbf16>
    %cst_66 = arith.constant dense<0.000000e+00> : vector<56x384xf32>
    %186 = tpu.matmul %184, %185, %cst_66 {dimension_numbers = #tpu.dot_dimension_numbers<[1], [0], [0], [1], [0, 0, 1, 1], [], []>} : vector<56x1536xbf16>, vector<1536x384xbf16>, vector<56x384xf32> -> vector<56x384xf32>
    %c0_67 = arith.constant 0 : index
    %c0_68 = arith.constant 0 : index
    %187 = vector.load %arg12[%c0_67, %c0_68] : memref<1x384xf32, #tpu.memory_space<vmem>>, vector<1x384xf32>
    %188 = vector.broadcast %187 : vector<1x384xf32> to vector<56x384xf32>
    %189 = arith.addf %186, %188 : vector<56x384xf32>
    %190 = arith.addf %189, %153 : vector<56x384xf32>
    %c0_69 = arith.constant 0 : index
    %c0_70 = arith.constant 0 : index
    %c0_71 = arith.constant 0 : index
    %191 = vector.load %arg13[%c0_69, %c0_70, %c0_71] : memref<1x56x384xf32, #tpu.memory_space<vmem>>, vector<1x56x384xf32>
    %192 = vector.shape_cast %191 : vector<1x56x384xf32> to vector<56x384xf32>
    %193 = vector.shape_cast %190 : vector<56x384xf32> to vector<1x56x384xf32>
    tpu.vector_store %arg13[%c0_69, %c0_70, %c0_71], %193 {strides = array<i32>} : memref<1x56x384xf32, #tpu.memory_space<vmem>>, vector<1x56x384xf32>,
    return
  }
  func.func @transform_0(%arg0: i32) -> (i32, i32, i32) {
    %c0_i32 = arith.constant 0 : i32
    %c0_i32_0 = arith.constant 0 : i32
    %c0_i32_1 = arith.constant 0 : i32
    return %arg0, %c0_i32, %c0_i32_0 : i32, i32, i32
  }
  func.func @transform_1(%arg0: i32) -> (i32, i32) {
    %c0_i32 = arith.constant 0 : i32
    %c0_i32_0 = arith.constant 0 : i32
    %c0_i32_1 = arith.constant 0 : i32
    return %c0_i32, %c0_i32_0 : i32, i32
  }
  func.func @transform_2(%arg0: i32) -> (i32, i32) {
    %c0_i32 = arith.constant 0 : i32
    %c0_i32_0 = arith.constant 0 : i32
    %c0_i32_1 = arith.constant 0 : i32
    return %c0_i32, %c0_i32_0 : i32, i32
  }
  func.func @transform_3(%arg0: i32) -> (i32, i32) {
    %c0_i32 = arith.constant 0 : i32
    %c0_i32_0 = arith.constant 0 : i32
    %c0_i32_1 = arith.constant 0 : i32
    return %c0_i32, %c0_i32_0 : i32, i32
  }
  func.func @transform_4(%arg0: i32) -> (i32, i32) {
    %c0_i32 = arith.constant 0 : i32
    %c0_i32_0 = arith.constant 0 : i32
    %c0_i32_1 = arith.constant 0 : i32
    return %c0_i32, %c0_i32_0 : i32, i32
  }
  func.func @transform_5(%arg0: i32) -> (i32, i32) {
    %c0_i32 = arith.constant 0 : i32
    %c0_i32_0 = arith.constant 0 : i32
    %c0_i32_1 = arith.constant 0 : i32
    return %c0_i32, %c0_i32_0 : i32, i32
  }
  func.func @transform_6(%arg0: i32) -> (i32, i32) {
    %c0_i32 = arith.constant 0 : i32
    %c0_i32_0 = arith.constant 0 : i32
    %c0_i32_1 = arith.constant 0 : i32
    return %c0_i32, %c0_i32_0 : i32, i32
  }
  func.func @transform_7(%arg0: i32) -> (i32, i32) {
    %c0_i32 = arith.constant 0 : i32
    %c0_i32_0 = arith.constant 0 : i32
    %c0_i32_1 = arith.constant 0 : i32
    return %c0_i32, %c0_i32_0 : i32, i32
  }
  func.func @transform_8(%arg0: i32) -> (i32, i32) {
    %c0_i32 = arith.constant 0 : i32
    %c0_i32_0 = arith.constant 0 : i32
    %c0_i32_1 = arith.constant 0 : i32
    return %c0_i32, %c0_i32_0 : i32, i32
  }
  func.func @transform_9(%arg0: i32) -> (i32, i32) {
    %c0_i32 = arith.constant 0 : i32
    %c0_i32_0 = arith.constant 0 : i32
    %c0_i32_1 = arith.constant 0 : i32
    return %c0_i32, %c0_i32_0 : i32, i32
  }
  func.func @transform_10(%arg0: i32) -> (i32, i32) {
    %c0_i32 = arith.constant 0 : i32
    %c0_i32_0 = arith.constant 0 : i32
    %c0_i32_1 = arith.constant 0 : i32
    return %c0_i32, %c0_i32_0 : i32, i32
  }
  func.func @transform_11(%arg0: i32) -> (i32, i32) {
    %c0_i32 = arith.constant 0 : i32
    %c0_i32_0 = arith.constant 0 : i32
    %c0_i32_1 = arith.constant 0 : i32
    return %c0_i32, %c0_i32_0 : i32, i32
  }
  func.func @transform_12(%arg0: i32) -> (i32, i32, i32) {
    %c0_i32 = arith.constant 0 : i32
    %c0_i32_0 = arith.constant 0 : i32
    %c0_i32_1 = arith.constant 0 : i32
    return %arg0, %c0_i32, %c0_i32_0 : i32, i32, i32
  }
}

</mosaic_0001>

<llo_original>
// kernel: tpu_custom_call.1
$region0: #{tpu_custom_call.1}
  #allocation0 [shape = 'u32[]', space=smem, size = 0x4, offset = 0x4, fixed_abs, tag = 'smem constant byte address 0x4 - core index']
  #allocation1 [shape = 'u32[144,128]{1,0:T(1,128)}', space=vmem, size = 0x12000, scoped, tag = 'internal scratch']
  %s0 = inlined_call_operand.hbm [shape: f32[2,56,384], index: 0, kind: input, shape index: {}]
  %s1 = inlined_call_operand.hbm [shape: f32[1,384], index: 1, kind: input, shape index: {}]
  %s2 = inlined_call_operand.hbm [shape: f32[1,384], index: 2, kind: input, shape index: {}]
  %s3 = inlined_call_operand.hbm [shape: bf16[384,1152], index: 3, kind: input, shape index: {}]
  %s4 = inlined_call_operand.hbm [shape: bf16[384,384], index: 4, kind: input, shape index: {}]
  %s5 = inlined_call_operand.hbm [shape: f32[1,384], index: 5, kind: input, shape index: {}]
  %s6 = inlined_call_operand.hbm [shape: f32[1,384], index: 6, kind: input, shape index: {}]
  %s7 = inlined_call_operand.hbm [shape: f32[1,384], index: 7, kind: input, shape index: {}]
  %s8 = inlined_call_operand.hbm [shape: bf16[384,1536], index: 8, kind: input, shape index: {}]
  %s9 = inlined_call_operand.hbm [shape: f32[1,1536], index: 9, kind: input, shape index: {}]
  %s10 = inlined_call_operand.hbm [shape: bf16[1536,384], index: 10, kind: input, shape index: {}]
  %s11 = inlined_call_operand.hbm [shape: f32[1,384], index: 11, kind: input, shape index: {}]
  %s12 = inlined_call_operand.hbm [shape: f32[2,56,384], index: 12, kind: output, shape index: {}]
  %s13 = sld [smem:[#allocation0]]
  $region129: #{tpu_custom_call.1} parent=0
    _
  %s15 = ssub.s32 1, %s13
  %s16 = scalar_select 0, %s15, %s13
  $region1: #{tpu_custom_call.1} parent=0
    #allocation2 [shape = 'u8[172032]{0}', space=vmem, size = 0x2a000, scoped, tag = 'input window, operand 0']
    #allocation3 [shape = 's32[2]{0}', space=sflag, size = 0x8, scoped, tag = 'scoped memory for tpu_custom_call.1']
    #allocation4 [shape = 's32[2]{0}', space=sflag, size = 0x8, scoped, tag = 'scoped memory for tpu_custom_call.1']
    #allocation5 [shape = 'u8[1536]{0}', space=vmem, size = 0x800, scoped, tag = 'input window, operand 1, single buffered']
    #allocation6 [shape = 's32[1]{0}', space=sflag, size = 0x4, scoped, tag = 'scoped memory for tpu_custom_call.1']
    #allocation7 [shape = 'u8[1536]{0}', space=vmem, size = 0x800, scoped, tag = 'input window, operand 2, single buffered']
    #allocation8 [shape = 'u8[884736]{0}', space=vmem, size = 0xd8000, scoped, tag = 'input window, operand 3, single buffered']
    #allocation9 [shape = 's32[1]{0}', space=sflag, size = 0x4, scoped, tag = 'scoped memory for tpu_custom_call.1']
    #allocation10 [shape = 'u8[294912]{0}', space=vmem, size = 0x48000, scoped, tag = 'input window, operand 4, single buffered']
    #allocation11 [shape = 'u8[1536]{0}', space=vmem, size = 0x800, scoped, tag = 'input window, operand 5, single buffered']
    #allocation12 [shape = 's32[1]{0}', space=sflag, size = 0x4, scoped, tag = 'scoped memory for tpu_custom_call.1']
    #allocation13 [shape = 'u8[1536]{0}', space=vmem, size = 0x800, scoped, tag = 'input window, operand 6, single buffered']
    #allocation14 [shape = 'u8[1536]{0}', space=vmem, size = 0x800, scoped, tag = 'input window, operand 7, single buffered']
    #allocation15 [shape = 's32[1]{0}', space=sflag, size = 0x4, scoped, tag = 'scoped memory for tpu_custom_call.1']
    #allocation16 [shape = 'u8[1179648]{0}', space=vmem, size = 0x120000, scoped, tag = 'input window, operand 8, single buffered']
    #allocation17 [shape = 'u8[6144]{0}', space=vmem, size = 0x1800, scoped, tag = 'input window, operand 9, single buffered']
    #allocation18 [shape = 's32[1]{0}', space=sflag, size = 0x4, scoped, tag = 'scoped memory for tpu_custom_call.1']
    #allocation19 [shape = 'u8[1179648]{0}', space=vmem, size = 0x120000, scoped, tag = 'input window, operand 10, single buffered']
    #allocation20 [shape = 'u8[1536]{0}', space=vmem, size = 0x800, scoped, tag = 'input window, operand 11, single buffered']
    #allocation21 [shape = 's32[1]{0}', space=sflag, size = 0x4, scoped, tag = 'scoped memory for tpu_custom_call.1']
    #allocation22 [shape = 'u8[172032]{0}', space=vmem, size = 0x2a000, scoped, tag = 'output window, operand 0']
    %17 = vsyncpa [#allocation3], 0
    %s18 = scalar_lea.sflag [#allocation3], 1
    %19 = vsyncpa %s18, 0
    %20 = vsyncpa [#allocation6], 0
    %21 = vsyncpa [#allocation9], 0
    %22 = vsyncpa [#allocation12], 0
    %23 = vsyncpa [#allocation15], 0
    %24 = vsyncpa [#allocation18], 0
    %25 = vsyncpa [#allocation21], 0
    %26 = vsyncpa [#allocation4], 0
    %s27 = scalar_lea.sflag [#allocation4], 1
    %28 = vsyncpa %s27, 0
    loop: start=0, step=1, limit=4
    $region2: #{tpu_custom_call.1} parent=1 // loop_pre_header
      _
    $region3: #{tpu_custom_call.1} parent=1 // loop_header
      %s30 = sphi 0, %s34
      %p31 = scmp.ge.s32.totalorder %s30, 4
      %s40 = sphi 0, %s42
      %s43 = sphi 0, %s40
      %s44 = sphi 0, %s43
      %s60 = sphi 0, %s44
      %s64 = sphi 0, %s64
      %s66 = sphi 0, %s64
      %s67 = sphi 0, %s66
      %s81 = sphi 0, %s67
      %s85 = sphi 0, %s85
      %s87 = sphi 0, %s85
      %s88 = sphi 0, %s87
      %s102 = sphi 0, %s88
      %s106 = sphi 0, %s106
      %s108 = sphi 0, %s106
      %s109 = sphi 0, %s108
      %s123 = sphi 0, %s109
      %s127 = sphi 0, %s127
      %s129 = sphi 0, %s127
      %s130 = sphi 0, %s129
      %s144 = sphi 0, %s130
      %s148 = sphi 0, %s148
      %s150 = sphi 0, %s148
      %s151 = sphi 0, %s150
      %s165 = sphi 0, %s151
      %s169 = sphi 0, %s169
      %s171 = sphi 0, %s169
      %s172 = sphi 0, %s171
      %s186 = sphi 0, %s172
      %s190 = sphi 0, %s190
      %s192 = sphi 0, %s190
      %s193 = sphi 0, %s192
      %s207 = sphi 0, %s193
      %s211 = sphi 0, %s211
      %s213 = sphi 0, %s211
      %s214 = sphi 0, %s213
      %s228 = sphi 0, %s214
      %s232 = sphi 0, %s232
      %s234 = sphi 0, %s232
      %s235 = sphi 0, %s234
      %s249 = sphi 0, %s235
      %s253 = sphi 0, %s253
      %s255 = sphi 0, %s253
      %s256 = sphi 0, %s255
      %s270 = sphi 0, %s256
      %s274 = sphi 0, %s274
      %s276 = sphi 0, %s274
      %s277 = sphi 0, %s276
      %s291 = sphi 0, %s277
      %s297 = sphi 0, %s299
      %s300 = sphi 0, %s297
      %s301 = sphi 0, %s300
      %s317 = sphi 0, %s301
    $region4: #{tpu_custom_call.1} parent=1 // loop_header_branch
      %33 = sbr.rel (%p31) target = $region8
    $region5: #{tpu_custom_call.1} parent=1 // loop_body
      %s35 = ssub.s32 %s30, 1
      %s36 = ssub.s32 %s30, 2
      %s37 = sadd.s32 %s30, 1
      %s38 = ssub.s32 %s30, %s37
      %p39 = scmp.eq.s32.totalorder %s38, 0
      %s41 = sadd.s32 %s40, 1
      %s42 = scalar_select %p39, %s40, %s41
      %p45 = pneg %p39
      %p46 = scmp.eq.s32.totalorder %s30, 1
      %p47 = por %p45, %p46
      %p48 = scmp.ne.s32.totalorder %s40, %s43
      %p49 = scmp.eq.s32.totalorder %s30, 0
      %p50 = por %p48, %p49
      %p51 = scmp.ne.s32.totalorder %s40, %s43
      %p52 = scmp.eq.s32.totalorder %s35, 1
      %p53 = por %p51, %p52
      %p54 = scmp.ne.s32.totalorder %s43, %s44
      %p55 = scmp.eq.s32.totalorder %s35, 0
      %p56 = por %p54, %p55
      %p57 = scmp.ne.s32.totalorder %s43, %s44
      %p58 = scmp.eq.s32.totalorder %s36, 1
      %p59 = por %p57, %p58
      %p61 = scmp.ne.s32.totalorder %s44, %s60
      %p62 = scmp.eq.s32.totalorder %s36, 0
      %p63 = por %p61, %p62
      %s65 = sadd.s32 %s64, 1
      %p68 = scmp.eq.s32.totalorder %s30, 1
      %p69 = scmp.ne.s32.totalorder %s64, %s66
      %p70 = scmp.eq.s32.totalorder %s30, 0
      %p71 = por %p69, %p70
      %p72 = scmp.ne.s32.totalorder %s64, %s66
      %p73 = scmp.eq.s32.totalorder %s35, 1
      %p74 = por %p72, %p73
      %p75 = scmp.ne.s32.totalorder %s66, %s67
      %p76 = scmp.eq.s32.totalorder %s35, 0
      %p77 = por %p75, %p76
      %p78 = scmp.ne.s32.totalorder %s66, %s67
      %p79 = scmp.eq.s32.totalorder %s36, 1
      %p80 = por %p78, %p79
      %p82 = scmp.ne.s32.totalorder %s67, %s81
      %p83 = scmp.eq.s32.totalorder %s36, 0
      %p84 = por %p82, %p83
      %s86 = sadd.s32 %s85, 1
      %p89 = scmp.eq.s32.totalorder %s30, 1
      %p90 = scmp.ne.s32.totalorder %s85, %s87
      %p91 = scmp.eq.s32.totalorder %s30, 0
      %p92 = por %p90, %p91
      %p93 = scmp.ne.s32.totalorder %s85, %s87
      %p94 = scmp.eq.s32.totalorder %s35, 1
      %p95 = por %p93, %p94
      %p96 = scmp.ne.s32.totalorder %s87, %s88
      %p97 = scmp.eq.s32.totalorder %s35, 0
      %p98 = por %p96, %p97
      %p99 = scmp.ne.s32.totalorder %s87, %s88
      %p100 = scmp.eq.s32.totalorder %s36, 1
      %p101 = por %p99, %p100
      %p103 = scmp.ne.s32.totalorder %s88, %s102
      %p104 = scmp.eq.s32.totalorder %s36, 0
      %p105 = por %p103, %p104
      %s107 = sadd.s32 %s106, 1
      %p110 = scmp.eq.s32.totalorder %s30, 1
      %p111 = scmp.ne.s32.totalorder %s106, %s108
      %p112 = scmp.eq.s32.totalorder %s30, 0
      %p113 = por %p111, %p112
      %p114 = scmp.ne.s32.totalorder %s106, %s108
      %p115 = scmp.eq.s32.totalorder %s35, 1
      %p116 = por %p114, %p115
      %p117 = scmp.ne.s32.totalorder %s108, %s109
      %p118 = scmp.eq.s32.totalorder %s35, 0
      %p119 = por %p117, %p118
      %p120 = scmp.ne.s32.totalorder %s108, %s109
      %p121 = scmp.eq.s32.totalorder %s36, 1
      %p122 = por %p120, %p121
      %p124 = scmp.ne.s32.totalorder %s109, %s123
      %p125 = scmp.eq.s32.totalorder %s36, 0
      %p126 = por %p124, %p125
      %s128 = sadd.s32 %s127, 1
      %p131 = scmp.eq.s32.totalorder %s30, 1
      %p132 = scmp.ne.s32.totalorder %s127, %s129
      %p133 = scmp.eq.s32.totalorder %s30, 0
      %p134 = por %p132, %p133
      %p135 = scmp.ne.s32.totalorder %s127, %s129
      %p136 = scmp.eq.s32.totalorder %s35, 1
      %p137 = por %p135, %p136
      %p138 = scmp.ne.s32.totalorder %s129, %s130
      %p139 = scmp.eq.s32.totalorder %s35, 0
      %p140 = por %p138, %p139
      %p141 = scmp.ne.s32.totalorder %s129, %s130
      %p142 = scmp.eq.s32.totalorder %s36, 1
      %p143 = por %p141, %p142
      %p145 = scmp.ne.s32.totalorder %s130, %s144
      %p146 = scmp.eq.s32.totalorder %s36, 0
      %p147 = por %p145, %p146
      %s149 = sadd.s32 %s148, 1
      %p152 = scmp.eq.s32.totalorder %s30, 1
      %p153 = scmp.ne.s32.totalorder %s148, %s150
      %p154 = scmp.eq.s32.totalorder %s30, 0
      %p155 = por %p153, %p154
      %p156 = scmp.ne.s32.totalorder %s148, %s150
      %p157 = scmp.eq.s32.totalorder %s35, 1
      %p158 = por %p156, %p157
      %p159 = scmp.ne.s32.totalorder %s150, %s151
      %p160 = scmp.eq.s32.totalorder %s35, 0
      %p161 = por %p159, %p160
      %p162 = scmp.ne.s32.totalorder %s150, %s151
      %p163 = scmp.eq.s32.totalorder %s36, 1
      %p164 = por %p162, %p163
      %p166 = scmp.ne.s32.totalorder %s151, %s165
      %p167 = scmp.eq.s32.totalorder %s36, 0
      %p168 = por %p166, %p167
      %s170 = sadd.s32 %s169, 1
      %p173 = scmp.eq.s32.totalorder %s30, 1
      %p174 = scmp.ne.s32.totalorder %s169, %s171
      %p175 = scmp.eq.s32.totalorder %s30, 0
      %p176 = por %p174, %p175
      %p177 = scmp.ne.s32.totalorder %s169, %s171
      %p178 = scmp.eq.s32.totalorder %s35, 1
      %p179 = por %p177, %p178
      %p180 = scmp.ne.s32.totalorder %s171, %s172
      %p181 = scmp.eq.s32.totalorder %s35, 0
      %p182 = por %p180, %p181
      %p183 = scmp.ne.s32.totalorder %s171, %s172
      %p184 = scmp.eq.s32.totalorder %s36, 1
      %p185 = por %p183, %p184
      %p187 = scmp.ne.s32.totalorder %s172, %s186
      %p188 = scmp.eq.s32.totalorder %s36, 0
      %p189 = por %p187, %p188
      %s191 = sadd.s32 %s190, 1
      %p194 = scmp.eq.s32.totalorder %s30, 1
      %p195 = scmp.ne.s32.totalorder %s190, %s192
      %p196 = scmp.eq.s32.totalorder %s30, 0
      %p197 = por %p195, %p196
      %p198 = scmp.ne.s32.totalorder %s190, %s192
      %p199 = scmp.eq.s32.totalorder %s35, 1
      %p200 = por %p198, %p199
      %p201 = scmp.ne.s32.totalorder %s192, %s193
      %p202 = scmp.eq.s32.totalorder %s35, 0
      %p203 = por %p201, %p202
      %p204 = scmp.ne.s32.totalorder %s192, %s193
      %p205 = scmp.eq.s32.totalorder %s36, 1
      %p206 = por %p204, %p205
      %p208 = scmp.ne.s32.totalorder %s193, %s207
      %p209 = scmp.eq.s32.totalorder %s36, 0
      %p210 = por %p208, %p209
      %s212 = sadd.s32 %s211, 1
      %p215 = scmp.eq.s32.totalorder %s30, 1
      %p216 = scmp.ne.s32.totalorder %s211, %s213
      %p217 = scmp.eq.s32.totalorder %s30, 0
      %p218 = por %p216, %p217
      %p219 = scmp.ne.s32.totalorder %s211, %s213
      %p220 = scmp.eq.s32.totalorder %s35, 1
      %p221 = por %p219, %p220
      %p222 = scmp.ne.s32.totalorder %s213, %s214
      %p223 = scmp.eq.s32.totalorder %s35, 0
      %p224 = por %p222, %p223
      %p225 = scmp.ne.s32.totalorder %s213, %s214
      %p226 = scmp.eq.s32.totalorder %s36, 1
      %p227 = por %p225, %p226
      %p229 = scmp.ne.s32.totalorder %s214, %s228
      %p230 = scmp.eq.s32.totalorder %s36, 0
      %p231 = por %p229, %p230
      %s233 = sadd.s32 %s232, 1
      %p236 = scmp.eq.s32.totalorder %s30, 1
      %p237 = scmp.ne.s32.totalorder %s232, %s234
      %p238 = scmp.eq.s32.totalorder %s30, 0
      %p239 = por %p237, %p238
      %p240 = scmp.ne.s32.totalorder %s232, %s234
      %p241 = scmp.eq.s32.totalorder %s35, 1
      %p242 = por %p240, %p241
      %p243 = scmp.ne.s32.totalorder %s234, %s235
      %p244 = scmp.eq.s32.totalorder %s35, 0
      %p245 = por %p243, %p244
      %p246 = scmp.ne.s32.totalorder %s234, %s235
      %p247 = scmp.eq.s32.totalorder %s36, 1
      %p248 = por %p246, %p247
      %p250 = scmp.ne.s32.totalorder %s235, %s249
      %p251 = scmp.eq.s32.totalorder %s36, 0
      %p252 = por %p250, %p251
      %s254 = sadd.s32 %s253, 1
      %p257 = scmp.eq.s32.totalorder %s30, 1
      %p258 = scmp.ne.s32.totalorder %s253, %s255
      %p259 = scmp.eq.s32.totalorder %s30, 0
      %p260 = por %p258, %p259
      %p261 = scmp.ne.s32.totalorder %s253, %s255
      %p262 = scmp.eq.s32.totalorder %s35, 1
      %p263 = por %p261, %p262
      %p264 = scmp.ne.s32.totalorder %s255, %s256
      %p265 = scmp.eq.s32.totalorder %s35, 0
      %p266 = por %p264, %p265
      %p267 = scmp.ne.s32.totalorder %s255, %s256
      %p268 = scmp.eq.s32.totalorder %s36, 1
      %p269 = por %p267, %p268
      %p271 = scmp.ne.s32.totalorder %s256, %s270
      %p272 = scmp.eq.s32.totalorder %s36, 0
      %p273 = por %p271, %p272
      %s275 = sadd.s32 %s274, 1
      %p278 = scmp.eq.s32.totalorder %s30, 1
      %p279 = scmp.ne.s32.totalorder %s274, %s276
      %p280 = scmp.eq.s32.totalorder %s30, 0
      %p281 = por %p279, %p280
      %p282 = scmp.ne.s32.totalorder %s274, %s276
      %p283 = scmp.eq.s32.totalorder %s35, 1
      %p284 = por %p282, %p283
      %p285 = scmp.ne.s32.totalorder %s276, %s277
      %p286 = scmp.eq.s32.totalorder %s35, 0
      %p287 = por %p285, %p286
      %p288 = scmp.ne.s32.totalorder %s276, %s277
      %p289 = scmp.eq.s32.totalorder %s36, 1
      %p290 = por %p288, %p289
      %p292 = scmp.ne.s32.totalorder %s277, %s291
      %p293 = scmp.eq.s32.totalorder %s36, 0
      %p294 = por %p292, %p293
      %s295 = ssub.s32 %s30, %s37
      %p296 = scmp.eq.s32.totalorder %s295, 0
      %s298 = sadd.s32 %s297, 1
      %s299 = scalar_select %p296, %s297, %s298
      %p302 = pneg %p296
      %p303 = scmp.eq.s32.totalorder %s30, 1
      %p304 = por %p302, %p303
      %p305 = scmp.ne.s32.totalorder %s297, %s300
      %p306 = scmp.eq.s32.totalorder %s30, 0
      %p307 = por %p305, %p306
      %p308 = scmp.ne.s32.totalorder %s297, %s300
      %p309 = scmp.eq.s32.totalorder %s35, 1
      %p310 = por %p308, %p309
      %p311 = scmp.ne.s32.totalorder %s300, %s301
      %p312 = scmp.eq.s32.totalorder %s35, 0
      %p313 = por %p311, %p312
      %p314 = scmp.ne.s32.totalorder %s300, %s301
      %p315 = scmp.eq.s32.totalorder %s36, 1
      %p316 = por %p314, %p315
      %p318 = scmp.ne.s32.totalorder %s301, %s317
      %p319 = scmp.eq.s32.totalorder %s36, 0
      %p320 = por %p318, %p319
      %p321 = scmp.le.s32.totalorder 1, %s30
      %p322 = scmp.lt.s32.totalorder %s30, 3
      %p323 = pnand %p321, %p322
      %p324 = pneg %p323
      // Predicated region
      $region9: #{tpu_custom_call.1} parent=5 // pred_check
        _
      $region10: #{tpu_custom_call.1} parent=5 // pred_check_branch
        %326 = sbr.rel (%p323) target = $region12
      $region11: #{tpu_custom_call.1} parent=5 // pred_region
        %s327 = ssub.s32 %s30, 1
        // Predicated region
        $region13: #{tpu_custom_call.1} parent=11 // pred_check
          %p328 = pneg %p77
        $region14: #{tpu_custom_call.1} parent=11 // pred_check_branch
          %330 = sbr.rel (%p328) target = $region16
        $region15: #{tpu_custom_call.1} parent=11 // pred_region
          %s332 = ssub.s32 48, 48
          %333 = vsyncadd [#allocation6], %s332
          %s335 = sshll.u32 [#allocation5], 4
          %s336 = int_to_ptr.vmem [resolvable:$true] %s335
          %338 = dma.hbm_to_vmem [thread:$0]  %s1, 48, %s336, [#allocation6]
        $region16: #{tpu_custom_call.1} parent=11 // pred_fallthru
          _
        // Predicated region
        $region17: #{tpu_custom_call.1} parent=11 // pred_check
          %p339 = pneg %p98
        $region18: #{tpu_custom_call.1} parent=11 // pred_check_branch
          %341 = sbr.rel (%p339) target = $region20
        $region19: #{tpu_custom_call.1} parent=11 // pred_region
          %s343 = ssub.s32 48, 48
          %344 = vsyncadd [#allocation6], %s343
          %s346 = sshll.u32 [#allocation7], 4
          %s347 = int_to_ptr.vmem [resolvable:$true] %s346
          %349 = dma.hbm_to_vmem [thread:$0]  %s2, 48, %s347, [#allocation6]
        $region20: #{tpu_custom_call.1} parent=11 // pred_fallthru
          _
        // Predicated region
        $region21: #{tpu_custom_call.1} parent=11 // pred_check
          %p350 = pneg %p119
        $region22: #{tpu_custom_call.1} parent=11 // pred_check_branch
          %352 = sbr.rel (%p350) target = $region24
        $region23: #{tpu_custom_call.1} parent=11 // pred_region
          %s354 = ssub.s32 27648, 27648
          %355 = vsyncadd [#allocation9], %s354
          %s356 = sshll.u32 [#allocation8], 4
          %s357 = int_to_ptr.vmem [resolvable:$true] %s356
          %362 = dma.hbm_to_vmem [thread:$0]  %s3, 27648, %s357, [#allocation9], 576, 576, 36
        $region24: #{tpu_custom_call.1} parent=11 // pred_fallthru
          _
        // Predicated region
        $region25: #{tpu_custom_call.1} parent=11 // pred_check
          %p363 = pneg %p140
        $region26: #{tpu_custom_call.1} parent=11 // pred_check_branch
          %365 = sbr.rel (%p363) target = $region28
        $region27: #{tpu_custom_call.1} parent=11 // pred_region
          %s367 = ssub.s32 9216, 9216
          %368 = vsyncadd [#allocation9], %s367
          %s369 = sshll.u32 [#allocation10], 4
          %s370 = int_to_ptr.vmem [resolvable:$true] %s369
          %375 = dma.hbm_to_vmem [thread:$0]  %s4, 9216, %s370, [#allocation9], 192, 192, 12
        $region28: #{tpu_custom_call.1} parent=11 // pred_fallthru
          _
        // Predicated region
        $region29: #{tpu_custom_call.1} parent=11 // pred_check
          %p376 = pneg %p161
        $region30: #{tpu_custom_call.1} parent=11 // pred_check_branch
          %378 = sbr.rel (%p376) target = $region32
        $region31: #{tpu_custom_call.1} parent=11 // pred_region
          %s380 = ssub.s32 48, 48
          %381 = vsyncadd [#allocation12], %s380
          %s383 = sshll.u32 [#allocation11], 4
          %s384 = int_to_ptr.vmem [resolvable:$true] %s383
          %386 = dma.hbm_to_vmem [thread:$0]  %s5, 48, %s384, [#allocation12]
        $region32: #{tpu_custom_call.1} parent=11 // pred_fallthru
          _
        // Predicated region
        $region33: #{tpu_custom_call.1} parent=11 // pred_check
          %p387 = pneg %p182
        $region34: #{tpu_custom_call.1} parent=11 // pred_check_branch
          %389 = sbr.rel (%p387) target = $region36
        $region35: #{tpu_custom_call.1} parent=11 // pred_region
          %s391 = ssub.s32 48, 48
          %392 = vsyncadd [#allocation12], %s391
          %s394 = sshll.u32 [#allocation13], 4
          %s395 = int_to_ptr.vmem [resolvable:$true] %s394
          %397 = dma.hbm_to_vmem [thread:$0]  %s6, 48, %s395, [#allocation12]
        $region36: #{tpu_custom_call.1} parent=11 // pred_fallthru
          _
        // Predicated region
        $region37: #{tpu_custom_call.1} parent=11 // pred_check
          %p398 = pneg %p203
        $region38: #{tpu_custom_call.1} parent=11 // pred_check_branch
          %400 = sbr.rel (%p398) target = $region40
        $region39: #{tpu_custom_call.1} parent=11 // pred_region
          %s402 = ssub.s32 48, 48
          %403 = vsyncadd [#allocation15], %s402
          %s405 = sshll.u32 [#allocation14], 4
          %s406 = int_to_ptr.vmem [resolvable:$true] %s405
          %408 = dma.hbm_to_vmem [thread:$0]  %s7, 48, %s406, [#allocation15]
        $region40: #{tpu_custom_call.1} parent=11 // pred_fallthru
          _
        // Predicated region
        $region41: #{tpu_custom_call.1} parent=11 // pred_check
          %p409 = pneg %p224
        $region42: #{tpu_custom_call.1} parent=11 // pred_check_branch
          %411 = sbr.rel (%p409) target = $region44
        $region43: #{tpu_custom_call.1} parent=11 // pred_region
          %s413 = ssub.s32 36864, 36864
          %414 = vsyncadd [#allocation15], %s413
          %s415 = sshll.u32 [#allocation16], 4
          %s416 = int_to_ptr.vmem [resolvable:$true] %s415
          %421 = dma.hbm_to_vmem [thread:$0]  %s8, 36864, %s416, [#allocation15], 768, 768, 48
        $region44: #{tpu_custom_call.1} parent=11 // pred_fallthru
          _
        // Predicated region
        $region45: #{tpu_custom_call.1} parent=11 // pred_check
          %p422 = pneg %p245
        $region46: #{tpu_custom_call.1} parent=11 // pred_check_branch
          %424 = sbr.rel (%p422) target = $region48
        $region47: #{tpu_custom_call.1} parent=11 // pred_region
          %s426 = ssub.s32 192, 192
          %427 = vsyncadd [#allocation18], %s426
          %s429 = sshll.u32 [#allocation17], 4
          %s430 = int_to_ptr.vmem [resolvable:$true] %s429
          %432 = dma.hbm_to_vmem [thread:$0]  %s9, 192, %s430, [#allocation18]
        $region48: #{tpu_custom_call.1} parent=11 // pred_fallthru
          _
        // Predicated region
        $region49: #{tpu_custom_call.1} parent=11 // pred_check
          %p433 = pneg %p266
        $region50: #{tpu_custom_call.1} parent=11 // pred_check_branch
          %435 = sbr.rel (%p433) target = $region52
        $region51: #{tpu_custom_call.1} parent=11 // pred_region
          %s437 = ssub.s32 36864, 36864
          %438 = vsyncadd [#allocation18], %s437
          %s439 = sshll.u32 [#allocation19], 4
          %s440 = int_to_ptr.vmem [resolvable:$true] %s439
          %445 = dma.hbm_to_vmem [thread:$0]  %s10, 36864, %s440, [#allocation18], 192, 192, 12
        $region52: #{tpu_custom_call.1} parent=11 // pred_fallthru
          _
        // Predicated region
        $region53: #{tpu_custom_call.1} parent=11 // pred_check
          %p446 = pneg %p287
        $region54: #{tpu_custom_call.1} parent=11 // pred_check_branch
          %448 = sbr.rel (%p446) target = $region56
        $region55: #{tpu_custom_call.1} parent=11 // pred_region
          %s450 = ssub.s32 48, 48
          %451 = vsyncadd [#allocation21], %s450
          %s453 = sshll.u32 [#allocation20], 4
          %s454 = int_to_ptr.vmem [resolvable:$true] %s453
          %456 = dma.hbm_to_vmem [thread:$0]  %s11, 48, %s454, [#allocation21]
        $region56: #{tpu_custom_call.1} parent=11 // pred_fallthru
          _
      $region12: #{tpu_custom_call.1} parent=5 // pred_fallthru
        _
      %p457 = scmp.lt.s32.totalorder %s30, 2
      // Predicated region
      $region57: #{tpu_custom_call.1} parent=5 // pred_check
        %p458 = pneg %p457
      $region58: #{tpu_custom_call.1} parent=5 // pred_check_branch
        %460 = sbr.rel (%p458) target = $region60
      $region59: #{tpu_custom_call.1} parent=5 // pred_region
        // Predicated region
        $region61: #{tpu_custom_call.1} parent=59 // pred_check
          %p461 = pneg %p50
        $region62: #{tpu_custom_call.1} parent=59 // pred_check_branch
          %463 = sbr.rel (%p461) target = $region64
        $region63: #{tpu_custom_call.1} parent=59 // pred_region
          %s464 = sand.u32 %s40, 1
          %s465 = scalar_lea.sflag [#allocation3], %s464
          %s466 = sand.u32 %s40, 1
          %s467 = smul.addr %s466, 168
          %s468 = scalar_lea.vmem [#allocation2], %s467
          %s470 = ssub.s32 2688, 2688
          %471 = vsyncadd %s465, %s470
          %s472 = smul.addr %s30, 21
          %s473 = smul.addr %s472, 128
          %s474 = scalar_lea.hbm %s0, %s473
          %s475 = sshll.u32 %s468, 4
          %s476 = int_to_ptr.vmem [resolvable:$true] %s475
          %481 = dma.hbm_to_vmem [thread:$0]  %s474, 2688, %s476, %s465, 384, 384, 24
        $region64: #{tpu_custom_call.1} parent=59 // pred_fallthru
          _
      $region60: #{tpu_custom_call.1} parent=5 // pred_fallthru
        _
      %p482 = scmp.le.s32.totalorder 1, %s30
      %p483 = scmp.lt.s32.totalorder %s30, 3
      %p484 = pnand %p482, %p483
      %p485 = pneg %p484
      // Predicated region
      $region65: #{tpu_custom_call.1} parent=5 // pred_check
        _
      $region66: #{tpu_custom_call.1} parent=5 // pred_check_branch
        %487 = sbr.rel (%p484) target = $region68
      $region67: #{tpu_custom_call.1} parent=5 // pred_region
        %s488 = ssub.s32 %s30, 1
        %s489 = sand.u32 %s43, 1
        %s490 = scalar_lea.sflag [#allocation3], %s489
        %s491 = sand.u32 %s43, 1
        %s492 = smul.addr %s491, 168
        %s493 = scalar_lea.vmem [#allocation2], %s492
        // Predicated region
        $region69: #{tpu_custom_call.1} parent=67 // pred_check
          %p494 = pneg %p56
        $region70: #{tpu_custom_call.1} parent=67 // pred_check_branch
          %496 = sbr.rel (%p494) target = $region72
        $region71: #{tpu_custom_call.1} parent=67 // pred_region
          %497 = dma.done %s490, 2688
        $region72: #{tpu_custom_call.1} parent=67 // pred_fallthru
          _
        // Predicated region
        $region73: #{tpu_custom_call.1} parent=67 // pred_check
          %p498 = pneg %p77
        $region74: #{tpu_custom_call.1} parent=67 // pred_check_branch
          %500 = sbr.rel (%p498) target = $region76
        $region75: #{tpu_custom_call.1} parent=67 // pred_region
          %501 = dma.done [#allocation6], 48
        $region76: #{tpu_custom_call.1} parent=67 // pred_fallthru
          _
        // Predicated region
        $region77: #{tpu_custom_call.1} parent=67 // pred_check
          %p502 = pneg %p98
        $region78: #{tpu_custom_call.1} parent=67 // pred_check_branch
          %504 = sbr.rel (%p502) target = $region80
        $region79: #{tpu_custom_call.1} parent=67 // pred_region
          %505 = dma.done [#allocation6], 48
        $region80: #{tpu_custom_call.1} parent=67 // pred_fallthru
          _
        // Predicated region
        $region81: #{tpu_custom_call.1} parent=67 // pred_check
          %p506 = pneg %p119
        $region82: #{tpu_custom_call.1} parent=67 // pred_check_branch
          %508 = sbr.rel (%p506) target = $region84
        $region83: #{tpu_custom_call.1} parent=67 // pred_region
          %509 = dma.done [#allocation9], 27648
        $region84: #{tpu_custom_call.1} parent=67 // pred_fallthru
          _
        // Predicated region
        $region85: #{tpu_custom_call.1} parent=67 // pred_check
          %p510 = pneg %p140
        $region86: #{tpu_custom_call.1} parent=67 // pred_check_branch
          %512 = sbr.rel (%p510) target = $region88
        $region87: #{tpu_custom_call.1} parent=67 // pred_region
          %513 = dma.done [#allocation9], 9216
        $region88: #{tpu_custom_call.1} parent=67 // pred_fallthru
          _
        // Predicated region
        $region89: #{tpu_custom_call.1} parent=67 // pred_check
          %p514 = pneg %p161
        $region90: #{tpu_custom_call.1} parent=67 // pred_check_branch
          %516 = sbr.rel (%p514) target = $region92
        $region91: #{tpu_custom_call.1} parent=67 // pred_region
          %517 = dma.done [#allocation12], 48
        $region92: #{tpu_custom_call.1} parent=67 // pred_fallthru
          _
        // Predicated region
        $region93: #{tpu_custom_call.1} parent=67 // pred_check
          %p518 = pneg %p182
        $region94: #{tpu_custom_call.1} parent=67 // pred_check_branch
          %520 = sbr.rel (%p518) target = $region96
        $region95: #{tpu_custom_call.1} parent=67 // pred_region
          %521 = dma.done [#allocation12], 48
        $region96: #{tpu_custom_call.1} parent=67 // pred_fallthru
          _
        // Predicated region
        $region97: #{tpu_custom_call.1} parent=67 // pred_check
          %p522 = pneg %p203
        $region98: #{tpu_custom_call.1} parent=67 // pred_check_branch
          %524 = sbr.rel (%p522) target = $region100
        $region99: #{tpu_custom_call.1} parent=67 // pred_region
          %525 = dma.done [#allocation15], 48
        $region100: #{tpu_custom_call.1} parent=67 // pred_fallthru
          _
        // Predicated region
        $region101: #{tpu_custom_call.1} parent=67 // pred_check
          %p526 = pneg %p224
        $region102: #{tpu_custom_call.1} parent=67 // pred_check_branch
          %528 = sbr.rel (%p526) target = $region104
        $region103: #{tpu_custom_call.1} parent=67 // pred_region
          %529 = dma.done [#allocation15], 36864
        $region104: #{tpu_custom_call.1} parent=67 // pred_fallthru
          _
        // Predicated region
        $region105: #{tpu_custom_call.1} parent=67 // pred_check
          %p530 = pneg %p245
        $region106: #{tpu_custom_call.1} parent=67 // pred_check_branch
          %532 = sbr.rel (%p530) target = $region108
        $region107: #{tpu_custom_call.1} parent=67 // pred_region
          %533 = dma.done [#allocation18], 192
        $region108: #{tpu_custom_call.1} parent=67 // pred_fallthru
          _
        // Predicated region
        $region109: #{tpu_custom_call.1} parent=67 // pred_check
          %p534 = pneg %p266
        $region110: #{tpu_custom_call.1} parent=67 // pred_check_branch
          %536 = sbr.rel (%p534) target = $region112
        $region111: #{tpu_custom_call.1} parent=67 // pred_region
          %537 = dma.done [#allocation18], 36864
        $region112: #{tpu_custom_call.1} parent=67 // pred_fallthru
          _
        // Predicated region
        $region113: #{tpu_custom_call.1} parent=67 // pred_check
          %p538 = pneg %p287
        $region114: #{tpu_custom_call.1} parent=67 // pred_check_branch
          %540 = sbr.rel (%p538) target = $region116
        $region115: #{tpu_custom_call.1} parent=67 // pred_region
          %541 = dma.done [#allocation21], 48
        $region116: #{tpu_custom_call.1} parent=67 // pred_fallthru
          _
        %s542 = sand.u32 %s43, 1
        %s543 = scalar_lea.sflag [#allocation3], %s542
        %s544 = sand.u32 %s43, 1
        %s545 = smul.addr %s544, 168
        %s546 = scalar_lea.vmem [#allocation2], %s545
        %p547 = pneg %p56
        %p548 = pneg %p53
        %p549 = pneg %p77
        %p550 = pneg %p74
        %p551 = pneg %p98
        %p552 = pneg %p95
        %p553 = pneg %p119
        %p554 = pneg %p116
        %p555 = pneg %p140
        %p556 = pneg %p137
        %p557 = pneg %p161
        %p558 = pneg %p158
        %p559 = pneg %p182
        %p560 = pneg %p179
        %p561 = pneg %p203
        %p562 = pneg %p200
        %p563 = pneg %p224
        %p564 = pneg %p221
        %p565 = pneg %p245
        %p566 = pneg %p242
        %p567 = pneg %p266
        %p568 = pneg %p263
        %p569 = pneg %p287
        %p570 = pneg %p284
        %p571 = pneg %p313
        %p572 = pneg %p310
        %s573 = sand.u32 %s300, 1
        %s574 = scalar_lea.sflag [#allocation4], %s573
        %s575 = sand.u32 %s300, 1
        %s576 = smul.addr %s575, 168
        %s577 = scalar_lea.vmem [#allocation22], %s576
        %v579 = vld [vmem:[%s493] sm:$0xff]
        %v580 = vld [vmem:[%s493 + $0x8] sm:$0xff]
        %v581 = vld [vmem:[%s493 + $0x10] sm:$0xff]
        %v582 = vld [vmem:[%s493 + $0x18] sm:$0xff]
        %v583 = vld [vmem:[%s493 + $0x20] sm:$0xff]
        %v584 = vld [vmem:[%s493 + $0x28] sm:$0xff]
        %v585 = vld [vmem:[%s493 + $0x30] sm:$0xff]
        %v586 = vld [vmem:[%s493 + $0x38] sm:$0xff]
        %v587 = vld [vmem:[%s493 + $0x40] sm:$0xff]
        %v588 = vld [vmem:[%s493 + $0x48] sm:$0xff]
        %v589 = vld [vmem:[%s493 + $0x50] sm:$0xff]
        %v590 = vld [vmem:[%s493 + $0x58] sm:$0xff]
        %v591 = vld [vmem:[%s493 + $0x60] sm:$0xff]
        %v592 = vld [vmem:[%s493 + $0x68] sm:$0xff]
        %v593 = vld [vmem:[%s493 + $0x70] sm:$0xff]
        %v594 = vld [vmem:[%s493 + $0x78] sm:$0xff]
        %v595 = vld [vmem:[%s493 + $0x80] sm:$0xff]
        %v596 = vld [vmem:[%s493 + $0x88] sm:$0xff]
        %v597 = vld [vmem:[%s493 + $0x90] sm:$0xff]
        %v598 = vld [vmem:[%s493 + $0x98] sm:$0xff]
        %v599 = vld [vmem:[%s493 + $0xa0] sm:$0xff]
        %v600 = vld [vmem:[#allocation5] sm:$0x7]
        %v601 = vld [vmem:[#allocation7] sm:$0x7]
        %v602 = vadd.f32 %v579, %v580
        %v603 = vadd.f32 %v602, %v581
        %604 = vadd.xlane.f32.xlu0 %v603
        %v605 = vpop.xlane.xlu0 %604
        %v606 = vadd.f32 %v582, %v583
        %v607 = vadd.f32 %v606, %v584
        %608 = vadd.xlane.f32.xlu0 %v607
        %v609 = vpop.xlane.xlu0 %608
        %v610 = vadd.f32 %v585, %v586
        %v611 = vadd.f32 %v610, %v587
        %612 = vadd.xlane.f32.xlu0 %v611
        %v613 = vpop.xlane.xlu0 %612
        %v614 = vadd.f32 %v588, %v589
        %v615 = vadd.f32 %v614, %v590
        %616 = vadd.xlane.f32.xlu0 %v615
        %v617 = vpop.xlane.xlu0 %616
        %v618 = vadd.f32 %v591, %v592
        %v619 = vadd.f32 %v618, %v593
        %620 = vadd.xlane.f32.xlu0 %v619
        %v621 = vpop.xlane.xlu0 %620
        %v622 = vadd.f32 %v594, %v595
        %v623 = vadd.f32 %v622, %v596
        %624 = vadd.xlane.f32.xlu0 %v623
        %v625 = vpop.xlane.xlu0 %624
        %v626 = vadd.f32 %v597, %v598
        %v627 = vadd.f32 %v626, %v599
        %628 = vadd.xlane.f32.xlu0 %v627
        %v629 = vpop.xlane.xlu0 %628
        %v630 = vrcp.pop 384.0
        %v631 = vmul.f32 %v605, %v630
        %v632 = vmul.f32 %v609, %v630
        %v633 = vmul.f32 %v613, %v630
        %v634 = vmul.f32 %v617, %v630
        %v635 = vmul.f32 %v621, %v630
        %v636 = vmul.f32 %v625, %v630
        %v637 = vmul.f32 %v629, %v630
        %v638 = vsub.f32 %v579, %v631
        %v639 = vsub.f32 %v580, %v631
        %v640 = vsub.f32 %v581, %v631
        %v641 = vsub.f32 %v582, %v632
        %v642 = vsub.f32 %v583, %v632
        %v643 = vsub.f32 %v584, %v632
        %v644 = vsub.f32 %v585, %v633
        %v645 = vsub.f32 %v586, %v633
        %v646 = vsub.f32 %v587, %v633
        %v647 = vsub.f32 %v588, %v634
        %v648 = vsub.f32 %v589, %v634
        %v649 = vsub.f32 %v590, %v634
        %v650 = vsub.f32 %v591, %v635
        %v651 = vsub.f32 %v592, %v635
        %v652 = vsub.f32 %v593, %v635
        %v653 = vsub.f32 %v594, %v636
        %v654 = vsub.f32 %v595, %v636
        %v655 = vsub.f32 %v596, %v636
        %v656 = vsub.f32 %v597, %v637
        %v657 = vsub.f32 %v598, %v637
        %v658 = vsub.f32 %v599, %v637
        %v659 = vmul.f32 %v638, %v638
        %v660 = vmul.f32 %v639, %v639
        %v661 = vmul.f32 %v640, %v640
        %v662 = vmul.f32 %v641, %v641
        %v663 = vmul.f32 %v642, %v642
        %v664 = vmul.f32 %v643, %v643
        %v665 = vmul.f32 %v644, %v644
        %v666 = vmul.f32 %v645, %v645
        %v667 = vmul.f32 %v646, %v646
        %v668 = vmul.f32 %v647, %v647
        %v669 = vmul.f32 %v648, %v648
        %v670 = vmul.f32 %v649, %v649
        %v671 = vmul.f32 %v650, %v650
        %v672 = vmul.f32 %v651, %v651
        %v673 = vmul.f32 %v652, %v652
        %v674 = vmul.f32 %v653, %v653
        %v675 = vmul.f32 %v654, %v654
        %v676 = vmul.f32 %v655, %v655
        %v677 = vmul.f32 %v656, %v656
        %v678 = vmul.f32 %v657, %v657
        %v679 = vmul.f32 %v658, %v658
        %v680 = vadd.f32 %v659, %v660
        %v681 = vadd.f32 %v680, %v661
        %682 = vadd.xlane.f32.xlu0 %v681
        %v683 = vpop.xlane.xlu0 %682
        %v684 = vadd.f32 %v662, %v663
        %v685 = vadd.f32 %v684, %v664
        %686 = vadd.xlane.f32.xlu0 %v685
        %v687 = vpop.xlane.xlu0 %686
        %v688 = vadd.f32 %v665, %v666
        %v689 = vadd.f32 %v688, %v667
        %690 = vadd.xlane.f32.xlu0 %v689
        %v691 = vpop.xlane.xlu0 %690
        %v692 = vadd.f32 %v668, %v669
        %v693 = vadd.f32 %v692, %v670
        %694 = vadd.xlane.f32.xlu0 %v693
        %v695 = vpop.xlane.xlu0 %694
        %v696 = vadd.f32 %v671, %v672
        %v697 = vadd.f32 %v696, %v673
        %698 = vadd.xlane.f32.xlu0 %v697
        %v699 = vpop.xlane.xlu0 %698
        %v700 = vadd.f32 %v674, %v675
        %v701 = vadd.f32 %v700, %v676
        %702 = vadd.xlane.f32.xlu0 %v701
        %v703 = vpop.xlane.xlu0 %702
        %v704 = vadd.f32 %v677, %v678
        %v705 = vadd.f32 %v704, %v679
        %706 = vadd.xlane.f32.xlu0 %v705
        %v707 = vpop.xlane.xlu0 %706
        %v708 = vmul.f32 %v683, %v630
        %v709 = vmul.f32 %v687, %v630
        %v710 = vmul.f32 %v691, %v630
        %v711 = vmul.f32 %v695, %v630
        %v712 = vmul.f32 %v699, %v630
        %v713 = vmul.f32 %v703, %v630
        %v714 = vmul.f32 %v707, %v630
        %v715 = vadd.f32 %v708, 1e-05
        %v716 = vadd.f32 %v709, 1e-05
        %v717 = vadd.f32 %v710, 1e-05
        %v718 = vadd.f32 %v711, 1e-05
        %v719 = vadd.f32 %v712, 1e-05
        %v720 = vadd.f32 %v713, 1e-05
        %v721 = vadd.f32 %v714, 1e-05
        %v722 = vrsqrt.pop %v715
        %v723 = vrsqrt.pop %v716
        %v724 = vrsqrt.pop %v717
        %v725 = vrsqrt.pop %v718
        %v726 = vrsqrt.pop %v719
        %v727 = vrsqrt.pop %v720
        %v728 = vrsqrt.pop %v721
        %v729 = vmul.f32 %v638, %v722
        %v730 = vmul.f32 %v639, %v722
        %v731 = vmul.f32 %v640, %v722
        %v732 = vmul.f32 %v641, %v723
        %v733 = vmul.f32 %v642, %v723
        %v734 = vmul.f32 %v643, %v723
        %v735 = vmul.f32 %v644, %v724
        %v736 = vmul.f32 %v645, %v724
        %v737 = vmul.f32 %v646, %v724
        %v738 = vmul.f32 %v647, %v725
        %v739 = vmul.f32 %v648, %v725
        %v740 = vmul.f32 %v649, %v725
        %v741 = vmul.f32 %v650, %v726
        %v742 = vmul.f32 %v651, %v726
        %v743 = vmul.f32 %v652, %v726
        %v744 = vmul.f32 %v653, %v727
        %v745 = vmul.f32 %v654, %v727
        %v746 = vmul.f32 %v655, %v727
        %v747 = vmul.f32 %v656, %v728
        %v748 = vmul.f32 %v657, %v728
        %v749 = vmul.f32 %v658, %v728
        %v751 = vlaneseq
        %v752 = vshrl.u32 %v751, 7
        %v753 = vsub.s32 0, %v752
        %v754 = vrot.slane %v600, %v753
        %v755 = vlaneseq
        %v756 = vshrl.u32 %v755, 7
        %v757 = vsub.s32 1, %v756
        %v758 = vrot.slane %v600, %v757
        %v759 = vlaneseq
        %v760 = vshrl.u32 %v759, 7
        %v761 = vsub.s32 2, %v760
        %v762 = vrot.slane %v600, %v761
        %v766 = vmul.f32 %v729, %v754
        %v767 = vmul.f32 %v730, %v758
        %v768 = vmul.f32 %v731, %v762
        %v769 = vmul.f32 %v732, %v754
        %v770 = vmul.f32 %v733, %v758
        %v771 = vmul.f32 %v734, %v762
        %v772 = vmul.f32 %v735, %v754
        %v773 = vmul.f32 %v736, %v758
        %v774 = vmul.f32 %v737, %v762
        %v775 = vmul.f32 %v738, %v754
        %v776 = vmul.f32 %v739, %v758
        %v777 = vmul.f32 %v740, %v762
        %v778 = vmul.f32 %v741, %v754
        %v779 = vmul.f32 %v742, %v758
        %v780 = vmul.f32 %v743, %v762
        %v781 = vmul.f32 %v744, %v754
        %v782 = vmul.f32 %v745, %v758
        %v783 = vmul.f32 %v746, %v762
        %v784 = vmul.f32 %v747, %v754
        %v785 = vmul.f32 %v748, %v758
        %v786 = vmul.f32 %v749, %v762
        %v788 = vlaneseq
        %v789 = vshrl.u32 %v788, 7
        %v790 = vsub.s32 0, %v789
        %v791 = vrot.slane %v601, %v790
        %v792 = vlaneseq
        %v793 = vshrl.u32 %v792, 7
        %v794 = vsub.s32 1, %v793
        %v795 = vrot.slane %v601, %v794
        %v796 = vlaneseq
        %v797 = vshrl.u32 %v796, 7
        %v798 = vsub.s32 2, %v797
        %v799 = vrot.slane %v601, %v798
        %v803 = vadd.f32 %v766, %v791
        %v804 = vadd.f32 %v767, %v795
        %v805 = vadd.f32 %v768, %v799
        %v806 = vadd.f32 %v769, %v791
        %v807 = vadd.f32 %v770, %v795
        %v808 = vadd.f32 %v771, %v799
        %v809 = vadd.f32 %v772, %v791
        %v810 = vadd.f32 %v773, %v795
        %v811 = vadd.f32 %v774, %v799
        %v812 = vadd.f32 %v775, %v791
        %v813 = vadd.f32 %v776, %v795
        %v814 = vadd.f32 %v777, %v799
        %v815 = vadd.f32 %v778, %v791
        %v816 = vadd.f32 %v779, %v795
        %v817 = vadd.f32 %v780, %v799
        %v818 = vadd.f32 %v781, %v791
        %v819 = vadd.f32 %v782, %v795
        %v820 = vadd.f32 %v783, %v799
        %v821 = vadd.f32 %v784, %v791
        %v822 = vadd.f32 %v785, %v795
        %v823 = vadd.f32 %v786, %v799
        %v824 = vpack.c.bf16 %v806, %v803
        %v825 = vpack.c.bf16 %v807, %v804
        %v826 = vpack.c.bf16 %v808, %v805
        %v827 = vpack.c.bf16 %v812, %v809
        %v828 = vpack.c.bf16 %v813, %v810
        %v829 = vpack.c.bf16 %v814, %v811
        %v830 = vpack.c.bf16 %v818, %v815
        %v831 = vpack.c.bf16 %v819, %v816
        %v832 = vpack.c.bf16 %v820, %v817
        %v833 = vpack.c.bf16 %v821, %v821
        %v834 = vpack.c.bf16 %v822, %v822
        %v835 = vpack.c.bf16 %v823, %v823
        %v836 = vld [vmem:[#allocation8] sm:$0xff]
        %v837 = vld [vmem:[#allocation8 + $0x8] sm:$0xff]
        %v838 = vld [vmem:[#allocation8 + $0x10] sm:$0xff]
        %v839 = vld [vmem:[#allocation8 + $0x18] sm:$0xff]
        %v840 = vld [vmem:[#allocation8 + $0x20] sm:$0xf]
        %v841 = vld [vmem:[#allocation8 + $0x24] sm:$0xff]
        %v842 = vld [vmem:[#allocation8 + $0x2c] sm:$0xff]
        %v843 = vld [vmem:[#allocation8 + $0x34] sm:$0xff]
        %v844 = vld [vmem:[#allocation8 + $0x3c] sm:$0xff]
        %v845 = vld [vmem:[#allocation8 + $0x44] sm:$0xf]
        %v846 = vld [vmem:[#allocation8 + $0x48] sm:$0xff]
        %v847 = vld [vmem:[#allocation8 + $0x50] sm:$0xff]
        %v848 = vld [vmem:[#allocation8 + $0x58] sm:$0xff]
        %v849 = vld [vmem:[#allocation8 + $0x60] sm:$0xff]
        %v850 = vld [vmem:[#allocation8 + $0x68] sm:$0xf]
        %v851 = vld [vmem:[#allocation8 + $0x6c] sm:$0xff]
        %v852 = vld [vmem:[#allocation8 + $0x74] sm:$0xff]
        %v853 = vld [vmem:[#allocation8 + $0x7c] sm:$0xff]
        %v854 = vld [vmem:[#allocation8 + $0x84] sm:$0xff]
        %v855 = vld [vmem:[#allocation8 + $0x8c] sm:$0xf]
        %v856 = vld [vmem:[#allocation8 + $0x90] sm:$0xff]
        %v857 = vld [vmem:[#allocation8 + $0x98] sm:$0xff]
        %v858 = vld [vmem:[#allocation8 + $0xa0] sm:$0xff]
        %v859 = vld [vmem:[#allocation8 + $0xa8] sm:$0xff]
        %v860 = vld [vmem:[#allocation8 + $0xb0] sm:$0xf]
        %v861 = vld [vmem:[#allocation8 + $0xb4] sm:$0xff]
        %v862 = vld [vmem:[#allocation8 + $0xbc] sm:$0xff]
        %v863 = vld [vmem:[#allocation8 + $0xc4] sm:$0xff]
        %v864 = vld [vmem:[#allocation8 + $0xcc] sm:$0xff]
        %v865 = vld [vmem:[#allocation8 + $0xd4] sm:$0xf]
        %v866 = vld [vmem:[#allocation8 + $0xd8] sm:$0xff]
        %v867 = vld [vmem:[#allocation8 + $0xe0] sm:$0xff]
        %v868 = vld [vmem:[#allocation8 + $0xe8] sm:$0xff]
        %v869 = vld [vmem:[#allocation8 + $0xf0] sm:$0xff]
        %v870 = vld [vmem:[#allocation8 + $0xf8] sm:$0xf]
        %v871 = vld [vmem:[#allocation8 + $0xfc] sm:$0xff]
        %v872 = vld [vmem:[#allocation8 + $0x104] sm:$0xff]
        %v873 = vld [vmem:[#allocation8 + $0x10c] sm:$0xff]
        %v874 = vld [vmem:[#allocation8 + $0x114] sm:$0xff]
        %v875 = vld [vmem:[#allocation8 + $0x11c] sm:$0xf]
        %v876 = vld [vmem:[#allocation8 + $0x120] sm:$0xff]
        %v877 = vld [vmem:[#allocation8 + $0x128] sm:$0xff]
        %v878 = vld [vmem:[#allocation8 + $0x130] sm:$0xff]
        %v879 = vld [vmem:[#allocation8 + $0x138] sm:$0xff]
        %v880 = vld [vmem:[#allocation8 + $0x140] sm:$0xf]
        %v881 = vld [vmem:[#allocation8 + $0x144] sm:$0xff]
        %v882 = vld [vmem:[#allocation8 + $0x14c] sm:$0xff]
        %v883 = vld [vmem:[#allocation8 + $0x154] sm:$0xff]
        %v884 = vld [vmem:[#allocation8 + $0x15c] sm:$0xff]
        %v885 = vld [vmem:[#allocation8 + $0x164] sm:$0xf]
        %v886 = vld [vmem:[#allocation8 + $0x168] sm:$0xff]
        %v887 = vld [vmem:[#allocation8 + $0x170] sm:$0xff]
        %v888 = vld [vmem:[#allocation8 + $0x178] sm:$0xff]
        %v889 = vld [vmem:[#allocation8 + $0x180] sm:$0xff]
        %v890 = vld [vmem:[#allocation8 + $0x188] sm:$0xf]
        %v891 = vld [vmem:[#allocation8 + $0x18c] sm:$0xff]
        %v892 = vld [vmem:[#allocation8 + $0x194] sm:$0xff]
        %v893 = vld [vmem:[#allocation8 + $0x19c] sm:$0xff]
        %v894 = vld [vmem:[#allocation8 + $0x1a4] sm:$0xff]
        %v895 = vld [vmem:[#allocation8 + $0x1ac] sm:$0xf]
        %v896 = vld [vmem:[#allocation8 + $0x1b0] sm:$0xff]
        %v897 = vld [vmem:[#allocation8 + $0x1b8] sm:$0xff]
        %v898 = vld [vmem:[#allocation8 + $0x1c0] sm:$0xff]
        %v899 = vld [vmem:[#allocation8 + $0x1c8] sm:$0xff]
        %v900 = vld [vmem:[#allocation8 + $0x1d0] sm:$0xf]
        %v901 = vld [vmem:[#allocation8 + $0x1d4] sm:$0xff]
        %v902 = vld [vmem:[#allocation8 + $0x1dc] sm:$0xff]
        %v903 = vld [vmem:[#allocation8 + $0x1e4] sm:$0xff]
        %v904 = vld [vmem:[#allocation8 + $0x1ec] sm:$0xff]
        %v905 = vld [vmem:[#allocation8 + $0x1f4] sm:$0xf]
        %v906 = vld [vmem:[#allocation8 + $0x1f8] sm:$0xff]
        %v907 = vld [vmem:[#allocation8 + $0x200] sm:$0xff]
        %v908 = vld [vmem:[#allocation8 + $0x208] sm:$0xff]
        %v909 = vld [vmem:[#allocation8 + $0x210] sm:$0xff]
        %v910 = vld [vmem:[#allocation8 + $0x218] sm:$0xf]
        %v911 = vld [vmem:[#allocation8 + $0x21c] sm:$0xff]
        %v912 = vld [vmem:[#allocation8 + $0x224] sm:$0xff]
        %v913 = vld [vmem:[#allocation8 + $0x22c] sm:$0xff]
        %v914 = vld [vmem:[#allocation8 + $0x234] sm:$0xff]
        %v915 = vld [vmem:[#allocation8 + $0x23c] sm:$0xf]
        %v916 = vld [vmem:[#allocation8 + $0x240] sm:$0xff]
        %v917 = vld [vmem:[#allocation8 + $0x248] sm:$0xff]
        %v918 = vld [vmem:[#allocation8 + $0x250] sm:$0xff]
        %v919 = vld [vmem:[#allocation8 + $0x258] sm:$0xff]
        %v920 = vld [vmem:[#allocation8 + $0x260] sm:$0xf]
        %v921 = vld [vmem:[#allocation8 + $0x264] sm:$0xff]
        %v922 = vld [vmem:[#allocation8 + $0x26c] sm:$0xff]
        %v923 = vld [vmem:[#allocation8 + $0x274] sm:$0xff]
        %v924 = vld [vmem:[#allocation8 + $0x27c] sm:$0xff]
        %v925 = vld [vmem:[#allocation8 + $0x284] sm:$0xf]
        %v926 = vld [vmem:[#allocation8 + $0x288] sm:$0xff]
        %v927 = vld [vmem:[#allocation8 + $0x290] sm:$0xff]
        %v928 = vld [vmem:[#allocation8 + $0x298] sm:$0xff]
        %v929 = vld [vmem:[#allocation8 + $0x2a0] sm:$0xff]
        %v930 = vld [vmem:[#allocation8 + $0x2a8] sm:$0xf]
        %v931 = vld [vmem:[#allocation8 + $0x2ac] sm:$0xff]
        %v932 = vld [vmem:[#allocation8 + $0x2b4] sm:$0xff]
        %v933 = vld [vmem:[#allocation8 + $0x2bc] sm:$0xff]
        %v934 = vld [vmem:[#allocation8 + $0x2c4] sm:$0xff]
        %v935 = vld [vmem:[#allocation8 + $0x2cc] sm:$0xf]
        %v936 = vld [vmem:[#allocation8 + $0x2d0] sm:$0xff]
        %v937 = vld [vmem:[#allocation8 + $0x2d8] sm:$0xff]
        %v938 = vld [vmem:[#allocation8 + $0x2e0] sm:$0xff]
        %v939 = vld [vmem:[#allocation8 + $0x2e8] sm:$0xff]
        %v940 = vld [vmem:[#allocation8 + $0x2f0] sm:$0xf]
        %v941 = vld [vmem:[#allocation8 + $0x2f4] sm:$0xff]
        %v942 = vld [vmem:[#allocation8 + $0x2fc] sm:$0xff]
        %v943 = vld [vmem:[#allocation8 + $0x304] sm:$0xff]
        %v944 = vld [vmem:[#allocation8 + $0x30c] sm:$0xff]
        %v945 = vld [vmem:[#allocation8 + $0x314] sm:$0xf]
        %v946 = vld [vmem:[#allocation8 + $0x318] sm:$0xff]
        %v947 = vld [vmem:[#allocation8 + $0x320] sm:$0xff]
        %v948 = vld [vmem:[#allocation8 + $0x328] sm:$0xff]
        %v949 = vld [vmem:[#allocation8 + $0x330] sm:$0xff]
        %v950 = vld [vmem:[#allocation8 + $0x338] sm:$0xf]
        %v951 = vld [vmem:[#allocation8 + $0x33c] sm:$0xff]
        %v952 = vld [vmem:[#allocation8 + $0x344] sm:$0xff]
        %v953 = vld [vmem:[#allocation8 + $0x34c] sm:$0xff]
        %v954 = vld [vmem:[#allocation8 + $0x354] sm:$0xff]
        %v955 = vld [vmem:[#allocation8 + $0x35c] sm:$0xf]
        %v956 = vld [vmem:[#allocation8 + $0x360] sm:$0xff]
        %v957 = vld [vmem:[#allocation8 + $0x368] sm:$0xff]
        %v958 = vld [vmem:[#allocation8 + $0x370] sm:$0xff]
        %v959 = vld [vmem:[#allocation8 + $0x378] sm:$0xff]
        %v960 = vld [vmem:[#allocation8 + $0x380] sm:$0xf]
        %v961 = vld [vmem:[#allocation8 + $0x384] sm:$0xff]
        %v962 = vld [vmem:[#allocation8 + $0x38c] sm:$0xff]
        %v963 = vld [vmem:[#allocation8 + $0x394] sm:$0xff]
        %v964 = vld [vmem:[#allocation8 + $0x39c] sm:$0xff]
        %v965 = vld [vmem:[#allocation8 + $0x3a4] sm:$0xf]
        %v966 = vld [vmem:[#allocation8 + $0x3a8] sm:$0xff]
        %v967 = vld [vmem:[#allocation8 + $0x3b0] sm:$0xff]
        %v968 = vld [vmem:[#allocation8 + $0x3b8] sm:$0xff]
        %v969 = vld [vmem:[#allocation8 + $0x3c0] sm:$0xff]
        %v970 = vld [vmem:[#allocation8 + $0x3c8] sm:$0xf]
        %v971 = vld [vmem:[#allocation8 + $0x3cc] sm:$0xff]
        %v972 = vld [vmem:[#allocation8 + $0x3d4] sm:$0xff]
        %v973 = vld [vmem:[#allocation8 + $0x3dc] sm:$0xff]
        %v974 = vld [vmem:[#allocation8 + $0x3e4] sm:$0xff]
        %v975 = vld [vmem:[#allocation8 + $0x3ec] sm:$0xf]
        %v976 = vld [vmem:[#allocation8 + $0x3f0] sm:$0xff]
        %v977 = vld [vmem:[#allocation8 + $0x3f8] sm:$0xff]
        %v978 = vld [vmem:[#allocation8 + $0x400] sm:$0xff]
        %v979 = vld [vmem:[#allocation8 + $0x408] sm:$0xff]
        %v980 = vld [vmem:[#allocation8 + $0x410] sm:$0xf]
        %v981 = vld [vmem:[#allocation8 + $0x414] sm:$0xff]
        %v982 = vld [vmem:[#allocation8 + $0x41c] sm:$0xff]
        %v983 = vld [vmem:[#allocation8 + $0x424] sm:$0xff]
        %v984 = vld [vmem:[#allocation8 + $0x42c] sm:$0xff]
        %v985 = vld [vmem:[#allocation8 + $0x434] sm:$0xf]
        %v986 = vld [vmem:[#allocation8 + $0x438] sm:$0xff]
        %v987 = vld [vmem:[#allocation8 + $0x440] sm:$0xff]
        %v988 = vld [vmem:[#allocation8 + $0x448] sm:$0xff]
        %v989 = vld [vmem:[#allocation8 + $0x450] sm:$0xff]
        %v990 = vld [vmem:[#allocation8 + $0x458] sm:$0xf]
        %v991 = vld [vmem:[#allocation8 + $0x45c] sm:$0xff]
        %v992 = vld [vmem:[#allocation8 + $0x464] sm:$0xff]
        %v993 = vld [vmem:[#allocation8 + $0x46c] sm:$0xff]
        %v994 = vld [vmem:[#allocation8 + $0x474] sm:$0xff]
        %v995 = vld [vmem:[#allocation8 + $0x47c] sm:$0xf]
        %v996 = vld [vmem:[#allocation8 + $0x480] sm:$0xff]
        %v997 = vld [vmem:[#allocation8 + $0x488] sm:$0xff]
        %v998 = vld [vmem:[#allocation8 + $0x490] sm:$0xff]
        %v999 = vld [vmem:[#allocation8 + $0x498] sm:$0xff]
        %v1000 = vld [vmem:[#allocation8 + $0x4a0] sm:$0xf]
        %v1001 = vld [vmem:[#allocation8 + $0x4a4] sm:$0xff]
        %v1002 = vld [vmem:[#allocation8 + $0x4ac] sm:$0xff]
        %v1003 = vld [vmem:[#allocation8 + $0x4b4] sm:$0xff]
        %v1004 = vld [vmem:[#allocation8 + $0x4bc] sm:$0xff]
        %v1005 = vld [vmem:[#allocation8 + $0x4c4] sm:$0xf]
        %v1006 = vld [vmem:[#allocation8 + $0x4c8] sm:$0xff]
        %v1007 = vld [vmem:[#allocation8 + $0x4d0] sm:$0xff]
        %v1008 = vld [vmem:[#allocation8 + $0x4d8] sm:$0xff]
        %v1009 = vld [vmem:[#allocation8 + $0x4e0] sm:$0xff]
        %v1010 = vld [vmem:[#allocation8 + $0x4e8] sm:$0xf]
        %v1011 = vld [vmem:[#allocation8 + $0x4ec] sm:$0xff]
        %v1012 = vld [vmem:[#allocation8 + $0x4f4] sm:$0xff]
        %v1013 = vld [vmem:[#allocation8 + $0x4fc] sm:$0xff]
        %v1014 = vld [vmem:[#allocation8 + $0x504] sm:$0xff]
        %v1015 = vld [vmem:[#allocation8 + $0x50c] sm:$0xf]
        %v1016 = vld [vmem:[#allocation8 + $0x510] sm:$0xff]
        %v1017 = vld [vmem:[#allocation8 + $0x518] sm:$0xff]
        %v1018 = vld [vmem:[#allocation8 + $0x520] sm:$0xff]
        %v1019 = vld [vmem:[#allocation8 + $0x528] sm:$0xff]
        %v1020 = vld [vmem:[#allocation8 + $0x530] sm:$0xf]
        %v1021 = vld [vmem:[#allocation8 + $0x534] sm:$0xff]
        %v1022 = vld [vmem:[#allocation8 + $0x53c] sm:$0xff]
        %v1023 = vld [vmem:[#allocation8 + $0x544] sm:$0xff]
        %v1024 = vld [vmem:[#allocation8 + $0x54c] sm:$0xff]
        %v1025 = vld [vmem:[#allocation8 + $0x554] sm:$0xf]
        %v1026 = vld [vmem:[#allocation8 + $0x558] sm:$0xff]
        %v1027 = vld [vmem:[#allocation8 + $0x560] sm:$0xff]
        %v1028 = vld [vmem:[#allocation8 + $0x568] sm:$0xff]
        %v1029 = vld [vmem:[#allocation8 + $0x570] sm:$0xff]
        %v1030 = vld [vmem:[#allocation8 + $0x578] sm:$0xf]
        %v1031 = vld [vmem:[#allocation8 + $0x57c] sm:$0xff]
        %v1032 = vld [vmem:[#allocation8 + $0x584] sm:$0xff]
        %v1033 = vld [vmem:[#allocation8 + $0x58c] sm:$0xff]
        %v1034 = vld [vmem:[#allocation8 + $0x594] sm:$0xff]
        %v1035 = vld [vmem:[#allocation8 + $0x59c] sm:$0xf]
        %v1036 = vld [vmem:[#allocation8 + $0x5a0] sm:$0xff]
        %v1037 = vld [vmem:[#allocation8 + $0x5a8] sm:$0xff]
        %v1038 = vld [vmem:[#allocation8 + $0x5b0] sm:$0xff]
        %v1039 = vld [vmem:[#allocation8 + $0x5b8] sm:$0xff]
        %v1040 = vld [vmem:[#allocation8 + $0x5c0] sm:$0xf]
        %v1041 = vld [vmem:[#allocation8 + $0x5c4] sm:$0xff]
        %v1042 = vld [vmem:[#allocation8 + $0x5cc] sm:$0xff]
        %v1043 = vld [vmem:[#allocation8 + $0x5d4] sm:$0xff]
        %v1044 = vld [vmem:[#allocation8 + $0x5dc] sm:$0xff]
        %v1045 = vld [vmem:[#allocation8 + $0x5e4] sm:$0xf]
        %v1046 = vld [vmem:[#allocation8 + $0x5e8] sm:$0xff]
        %v1047 = vld [vmem:[#allocation8 + $0x5f0] sm:$0xff]
        %v1048 = vld [vmem:[#allocation8 + $0x5f8] sm:$0xff]
        %v1049 = vld [vmem:[#allocation8 + $0x600] sm:$0xff]
        %v1050 = vld [vmem:[#allocation8 + $0x608] sm:$0xf]
        %v1051 = vld [vmem:[#allocation8 + $0x60c] sm:$0xff]
        %v1052 = vld [vmem:[#allocation8 + $0x614] sm:$0xff]
        %v1053 = vld [vmem:[#allocation8 + $0x61c] sm:$0xff]
        %v1054 = vld [vmem:[#allocation8 + $0x624] sm:$0xff]
        %v1055 = vld [vmem:[#allocation8 + $0x62c] sm:$0xf]
        %v1056 = vld [vmem:[#allocation8 + $0x630] sm:$0xff]
        %v1057 = vld [vmem:[#allocation8 + $0x638] sm:$0xff]
        %v1058 = vld [vmem:[#allocation8 + $0x640] sm:$0xff]
        %v1059 = vld [vmem:[#allocation8 + $0x648] sm:$0xff]
        %v1060 = vld [vmem:[#allocation8 + $0x650] sm:$0xf]
        %v1061 = vld [vmem:[#allocation8 + $0x654] sm:$0xff]
        %v1062 = vld [vmem:[#allocation8 + $0x65c] sm:$0xff]
        %v1063 = vld [vmem:[#allocation8 + $0x664] sm:$0xff]
        %v1064 = vld [vmem:[#allocation8 + $0x66c] sm:$0xff]
        %v1065 = vld [vmem:[#allocation8 + $0x674] sm:$0xf]
        %v1066 = vld [vmem:[#allocation8 + $0x678] sm:$0xff]
        %v1067 = vld [vmem:[#allocation8 + $0x680] sm:$0xff]
        %v1068 = vld [vmem:[#allocation8 + $0x688] sm:$0xff]
        %v1069 = vld [vmem:[#allocation8 + $0x690] sm:$0xff]
        %v1070 = vld [vmem:[#allocation8 + $0x698] sm:$0xf]
        %v1071 = vld [vmem:[#allocation8 + $0x69c] sm:$0xff]
        %v1072 = vld [vmem:[#allocation8 + $0x6a4] sm:$0xff]
        %v1073 = vld [vmem:[#allocation8 + $0x6ac] sm:$0xff]
        %v1074 = vld [vmem:[#allocation8 + $0x6b4] sm:$0xff]
        %v1075 = vld [vmem:[#allocation8 + $0x6bc] sm:$0xf]
        %v1316 = vunpack.c.l.b16 %v836
        %v1317 = vunpack.c.h.b16 %v836
        %v1318 = vunpack.c.l.b16 %v837
        %v1319 = vunpack.c.h.b16 %v837
        %v1320 = vunpack.c.l.b16 %v838
        %v1321 = vunpack.c.h.b16 %v838
        %v1322 = vunpack.c.l.b16 %v839
        %v1323 = vunpack.c.h.b16 %v839
        %v1324 = vunpack.c.l.b16 %v840
        %v1325 = vunpack.c.l.b16 %v841
        %v1326 = vunpack.c.h.b16 %v841
        %v1327 = vunpack.c.l.b16 %v842
        %v1328 = vunpack.c.h.b16 %v842
        %v1329 = vunpack.c.l.b16 %v843
        %v1330 = vunpack.c.h.b16 %v843
        %v1331 = vunpack.c.l.b16 %v844
        %v1332 = vunpack.c.h.b16 %v844
        %v1333 = vunpack.c.l.b16 %v845
        %v1334 = vunpack.c.l.b16 %v846
        %v1335 = vunpack.c.h.b16 %v846
        %v1336 = vunpack.c.l.b16 %v847
        %v1337 = vunpack.c.h.b16 %v847
        %v1338 = vunpack.c.l.b16 %v848
        %v1339 = vunpack.c.h.b16 %v848
        %v1340 = vunpack.c.l.b16 %v849
        %v1341 = vunpack.c.h.b16 %v849
        %v1342 = vunpack.c.l.b16 %v850
        %v1343 = vunpack.c.l.b16 %v851
        %v1344 = vunpack.c.h.b16 %v851
        %v1345 = vunpack.c.l.b16 %v852
        %v1346 = vunpack.c.h.b16 %v852
        %v1347 = vunpack.c.l.b16 %v853
        %v1348 = vunpack.c.h.b16 %v853
        %v1349 = vunpack.c.l.b16 %v854
        %v1350 = vunpack.c.h.b16 %v854
        %v1351 = vunpack.c.l.b16 %v855
        %v1352 = vunpack.c.l.b16 %v856
        %v1353 = vunpack.c.h.b16 %v856
        %v1354 = vunpack.c.l.b16 %v857
        %v1355 = vunpack.c.h.b16 %v857
        %v1356 = vunpack.c.l.b16 %v858
        %v1357 = vunpack.c.h.b16 %v858
        %v1358 = vunpack.c.l.b16 %v859
        %v1359 = vunpack.c.h.b16 %v859
        %v1360 = vunpack.c.l.b16 %v860
        %v1361 = vunpack.c.l.b16 %v861
        %v1362 = vunpack.c.h.b16 %v861
        %v1363 = vunpack.c.l.b16 %v862
        %v1364 = vunpack.c.h.b16 %v862
        %v1365 = vunpack.c.l.b16 %v863
        %v1366 = vunpack.c.h.b16 %v863
        %v1367 = vunpack.c.l.b16 %v864
        %v1368 = vunpack.c.h.b16 %v864
        %v1369 = vunpack.c.l.b16 %v865
        %v1370 = vunpack.c.l.b16 %v866
        %v1371 = vunpack.c.h.b16 %v866
        %v1372 = vunpack.c.l.b16 %v867
        %v1373 = vunpack.c.h.b16 %v867
        %v1374 = vunpack.c.l.b16 %v868
        %v1375 = vunpack.c.h.b16 %v868
        %v1376 = vunpack.c.l.b16 %v869
        %v1377 = vunpack.c.h.b16 %v869
        %v1378 = vunpack.c.l.b16 %v870
        %v1379 = vunpack.c.l.b16 %v871
        %v1380 = vunpack.c.h.b16 %v871
        %v1381 = vunpack.c.l.b16 %v872
        %v1382 = vunpack.c.h.b16 %v872
        %v1383 = vunpack.c.l.b16 %v873
        %v1384 = vunpack.c.h.b16 %v873
        %v1385 = vunpack.c.l.b16 %v874
        %v1386 = vunpack.c.h.b16 %v874
        %v1387 = vunpack.c.l.b16 %v875
        %v1388 = vunpack.c.l.b16 %v876
        %v1389 = vunpack.c.h.b16 %v876
        %v1390 = vunpack.c.l.b16 %v877
        %v1391 = vunpack.c.h.b16 %v877
        %v1392 = vunpack.c.l.b16 %v878
        %v1393 = vunpack.c.h.b16 %v878
        %v1394 = vunpack.c.l.b16 %v879
        %v1395 = vunpack.c.h.b16 %v879
        %v1396 = vunpack.c.l.b16 %v880
        %v1397 = vunpack.c.l.b16 %v881
        %v1398 = vunpack.c.h.b16 %v881
        %v1399 = vunpack.c.l.b16 %v882
        %v1400 = vunpack.c.h.b16 %v882
        %v1401 = vunpack.c.l.b16 %v883
        %v1402 = vunpack.c.h.b16 %v883
        %v1403 = vunpack.c.l.b16 %v884
        %v1404 = vunpack.c.h.b16 %v884
        %v1405 = vunpack.c.l.b16 %v885
        %v1406 = vunpack.c.l.b16 %v886
        %v1407 = vunpack.c.h.b16 %v886
        %v1408 = vunpack.c.l.b16 %v887
        %v1409 = vunpack.c.h.b16 %v887
        %v1410 = vunpack.c.l.b16 %v888
        %v1411 = vunpack.c.h.b16 %v888
        %v1412 = vunpack.c.l.b16 %v889
        %v1413 = vunpack.c.h.b16 %v889
        %v1414 = vunpack.c.l.b16 %v890
        %v1415 = vunpack.c.l.b16 %v891
        %v1416 = vunpack.c.h.b16 %v891
        %v1417 = vunpack.c.l.b16 %v892
        %v1418 = vunpack.c.h.b16 %v892
        %v1419 = vunpack.c.l.b16 %v893
        %v1420 = vunpack.c.h.b16 %v893
        %v1421 = vunpack.c.l.b16 %v894
        %v1422 = vunpack.c.h.b16 %v894
        %v1423 = vunpack.c.l.b16 %v895
        %v1424 = vunpack.c.l.b16 %v896
        %v1425 = vunpack.c.h.b16 %v896
        %v1426 = vunpack.c.l.b16 %v897
        %v1427 = vunpack.c.h.b16 %v897
        %v1428 = vunpack.c.l.b16 %v898
        %v1429 = vunpack.c.h.b16 %v898
        %v1430 = vunpack.c.l.b16 %v899
        %v1431 = vunpack.c.h.b16 %v899
        %v1432 = vunpack.c.l.b16 %v900
        %v1433 = vunpack.c.l.b16 %v901
        %v1434 = vunpack.c.h.b16 %v901
        %v1435 = vunpack.c.l.b16 %v902
        %v1436 = vunpack.c.h.b16 %v902
        %v1437 = vunpack.c.l.b16 %v903
        %v1438 = vunpack.c.h.b16 %v903
        %v1439 = vunpack.c.l.b16 %v904
        %v1440 = vunpack.c.h.b16 %v904
        %v1441 = vunpack.c.l.b16 %v905
        %v1442 = vunpack.c.l.b16 %v906
        %v1443 = vunpack.c.h.b16 %v906
        %v1444 = vunpack.c.l.b16 %v907
        %v1445 = vunpack.c.h.b16 %v907
        %v1446 = vunpack.c.l.b16 %v908
        %v1447 = vunpack.c.h.b16 %v908
        %v1448 = vunpack.c.l.b16 %v909
        %v1449 = vunpack.c.h.b16 %v909
        %v1450 = vunpack.c.l.b16 %v910
        %v1451 = vunpack.c.l.b16 %v911
        %v1452 = vunpack.c.h.b16 %v911
        %v1453 = vunpack.c.l.b16 %v912
        %v1454 = vunpack.c.h.b16 %v912
        %v1455 = vunpack.c.l.b16 %v913
        %v1456 = vunpack.c.h.b16 %v913
        %v1457 = vunpack.c.l.b16 %v914
        %v1458 = vunpack.c.h.b16 %v914
        %v1459 = vunpack.c.l.b16 %v915
        %v1460 = vunpack.c.l.b16 %v916
        %v1461 = vunpack.c.h.b16 %v916
        %v1462 = vunpack.c.l.b16 %v917
        %v1463 = vunpack.c.h.b16 %v917
        %v1464 = vunpack.c.l.b16 %v918
        %v1465 = vunpack.c.h.b16 %v918
        %v1466 = vunpack.c.l.b16 %v919
        %v1467 = vunpack.c.h.b16 %v919
        %v1468 = vunpack.c.l.b16 %v920
        %v1469 = vunpack.c.l.b16 %v921
        %v1470 = vunpack.c.h.b16 %v921
        %v1471 = vunpack.c.l.b16 %v922
        %v1472 = vunpack.c.h.b16 %v922
        %v1473 = vunpack.c.l.b16 %v923
        %v1474 = vunpack.c.h.b16 %v923
        %v1475 = vunpack.c.l.b16 %v924
        %v1476 = vunpack.c.h.b16 %v924
        %v1477 = vunpack.c.l.b16 %v925
        %v1478 = vunpack.c.l.b16 %v926
        %v1479 = vunpack.c.h.b16 %v926
        %v1480 = vunpack.c.l.b16 %v927
        %v1481 = vunpack.c.h.b16 %v927
        %v1482 = vunpack.c.l.b16 %v928
        %v1483 = vunpack.c.h.b16 %v928
        %v1484 = vunpack.c.l.b16 %v929
        %v1485 = vunpack.c.h.b16 %v929
        %v1486 = vunpack.c.l.b16 %v930
        %v1487 = vunpack.c.l.b16 %v931
        %v1488 = vunpack.c.h.b16 %v931
        %v1489 = vunpack.c.l.b16 %v932
        %v1490 = vunpack.c.h.b16 %v932
        %v1491 = vunpack.c.l.b16 %v933
        %v1492 = vunpack.c.h.b16 %v933
        %v1493 = vunpack.c.l.b16 %v934
        %v1494 = vunpack.c.h.b16 %v934
        %v1495 = vunpack.c.l.b16 %v935
        %v1496 = vunpack.c.l.b16 %v936
        %v1497 = vunpack.c.h.b16 %v936
        %v1498 = vunpack.c.l.b16 %v937
        %v1499 = vunpack.c.h.b16 %v937
        %v1500 = vunpack.c.l.b16 %v938
        %v1501 = vunpack.c.h.b16 %v938
        %v1502 = vunpack.c.l.b16 %v939
        %v1503 = vunpack.c.h.b16 %v939
        %v1504 = vunpack.c.l.b16 %v940
        %v1505 = vunpack.c.l.b16 %v941
        %v1506 = vunpack.c.h.b16 %v941
        %v1507 = vunpack.c.l.b16 %v942
        %v1508 = vunpack.c.h.b16 %v942
        %v1509 = vunpack.c.l.b16 %v943
        %v1510 = vunpack.c.h.b16 %v943
        %v1511 = vunpack.c.l.b16 %v944
        %v1512 = vunpack.c.h.b16 %v944
        %v1513 = vunpack.c.l.b16 %v945
        %v1514 = vunpack.c.l.b16 %v946
        %v1515 = vunpack.c.h.b16 %v946
        %v1516 = vunpack.c.l.b16 %v947
        %v1517 = vunpack.c.h.b16 %v947
        %v1518 = vunpack.c.l.b16 %v948
        %v1519 = vunpack.c.h.b16 %v948
        %v1520 = vunpack.c.l.b16 %v949
        %v1521 = vunpack.c.h.b16 %v949
        %v1522 = vunpack.c.l.b16 %v950
        %v1523 = vunpack.c.l.b16 %v951
        %v1524 = vunpack.c.h.b16 %v951
        %v1525 = vunpack.c.l.b16 %v952
        %v1526 = vunpack.c.h.b16 %v952
        %v1527 = vunpack.c.l.b16 %v953
        %v1528 = vunpack.c.h.b16 %v953
        %v1529 = vunpack.c.l.b16 %v954
        %v1530 = vunpack.c.h.b16 %v954
        %v1531 = vunpack.c.l.b16 %v955
        %v1532 = vunpack.c.l.b16 %v956
        %v1533 = vunpack.c.h.b16 %v956
        %v1534 = vunpack.c.l.b16 %v957
        %v1535 = vunpack.c.h.b16 %v957
        %v1536 = vunpack.c.l.b16 %v958
        %v1537 = vunpack.c.h.b16 %v958
        %v1538 = vunpack.c.l.b16 %v959
        %v1539 = vunpack.c.h.b16 %v959
        %v1540 = vunpack.c.l.b16 %v960
        %v1541 = vunpack.c.l.b16 %v961
        %v1542 = vunpack.c.h.b16 %v961
        %v1543 = vunpack.c.l.b16 %v962
        %v1544 = vunpack.c.h.b16 %v962
        %v1545 = vunpack.c.l.b16 %v963
        %v1546 = vunpack.c.h.b16 %v963
        %v1547 = vunpack.c.l.b16 %v964
        %v1548 = vunpack.c.h.b16 %v964
        %v1549 = vunpack.c.l.b16 %v965
        %v1550 = vunpack.c.l.b16 %v966
        %v1551 = vunpack.c.h.b16 %v966
        %v1552 = vunpack.c.l.b16 %v967
        %v1553 = vunpack.c.h.b16 %v967
        %v1554 = vunpack.c.l.b16 %v968
        %v1555 = vunpack.c.h.b16 %v968
        %v1556 = vunpack.c.l.b16 %v969
        %v1557 = vunpack.c.h.b16 %v969
        %v1558 = vunpack.c.l.b16 %v970
        %v1559 = vunpack.c.l.b16 %v971
        %v1560 = vunpack.c.h.b16 %v971
        %v1561 = vunpack.c.l.b16 %v972
        %v1562 = vunpack.c.h.b16 %v972
        %v1563 = vunpack.c.l.b16 %v973
        %v1564 = vunpack.c.h.b16 %v973
        %v1565 = vunpack.c.l.b16 %v974
        %v1566 = vunpack.c.h.b16 %v974
        %v1567 = vunpack.c.l.b16 %v975
        %v1568 = vunpack.c.l.b16 %v976
        %v1569 = vunpack.c.h.b16 %v976
        %v1570 = vunpack.c.l.b16 %v977
        %v1571 = vunpack.c.h.b16 %v977
        %v1572 = vunpack.c.l.b16 %v978
        %v1573 = vunpack.c.h.b16 %v978
        %v1574 = vunpack.c.l.b16 %v979
        %v1575 = vunpack.c.h.b16 %v979
        %v1576 = vunpack.c.l.b16 %v980
        %v1577 = vunpack.c.l.b16 %v981
        %v1578 = vunpack.c.h.b16 %v981
        %v1579 = vunpack.c.l.b16 %v982
        %v1580 = vunpack.c.h.b16 %v982
        %v1581 = vunpack.c.l.b16 %v983
        %v1582 = vunpack.c.h.b16 %v983
        %v1583 = vunpack.c.l.b16 %v984
        %v1584 = vunpack.c.h.b16 %v984
        %v1585 = vunpack.c.l.b16 %v985
        %v1586 = vunpack.c.l.b16 %v986
        %v1587 = vunpack.c.h.b16 %v986
        %v1588 = vunpack.c.l.b16 %v987
        %v1589 = vunpack.c.h.b16 %v987
        %v1590 = vunpack.c.l.b16 %v988
        %v1591 = vunpack.c.h.b16 %v988
        %v1592 = vunpack.c.l.b16 %v989
        %v1593 = vunpack.c.h.b16 %v989
        %v1594 = vunpack.c.l.b16 %v990
        %v1595 = vunpack.c.l.b16 %v991
        %v1596 = vunpack.c.h.b16 %v991
        %v1597 = vunpack.c.l.b16 %v992
        %v1598 = vunpack.c.h.b16 %v992
        %v1599 = vunpack.c.l.b16 %v993
        %v1600 = vunpack.c.h.b16 %v993
        %v1601 = vunpack.c.l.b16 %v994
        %v1602 = vunpack.c.h.b16 %v994
        %v1603 = vunpack.c.l.b16 %v995
        %v1604 = vunpack.c.l.b16 %v996
        %v1605 = vunpack.c.h.b16 %v996
        %v1606 = vunpack.c.l.b16 %v997
        %v1607 = vunpack.c.h.b16 %v997
        %v1608 = vunpack.c.l.b16 %v998
        %v1609 = vunpack.c.h.b16 %v998
        %v1610 = vunpack.c.l.b16 %v999
        %v1611 = vunpack.c.h.b16 %v999
        %v1612 = vunpack.c.l.b16 %v1000
        %v1613 = vunpack.c.l.b16 %v1001
        %v1614 = vunpack.c.h.b16 %v1001
        %v1615 = vunpack.c.l.b16 %v1002
        %v1616 = vunpack.c.h.b16 %v1002
        %v1617 = vunpack.c.l.b16 %v1003
        %v1618 = vunpack.c.h.b16 %v1003
        %v1619 = vunpack.c.l.b16 %v1004
        %v1620 = vunpack.c.h.b16 %v1004
        %v1621 = vunpack.c.l.b16 %v1005
        %v1622 = vunpack.c.l.b16 %v1006
        %v1623 = vunpack.c.h.b16 %v1006
        %v1624 = vunpack.c.l.b16 %v1007
        %v1625 = vunpack.c.h.b16 %v1007
        %v1626 = vunpack.c.l.b16 %v1008
        %v1627 = vunpack.c.h.b16 %v1008
        %v1628 = vunpack.c.l.b16 %v1009
        %v1629 = vunpack.c.h.b16 %v1009
        %v1630 = vunpack.c.l.b16 %v1010
        %v1631 = vunpack.c.l.b16 %v1011
        %v1632 = vunpack.c.h.b16 %v1011
        %v1633 = vunpack.c.l.b16 %v1012
        %v1634 = vunpack.c.h.b16 %v1012
        %v1635 = vunpack.c.l.b16 %v1013
        %v1636 = vunpack.c.h.b16 %v1013
        %v1637 = vunpack.c.l.b16 %v1014
        %v1638 = vunpack.c.h.b16 %v1014
        %v1639 = vunpack.c.l.b16 %v1015
        %v1640 = vunpack.c.l.b16 %v1016
        %v1641 = vunpack.c.h.b16 %v1016
        %v1642 = vunpack.c.l.b16 %v1017
        %v1643 = vunpack.c.h.b16 %v1017
        %v1644 = vunpack.c.l.b16 %v1018
        %v1645 = vunpack.c.h.b16 %v1018
        %v1646 = vunpack.c.l.b16 %v1019
        %v1647 = vunpack.c.h.b16 %v1019
        %v1648 = vunpack.c.l.b16 %v1020
        %v1649 = vunpack.c.l.b16 %v1021
        %v1650 = vunpack.c.h.b16 %v1021
        %v1651 = vunpack.c.l.b16 %v1022
        %v1652 = vunpack.c.h.b16 %v1022
        %v1653 = vunpack.c.l.b16 %v1023
        %v1654 = vunpack.c.h.b16 %v1023
        %v1655 = vunpack.c.l.b16 %v1024
        %v1656 = vunpack.c.h.b16 %v1024
        %v1657 = vunpack.c.l.b16 %v1025
        %v1658 = vunpack.c.l.b16 %v1026
        %v1659 = vunpack.c.h.b16 %v1026
        %v1660 = vunpack.c.l.b16 %v1027
        %v1661 = vunpack.c.h.b16 %v1027
        %v1662 = vunpack.c.l.b16 %v1028
        %v1663 = vunpack.c.h.b16 %v1028
        %v1664 = vunpack.c.l.b16 %v1029
        %v1665 = vunpack.c.h.b16 %v1029
        %v1666 = vunpack.c.l.b16 %v1030
        %v1667 = vunpack.c.l.b16 %v1031
        %v1668 = vunpack.c.h.b16 %v1031
        %v1669 = vunpack.c.l.b16 %v1032
        %v1670 = vunpack.c.h.b16 %v1032
        %v1671 = vunpack.c.l.b16 %v1033
        %v1672 = vunpack.c.h.b16 %v1033
        %v1673 = vunpack.c.l.b16 %v1034
        %v1674 = vunpack.c.h.b16 %v1034
        %v1675 = vunpack.c.l.b16 %v1035
        %v1676 = vunpack.c.l.b16 %v1036
        %v1677 = vunpack.c.h.b16 %v1036
        %v1678 = vunpack.c.l.b16 %v1037
        %v1679 = vunpack.c.h.b16 %v1037
        %v1680 = vunpack.c.l.b16 %v1038
        %v1681 = vunpack.c.h.b16 %v1038
        %v1682 = vunpack.c.l.b16 %v1039
        %v1683 = vunpack.c.h.b16 %v1039
        %v1684 = vunpack.c.l.b16 %v1040
        %v1685 = vunpack.c.l.b16 %v1041
        %v1686 = vunpack.c.h.b16 %v1041
        %v1687 = vunpack.c.l.b16 %v1042
        %v1688 = vunpack.c.h.b16 %v1042
        %v1689 = vunpack.c.l.b16 %v1043
        %v1690 = vunpack.c.h.b16 %v1043
        %v1691 = vunpack.c.l.b16 %v1044
        %v1692 = vunpack.c.h.b16 %v1044
        %v1693 = vunpack.c.l.b16 %v1045
        %v1694 = vunpack.c.l.b16 %v1046
        %v1695 = vunpack.c.h.b16 %v1046
        %v1696 = vunpack.c.l.b16 %v1047
        %v1697 = vunpack.c.h.b16 %v1047
        %v1698 = vunpack.c.l.b16 %v1048
        %v1699 = vunpack.c.h.b16 %v1048
        %v1700 = vunpack.c.l.b16 %v1049
        %v1701 = vunpack.c.h.b16 %v1049
        %v1702 = vunpack.c.l.b16 %v1050
        %v1703 = vunpack.c.l.b16 %v1051
        %v1704 = vunpack.c.h.b16 %v1051
        %v1705 = vunpack.c.l.b16 %v1052
        %v1706 = vunpack.c.h.b16 %v1052
        %v1707 = vunpack.c.l.b16 %v1053
        %v1708 = vunpack.c.h.b16 %v1053
        %v1709 = vunpack.c.l.b16 %v1054
        %v1710 = vunpack.c.h.b16 %v1054
        %v1711 = vunpack.c.l.b16 %v1055
        %v1712 = vunpack.c.l.b16 %v1056
        %v1713 = vunpack.c.h.b16 %v1056
        %v1714 = vunpack.c.l.b16 %v1057
        %v1715 = vunpack.c.h.b16 %v1057
        %v1716 = vunpack.c.l.b16 %v1058
        %v1717 = vunpack.c.h.b16 %v1058
        %v1718 = vunpack.c.l.b16 %v1059
        %v1719 = vunpack.c.h.b16 %v1059
        %v1720 = vunpack.c.l.b16 %v1060
        %v1721 = vunpack.c.l.b16 %v1061
        %v1722 = vunpack.c.h.b16 %v1061
        %v1723 = vunpack.c.l.b16 %v1062
        %v1724 = vunpack.c.h.b16 %v1062
        %v1725 = vunpack.c.l.b16 %v1063
        %v1726 = vunpack.c.h.b16 %v1063
        %v1727 = vunpack.c.l.b16 %v1064
        %v1728 = vunpack.c.h.b16 %v1064
        %v1729 = vunpack.c.l.b16 %v1065
        %v1730 = vunpack.c.l.b16 %v1066
        %v1731 = vunpack.c.h.b16 %v1066
        %v1732 = vunpack.c.l.b16 %v1067
        %v1733 = vunpack.c.h.b16 %v1067
        %v1734 = vunpack.c.l.b16 %v1068
        %v1735 = vunpack.c.h.b16 %v1068
        %v1736 = vunpack.c.l.b16 %v1069
        %v1737 = vunpack.c.h.b16 %v1069
        %v1738 = vunpack.c.l.b16 %v1070
        %v1739 = vunpack.c.l.b16 %v1071
        %v1740 = vunpack.c.h.b16 %v1071
        %v1741 = vunpack.c.l.b16 %v1072
        %v1742 = vunpack.c.h.b16 %v1072
        %v1743 = vunpack.c.l.b16 %v1073
        %v1744 = vunpack.c.h.b16 %v1073
        %v1745 = vunpack.c.l.b16 %v1074
        %v1746 = vunpack.c.h.b16 %v1074
        %v1747 = vunpack.c.l.b16 %v1075
        %v1748 = vpack.c.b16 %v1325, %v1316
        %v1749 = vpack.c.b16 %v1326, %v1317
        %v1750 = vpack.c.b16 %v1327, %v1318
        %v1751 = vpack.c.b16 %v1328, %v1319
        %v1752 = vpack.c.b16 %v1329, %v1320
        %v1753 = vpack.c.b16 %v1330, %v1321
        %v1754 = vpack.c.b16 %v1331, %v1322
        %v1755 = vpack.c.b16 %v1332, %v1323
        %v1756 = vpack.c.b16 %v1333, %v1324
        %v1757 = vpack.c.b16 %v1343, %v1334
        %v1758 = vpack.c.b16 %v1344, %v1335
        %v1759 = vpack.c.b16 %v1345, %v1336
        %v1760 = vpack.c.b16 %v1346, %v1337
        %v1761 = vpack.c.b16 %v1347, %v1338
        %v1762 = vpack.c.b16 %v1348, %v1339
        %v1763 = vpack.c.b16 %v1349, %v1340
        %v1764 = vpack.c.b16 %v1350, %v1341
        %v1765 = vpack.c.b16 %v1351, %v1342
        %v1766 = vpack.c.b16 %v1361, %v1352
        %v1767 = vpack.c.b16 %v1362, %v1353
        %v1768 = vpack.c.b16 %v1363, %v1354
        %v1769 = vpack.c.b16 %v1364, %v1355
        %v1770 = vpack.c.b16 %v1365, %v1356
        %v1771 = vpack.c.b16 %v1366, %v1357
        %v1772 = vpack.c.b16 %v1367, %v1358
        %v1773 = vpack.c.b16 %v1368, %v1359
        %v1774 = vpack.c.b16 %v1369, %v1360
        %v1775 = vpack.c.b16 %v1379, %v1370
        %v1776 = vpack.c.b16 %v1380, %v1371
        %v1777 = vpack.c.b16 %v1381, %v1372
        %v1778 = vpack.c.b16 %v1382, %v1373
        %v1779 = vpack.c.b16 %v1383, %v1374
        %v1780 = vpack.c.b16 %v1384, %v1375
        %v1781 = vpack.c.b16 %v1385, %v1376
        %v1782 = vpack.c.b16 %v1386, %v1377
        %v1783 = vpack.c.b16 %v1387, %v1378
        %v1784 = vpack.c.b16 %v1397, %v1388
        %v1785 = vpack.c.b16 %v1398, %v1389
        %v1786 = vpack.c.b16 %v1399, %v1390
        %v1787 = vpack.c.b16 %v1400, %v1391
        %v1788 = vpack.c.b16 %v1401, %v1392
        %v1789 = vpack.c.b16 %v1402, %v1393
        %v1790 = vpack.c.b16 %v1403, %v1394
        %v1791 = vpack.c.b16 %v1404, %v1395
        %v1792 = vpack.c.b16 %v1405, %v1396
        %v1793 = vpack.c.b16 %v1415, %v1406
        %v1794 = vpack.c.b16 %v1416, %v1407
        %v1795 = vpack.c.b16 %v1417, %v1408
        %v1796 = vpack.c.b16 %v1418, %v1409
        %v1797 = vpack.c.b16 %v1419, %v1410
        %v1798 = vpack.c.b16 %v1420, %v1411
        %v1799 = vpack.c.b16 %v1421, %v1412
        %v1800 = vpack.c.b16 %v1422, %v1413
        %v1801 = vpack.c.b16 %v1423, %v1414
        %v1802 = vpack.c.b16 %v1433, %v1424
        %v1803 = vpack.c.b16 %v1434, %v1425
        %v1804 = vpack.c.b16 %v1435, %v1426
        %v1805 = vpack.c.b16 %v1436, %v1427
        %v1806 = vpack.c.b16 %v1437, %v1428
        %v1807 = vpack.c.b16 %v1438, %v1429
        %v1808 = vpack.c.b16 %v1439, %v1430
        %v1809 = vpack.c.b16 %v1440, %v1431
        %v1810 = vpack.c.b16 %v1441, %v1432
        %v1811 = vpack.c.b16 %v1451, %v1442
        %v1812 = vpack.c.b16 %v1452, %v1443
        %v1813 = vpack.c.b16 %v1453, %v1444
        %v1814 = vpack.c.b16 %v1454, %v1445
        %v1815 = vpack.c.b16 %v1455, %v1446
        %v1816 = vpack.c.b16 %v1456, %v1447
        %v1817 = vpack.c.b16 %v1457, %v1448
        %v1818 = vpack.c.b16 %v1458, %v1449
        %v1819 = vpack.c.b16 %v1459, %v1450
        %v1820 = vpack.c.b16 %v1469, %v1460
        %v1821 = vpack.c.b16 %v1470, %v1461
        %v1822 = vpack.c.b16 %v1471, %v1462
        %v1823 = vpack.c.b16 %v1472, %v1463
        %v1824 = vpack.c.b16 %v1473, %v1464
        %v1825 = vpack.c.b16 %v1474, %v1465
        %v1826 = vpack.c.b16 %v1475, %v1466
        %v1827 = vpack.c.b16 %v1476, %v1467
        %v1828 = vpack.c.b16 %v1477, %v1468
        %v1829 = vpack.c.b16 %v1487, %v1478
        %v1830 = vpack.c.b16 %v1488, %v1479
        %v1831 = vpack.c.b16 %v1489, %v1480
        %v1832 = vpack.c.b16 %v1490, %v1481
        %v1833 = vpack.c.b16 %v1491, %v1482
        %v1834 = vpack.c.b16 %v1492, %v1483
        %v1835 = vpack.c.b16 %v1493, %v1484
        %v1836 = vpack.c.b16 %v1494, %v1485
        %v1837 = vpack.c.b16 %v1495, %v1486
        %v1838 = vpack.c.b16 %v1505, %v1496
        %v1839 = vpack.c.b16 %v1506, %v1497
        %v1840 = vpack.c.b16 %v1507, %v1498
        %v1841 = vpack.c.b16 %v1508, %v1499
        %v1842 = vpack.c.b16 %v1509, %v1500
        %v1843 = vpack.c.b16 %v1510, %v1501
        %v1844 = vpack.c.b16 %v1511, %v1502
        %v1845 = vpack.c.b16 %v1512, %v1503
        %v1846 = vpack.c.b16 %v1513, %v1504
        %v1847 = vpack.c.b16 %v1523, %v1514
        %v1848 = vpack.c.b16 %v1524, %v1515
        %v1849 = vpack.c.b16 %v1525, %v1516
        %v1850 = vpack.c.b16 %v1526, %v1517
        %v1851 = vpack.c.b16 %v1527, %v1518
        %v1852 = vpack.c.b16 %v1528, %v1519
        %v1853 = vpack.c.b16 %v1529, %v1520
        %v1854 = vpack.c.b16 %v1530, %v1521
        %v1855 = vpack.c.b16 %v1531, %v1522
        %v1856 = vpack.c.b16 %v1541, %v1532
        %v1857 = vpack.c.b16 %v1542, %v1533
        %v1858 = vpack.c.b16 %v1543, %v1534
        %v1859 = vpack.c.b16 %v1544, %v1535
        %v1860 = vpack.c.b16 %v1545, %v1536
        %v1861 = vpack.c.b16 %v1546, %v1537
        %v1862 = vpack.c.b16 %v1547, %v1538
        %v1863 = vpack.c.b16 %v1548, %v1539
        %v1864 = vpack.c.b16 %v1549, %v1540
        %v1865 = vpack.c.b16 %v1559, %v1550
        %v1866 = vpack.c.b16 %v1560, %v1551
        %v1867 = vpack.c.b16 %v1561, %v1552
        %v1868 = vpack.c.b16 %v1562, %v1553
        %v1869 = vpack.c.b16 %v1563, %v1554
        %v1870 = vpack.c.b16 %v1564, %v1555
        %v1871 = vpack.c.b16 %v1565, %v1556
        %v1872 = vpack.c.b16 %v1566, %v1557
        %v1873 = vpack.c.b16 %v1567, %v1558
        %v1874 = vpack.c.b16 %v1577, %v1568
        %v1875 = vpack.c.b16 %v1578, %v1569
        %v1876 = vpack.c.b16 %v1579, %v1570
        %v1877 = vpack.c.b16 %v1580, %v1571
        %v1878 = vpack.c.b16 %v1581, %v1572
        %v1879 = vpack.c.b16 %v1582, %v1573
        %v1880 = vpack.c.b16 %v1583, %v1574
        %v1881 = vpack.c.b16 %v1584, %v1575
        %v1882 = vpack.c.b16 %v1585, %v1576
        %v1883 = vpack.c.b16 %v1595, %v1586
        %v1884 = vpack.c.b16 %v1596, %v1587
        %v1885 = vpack.c.b16 %v1597, %v1588
        %v1886 = vpack.c.b16 %v1598, %v1589
        %v1887 = vpack.c.b16 %v1599, %v1590
        %v1888 = vpack.c.b16 %v1600, %v1591
        %v1889 = vpack.c.b16 %v1601, %v1592
        %v1890 = vpack.c.b16 %v1602, %v1593
        %v1891 = vpack.c.b16 %v1603, %v1594
        %v1892 = vpack.c.b16 %v1613, %v1604
        %v1893 = vpack.c.b16 %v1614, %v1605
        %v1894 = vpack.c.b16 %v1615, %v1606
        %v1895 = vpack.c.b16 %v1616, %v1607
        %v1896 = vpack.c.b16 %v1617, %v1608
        %v1897 = vpack.c.b16 %v1618, %v1609
        %v1898 = vpack.c.b16 %v1619, %v1610
        %v1899 = vpack.c.b16 %v1620, %v1611
        %v1900 = vpack.c.b16 %v1621, %v1612
        %v1901 = vpack.c.b16 %v1631, %v1622
        %v1902 = vpack.c.b16 %v1632, %v1623
        %v1903 = vpack.c.b16 %v1633, %v1624
        %v1904 = vpack.c.b16 %v1634, %v1625
        %v1905 = vpack.c.b16 %v1635, %v1626
        %v1906 = vpack.c.b16 %v1636, %v1627
        %v1907 = vpack.c.b16 %v1637, %v1628
        %v1908 = vpack.c.b16 %v1638, %v1629
        %v1909 = vpack.c.b16 %v1639, %v1630
        %v1910 = vpack.c.b16 %v1649, %v1640
        %v1911 = vpack.c.b16 %v1650, %v1641
        %v1912 = vpack.c.b16 %v1651, %v1642
        %v1913 = vpack.c.b16 %v1652, %v1643
        %v1914 = vpack.c.b16 %v1653, %v1644
        %v1915 = vpack.c.b16 %v1654, %v1645
        %v1916 = vpack.c.b16 %v1655, %v1646
        %v1917 = vpack.c.b16 %v1656, %v1647
        %v1918 = vpack.c.b16 %v1657, %v1648
        %v1919 = vpack.c.b16 %v1667, %v1658
        %v1920 = vpack.c.b16 %v1668, %v1659
        %v1921 = vpack.c.b16 %v1669, %v1660
        %v1922 = vpack.c.b16 %v1670, %v1661
        %v1923 = vpack.c.b16 %v1671, %v1662
        %v1924 = vpack.c.b16 %v1672, %v1663
        %v1925 = vpack.c.b16 %v1673, %v1664
        %v1926 = vpack.c.b16 %v1674, %v1665
        %v1927 = vpack.c.b16 %v1675, %v1666
        %v1928 = vpack.c.b16 %v1685, %v1676
        %v1929 = vpack.c.b16 %v1686, %v1677
        %v1930 = vpack.c.b16 %v1687, %v1678
        %v1931 = vpack.c.b16 %v1688, %v1679
        %v1932 = vpack.c.b16 %v1689, %v1680
        %v1933 = vpack.c.b16 %v1690, %v1681
        %v1934 = vpack.c.b16 %v1691, %v1682
        %v1935 = vpack.c.b16 %v1692, %v1683
        %v1936 = vpack.c.b16 %v1693, %v1684
        %v1937 = vpack.c.b16 %v1703, %v1694
        %v1938 = vpack.c.b16 %v1704, %v1695
        %v1939 = vpack.c.b16 %v1705, %v1696
        %v1940 = vpack.c.b16 %v1706, %v1697
        %v1941 = vpack.c.b16 %v1707, %v1698
        %v1942 = vpack.c.b16 %v1708, %v1699
        %v1943 = vpack.c.b16 %v1709, %v1700
        %v1944 = vpack.c.b16 %v1710, %v1701
        %v1945 = vpack.c.b16 %v1711, %v1702
        %v1946 = vpack.c.b16 %v1721, %v1712
        %v1947 = vpack.c.b16 %v1722, %v1713
        %v1948 = vpack.c.b16 %v1723, %v1714
        %v1949 = vpack.c.b16 %v1724, %v1715
        %v1950 = vpack.c.b16 %v1725, %v1716
        %v1951 = vpack.c.b16 %v1726, %v1717
        %v1952 = vpack.c.b16 %v1727, %v1718
        %v1953 = vpack.c.b16 %v1728, %v1719
        %v1954 = vpack.c.b16 %v1729, %v1720
        %v1955 = vpack.c.b16 %v1739, %v1730
        %v1956 = vpack.c.b16 %v1740, %v1731
        %v1957 = vpack.c.b16 %v1741, %v1732
        %v1958 = vpack.c.b16 %v1742, %v1733
        %v1959 = vpack.c.b16 %v1743, %v1734
        %v1960 = vpack.c.b16 %v1744, %v1735
        %v1961 = vpack.c.b16 %v1745, %v1736
        %v1962 = vpack.c.b16 %v1746, %v1737
        %v1963 = vpack.c.b16 %v1747, %v1738
        %2180 = vmatprep.subr.bf16.mxu0 %v1812
        %2181 = vmatpush1.bf16.msra.mxu0 %v1811
        %2182 = vmatprep.subr.bf16.mxu0 %v1803
        %2183 = vmatpush1.bf16.msra.mxu0 %v1802
        %2184 = vmatprep.subr.bf16.mxu0 %v1794
        %2185 = vmatpush1.bf16.msra.mxu0 %v1793
        %2186 = vmatprep.subr.bf16.mxu0 %v1785
        %2187 = vmatpush1.bf16.msra.mxu0 %v1784
        %2188 = vmatprep.subr.bf16.mxu0 %v1776
        %2189 = vmatpush1.bf16.msra.mxu0 %v1775
        %2190 = vmatprep.subr.bf16.mxu0 %v1767
        %2191 = vmatpush1.bf16.msra.mxu0 %v1766
        %2192 = vmatprep.subr.bf16.mxu0 %v1758
        %2193 = vmatpush1.bf16.msra.mxu0 %v1757
        %2194 = vmatprep.subr.bf16.mxu0 %v1749
        %2195 = vmatpush1.bf16.msra.mxu0 %v1748
        %2196 = vmatprep.subr.bf16.mxu0 %v1884
        %2197 = vmatpush2.bf16.msra.mxu0 %v1883
        %2198 = vmatprep.subr.bf16.mxu0 %v1875
        %2199 = vmatpush2.bf16.msra.mxu0 %v1874
        %2200 = vmatprep.subr.bf16.mxu0 %v1866
        %2201 = vmatpush2.bf16.msra.mxu0 %v1865
        %2202 = vmatprep.subr.bf16.mxu0 %v1857
        %2203 = vmatpush2.bf16.msra.mxu0 %v1856
        %2204 = vmatprep.subr.bf16.mxu0 %v1848
        %2205 = vmatpush2.bf16.msra.mxu0 %v1847
        %2206 = vmatprep.subr.bf16.mxu0 %v1839
        %2207 = vmatpush2.bf16.msra.mxu0 %v1838
        %2208 = vmatprep.subr.bf16.mxu0 %v1830
        %2209 = vmatpush2.bf16.msra.mxu0 %v1829
        %2210 = vmatprep.subr.bf16.mxu0 %v1821
        %2211 = vmatpush2.bf16.msra.mxu0 %v1820
        %2212 = vmatprep.mubr.bf16.mxu0 %v825
        %2213 = vmatmul.mubr.bf16.gmra.mxu0 %v824
        %v2214 = vpop.f32.mrf.mxu0
        %v2215 = vadd.f32 0.0, %v2214
        %v2216 = vpop.f32.mrf.mxu0
        %v2217 = vadd.f32 0.0, %v2216
        %v2218 = vpop.f32.mrf.mxu0
        %v2219 = vadd.f32 0.0, %v2218
        %v2220 = vpop.f32.mrf.mxu0
        %v2221 = vadd.f32 0.0, %v2220
        %2222 = vmatprep.mubr.bf16.mxu0 %v828
        %2223 = vmatmul.mubr.bf16.gmra.mxu0 %v827
        %v2224 = vpop.f32.mrf.mxu0
        %v2225 = vadd.f32 0.0, %v2224
        %v2226 = vpop.f32.mrf.mxu0
        %v2227 = vadd.f32 0.0, %v2226
        %v2228 = vpop.f32.mrf.mxu0
        %v2229 = vadd.f32 0.0, %v2228
        %v2230 = vpop.f32.mrf.mxu0
        %v2231 = vadd.f32 0.0, %v2230
        %2232 = vmatprep.mubr.bf16.mxu0 %v831
        %2233 = vmatmul.mubr.bf16.gmra.mxu0 %v830
        %v2234 = vpop.f32.mrf.mxu0
        %v2235 = vadd.f32 0.0, %v2234
        %v2236 = vpop.f32.mrf.mxu0
        %v2237 = vadd.f32 0.0, %v2236
        %v2238 = vpop.f32.mrf.mxu0
        %v2239 = vadd.f32 0.0, %v2238
        %v2240 = vpop.f32.mrf.mxu0
        %v2241 = vadd.f32 0.0, %v2240
        %2242 = vmatprep.mubr.bf16.mxu0 %v834
        %2243 = vmatmul.mubr.bf16.gmra.mxu0 %v833
        %v2244 = vpop.f32.mrf.mxu0
        %v2245 = vadd.f32 0.0, %v2244
        %v2246 = vpop.f32.mrf.mxu0
        %v2247 = vadd.f32 0.0, %v2246
        %v2248 = vpop.f32.mrf.mxu0
        %v2249 = vpop.f32.mrf.mxu0
        %2250 = vdwg.mxu0
        %2251 = vmatprep.subr.bf16.mxu0 %v1956
        %2252 = vmatpush1.bf16.msra.mxu0 %v1955
        %2253 = vmatprep.subr.bf16.mxu0 %v1947
        %2254 = vmatpush1.bf16.msra.mxu0 %v1946
        %2255 = vmatprep.subr.bf16.mxu0 %v1938
        %2256 = vmatpush1.bf16.msra.mxu0 %v1937
        %2257 = vmatprep.subr.bf16.mxu0 %v1929
        %2258 = vmatpush1.bf16.msra.mxu0 %v1928
        %2259 = vmatprep.subr.bf16.mxu0 %v1920
        %2260 = vmatpush1.bf16.msra.mxu0 %v1919
        %2261 = vmatprep.subr.bf16.mxu0 %v1911
        %2262 = vmatpush1.bf16.msra.mxu0 %v1910
        %2263 = vmatprep.subr.bf16.mxu0 %v1902
        %2264 = vmatpush1.bf16.msra.mxu0 %v1901
        %2265 = vmatprep.subr.bf16.mxu0 %v1893
        %2266 = vmatpush1.bf16.msra.mxu0 %v1892
        %2267 = vmatprep.subr.bf16.mxu0 0
        %2268 = vmatpush2.bf16.msra.mxu0 0
        %2269 = vmatprep.subr.bf16.mxu0 0
        %2270 = vmatpush2.bf16.msra.mxu0 0
        %2271 = vmatprep.subr.bf16.mxu0 0
        %2272 = vmatpush2.bf16.msra.mxu0 0
        %2273 = vmatprep.subr.bf16.mxu0 0
        %2274 = vmatpush2.bf16.msra.mxu0 0
        %2275 = vmatprep.subr.bf16.mxu0 0
        %2276 = vmatpush2.bf16.msra.mxu0 0
        %2277 = vmatprep.subr.bf16.mxu0 0
        %2278 = vmatpush2.bf16.msra.mxu0 0
        %2279 = vmatprep.subr.bf16.mxu0 0
        %2280 = vmatpush2.bf16.msra.mxu0 0
        %2281 = vmatprep.subr.bf16.mxu0 0
        %2282 = vmatpush2.bf16.msra.mxu0 0
        %2283 = vmatprep.mubr.bf16.mxu0 0
        %2284 = vmatmul.mubr.bf16.gmra.mxu0 %v826
        %v2285 = vpop.f32.mrf.mxu0
        %v2286 = vadd.f32 %v2215, %v2285
        %v2287 = vpop.f32.mrf.mxu0
        %v2288 = vadd.f32 %v2217, %v2287
        %v2289 = vpop.f32.mrf.mxu0
        %v2290 = vadd.f32 %v2219, %v2289
        %v2291 = vpop.f32.mrf.mxu0
        %v2292 = vadd.f32 %v2221, %v2291
        %2293 = vmatprep.mubr.bf16.mxu0 0
        %2294 = vmatmul.mubr.bf16.gmra.mxu0 %v829
        %v2295 = vpop.f32.mrf.mxu0
        %v2296 = vadd.f32 %v2225, %v2295
        %v2297 = vpop.f32.mrf.mxu0
        %v2298 = vadd.f32 %v2227, %v2297
        %v2299 = vpop.f32.mrf.mxu0
        %v2300 = vadd.f32 %v2229, %v2299
        %v2301 = vpop.f32.mrf.mxu0
        %v2302 = vadd.f32 %v2231, %v2301
        %2303 = vmatprep.mubr.bf16.mxu0 0
        %2304 = vmatmul.mubr.bf16.gmra.mxu0 %v832
        %v2305 = vpop.f32.mrf.mxu0
        %v2306 = vadd.f32 %v2235, %v2305
        %v2307 = vpop.f32.mrf.mxu0
        %v2308 = vadd.f32 %v2237, %v2307
        %v2309 = vpop.f32.mrf.mxu0
        %v2310 = vadd.f32 %v2239, %v2309
        %v2311 = vpop.f32.mrf.mxu0
        %v2312 = vadd.f32 %v2241, %v2311
        %2313 = vmatprep.mubr.bf16.mxu0 0
        %2314 = vmatmul.mubr.bf16.gmra.mxu0 %v835
        %v2315 = vpop.f32.mrf.mxu0
        %v2316 = vadd.f32 %v2245, %v2315
        %v2317 = vpop.f32.mrf.mxu0
        %v2318 = vadd.f32 %v2247, %v2317
        %v2319 = vpop.f32.mrf.mxu0
        %v2320 = vpop.f32.mrf.mxu0
        %2321 = vdwg.mxu0
        %2322 = vmatprep.subr.bf16.mxu0 %v1814
        %2323 = vmatpush1.bf16.msra.mxu0 %v1813
        %2324 = vmatprep.subr.bf16.mxu0 %v1805
        %2325 = vmatpush1.bf16.msra.mxu0 %v1804
        %2326 = vmatprep.subr.bf16.mxu0 %v1796
        %2327 = vmatpush1.bf16.msra.mxu0 %v1795
        %2328 = vmatprep.subr.bf16.mxu0 %v1787
        %2329 = vmatpush1.bf16.msra.mxu0 %v1786
        %2330 = vmatprep.subr.bf16.mxu0 %v1778
        %2331 = vmatpush1.bf16.msra.mxu0 %v1777
        %2332 = vmatprep.subr.bf16.mxu0 %v1769
        %2333 = vmatpush1.bf16.msra.mxu0 %v1768
        %2334 = vmatprep.subr.bf16.mxu0 %v1760
        %2335 = vmatpush1.bf16.msra.mxu0 %v1759
        %2336 = vmatprep.subr.bf16.mxu0 %v1751
        %2337 = vmatpush1.bf16.msra.mxu0 %v1750
        %2338 = vmatprep.subr.bf16.mxu0 %v1886
        %2339 = vmatpush2.bf16.msra.mxu0 %v1885
        %2340 = vmatprep.subr.bf16.mxu0 %v1877
        %2341 = vmatpush2.bf16.msra.mxu0 %v1876
        %2342 = vmatprep.subr.bf16.mxu0 %v1868
        %2343 = vmatpush2.bf16.msra.mxu0 %v1867
        %2344 = vmatprep.subr.bf16.mxu0 %v1859
        %2345 = vmatpush2.bf16.msra.mxu0 %v1858
        %2346 = vmatprep.subr.bf16.mxu0 %v1850
        %2347 = vmatpush2.bf16.msra.mxu0 %v1849
        %2348 = vmatprep.subr.bf16.mxu0 %v1841
        %2349 = vmatpush2.bf16.msra.mxu0 %v1840
        %2350 = vmatprep.subr.bf16.mxu0 %v1832
        %2351 = vmatpush2.bf16.msra.mxu0 %v1831
        %2352 = vmatprep.subr.bf16.mxu0 %v1823
        %2353 = vmatpush2.bf16.msra.mxu0 %v1822
        %2354 = vmatprep.mubr.bf16.mxu0 %v825
        %2355 = vmatmul.mubr.bf16.gmra.mxu0 %v824
        %v2356 = vpop.f32.mrf.mxu0
        %v2357 = vadd.f32 0.0, %v2356
        %v2358 = vpop.f32.mrf.mxu0
        %v2359 = vadd.f32 0.0, %v2358
        %v2360 = vpop.f32.mrf.mxu0
        %v2361 = vadd.f32 0.0, %v2360
        %v2362 = vpop.f32.mrf.mxu0
        %v2363 = vadd.f32 0.0, %v2362
        %2364 = vmatprep.mubr.bf16.mxu0 %v828
        %2365 = vmatmul.mubr.bf16.gmra.mxu0 %v827
        %v2366 = vpop.f32.mrf.mxu0
        %v2367 = vadd.f32 0.0, %v2366
        %v2368 = vpop.f32.mrf.mxu0
        %v2369 = vadd.f32 0.0, %v2368
        %v2370 = vpop.f32.mrf.mxu0
        %v2371 = vadd.f32 0.0, %v2370
        %v2372 = vpop.f32.mrf.mxu0
        %v2373 = vadd.f32 0.0, %v2372
        %2374 = vmatprep.mubr.bf16.mxu0 %v831
        %2375 = vmatmul.mubr.bf16.gmra.mxu0 %v830
        %v2376 = vpop.f32.mrf.mxu0
        %v2377 = vadd.f32 0.0, %v2376
        %v2378 = vpop.f32.mrf.mxu0
        %v2379 = vadd.f32 0.0, %v2378
        %v2380 = vpop.f32.mrf.mxu0
        %v2381 = vadd.f32 0.0, %v2380
        %v2382 = vpop.f32.mrf.mxu0
        %v2383 = vadd.f32 0.0, %v2382
        %2384 = vmatprep.mubr.bf16.mxu0 %v834
        %2385 = vmatmul.mubr.bf16.gmra.mxu0 %v833
        %v2386 = vpop.f32.mrf.mxu0
        %v2387 = vadd.f32 0.0, %v2386
        %v2388 = vpop.f32.mrf.mxu0
        %v2389 = vadd.f32 0.0, %v2388
        %v2390 = vpop.f32.mrf.mxu0
        %v2391 = vpop.f32.mrf.mxu0
        %2392 = vdwg.mxu0
        %2393 = vmatprep.subr.bf16.mxu0 %v1958
        %2394 = vmatpush1.bf16.msra.mxu0 %v1957
        %2395 = vmatprep.subr.bf16.mxu0 %v1949
        %2396 = vmatpush1.bf16.msra.mxu0 %v1948
        %2397 = vmatprep.subr.bf16.mxu0 %v1940
        %2398 = vmatpush1.bf16.msra.mxu0 %v1939
        %2399 = vmatprep.subr.bf16.mxu0 %v1931
        %2400 = vmatpush1.bf16.msra.mxu0 %v1930
        %2401 = vmatprep.subr.bf16.mxu0 %v1922
        %2402 = vmatpush1.bf16.msra.mxu0 %v1921
        %2403 = vmatprep.subr.bf16.mxu0 %v1913
        %2404 = vmatpush1.bf16.msra.mxu0 %v1912
        %2405 = vmatprep.subr.bf16.mxu0 %v1904
        %2406 = vmatpush1.bf16.msra.mxu0 %v1903
        %2407 = vmatprep.subr.bf16.mxu0 %v1895
        %2408 = vmatpush1.bf16.msra.mxu0 %v1894
        %2409 = vmatprep.subr.bf16.mxu0 0
        %2410 = vmatpush2.bf16.msra.mxu0 0
        %2411 = vmatprep.subr.bf16.mxu0 0
        %2412 = vmatpush2.bf16.msra.mxu0 0
        %2413 = vmatprep.subr.bf16.mxu0 0
        %2414 = vmatpush2.bf16.msra.mxu0 0
        %2415 = vmatprep.subr.bf16.mxu0 0
        %2416 = vmatpush2.bf16.msra.mxu0 0
        %2417 = vmatprep.subr.bf16.mxu0 0
        %2418 = vmatpush2.bf16.msra.mxu0 0
        %2419 = vmatprep.subr.bf16.mxu0 0
        %2420 = vmatpush2.bf16.msra.mxu0 0
        %2421 = vmatprep.subr.bf16.mxu0 0
        %2422 = vmatpush2.bf16.msra.mxu0 0
        %2423 = vmatprep.subr.bf16.mxu0 0
        %2424 = vmatpush2.bf16.msra.mxu0 0
        %2425 = vmatprep.mubr.bf16.mxu0 0
        %2426 = vmatmul.mubr.bf16.gmra.mxu0 %v826
        %v2427 = vpop.f32.mrf.mxu0
        %v2428 = vadd.f32 %v2357, %v2427
        %v2429 = vpop.f32.mrf.mxu0
        %v2430 = vadd.f32 %v2359, %v2429
        %v2431 = vpop.f32.mrf.mxu0
        %v2432 = vadd.f32 %v2361, %v2431
        %v2433 = vpop.f32.mrf.mxu0
        %v2434 = vadd.f32 %v2363, %v2433
        %2435 = vmatprep.mubr.bf16.mxu0 0
        %2436 = vmatmul.mubr.bf16.gmra.mxu0 %v829
        %v2437 = vpop.f32.mrf.mxu0
        %v2438 = vadd.f32 %v2367, %v2437
        %v2439 = vpop.f32.mrf.mxu0
        %v2440 = vadd.f32 %v2369, %v2439
        %v2441 = vpop.f32.mrf.mxu0
        %v2442 = vadd.f32 %v2371, %v2441
        %v2443 = vpop.f32.mrf.mxu0
        %v2444 = vadd.f32 %v2373, %v2443
        %2445 = vmatprep.mubr.bf16.mxu0 0
        %2446 = vmatmul.mubr.bf16.gmra.mxu0 %v832
        %v2447 = vpop.f32.mrf.mxu0
        %v2448 = vadd.f32 %v2377, %v2447
        %v2449 = vpop.f32.mrf.mxu0
        %v2450 = vadd.f32 %v2379, %v2449
        %v2451 = vpop.f32.mrf.mxu0
        %v2452 = vadd.f32 %v2381, %v2451
        %v2453 = vpop.f32.mrf.mxu0
        %v2454 = vadd.f32 %v2383, %v2453
        %2455 = vmatprep.mubr.bf16.mxu0 0
        %2456 = vmatmul.mubr.bf16.gmra.mxu0 %v835
        %v2457 = vpop.f32.mrf.mxu0
        %v2458 = vadd.f32 %v2387, %v2457
        %v2459 = vpop.f32.mrf.mxu0
        %v2460 = vadd.f32 %v2389, %v2459
        %v2461 = vpop.f32.mrf.mxu0
        %v2462 = vpop.f32.mrf.mxu0
        %2463 = vdwg.mxu0
        %2464 = vmatprep.subr.bf16.mxu0 %v1816
        %2465 = vmatpush1.bf16.msra.mxu0 %v1815
        %2466 = vmatprep.subr.bf16.mxu0 %v1807
        %2467 = vmatpush1.bf16.msra.mxu0 %v1806
        %2468 = vmatprep.subr.bf16.mxu0 %v1798
        %2469 = vmatpush1.bf16.msra.mxu0 %v1797
        %2470 = vmatprep.subr.bf16.mxu0 %v1789
        %2471 = vmatpush1.bf16.msra.mxu0 %v1788
        %2472 = vmatprep.subr.bf16.mxu0 %v1780
        %2473 = vmatpush1.bf16.msra.mxu0 %v1779
        %2474 = vmatprep.subr.bf16.mxu0 %v1771
        %2475 = vmatpush1.bf16.msra.mxu0 %v1770
        %2476 = vmatprep.subr.bf16.mxu0 %v1762
        %2477 = vmatpush1.bf16.msra.mxu0 %v1761
        %2478 = vmatprep.subr.bf16.mxu0 %v1753
        %2479 = vmatpush1.bf16.msra.mxu0 %v1752
        %2480 = vmatprep.subr.bf16.mxu0 %v1888
        %2481 = vmatpush2.bf16.msra.mxu0 %v1887
        %2482 = vmatprep.subr.bf16.mxu0 %v1879
        %2483 = vmatpush2.bf16.msra.mxu0 %v1878
        %2484 = vmatprep.subr.bf16.mxu0 %v1870
        %2485 = vmatpush2.bf16.msra.mxu0 %v1869
        %2486 = vmatprep.subr.bf16.mxu0 %v1861
        %2487 = vmatpush2.bf16.msra.mxu0 %v1860
        %2488 = vmatprep.subr.bf16.mxu0 %v1852
        %2489 = vmatpush2.bf16.msra.mxu0 %v1851
        %2490 = vmatprep.subr.bf16.mxu0 %v1843
        %2491 = vmatpush2.bf16.msra.mxu0 %v1842
        %2492 = vmatprep.subr.bf16.mxu0 %v1834
        %2493 = vmatpush2.bf16.msra.mxu0 %v1833
        %2494 = vmatprep.subr.bf16.mxu0 %v1825
        %2495 = vmatpush2.bf16.msra.mxu0 %v1824
        %2496 = vmatprep.mubr.bf16.mxu0 %v825
        %2497 = vmatmul.mubr.bf16.gmra.mxu0 %v824
        %v2498 = vpop.f32.mrf.mxu0
        %v2499 = vadd.f32 0.0, %v2498
        %v2500 = vpop.f32.mrf.mxu0
        %v2501 = vadd.f32 0.0, %v2500
        %v2502 = vpop.f32.mrf.mxu0
        %v2503 = vadd.f32 0.0, %v2502
        %v2504 = vpop.f32.mrf.mxu0
        %v2505 = vadd.f32 0.0, %v2504
        %2506 = vmatprep.mubr.bf16.mxu0 %v828
        %2507 = vmatmul.mubr.bf16.gmra.mxu0 %v827
        %v2508 = vpop.f32.mrf.mxu0
        %v2509 = vadd.f32 0.0, %v2508
        %v2510 = vpop.f32.mrf.mxu0
        %v2511 = vadd.f32 0.0, %v2510
        %v2512 = vpop.f32.mrf.mxu0
        %v2513 = vadd.f32 0.0, %v2512
        %v2514 = vpop.f32.mrf.mxu0
        %v2515 = vadd.f32 0.0, %v2514
        %2516 = vmatprep.mubr.bf16.mxu0 %v831
        %2517 = vmatmul.mubr.bf16.gmra.mxu0 %v830
        %v2518 = vpop.f32.mrf.mxu0
        %v2519 = vadd.f32 0.0, %v2518
        %v2520 = vpop.f32.mrf.mxu0
        %v2521 = vadd.f32 0.0, %v2520
        %v2522 = vpop.f32.mrf.mxu0
        %v2523 = vadd.f32 0.0, %v2522
        %v2524 = vpop.f32.mrf.mxu0
        %v2525 = vadd.f32 0.0, %v2524
        %2526 = vmatprep.mubr.bf16.mxu0 %v834
        %2527 = vmatmul.mubr.bf16.gmra.mxu0 %v833
        %v2528 = vpop.f32.mrf.mxu0
        %v2529 = vadd.f32 0.0, %v2528
        %v2530 = vpop.f32.mrf.mxu0
        %v2531 = vadd.f32 0.0, %v2530
        %v2532 = vpop.f32.mrf.mxu0
        %v2533 = vpop.f32.mrf.mxu0
        %2534 = vdwg.mxu0
        %2535 = vmatprep.subr.bf16.mxu0 %v1960
        %2536 = vmatpush1.bf16.msra.mxu0 %v1959
        %2537 = vmatprep.subr.bf16.mxu0 %v1951
        %2538 = vmatpush1.bf16.msra.mxu0 %v1950
        %2539 = vmatprep.subr.bf16.mxu0 %v1942
        %2540 = vmatpush1.bf16.msra.mxu0 %v1941
        %2541 = vmatprep.subr.bf16.mxu0 %v1933
        %2542 = vmatpush1.bf16.msra.mxu0 %v1932
        %2543 = vmatprep.subr.bf16.mxu0 %v1924
        %2544 = vmatpush1.bf16.msra.mxu0 %v1923
        %2545 = vmatprep.subr.bf16.mxu0 %v1915
        %2546 = vmatpush1.bf16.msra.mxu0 %v1914
        %2547 = vmatprep.subr.bf16.mxu0 %v1906
        %2548 = vmatpush1.bf16.msra.mxu0 %v1905
        %2549 = vmatprep.subr.bf16.mxu0 %v1897
        %2550 = vmatpush1.bf16.msra.mxu0 %v1896
        %2551 = vmatprep.subr.bf16.mxu0 0
        %2552 = vmatpush2.bf16.msra.mxu0 0
        %2553 = vmatprep.subr.bf16.mxu0 0
        %2554 = vmatpush2.bf16.msra.mxu0 0
        %2555 = vmatprep.subr.bf16.mxu0 0
        %2556 = vmatpush2.bf16.msra.mxu0 0
        %2557 = vmatprep.subr.bf16.mxu0 0
        %2558 = vmatpush2.bf16.msra.mxu0 0
        %2559 = vmatprep.subr.bf16.mxu0 0
        %2560 = vmatpush2.bf16.msra.mxu0 0
        %2561 = vmatprep.subr.bf16.mxu0 0
        %2562 = vmatpush2.bf16.msra.mxu0 0
        %2563 = vmatprep.subr.bf16.mxu0 0
        %2564 = vmatpush2.bf16.msra.mxu0 0
        %2565 = vmatprep.subr.bf16.mxu0 0
        %2566 = vmatpush2.bf16.msra.mxu0 0
        %2567 = vmatprep.mubr.bf16.mxu0 0
        %2568 = vmatmul.mubr.bf16.gmra.mxu0 %v826
        %v2569 = vpop.f32.mrf.mxu0
        %v2570 = vadd.f32 %v2499, %v2569
        %v2571 = vpop.f32.mrf.mxu0
        %v2572 = vadd.f32 %v2501, %v2571
        %v2573 = vpop.f32.mrf.mxu0
        %v2574 = vadd.f32 %v2503, %v2573
        %v2575 = vpop.f32.mrf.mxu0
        %v2576 = vadd.f32 %v2505, %v2575
        %2577 = vmatprep.mubr.bf16.mxu0 0
        %2578 = vmatmul.mubr.bf16.gmra.mxu0 %v829
        %v2579 = vpop.f32.mrf.mxu0
        %v2580 = vadd.f32 %v2509, %v2579
        %v2581 = vpop.f32.mrf.mxu0
        %v2582 = vadd.f32 %v2511, %v2581
        %v2583 = vpop.f32.mrf.mxu0
        %v2584 = vadd.f32 %v2513, %v2583
        %v2585 = vpop.f32.mrf.mxu0
        %v2586 = vadd.f32 %v2515, %v2585
        %2587 = vmatprep.mubr.bf16.mxu0 0
        %2588 = vmatmul.mubr.bf16.gmra.mxu0 %v832
        %v2589 = vpop.f32.mrf.mxu0
        %v2590 = vadd.f32 %v2519, %v2589
        %v2591 = vpop.f32.mrf.mxu0
        %v2592 = vadd.f32 %v2521, %v2591
        %v2593 = vpop.f32.mrf.mxu0
        %v2594 = vadd.f32 %v2523, %v2593
        %v2595 = vpop.f32.mrf.mxu0
        %v2596 = vadd.f32 %v2525, %v2595
        %2597 = vmatprep.mubr.bf16.mxu0 0
        %2598 = vmatmul.mubr.bf16.gmra.mxu0 %v835
        %v2599 = vpop.f32.mrf.mxu0
        %v2600 = vadd.f32 %v2529, %v2599
        %v2601 = vpop.f32.mrf.mxu0
        %v2602 = vadd.f32 %v2531, %v2601
        %v2603 = vpop.f32.mrf.mxu0
        %v2604 = vpop.f32.mrf.mxu0
        %2605 = vdwg.mxu0
        %2606 = vmatprep.subr.bf16.mxu0 %v1818
        %2607 = vmatpush1.bf16.msra.mxu0 %v1817
        %2608 = vmatprep.subr.bf16.mxu0 %v1809
        %2609 = vmatpush1.bf16.msra.mxu0 %v1808
        %2610 = vmatprep.subr.bf16.mxu0 %v1800
        %2611 = vmatpush1.bf16.msra.mxu0 %v1799
        %2612 = vmatprep.subr.bf16.mxu0 %v1791
        %2613 = vmatpush1.bf16.msra.mxu0 %v1790
        %2614 = vmatprep.subr.bf16.mxu0 %v1782
        %2615 = vmatpush1.bf16.msra.mxu0 %v1781
        %2616 = vmatprep.subr.bf16.mxu0 %v1773
        %2617 = vmatpush1.bf16.msra.mxu0 %v1772
        %2618 = vmatprep.subr.bf16.mxu0 %v1764
        %2619 = vmatpush1.bf16.msra.mxu0 %v1763
        %2620 = vmatprep.subr.bf16.mxu0 %v1755
        %2621 = vmatpush1.bf16.msra.mxu0 %v1754
        %2622 = vmatprep.subr.bf16.mxu0 %v1890
        %2623 = vmatpush2.bf16.msra.mxu0 %v1889
        %2624 = vmatprep.subr.bf16.mxu0 %v1881
        %2625 = vmatpush2.bf16.msra.mxu0 %v1880
        %2626 = vmatprep.subr.bf16.mxu0 %v1872
        %2627 = vmatpush2.bf16.msra.mxu0 %v1871
        %2628 = vmatprep.subr.bf16.mxu0 %v1863
        %2629 = vmatpush2.bf16.msra.mxu0 %v1862
        %2630 = vmatprep.subr.bf16.mxu0 %v1854
        %2631 = vmatpush2.bf16.msra.mxu0 %v1853
        %2632 = vmatprep.subr.bf16.mxu0 %v1845
        %2633 = vmatpush2.bf16.msra.mxu0 %v1844
        %2634 = vmatprep.subr.bf16.mxu0 %v1836
        %2635 = vmatpush2.bf16.msra.mxu0 %v1835
        %2636 = vmatprep.subr.bf16.mxu0 %v1827
        %2637 = vmatpush2.bf16.msra.mxu0 %v1826
        %2638 = vmatprep.mubr.bf16.mxu0 %v825
        %2639 = vmatmul.mubr.bf16.gmra.mxu0 %v824
        %v2640 = vpop.f32.mrf.mxu0
        %v2641 = vadd.f32 0.0, %v2640
        %v2642 = vpop.f32.mrf.mxu0
        %v2643 = vadd.f32 0.0, %v2642
        %v2644 = vpop.f32.mrf.mxu0
        %v2645 = vadd.f32 0.0, %v2644
        %v2646 = vpop.f32.mrf.mxu0
        %v2647 = vadd.f32 0.0, %v2646
        %2648 = vmatprep.mubr.bf16.mxu0 %v828
        %2649 = vmatmul.mubr.bf16.gmra.mxu0 %v827
        %v2650 = vpop.f32.mrf.mxu0
        %v2651 = vadd.f32 0.0, %v2650
        %v2652 = vpop.f32.mrf.mxu0
        %v2653 = vadd.f32 0.0, %v2652
        %v2654 = vpop.f32.mrf.mxu0
        %v2655 = vadd.f32 0.0, %v2654
        %v2656 = vpop.f32.mrf.mxu0
        %v2657 = vadd.f32 0.0, %v2656
        %2658 = vmatprep.mubr.bf16.mxu0 %v831
        %2659 = vmatmul.mubr.bf16.gmra.mxu0 %v830
        %v2660 = vpop.f32.mrf.mxu0
        %v2661 = vadd.f32 0.0, %v2660
        %v2662 = vpop.f32.mrf.mxu0
        %v2663 = vadd.f32 0.0, %v2662
        %v2664 = vpop.f32.mrf.mxu0
        %v2665 = vadd.f32 0.0, %v2664
        %v2666 = vpop.f32.mrf.mxu0
        %v2667 = vadd.f32 0.0, %v2666
        %2668 = vmatprep.mubr.bf16.mxu0 %v834
        %2669 = vmatmul.mubr.bf16.gmra.mxu0 %v833
        %v2670 = vpop.f32.mrf.mxu0
        %v2671 = vadd.f32 0.0, %v2670
        %v2672 = vpop.f32.mrf.mxu0
        %v2673 = vadd.f32 0.0, %v2672
        %v2674 = vpop.f32.mrf.mxu0
        %v2675 = vpop.f32.mrf.mxu0
        %2676 = vdwg.mxu0
        %2677 = vmatprep.subr.bf16.mxu0 %v1962
        %2678 = vmatpush1.bf16.msra.mxu0 %v1961
        %2679 = vmatprep.subr.bf16.mxu0 %v1953
        %2680 = vmatpush1.bf16.msra.mxu0 %v1952
        %2681 = vmatprep.subr.bf16.mxu0 %v1944
        %2682 = vmatpush1.bf16.msra.mxu0 %v1943
        %2683 = vmatprep.subr.bf16.mxu0 %v1935
        %2684 = vmatpush1.bf16.msra.mxu0 %v1934
        %2685 = vmatprep.subr.bf16.mxu0 %v1926
        %2686 = vmatpush1.bf16.msra.mxu0 %v1925
        %2687 = vmatprep.subr.bf16.mxu0 %v1917
        %2688 = vmatpush1.bf16.msra.mxu0 %v1916
        %2689 = vmatprep.subr.bf16.mxu0 %v1908
        %2690 = vmatpush1.bf16.msra.mxu0 %v1907
        %2691 = vmatprep.subr.bf16.mxu0 %v1899
        %2692 = vmatpush1.bf16.msra.mxu0 %v1898
        %2693 = vmatprep.subr.bf16.mxu0 0
        %2694 = vmatpush2.bf16.msra.mxu0 0
        %2695 = vmatprep.subr.bf16.mxu0 0
        %2696 = vmatpush2.bf16.msra.mxu0 0
        %2697 = vmatprep.subr.bf16.mxu0 0
        %2698 = vmatpush2.bf16.msra.mxu0 0
        %2699 = vmatprep.subr.bf16.mxu0 0
        %2700 = vmatpush2.bf16.msra.mxu0 0
        %2701 = vmatprep.subr.bf16.mxu0 0
        %2702 = vmatpush2.bf16.msra.mxu0 0
        %2703 = vmatprep.subr.bf16.mxu0 0
        %2704 = vmatpush2.bf16.msra.mxu0 0
        %2705 = vmatprep.subr.bf16.mxu0 0
        %2706 = vmatpush2.bf16.msra.mxu0 0
        %2707 = vmatprep.subr.bf16.mxu0 0
        %2708 = vmatpush2.bf16.msra.mxu0 0
        %2709 = vmatprep.mubr.bf16.mxu0 0
        %2710 = vmatmul.mubr.bf16.gmra.mxu0 %v826
        %v2711 = vpop.f32.mrf.mxu0
        %v2712 = vadd.f32 %v2641, %v2711
        %v2713 = vpop.f32.mrf.mxu0
        %v2714 = vadd.f32 %v2643, %v2713
        %v2715 = vpop.f32.mrf.mxu0
        %v2716 = vadd.f32 %v2645, %v2715
        %v2717 = vpop.f32.mrf.mxu0
        %v2718 = vadd.f32 %v2647, %v2717
        %2719 = vmatprep.mubr.bf16.mxu0 0
        %2720 = vmatmul.mubr.bf16.gmra.mxu0 %v829
        %v2721 = vpop.f32.mrf.mxu0
        %v2722 = vadd.f32 %v2651, %v2721
        %v2723 = vpop.f32.mrf.mxu0
        %v2724 = vadd.f32 %v2653, %v2723
        %v2725 = vpop.f32.mrf.mxu0
        %v2726 = vadd.f32 %v2655, %v2725
        %v2727 = vpop.f32.mrf.mxu0
        %v2728 = vadd.f32 %v2657, %v2727
        %2729 = vmatprep.mubr.bf16.mxu0 0
        %2730 = vmatmul.mubr.bf16.gmra.mxu0 %v832
        %v2731 = vpop.f32.mrf.mxu0
        %v2732 = vadd.f32 %v2661, %v2731
        %v2733 = vpop.f32.mrf.mxu0
        %v2734 = vadd.f32 %v2663, %v2733
        %v2735 = vpop.f32.mrf.mxu0
        %v2736 = vadd.f32 %v2665, %v2735
        %v2737 = vpop.f32.mrf.mxu0
        %v2738 = vadd.f32 %v2667, %v2737
        %2739 = vmatprep.mubr.bf16.mxu0 0
        %2740 = vmatmul.mubr.bf16.gmra.mxu0 %v835
        %v2741 = vpop.f32.mrf.mxu0
        %v2742 = vadd.f32 %v2671, %v2741
        %v2743 = vpop.f32.mrf.mxu0
        %v2744 = vadd.f32 %v2673, %v2743
        %v2745 = vpop.f32.mrf.mxu0
        %v2746 = vpop.f32.mrf.mxu0
        %2747 = vdwg.mxu0
        %2748 = vmatprep.subr.bf16.mxu0 0
        %2749 = vmatpush1.bf16.msra.mxu0 %v1819
        %2750 = vmatprep.subr.bf16.mxu0 0
        %2751 = vmatpush1.bf16.msra.mxu0 %v1810
        %2752 = vmatprep.subr.bf16.mxu0 0
        %2753 = vmatpush1.bf16.msra.mxu0 %v1801
        %2754 = vmatprep.subr.bf16.mxu0 0
        %2755 = vmatpush1.bf16.msra.mxu0 %v1792
        %2756 = vmatprep.subr.bf16.mxu0 0
        %2757 = vmatpush1.bf16.msra.mxu0 %v1783
        %2758 = vmatprep.subr.bf16.mxu0 0
        %2759 = vmatpush1.bf16.msra.mxu0 %v1774
        %2760 = vmatprep.subr.bf16.mxu0 0
        %2761 = vmatpush1.bf16.msra.mxu0 %v1765
        %2762 = vmatprep.subr.bf16.mxu0 0
        %2763 = vmatpush1.bf16.msra.mxu0 %v1756
        %2764 = vmatprep.subr.bf16.mxu0 0
        %2765 = vmatpush2.bf16.msra.mxu0 %v1891
        %2766 = vmatprep.subr.bf16.mxu0 0
        %2767 = vmatpush2.bf16.msra.mxu0 %v1882
        %2768 = vmatprep.subr.bf16.mxu0 0
        %2769 = vmatpush2.bf16.msra.mxu0 %v1873
        %2770 = vmatprep.subr.bf16.mxu0 0
        %2771 = vmatpush2.bf16.msra.mxu0 %v1864
        %2772 = vmatprep.subr.bf16.mxu0 0
        %2773 = vmatpush2.bf16.msra.mxu0 %v1855
        %2774 = vmatprep.subr.bf16.mxu0 0
        %2775 = vmatpush2.bf16.msra.mxu0 %v1846
        %2776 = vmatprep.subr.bf16.mxu0 0
        %2777 = vmatpush2.bf16.msra.mxu0 %v1837
        %2778 = vmatprep.subr.bf16.mxu0 0
        %2779 = vmatpush2.bf16.msra.mxu0 %v1828
        %2780 = vmatprep.mubr.bf16.mxu0 %v825
        %2781 = vmatmul.mubr.bf16.gmra.mxu0 %v824
        %v2782 = vpop.f32.mrf.mxu0
        %v2783 = vadd.f32 0.0, %v2782
        %v2784 = vpop.f32.mrf.mxu0
        %v2785 = vpop.f32.mrf.mxu0
        %v2786 = vadd.f32 0.0, %v2785
        %v2787 = vpop.f32.mrf.mxu0
        %2788 = vmatprep.mubr.bf16.mxu0 %v828
        %2789 = vmatmul.mubr.bf16.gmra.mxu0 %v827
        %v2790 = vpop.f32.mrf.mxu0
        %v2791 = vadd.f32 0.0, %v2790
        %v2792 = vpop.f32.mrf.mxu0
        %v2793 = vpop.f32.mrf.mxu0
        %v2794 = vadd.f32 0.0, %v2793
        %v2795 = vpop.f32.mrf.mxu0
        %2796 = vmatprep.mubr.bf16.mxu0 %v831
        %2797 = vmatmul.mubr.bf16.gmra.mxu0 %v830
        %v2798 = vpop.f32.mrf.mxu0
        %v2799 = vadd.f32 0.0, %v2798
        %v2800 = vpop.f32.mrf.mxu0
        %v2801 = vpop.f32.mrf.mxu0
        %v2802 = vadd.f32 0.0, %v2801
        %v2803 = vpop.f32.mrf.mxu0
        %2804 = vmatprep.mubr.bf16.mxu0 %v834
        %2805 = vmatmul.mubr.bf16.gmra.mxu0 %v833
        %v2806 = vpop.f32.mrf.mxu0
        %v2807 = vadd.f32 0.0, %v2806
        %v2808 = vpop.f32.mrf.mxu0
        %v2809 = vpop.f32.mrf.mxu0
        %v2810 = vpop.f32.mrf.mxu0
        %2811 = vdwg.mxu0
        %2812 = vmatprep.subr.bf16.mxu0 0
        %2813 = vmatpush1.bf16.msra.mxu0 %v1963
        %2814 = vmatprep.subr.bf16.mxu0 0
        %2815 = vmatpush1.bf16.msra.mxu0 %v1954
        %2816 = vmatprep.subr.bf16.mxu0 0
        %2817 = vmatpush1.bf16.msra.mxu0 %v1945
        %2818 = vmatprep.subr.bf16.mxu0 0
        %2819 = vmatpush1.bf16.msra.mxu0 %v1936
        %2820 = vmatprep.subr.bf16.mxu0 0
        %2821 = vmatpush1.bf16.msra.mxu0 %v1927
        %2822 = vmatprep.subr.bf16.mxu0 0
        %2823 = vmatpush1.bf16.msra.mxu0 %v1918
        %2824 = vmatprep.subr.bf16.mxu0 0
        %2825 = vmatpush1.bf16.msra.mxu0 %v1909
        %2826 = vmatprep.subr.bf16.mxu0 0
        %2827 = vmatpush1.bf16.msra.mxu0 %v1900
        %2828 = vmatprep.subr.bf16.mxu0 0
        %2829 = vmatpush2.bf16.msra.mxu0 0
        %2830 = vmatprep.subr.bf16.mxu0 0
        %2831 = vmatpush2.bf16.msra.mxu0 0
        %2832 = vmatprep.subr.bf16.mxu0 0
        %2833 = vmatpush2.bf16.msra.mxu0 0
        %2834 = vmatprep.subr.bf16.mxu0 0
        %2835 = vmatpush2.bf16.msra.mxu0 0
        %2836 = vmatprep.subr.bf16.mxu0 0
        %2837 = vmatpush2.bf16.msra.mxu0 0
        %2838 = vmatprep.subr.bf16.mxu0 0
        %2839 = vmatpush2.bf16.msra.mxu0 0
        %2840 = vmatprep.subr.bf16.mxu0 0
        %2841 = vmatpush2.bf16.msra.mxu0 0
        %2842 = vmatprep.subr.bf16.mxu0 0
        %2843 = vmatpush2.bf16.msra.mxu0 0
        %2844 = vmatprep.mubr.bf16.mxu0 0
        %2845 = vmatmul.mubr.bf16.gmra.mxu0 %v826
        %v2846 = vpop.f32.mrf.mxu0
        %v2847 = vadd.f32 %v2783, %v2846
        %v2848 = vpop.f32.mrf.mxu0
        %v2849 = vpop.f32.mrf.mxu0
        %v2850 = vadd.f32 %v2786, %v2849
        %v2851 = vpop.f32.mrf.mxu0
        %2852 = vmatprep.mubr.bf16.mxu0 0
        %2853 = vmatmul.mubr.bf16.gmra.mxu0 %v829
        %v2854 = vpop.f32.mrf.mxu0
        %v2855 = vadd.f32 %v2791, %v2854
        %v2856 = vpop.f32.mrf.mxu0
        %v2857 = vpop.f32.mrf.mxu0
        %v2858 = vadd.f32 %v2794, %v2857
        %v2859 = vpop.f32.mrf.mxu0
        %2860 = vmatprep.mubr.bf16.mxu0 0
        %2861 = vmatmul.mubr.bf16.gmra.mxu0 %v832
        %v2862 = vpop.f32.mrf.mxu0
        %v2863 = vadd.f32 %v2799, %v2862
        %v2864 = vpop.f32.mrf.mxu0
        %v2865 = vpop.f32.mrf.mxu0
        %v2866 = vadd.f32 %v2802, %v2865
        %v2867 = vpop.f32.mrf.mxu0
        %2868 = vmatprep.mubr.bf16.mxu0 0
        %2869 = vmatmul.mubr.bf16.gmra.mxu0 %v835
        %v2870 = vpop.f32.mrf.mxu0
        %v2871 = vadd.f32 %v2807, %v2870
        %v2872 = vpop.f32.mrf.mxu0
        %v2873 = vpop.f32.mrf.mxu0
        %v2874 = vpop.f32.mrf.mxu0
        %2875 = vdwg.mxu0
        %v2876 = vmul.f32 %v2286, 0.05103104
        %v2877 = vmul.f32 %v2288, 0.05103104
        %v2878 = vmul.f32 %v2428, 0.05103104
        %v2879 = vmul.f32 %v2290, 0.05103104
        %v2880 = vmul.f32 %v2292, 0.05103104
        %v2881 = vmul.f32 %v2432, 0.05103104
        %v2882 = vmul.f32 %v2296, 0.05103104
        %v2883 = vmul.f32 %v2298, 0.05103104
        %v2884 = vmul.f32 %v2438, 0.05103104
        %v2885 = vmul.f32 %v2300, 0.05103104
        %v2886 = vmul.f32 %v2302, 0.05103104
        %v2887 = vmul.f32 %v2442, 0.05103104
        %v2888 = vmul.f32 %v2306, 0.05103104
        %v2889 = vmul.f32 %v2308, 0.05103104
        %v2890 = vmul.f32 %v2448, 0.05103104
        %v2891 = vmul.f32 %v2310, 0.05103104
        %v2892 = vmul.f32 %v2312, 0.05103104
        %v2893 = vmul.f32 %v2452, 0.05103104
        %v2894 = vmul.f32 %v2316, 0.05103104
        %v2895 = vmul.f32 %v2318, 0.05103104
        %v2896 = vmul.f32 %v2458, 0.05103104
        %v2897 = vpack.c.bf16 %v2879, %v2876
        %v2898 = vpack.c.bf16 %v2880, %v2877
        %v2899 = vpack.c.bf16 %v2881, %v2878
        %v2900 = vpack.c.bf16 %v2885, %v2882
        %v2901 = vpack.c.bf16 %v2886, %v2883
        %v2902 = vpack.c.bf16 %v2887, %v2884
        %v2903 = vpack.c.bf16 %v2891, %v2888
        %v2904 = vpack.c.bf16 %v2892, %v2889
        %v2905 = vpack.c.bf16 %v2893, %v2890
        %v2906 = vpack.c.bf16 %v2894, %v2894
        %v2907 = vpack.c.bf16 %v2895, %v2895
        %v2908 = vpack.c.bf16 %v2896, %v2896
        %v2909 = vpack.c.bf16 %v2434, %v2430
        %v2910 = vpack.c.bf16 %v2574, %v2570
        %v2911 = vpack.c.bf16 %v2576, %v2572
        %v2912 = vpack.c.bf16 %v2444, %v2440
        %v2913 = vpack.c.bf16 %v2584, %v2580
        %v2914 = vpack.c.bf16 %v2586, %v2582
        %v2915 = vpack.c.bf16 %v2454, %v2450
        %v2916 = vpack.c.bf16 %v2594, %v2590
        %v2917 = vpack.c.bf16 %v2596, %v2592
        %v2918 = vpack.c.bf16 %v2460, %v2460
        %v2919 = vpack.c.bf16 %v2600, %v2600
        %v2920 = vpack.c.bf16 %v2602, %v2602
        %v2921 = vpack.c.bf16 %v2716, %v2712
        %v2922 = vpack.c.bf16 %v2718, %v2714
        %v2923 = vpack.c.bf16 %v2850, %v2847
        %v2924 = vpack.c.bf16 %v2726, %v2722
        %v2925 = vpack.c.bf16 %v2728, %v2724
        %v2926 = vpack.c.bf16 %v2858, %v2855
        %v2927 = vpack.c.bf16 %v2736, %v2732
        %v2928 = vpack.c.bf16 %v2738, %v2734
        %v2929 = vpack.c.bf16 %v2866, %v2863
        %v2930 = vpack.c.bf16 %v2742, %v2742
        %v2931 = vpack.c.bf16 %v2744, %v2744
        %v2932 = vpack.c.bf16 %v2871, %v2871
        %v2933 = vlaneseq
        %v2934 = vshrl.u32 %v2933, 7
        %v2935 = vadd.s32 %v2934, 8
        %v2936 = vadd.s32 %v2934, 16
        %v2937 = vadd.s32 %v2934, 24
        %v2938 = vadd.s32 %v2934, 32
        %v2939 = vadd.s32 %v2934, 40
        %v2940 = vadd.s32 %v2934, 48
        %v2941 = vlaneseq
        %v2942 = vand.u32 %v2941, 127
        %vm2943 = vcmp.le.s32.totalorder %v2942, %v2934
        %vm2944 = vcmp.le.s32.totalorder %v2942, %v2935
        %vm2945 = vcmp.le.s32.totalorder %v2942, %v2936
        %vm2946 = vcmp.le.s32.totalorder %v2942, %v2937
        %vm2947 = vcmp.le.s32.totalorder %v2942, %v2938
        %vm2948 = vcmp.le.s32.totalorder %v2942, %v2939
        %vm2949 = vcmp.le.s32.totalorder %v2942, %v2940
        %vm2950 = vcmask 523264
        %v2952 = vsel %vm2950, %v2897, 0
        %v2955 = vsel %vm2950, %v2900, 0
        %v2958 = vsel %vm2950, %v2903, 0
        %v2961 = vsel %vm2950, %v2906, 0
        %v2964 = vsel %vm2950, %v2909, 0
        %v2967 = vsel %vm2950, %v2912, 0
        %v2970 = vsel %vm2950, %v2915, 0
        %v2973 = vsel %vm2950, %v2918, 0
        %2975 = vmatprep.subr.bf16.mxu0 0
        %2976 = vmatpush1.bf16.xpose.msra.mxu0 0
        %2977 = vmatprep.subr.bf16.mxu0 0
        %2978 = vmatpush1.bf16.xpose.msra.mxu0 0
        %2979 = vmatprep.subr.bf16.mxu0 0
        %2980 = vmatpush1.bf16.xpose.msra.mxu0 0
        %2981 = vmatprep.subr.bf16.mxu0 0
        %2982 = vmatpush1.bf16.xpose.msra.mxu0 0
        %2983 = vmatprep.subr.bf16.mxu0 0
        %2984 = vmatpush1.bf16.xpose.msra.mxu0 %v2973
        %2985 = vmatprep.subr.bf16.mxu0 0
        %2986 = vmatpush1.bf16.xpose.msra.mxu0 %v2970
        %2987 = vmatprep.subr.bf16.mxu0 0
        %2988 = vmatpush1.bf16.xpose.msra.mxu0 %v2967
        %2989 = vmatprep.subr.bf16.mxu0 0
        %2990 = vmatpush1.bf16.xpose.msra.mxu0 %v2964
        %2991 = vmatprep.subr.bf16.mxu0 0
        %2992 = vmatpush2.bf16.xpose.msra.mxu0 0
        %2993 = vmatprep.subr.bf16.mxu0 0
        %2994 = vmatpush2.bf16.xpose.msra.mxu0 0
        %2995 = vmatprep.subr.bf16.mxu0 0
        %2996 = vmatpush2.bf16.xpose.msra.mxu0 0
        %2997 = vmatprep.subr.bf16.mxu0 0
        %2998 = vmatpush2.bf16.xpose.msra.mxu0 0
        %2999 = vmatprep.subr.bf16.mxu0 0
        %3000 = vmatpush2.bf16.xpose.msra.mxu0 0
        %3001 = vmatprep.subr.bf16.mxu0 0
        %3002 = vmatpush2.bf16.xpose.msra.mxu0 0
        %3003 = vmatprep.subr.bf16.mxu0 0
        %3004 = vmatpush2.bf16.xpose.msra.mxu0 0
        %3005 = vmatprep.subr.bf16.mxu0 0
        %3006 = vmatpush2.bf16.xpose.msra.mxu0 0
        %3007 = vmatprep.mubr.bf16.mxu0 0
        %3008 = vmatmul.mubr.bf16.gmra.mxu0 %v2952
        %v3009 = vpop.f32.mrf.mxu0
        %v3010 = vadd.f32 0.0, %v3009
        %v3011 = vpop.f32.mrf.mxu0
        %v3012 = vpop.f32.mrf.mxu0
        %v3013 = vadd.f32 0.0, %v3012
        %v3014 = vpop.f32.mrf.mxu0
        %3015 = vmatprep.mubr.bf16.mxu0 0
        %3016 = vmatmul.mubr.bf16.gmra.mxu0 %v2955
        %v3017 = vpop.f32.mrf.mxu0
        %v3018 = vadd.f32 0.0, %v3017
        %v3019 = vpop.f32.mrf.mxu0
        %v3020 = vpop.f32.mrf.mxu0
        %v3021 = vadd.f32 0.0, %v3020
        %v3022 = vpop.f32.mrf.mxu0
        %3023 = vmatprep.mubr.bf16.mxu0 0
        %3024 = vmatmul.mubr.bf16.gmra.mxu0 %v2958
        %v3025 = vpop.f32.mrf.mxu0
        %v3026 = vadd.f32 0.0, %v3025
        %v3027 = vpop.f32.mrf.mxu0
        %v3028 = vpop.f32.mrf.mxu0
        %v3029 = vadd.f32 0.0, %v3028
        %v3030 = vpop.f32.mrf.mxu0
        %3031 = vmatprep.mubr.bf16.mxu0 0
        %3032 = vmatmul.mubr.bf16.gmra.mxu0 %v2961
        %v3033 = vpop.f32.mrf.mxu0
        %v3034 = vadd.f32 0.0, %v3033
        %v3035 = vpop.f32.mrf.mxu0
        %v3036 = vpop.f32.mrf.mxu0
        %v3037 = vpop.f32.mrf.mxu0
        %3038 = vdwg.mxu0
        %v3039 = vsel %vm2943, %v3010, -1e+30
        %v3040 = vsel %vm2944, %v3013, -1e+30
        %v3041 = vsel %vm2945, %v3018, -1e+30
        %v3042 = vsel %vm2946, %v3021, -1e+30
        %v3043 = vsel %vm2947, %v3026, -1e+30
        %v3044 = vsel %vm2948, %v3029, -1e+30
        %v3045 = vsel %vm2949, %v3034, -1e+30
        %vm3046 = vcmask 457728
        %v3047 = vsel %vm3046, %v3039, -inf
        %3048 = vmax.xlane.f32.xlu0 %v3047
        %v3049 = vpop.xlane.xlu0 %3048
        %v3050 = vsel %vm3046, %v3040, -inf
        %3051 = vmax.xlane.f32.xlu0 %v3050
        %v3052 = vpop.xlane.xlu0 %3051
        %v3053 = vsel %vm3046, %v3041, -inf
        %3054 = vmax.xlane.f32.xlu0 %v3053
        %v3055 = vpop.xlane.xlu0 %3054
        %v3056 = vsel %vm3046, %v3042, -inf
        %3057 = vmax.xlane.f32.xlu0 %v3056
        %v3058 = vpop.xlane.xlu0 %3057
        %v3059 = vsel %vm3046, %v3043, -inf
        %3060 = vmax.xlane.f32.xlu0 %v3059
        %v3061 = vpop.xlane.xlu0 %3060
        %v3062 = vsel %vm3046, %v3044, -inf
        %3063 = vmax.xlane.f32.xlu0 %v3062
        %v3064 = vpop.xlane.xlu0 %3063
        %v3065 = vsel %vm3046, %v3045, -inf
        %3066 = vmax.xlane.f32.xlu0 %v3065
        %v3067 = vpop.xlane.xlu0 %3066
        %v3068 = vsub.f32 %v3039, %v3049
        %v3069 = vsub.f32 %v3040, %v3052
        %v3070 = vsub.f32 %v3041, %v3055
        %v3071 = vsub.f32 %v3042, %v3058
        %v3072 = vsub.f32 %v3043, %v3061
        %v3073 = vsub.f32 %v3044, %v3064
        %v3074 = vsub.f32 %v3045, %v3067
        %v3075 = vmul.f32 %v3068, 1.442695
        %v3076 = vpow.pop %v3075
        %v3077 = vmul.f32 %v3069, 1.442695
        %v3078 = vpow.pop %v3077
        %v3079 = vmul.f32 %v3070, 1.442695
        %v3080 = vpow.pop %v3079
        %v3081 = vmul.f32 %v3071, 1.442695
        %v3082 = vpow.pop %v3081
        %v3083 = vmul.f32 %v3072, 1.442695
        %v3084 = vpow.pop %v3083
        %v3085 = vmul.f32 %v3073, 1.442695
        %v3086 = vpow.pop %v3085
        %v3087 = vmul.f32 %v3074, 1.442695
        %v3088 = vpow.pop %v3087
        %v3089 = vsel %vm3046, %v3076, 0.0
        %3090 = vadd.xlane.f32.xlu0 %v3089
        %v3091 = vpop.xlane.xlu0 %3090
        %v3092 = vsel %vm3046, %v3078, 0.0
        %3093 = vadd.xlane.f32.xlu0 %v3092
        %v3094 = vpop.xlane.xlu0 %3093
        %v3095 = vsel %vm3046, %v3080, 0.0
        %3096 = vadd.xlane.f32.xlu0 %v3095
        %v3097 = vpop.xlane.xlu0 %3096
        %v3098 = vsel %vm3046, %v3082, 0.0
        %3099 = vadd.xlane.f32.xlu0 %v3098
        %v3100 = vpop.xlane.xlu0 %3099
        %v3101 = vsel %vm3046, %v3084, 0.0
        %3102 = vadd.xlane.f32.xlu0 %v3101
        %v3103 = vpop.xlane.xlu0 %3102
        %v3104 = vsel %vm3046, %v3086, 0.0
        %3105 = vadd.xlane.f32.xlu0 %v3104
        %v3106 = vpop.xlane.xlu0 %3105
        %v3107 = vsel %vm3046, %v3088, 0.0
        %3108 = vadd.xlane.f32.xlu0 %v3107
        %v3109 = vpop.xlane.xlu0 %3108
        %v3110 = vrcp.pop %v3091
        %v3111 = vrcp.pop %v3094
        %v3112 = vrcp.pop %v3097
        %v3113 = vrcp.pop %v3100
        %v3114 = vrcp.pop %v3103
        %v3115 = vrcp.pop %v3106
        %v3116 = vrcp.pop %v3109
        %v3117 = vmul.f32 %v3076, %v3110
        %v3118 = vmul.f32 %v3078, %v3111
        %v3119 = vmul.f32 %v3080, %v3112
        %v3120 = vmul.f32 %v3082, %v3113
        %v3121 = vmul.f32 %v3084, %v3114
        %v3122 = vmul.f32 %v3086, %v3115
        %v3123 = vmul.f32 %v3088, %v3116
        %v3124 = vpack.c.bf16 %v3118, %v3117
        %v3125 = vpack.c.bf16 %v3120, %v3119
        %v3126 = vpack.c.bf16 %v3122, %v3121
        %v3127 = vpack.c.bf16 %v3123, %v3123
        %v3129 = vsel %vm3046, %v3124, 0
        %v3132 = vsel %vm3046, %v3125, 0
        %v3135 = vsel %vm3046, %v3126, 0
        %v3138 = vsel %vm3046, %v3127, 0
        %vm3140 = vcmask 1043456
        %v3142 = vsel %vm3140, %v2930, 0
        %3144 = vmatprep.subr.bf16.mxu0 0
        %3145 = vmatpush1.bf16.msra.mxu0 0
        %3146 = vmatprep.subr.bf16.mxu0 0
        %3147 = vmatpush1.bf16.msra.mxu0 0
        %3148 = vmatprep.subr.bf16.mxu0 0
        %3149 = vmatpush1.bf16.msra.mxu0 0
        %3150 = vmatprep.subr.bf16.mxu0 0
        %3151 = vmatpush1.bf16.msra.mxu0 0
        %3152 = vmatprep.subr.bf16.mxu0 0
        %3153 = vmatpush1.bf16.msra.mxu0 %v3142
        %3154 = vmatprep.subr.bf16.mxu0 0
        %3155 = vmatpush1.bf16.msra.mxu0 %v2927
        %3156 = vmatprep.subr.bf16.mxu0 0
        %3157 = vmatpush1.bf16.msra.mxu0 %v2924
        %3158 = vmatprep.subr.bf16.mxu0 0
        %3159 = vmatpush1.bf16.msra.mxu0 %v2921
        %3160 = vmatprep.subr.bf16.mxu0 0
        %3161 = vmatpush2.bf16.msra.mxu0 0
        %3162 = vmatprep.subr.bf16.mxu0 0
        %3163 = vmatpush2.bf16.msra.mxu0 0
        %3164 = vmatprep.subr.bf16.mxu0 0
        %3165 = vmatpush2.bf16.msra.mxu0 0
        %3166 = vmatprep.subr.bf16.mxu0 0
        %3167 = vmatpush2.bf16.msra.mxu0 0
        %3168 = vmatprep.subr.bf16.mxu0 0
        %3169 = vmatpush2.bf16.msra.mxu0 0
        %3170 = vmatprep.subr.bf16.mxu0 0
        %3171 = vmatpush2.bf16.msra.mxu0 0
        %3172 = vmatprep.subr.bf16.mxu0 0
        %3173 = vmatpush2.bf16.msra.mxu0 0
        %3174 = vmatprep.subr.bf16.mxu0 0
        %3175 = vmatpush2.bf16.msra.mxu0 0
        %3176 = vmatprep.mubr.bf16.mxu0 0
        %3177 = vmatmul.mubr.bf16.gmra.mxu0 %v3129
        %v3178 = vpop.f32.mrf.mxu0
        %v3179 = vadd.f32 0.0, %v3178
        %v3180 = vpop.f32.mrf.mxu0
        %v3181 = vpop.f32.mrf.mxu0
        %v3182 = vadd.f32 0.0, %v3181
        %v3183 = vpop.f32.mrf.mxu0
        %3184 = vmatprep.mubr.bf16.mxu0 0
        %3185 = vmatmul.mubr.bf16.gmra.mxu0 %v3132
        %v3186 = vpop.f32.mrf.mxu0
        %v3187 = vadd.f32 0.0, %v3186
        %v3188 = vpop.f32.mrf.mxu0
        %v3189 = vpop.f32.mrf.mxu0
        %v3190 = vadd.f32 0.0, %v3189
        %v3191 = vpop.f32.mrf.mxu0
        %3192 = vmatprep.mubr.bf16.mxu0 0
        %3193 = vmatmul.mubr.bf16.gmra.mxu0 %v3135
        %v3194 = vpop.f32.mrf.mxu0
        %v3195 = vadd.f32 0.0, %v3194
        %v3196 = vpop.f32.mrf.mxu0
        %v3197 = vpop.f32.mrf.mxu0
        %v3198 = vadd.f32 0.0, %v3197
        %v3199 = vpop.f32.mrf.mxu0
        %3200 = vmatprep.mubr.bf16.mxu0 0
        %3201 = vmatmul.mubr.bf16.gmra.mxu0 %v3138
        %v3202 = vpop.f32.mrf.mxu0
        %v3203 = vadd.f32 0.0, %v3202
        %v3204 = vpop.f32.mrf.mxu0
        %v3205 = vpop.f32.mrf.mxu0
        %v3206 = vpop.f32.mrf.mxu0
        %3207 = vdwg.mxu0
        %3212 = vrot.lane.b32.xlu0 %v2897, 64
        %v3213 = vpop.permute.xlu0 %3212
        %3214 = vrot.lane.b32.xlu0 %v2900, 64
        %v3215 = vpop.permute.xlu0 %3214
        %3216 = vrot.lane.b32.xlu0 %v2903, 64
        %v3217 = vpop.permute.xlu0 %3216
        %3218 = vrot.lane.b32.xlu0 %v2906, 64
        %v3219 = vpop.permute.xlu0 %3218
        %3224 = vrot.lane.b32.xlu0 %v2909, 64
        %v3225 = vpop.permute.xlu0 %3224
        %3226 = vrot.lane.b32.xlu0 %v2912, 64
        %v3227 = vpop.permute.xlu0 %3226
        %3228 = vrot.lane.b32.xlu0 %v2915, 64
        %v3229 = vpop.permute.xlu0 %3228
        %3230 = vrot.lane.b32.xlu0 %v2918, 64
        %v3231 = vpop.permute.xlu0 %3230
        %v3233 = vsel %vm2950, %v3213, 0
        %v3236 = vsel %vm2950, %v3215, 0
        %v3239 = vsel %vm2950, %v3217, 0
        %v3242 = vsel %vm2950, %v3219, 0
        %v3245 = vsel %vm2950, %v3225, 0
        %v3248 = vsel %vm2950, %v3227, 0
        %v3251 = vsel %vm2950, %v3229, 0
        %v3254 = vsel %vm2950, %v3231, 0
        %3256 = vmatprep.subr.bf16.mxu0 0
        %3257 = vmatpush1.bf16.xpose.msra.mxu0 0
        %3258 = vmatprep.subr.bf16.mxu0 0
        %3259 = vmatpush1.bf16.xpose.msra.mxu0 0
        %3260 = vmatprep.subr.bf16.mxu0 0
        %3261 = vmatpush1.bf16.xpose.msra.mxu0 0
        %3262 = vmatprep.subr.bf16.mxu0 0
        %3263 = vmatpush1.bf16.xpose.msra.mxu0 0
        %3264 = vmatprep.subr.bf16.mxu0 0
        %3265 = vmatpush1.bf16.xpose.msra.mxu0 %v3254
        %3266 = vmatprep.subr.bf16.mxu0 0
        %3267 = vmatpush1.bf16.xpose.msra.mxu0 %v3251
        %3268 = vmatprep.subr.bf16.mxu0 0
        %3269 = vmatpush1.bf16.xpose.msra.mxu0 %v3248
        %3270 = vmatprep.subr.bf16.mxu0 0
        %3271 = vmatpush1.bf16.xpose.msra.mxu0 %v3245
        %3272 = vmatprep.subr.bf16.mxu0 0
        %3273 = vmatpush2.bf16.xpose.msra.mxu0 0
        %3274 = vmatprep.subr.bf16.mxu0 0
        %3275 = vmatpush2.bf16.xpose.msra.mxu0 0
        %3276 = vmatprep.subr.bf16.mxu0 0
        %3277 = vmatpush2.bf16.xpose.msra.mxu0 0
        %3278 = vmatprep.subr.bf16.mxu0 0
        %3279 = vmatpush2.bf16.xpose.msra.mxu0 0
        %3280 = vmatprep.subr.bf16.mxu0 0
        %3281 = vmatpush2.bf16.xpose.msra.mxu0 0
        %3282 = vmatprep.subr.bf16.mxu0 0
        %3283 = vmatpush2.bf16.xpose.msra.mxu0 0
        %3284 = vmatprep.subr.bf16.mxu0 0
        %3285 = vmatpush2.bf16.xpose.msra.mxu0 0
        %3286 = vmatprep.subr.bf16.mxu0 0
        %3287 = vmatpush2.bf16.xpose.msra.mxu0 0
        %3288 = vmatprep.mubr.bf16.mxu0 0
        %3289 = vmatmul.mubr.bf16.gmra.mxu0 %v3233
        %v3290 = vpop.f32.mrf.mxu0
        %v3291 = vadd.f32 0.0, %v3290
        %v3292 = vpop.f32.mrf.mxu0
        %v3293 = vpop.f32.mrf.mxu0
        %v3294 = vadd.f32 0.0, %v3293
        %v3295 = vpop.f32.mrf.mxu0
        %3296 = vmatprep.mubr.bf16.mxu0 0
        %3297 = vmatmul.mubr.bf16.gmra.mxu0 %v3236
        %v3298 = vpop.f32.mrf.mxu0
        %v3299 = vadd.f32 0.0, %v3298
        %v3300 = vpop.f32.mrf.mxu0
        %v3301 = vpop.f32.mrf.mxu0
        %v3302 = vadd.f32 0.0, %v3301
        %v3303 = vpop.f32.mrf.mxu0
        %3304 = vmatprep.mubr.bf16.mxu0 0
        %3305 = vmatmul.mubr.bf16.gmra.mxu0 %v3239
        %v3306 = vpop.f32.mrf.mxu0
        %v3307 = vadd.f32 0.0, %v3306
        %v3308 = vpop.f32.mrf.mxu0
        %v3309 = vpop.f32.mrf.mxu0
        %v3310 = vadd.f32 0.0, %v3309
        %v3311 = vpop.f32.mrf.mxu0
        %3312 = vmatprep.mubr.bf16.mxu0 0
        %3313 = vmatmul.mubr.bf16.gmra.mxu0 %v3242
        %v3314 = vpop.f32.mrf.mxu0
        %v3315 = vadd.f32 0.0, %v3314
        %v3316 = vpop.f32.mrf.mxu0
        %v3317 = vpop.f32.mrf.mxu0
        %v3318 = vpop.f32.mrf.mxu0
        %3319 = vdwg.mxu0
        %v3320 = vsel %vm2943, %v3291, -1e+30
        %v3321 = vsel %vm2944, %v3294, -1e+30
        %v3322 = vsel %vm2945, %v3299, -1e+30
        %v3323 = vsel %vm2946, %v3302, -1e+30
        %v3324 = vsel %vm2947, %v3307, -1e+30
        %v3325 = vsel %vm2948, %v3310, -1e+30
        %v3326 = vsel %vm2949, %v3315, -1e+30
        %v3327 = vsel %vm3046, %v3320, -inf
        %3328 = vmax.xlane.f32.xlu0 %v3327
        %v3329 = vpop.xlane.xlu0 %3328
        %v3330 = vsel %vm3046, %v3321, -inf
        %3331 = vmax.xlane.f32.xlu0 %v3330
        %v3332 = vpop.xlane.xlu0 %3331
        %v3333 = vsel %vm3046, %v3322, -inf
        %3334 = vmax.xlane.f32.xlu0 %v3333
        %v3335 = vpop.xlane.xlu0 %3334
        %v3336 = vsel %vm3046, %v3323, -inf
        %3337 = vmax.xlane.f32.xlu0 %v3336
        %v3338 = vpop.xlane.xlu0 %3337
        %v3339 = vsel %vm3046, %v3324, -inf
        %3340 = vmax.xlane.f32.xlu0 %v3339
        %v3341 = vpop.xlane.xlu0 %3340
        %v3342 = vsel %vm3046, %v3325, -inf
        %3343 = vmax.xlane.f32.xlu0 %v3342
        %v3344 = vpop.xlane.xlu0 %3343
        %v3345 = vsel %vm3046, %v3326, -inf
        %3346 = vmax.xlane.f32.xlu0 %v3345
        %v3347 = vpop.xlane.xlu0 %3346
        %v3348 = vsub.f32 %v3320, %v3329
        %v3349 = vsub.f32 %v3321, %v3332
        %v3350 = vsub.f32 %v3322, %v3335
        %v3351 = vsub.f32 %v3323, %v3338
        %v3352 = vsub.f32 %v3324, %v3341
        %v3353 = vsub.f32 %v3325, %v3344
        %v3354 = vsub.f32 %v3326, %v3347
        %v3355 = vmul.f32 %v3348, 1.442695
        %v3356 = vpow.pop %v3355
        %v3357 = vmul.f32 %v3349, 1.442695
        %v3358 = vpow.pop %v3357
        %v3359 = vmul.f32 %v3350, 1.442695
        %v3360 = vpow.pop %v3359
        %v3361 = vmul.f32 %v3351, 1.442695
        %v3362 = vpow.pop %v3361
        %v3363 = vmul.f32 %v3352, 1.442695
        %v3364 = vpow.pop %v3363
        %v3365 = vmul.f32 %v3353, 1.442695
        %v3366 = vpow.pop %v3365
        %v3367 = vmul.f32 %v3354, 1.442695
        %v3368 = vpow.pop %v3367
        %v3369 = vsel %vm3046, %v3356, 0.0
        %3370 = vadd.xlane.f32.xlu0 %v3369
        %v3371 = vpop.xlane.xlu0 %3370
        %v3372 = vsel %vm3046, %v3358, 0.0
        %3373 = vadd.xlane.f32.xlu0 %v3372
        %v3374 = vpop.xlane.xlu0 %3373
        %v3375 = vsel %vm3046, %v3360, 0.0
        %3376 = vadd.xlane.f32.xlu0 %v3375
        %v3377 = vpop.xlane.xlu0 %3376
        %v3378 = vsel %vm3046, %v3362, 0.0
        %3379 = vadd.xlane.f32.xlu0 %v3378
        %v3380 = vpop.xlane.xlu0 %3379
        %v3381 = vsel %vm3046, %v3364, 0.0
        %3382 = vadd.xlane.f32.xlu0 %v3381
        %v3383 = vpop.xlane.xlu0 %3382
        %v3384 = vsel %vm3046, %v3366, 0.0
        %3385 = vadd.xlane.f32.xlu0 %v3384
        %v3386 = vpop.xlane.xlu0 %3385
        %v3387 = vsel %vm3046, %v3368, 0.0
        %3388 = vadd.xlane.f32.xlu0 %v3387
        %v3389 = vpop.xlane.xlu0 %3388
        %v3390 = vrcp.pop %v3371
        %v3391 = vrcp.pop %v3374
        %v3392 = vrcp.pop %v3377
        %v3393 = vrcp.pop %v3380
        %v3394 = vrcp.pop %v3383
        %v3395 = vrcp.pop %v3386
        %v3396 = vrcp.pop %v3389
        %v3397 = vmul.f32 %v3356, %v3390
        %v3398 = vmul.f32 %v3358, %v3391
        %v3399 = vmul.f32 %v3360, %v3392
        %v3400 = vmul.f32 %v3362, %v3393
        %v3401 = vmul.f32 %v3364, %v3394
        %v3402 = vmul.f32 %v3366, %v3395
        %v3403 = vmul.f32 %v3368, %v3396
        %v3404 = vpack.c.bf16 %v3398, %v3397
        %v3405 = vpack.c.bf16 %v3400, %v3399
        %v3406 = vpack.c.bf16 %v3402, %v3401
        %v3407 = vpack.c.bf16 %v3403, %v3403
        %3412 = vrot.lane.b32.xlu0 %v2921, 64
        %v3413 = vpop.permute.xlu0 %3412
        %3414 = vrot.lane.b32.xlu0 %v2924, 64
        %v3415 = vpop.permute.xlu0 %3414
        %3416 = vrot.lane.b32.xlu0 %v2927, 64
        %v3417 = vpop.permute.xlu0 %3416
        %3418 = vrot.lane.b32.xlu0 %v2930, 64
        %v3419 = vpop.permute.xlu0 %3418
        %v3424 = vsel %vm3046, %v3404, 0
        %v3427 = vsel %vm3046, %v3405, 0
        %v3430 = vsel %vm3046, %v3406, 0
        %v3433 = vsel %vm3046, %v3407, 0
        %v3436 = vsel %vm3140, %v3419, 0
        %3438 = vmatprep.subr.bf16.mxu0 0
        %3439 = vmatpush1.bf16.msra.mxu0 0
        %3440 = vmatprep.subr.bf16.mxu0 0
        %3441 = vmatpush1.bf16.msra.mxu0 0
        %3442 = vmatprep.subr.bf16.mxu0 0
        %3443 = vmatpush1.bf16.msra.mxu0 0
        %3444 = vmatprep.subr.bf16.mxu0 0
        %3445 = vmatpush1.bf16.msra.mxu0 0
        %3446 = vmatprep.subr.bf16.mxu0 0
        %3447 = vmatpush1.bf16.msra.mxu0 %v3436
        %3448 = vmatprep.subr.bf16.mxu0 0
        %3449 = vmatpush1.bf16.msra.mxu0 %v3417
        %3450 = vmatprep.subr.bf16.mxu0 0
        %3451 = vmatpush1.bf16.msra.mxu0 %v3415
        %3452 = vmatprep.subr.bf16.mxu0 0
        %3453 = vmatpush1.bf16.msra.mxu0 %v3413
        %3454 = vmatprep.subr.bf16.mxu0 0
        %3455 = vmatpush2.bf16.msra.mxu0 0
        %3456 = vmatprep.subr.bf16.mxu0 0
        %3457 = vmatpush2.bf16.msra.mxu0 0
        %3458 = vmatprep.subr.bf16.mxu0 0
        %3459 = vmatpush2.bf16.msra.mxu0 0
        %3460 = vmatprep.subr.bf16.mxu0 0
        %3461 = vmatpush2.bf16.msra.mxu0 0
        %3462 = vmatprep.subr.bf16.mxu0 0
        %3463 = vmatpush2.bf16.msra.mxu0 0
        %3464 = vmatprep.subr.bf16.mxu0 0
        %3465 = vmatpush2.bf16.msra.mxu0 0
        %3466 = vmatprep.subr.bf16.mxu0 0
        %3467 = vmatpush2.bf16.msra.mxu0 0
        %3468 = vmatprep.subr.bf16.mxu0 0
        %3469 = vmatpush2.bf16.msra.mxu0 0
        %3470 = vmatprep.mubr.bf16.mxu0 0
        %3471 = vmatmul.mubr.bf16.gmra.mxu0 %v3424
        %v3472 = vpop.f32.mrf.mxu0
        %v3473 = vadd.f32 0.0, %v3472
        %v3474 = vpop.f32.mrf.mxu0
        %v3475 = vpop.f32.mrf.mxu0
        %v3476 = vadd.f32 0.0, %v3475
        %v3477 = vpop.f32.mrf.mxu0
        %3478 = vmatprep.mubr.bf16.mxu0 0
        %3479 = vmatmul.mubr.bf16.gmra.mxu0 %v3427
        %v3480 = vpop.f32.mrf.mxu0
        %v3481 = vadd.f32 0.0, %v3480
        %v3482 = vpop.f32.mrf.mxu0
        %v3483 = vpop.f32.mrf.mxu0
        %v3484 = vadd.f32 0.0, %v3483
        %v3485 = vpop.f32.mrf.mxu0
        %3486 = vmatprep.mubr.bf16.mxu0 0
        %3487 = vmatmul.mubr.bf16.gmra.mxu0 %v3430
        %v3488 = vpop.f32.mrf.mxu0
        %v3489 = vadd.f32 0.0, %v3488
        %v3490 = vpop.f32.mrf.mxu0
        %v3491 = vpop.f32.mrf.mxu0
        %v3492 = vadd.f32 0.0, %v3491
        %v3493 = vpop.f32.mrf.mxu0
        %3494 = vmatprep.mubr.bf16.mxu0 0
        %3495 = vmatmul.mubr.bf16.gmra.mxu0 %v3433
        %v3496 = vpop.f32.mrf.mxu0
        %v3497 = vadd.f32 0.0, %v3496
        %v3498 = vpop.f32.mrf.mxu0
        %v3499 = vpop.f32.mrf.mxu0
        %v3500 = vpop.f32.mrf.mxu0
        %3501 = vdwg.mxu0
        %v3503 = vsel %vm2950, %v2898, 0
        %v3506 = vsel %vm2950, %v2901, 0
        %v3509 = vsel %vm2950, %v2904, 0
        %v3512 = vsel %vm2950, %v2907, 0
        %v3515 = vsel %vm2950, %v2910, 0
        %v3518 = vsel %vm2950, %v2913, 0
        %v3521 = vsel %vm2950, %v2916, 0
        %v3524 = vsel %vm2950, %v2919, 0
        %3526 = vmatprep.subr.bf16.mxu0 0
        %3527 = vmatpush1.bf16.xpose.msra.mxu0 0
        %3528 = vmatprep.subr.bf16.mxu0 0
        %3529 = vmatpush1.bf16.xpose.msra.mxu0 0
        %3530 = vmatprep.subr.bf16.mxu0 0
        %3531 = vmatpush1.bf16.xpose.msra.mxu0 0
        %3532 = vmatprep.subr.bf16.mxu0 0
        %3533 = vmatpush1.bf16.xpose.msra.mxu0 0
        %3534 = vmatprep.subr.bf16.mxu0 0
        %3535 = vmatpush1.bf16.xpose.msra.mxu0 %v3524
        %3536 = vmatprep.subr.bf16.mxu0 0
        %3537 = vmatpush1.bf16.xpose.msra.mxu0 %v3521
        %3538 = vmatprep.subr.bf16.mxu0 0
        %3539 = vmatpush1.bf16.xpose.msra.mxu0 %v3518
        %3540 = vmatprep.subr.bf16.mxu0 0
        %3541 = vmatpush1.bf16.xpose.msra.mxu0 %v3515
        %3542 = vmatprep.subr.bf16.mxu0 0
        %3543 = vmatpush2.bf16.xpose.msra.mxu0 0
        %3544 = vmatprep.subr.bf16.mxu0 0
        %3545 = vmatpush2.bf16.xpose.msra.mxu0 0
        %3546 = vmatprep.subr.bf16.mxu0 0
        %3547 = vmatpush2.bf16.xpose.msra.mxu0 0
        %3548 = vmatprep.subr.bf16.mxu0 0
        %3549 = vmatpush2.bf16.xpose.msra.mxu0 0
        %3550 = vmatprep.subr.bf16.mxu0 0
        %3551 = vmatpush2.bf16.xpose.msra.mxu0 0
        %3552 = vmatprep.subr.bf16.mxu0 0
        %3553 = vmatpush2.bf16.xpose.msra.mxu0 0
        %3554 = vmatprep.subr.bf16.mxu0 0
        %3555 = vmatpush2.bf16.xpose.msra.mxu0 0
        %3556 = vmatprep.subr.bf16.mxu0 0
        %3557 = vmatpush2.bf16.xpose.msra.mxu0 0
        %3558 = vmatprep.mubr.bf16.mxu0 0
        %3559 = vmatmul.mubr.bf16.gmra.mxu0 %v3503
        %v3560 = vpop.f32.mrf.mxu0
        %v3561 = vadd.f32 0.0, %v3560
        %v3562 = vpop.f32.mrf.mxu0
        %v3563 = vpop.f32.mrf.mxu0
        %v3564 = vadd.f32 0.0, %v3563
        %v3565 = vpop.f32.mrf.mxu0
        %3566 = vmatprep.mubr.bf16.mxu0 0
        %3567 = vmatmul.mubr.bf16.gmra.mxu0 %v3506
        %v3568 = vpop.f32.mrf.mxu0
        %v3569 = vadd.f32 0.0, %v3568
        %v3570 = vpop.f32.mrf.mxu0
        %v3571 = vpop.f32.mrf.mxu0
        %v3572 = vadd.f32 0.0, %v3571
        %v3573 = vpop.f32.mrf.mxu0
        %3574 = vmatprep.mubr.bf16.mxu0 0
        %3575 = vmatmul.mubr.bf16.gmra.mxu0 %v3509
        %v3576 = vpop.f32.mrf.mxu0
        %v3577 = vadd.f32 0.0, %v3576
        %v3578 = vpop.f32.mrf.mxu0
        %v3579 = vpop.f32.mrf.mxu0
        %v3580 = vadd.f32 0.0, %v3579
        %v3581 = vpop.f32.mrf.mxu0
        %3582 = vmatprep.mubr.bf16.mxu0 0
        %3583 = vmatmul.mubr.bf16.gmra.mxu0 %v3512
        %v3584 = vpop.f32.mrf.mxu0
        %v3585 = vadd.f32 0.0, %v3584
        %v3586 = vpop.f32.mrf.mxu0
        %v3587 = vpop.f32.mrf.mxu0
        %v3588 = vpop.f32.mrf.mxu0
        %3589 = vdwg.mxu0
        %v3590 = vsel %vm2943, %v3561, -1e+30
        %v3591 = vsel %vm2944, %v3564, -1e+30
        %v3592 = vsel %vm2945, %v3569, -1e+30
        %v3593 = vsel %vm2946, %v3572, -1e+30
        %v3594 = vsel %vm2947, %v3577, -1e+30
        %v3595 = vsel %vm2948, %v3580, -1e+30
        %v3596 = vsel %vm2949, %v3585, -1e+30
        %v3597 = vsel %vm3046, %v3590, -inf
        %3598 = vmax.xlane.f32.xlu0 %v3597
        %v3599 = vpop.xlane.xlu0 %3598
        %v3600 = vsel %vm3046, %v3591, -inf
        %3601 = vmax.xlane.f32.xlu0 %v3600
        %v3602 = vpop.xlane.xlu0 %3601
        %v3603 = vsel %vm3046, %v3592, -inf
        %3604 = vmax.xlane.f32.xlu0 %v3603
        %v3605 = vpop.xlane.xlu0 %3604
        %v3606 = vsel %vm3046, %v3593, -inf
        %3607 = vmax.xlane.f32.xlu0 %v3606
        %v3608 = vpop.xlane.xlu0 %3607
        %v3609 = vsel %vm3046, %v3594, -inf
        %3610 = vmax.xlane.f32.xlu0 %v3609
        %v3611 = vpop.xlane.xlu0 %3610
        %v3612 = vsel %vm3046, %v3595, -inf
        %3613 = vmax.xlane.f32.xlu0 %v3612
        %v3614 = vpop.xlane.xlu0 %3613
        %v3615 = vsel %vm3046, %v3596, -inf
        %3616 = vmax.xlane.f32.xlu0 %v3615
        %v3617 = vpop.xlane.xlu0 %3616
        %v3618 = vsub.f32 %v3590, %v3599
        %v3619 = vsub.f32 %v3591, %v3602
        %v3620 = vsub.f32 %v3592, %v3605
        %v3621 = vsub.f32 %v3593, %v3608
        %v3622 = vsub.f32 %v3594, %v3611
        %v3623 = vsub.f32 %v3595, %v3614
        %v3624 = vsub.f32 %v3596, %v3617
        %v3625 = vmul.f32 %v3618, 1.442695
        %v3626 = vpow.pop %v3625
        %v3627 = vmul.f32 %v3619, 1.442695
        %v3628 = vpow.pop %v3627
        %v3629 = vmul.f32 %v3620, 1.442695
        %v3630 = vpow.pop %v3629
        %v3631 = vmul.f32 %v3621, 1.442695
        %v3632 = vpow.pop %v3631
        %v3633 = vmul.f32 %v3622, 1.442695
        %v3634 = vpow.pop %v3633
        %v3635 = vmul.f32 %v3623, 1.442695
        %v3636 = vpow.pop %v3635
        %v3637 = vmul.f32 %v3624, 1.442695
        %v3638 = vpow.pop %v3637
        %v3639 = vsel %vm3046, %v3626, 0.0
        %3640 = vadd.xlane.f32.xlu0 %v3639
        %v3641 = vpop.xlane.xlu0 %3640
        %v3642 = vsel %vm3046, %v3628, 0.0
        %3643 = vadd.xlane.f32.xlu0 %v3642
        %v3644 = vpop.xlane.xlu0 %3643
        %v3645 = vsel %vm3046, %v3630, 0.0
        %3646 = vadd.xlane.f32.xlu0 %v3645
        %v3647 = vpop.xlane.xlu0 %3646
        %v3648 = vsel %vm3046, %v3632, 0.0
        %3649 = vadd.xlane.f32.xlu0 %v3648
        %v3650 = vpop.xlane.xlu0 %3649
        %v3651 = vsel %vm3046, %v3634, 0.0
        %3652 = vadd.xlane.f32.xlu0 %v3651
        %v3653 = vpop.xlane.xlu0 %3652
        %v3654 = vsel %vm3046, %v3636, 0.0
        %3655 = vadd.xlane.f32.xlu0 %v3654
        %v3656 = vpop.xlane.xlu0 %3655
        %v3657 = vsel %vm3046, %v3638, 0.0
        %3658 = vadd.xlane.f32.xlu0 %v3657
        %v3659 = vpop.xlane.xlu0 %3658
        %v3660 = vrcp.pop %v3641
        %v3661 = vrcp.pop %v3644
        %v3662 = vrcp.pop %v3647
        %v3663 = vrcp.pop %v3650
        %v3664 = vrcp.pop %v3653
        %v3665 = vrcp.pop %v3656
        %v3666 = vrcp.pop %v3659
        %v3667 = vmul.f32 %v3626, %v3660
        %v3668 = vmul.f32 %v3628, %v3661
        %v3669 = vmul.f32 %v3630, %v3662
        %v3670 = vmul.f32 %v3632, %v3663
        %v3671 = vmul.f32 %v3634, %v3664
        %v3672 = vmul.f32 %v3636, %v3665
        %v3673 = vmul.f32 %v3638, %v3666
        %v3674 = vpack.c.bf16 %v3668, %v3667
        %v3675 = vpack.c.bf16 %v3670, %v3669
        %v3676 = vpack.c.bf16 %v3672, %v3671
        %v3677 = vpack.c.bf16 %v3673, %v3673
        %v3679 = vsel %vm3046, %v3674, 0
        %v3682 = vsel %vm3046, %v3675, 0
        %v3685 = vsel %vm3046, %v3676, 0
        %v3688 = vsel %vm3046, %v3677, 0
        %v3691 = vsel %vm3140, %v2931, 0
        %3693 = vmatprep.subr.bf16.mxu0 0
        %3694 = vmatpush1.bf16.msra.mxu0 0
        %3695 = vmatprep.subr.bf16.mxu0 0
        %3696 = vmatpush1.bf16.msra.mxu0 0
        %3697 = vmatprep.subr.bf16.mxu0 0
        %3698 = vmatpush1.bf16.msra.mxu0 0
        %3699 = vmatprep.subr.bf16.mxu0 0
        %3700 = vmatpush1.bf16.msra.mxu0 0
        %3701 = vmatprep.subr.bf16.mxu0 0
        %3702 = vmatpush1.bf16.msra.mxu0 %v3691
        %3703 = vmatprep.subr.bf16.mxu0 0
        %3704 = vmatpush1.bf16.msra.mxu0 %v2928
        %3705 = vmatprep.subr.bf16.mxu0 0
        %3706 = vmatpush1.bf16.msra.mxu0 %v2925
        %3707 = vmatprep.subr.bf16.mxu0 0
        %3708 = vmatpush1.bf16.msra.mxu0 %v2922
        %3709 = vmatprep.subr.bf16.mxu0 0
        %3710 = vmatpush2.bf16.msra.mxu0 0
        %3711 = vmatprep.subr.bf16.mxu0 0
        %3712 = vmatpush2.bf16.msra.mxu0 0
        %3713 = vmatprep.subr.bf16.mxu0 0
        %3714 = vmatpush2.bf16.msra.mxu0 0
        %3715 = vmatprep.subr.bf16.mxu0 0
        %3716 = vmatpush2.bf16.msra.mxu0 0
        %3717 = vmatprep.subr.bf16.mxu0 0
        %3718 = vmatpush2.bf16.msra.mxu0 0
        %3719 = vmatprep.subr.bf16.mxu0 0
        %3720 = vmatpush2.bf16.msra.mxu0 0
        %3721 = vmatprep.subr.bf16.mxu0 0
        %3722 = vmatpush2.bf16.msra.mxu0 0
        %3723 = vmatprep.subr.bf16.mxu0 0
        %3724 = vmatpush2.bf16.msra.mxu0 0
        %3725 = vmatprep.mubr.bf16.mxu0 0
        %3726 = vmatmul.mubr.bf16.gmra.mxu0 %v3679
        %v3727 = vpop.f32.mrf.mxu0
        %v3728 = vadd.f32 0.0, %v3727
        %v3729 = vpop.f32.mrf.mxu0
        %v3730 = vpop.f32.mrf.mxu0
        %v3731 = vadd.f32 0.0, %v3730
        %v3732 = vpop.f32.mrf.mxu0
        %3733 = vmatprep.mubr.bf16.mxu0 0
        %3734 = vmatmul.mubr.bf16.gmra.mxu0 %v3682
        %v3735 = vpop.f32.mrf.mxu0
        %v3736 = vadd.f32 0.0, %v3735
        %v3737 = vpop.f32.mrf.mxu0
        %v3738 = vpop.f32.mrf.mxu0
        %v3739 = vadd.f32 0.0, %v3738
        %v3740 = vpop.f32.mrf.mxu0
        %3741 = vmatprep.mubr.bf16.mxu0 0
        %3742 = vmatmul.mubr.bf16.gmra.mxu0 %v3685
        %v3743 = vpop.f32.mrf.mxu0
        %v3744 = vadd.f32 0.0, %v3743
        %v3745 = vpop.f32.mrf.mxu0
        %v3746 = vpop.f32.mrf.mxu0
        %v3747 = vadd.f32 0.0, %v3746
        %v3748 = vpop.f32.mrf.mxu0
        %3749 = vmatprep.mubr.bf16.mxu0 0
        %3750 = vmatmul.mubr.bf16.gmra.mxu0 %v3688
        %v3751 = vpop.f32.mrf.mxu0
        %v3752 = vadd.f32 0.0, %v3751
        %v3753 = vpop.f32.mrf.mxu0
        %v3754 = vpop.f32.mrf.mxu0
        %v3755 = vpop.f32.mrf.mxu0
        %3756 = vdwg.mxu0
        %3761 = vrot.lane.b32.xlu0 %v2898, 64
        %v3762 = vpop.permute.xlu0 %3761
        %3763 = vrot.lane.b32.xlu0 %v2901, 64
        %v3764 = vpop.permute.xlu0 %3763
        %3765 = vrot.lane.b32.xlu0 %v2904, 64
        %v3766 = vpop.permute.xlu0 %3765
        %3767 = vrot.lane.b32.xlu0 %v2907, 64
        %v3768 = vpop.permute.xlu0 %3767
        %3773 = vrot.lane.b32.xlu0 %v2910, 64
        %v3774 = vpop.permute.xlu0 %3773
        %3775 = vrot.lane.b32.xlu0 %v2913, 64
        %v3776 = vpop.permute.xlu0 %3775
        %3777 = vrot.lane.b32.xlu0 %v2916, 64
        %v3778 = vpop.permute.xlu0 %3777
        %3779 = vrot.lane.b32.xlu0 %v2919, 64
        %v3780 = vpop.permute.xlu0 %3779
        %v3782 = vsel %vm2950, %v3762, 0
        %v3785 = vsel %vm2950, %v3764, 0
        %v3788 = vsel %vm2950, %v3766, 0
        %v3791 = vsel %vm2950, %v3768, 0
        %v3794 = vsel %vm2950, %v3774, 0
        %v3797 = vsel %vm2950, %v3776, 0
        %v3800 = vsel %vm2950, %v3778, 0
        %v3803 = vsel %vm2950, %v3780, 0
        %3805 = vmatprep.subr.bf16.mxu0 0
        %3806 = vmatpush1.bf16.xpose.msra.mxu0 0
        %3807 = vmatprep.subr.bf16.mxu0 0
        %3808 = vmatpush1.bf16.xpose.msra.mxu0 0
        %3809 = vmatprep.subr.bf16.mxu0 0
        %3810 = vmatpush1.bf16.xpose.msra.mxu0 0
        %3811 = vmatprep.subr.bf16.mxu0 0
        %3812 = vmatpush1.bf16.xpose.msra.mxu0 0
        %3813 = vmatprep.subr.bf16.mxu0 0
        %3814 = vmatpush1.bf16.xpose.msra.mxu0 %v3803
        %3815 = vmatprep.subr.bf16.mxu0 0
        %3816 = vmatpush1.bf16.xpose.msra.mxu0 %v3800
        %3817 = vmatprep.subr.bf16.mxu0 0
        %3818 = vmatpush1.bf16.xpose.msra.mxu0 %v3797
        %3819 = vmatprep.subr.bf16.mxu0 0
        %3820 = vmatpush1.bf16.xpose.msra.mxu0 %v3794
        %3821 = vmatprep.subr.bf16.mxu0 0
        %3822 = vmatpush2.bf16.xpose.msra.mxu0 0
        %3823 = vmatprep.subr.bf16.mxu0 0
        %3824 = vmatpush2.bf16.xpose.msra.mxu0 0
        %3825 = vmatprep.subr.bf16.mxu0 0
        %3826 = vmatpush2.bf16.xpose.msra.mxu0 0
        %3827 = vmatprep.subr.bf16.mxu0 0
        %3828 = vmatpush2.bf16.xpose.msra.mxu0 0
        %3829 = vmatprep.subr.bf16.mxu0 0
        %3830 = vmatpush2.bf16.xpose.msra.mxu0 0
        %3831 = vmatprep.subr.bf16.mxu0 0
        %3832 = vmatpush2.bf16.xpose.msra.mxu0 0
        %3833 = vmatprep.subr.bf16.mxu0 0
        %3834 = vmatpush2.bf16.xpose.msra.mxu0 0
        %3835 = vmatprep.subr.bf16.mxu0 0
        %3836 = vmatpush2.bf16.xpose.msra.mxu0 0
        %3837 = vmatprep.mubr.bf16.mxu0 0
        %3838 = vmatmul.mubr.bf16.gmra.mxu0 %v3782
        %v3839 = vpop.f32.mrf.mxu0
        %v3840 = vadd.f32 0.0, %v3839
        %v3841 = vpop.f32.mrf.mxu0
        %v3842 = vpop.f32.mrf.mxu0
        %v3843 = vadd.f32 0.0, %v3842
        %v3844 = vpop.f32.mrf.mxu0
        %3845 = vmatprep.mubr.bf16.mxu0 0
        %3846 = vmatmul.mubr.bf16.gmra.mxu0 %v3785
        %v3847 = vpop.f32.mrf.mxu0
        %v3848 = vadd.f32 0.0, %v3847
        %v3849 = vpop.f32.mrf.mxu0
        %v3850 = vpop.f32.mrf.mxu0
        %v3851 = vadd.f32 0.0, %v3850
        %v3852 = vpop.f32.mrf.mxu0
        %3853 = vmatprep.mubr.bf16.mxu0 0
        %3854 = vmatmul.mubr.bf16.gmra.mxu0 %v3788
        %v3855 = vpop.f32.mrf.mxu0
        %v3856 = vadd.f32 0.0, %v3855
        %v3857 = vpop.f32.mrf.mxu0
        %v3858 = vpop.f32.mrf.mxu0
        %v3859 = vadd.f32 0.0, %v3858
        %v3860 = vpop.f32.mrf.mxu0
        %3861 = vmatprep.mubr.bf16.mxu0 0
        %3862 = vmatmul.mubr.bf16.gmra.mxu0 %v3791
        %v3863 = vpop.f32.mrf.mxu0
        %v3864 = vadd.f32 0.0, %v3863
        %v3865 = vpop.f32.mrf.mxu0
        %v3866 = vpop.f32.mrf.mxu0
        %v3867 = vpop.f32.mrf.mxu0
        %3868 = vdwg.mxu0
        %v3869 = vsel %vm2943, %v3840, -1e+30
        %v3870 = vsel %vm2944, %v3843, -1e+30
        %v3871 = vsel %vm2945, %v3848, -1e+30
        %v3872 = vsel %vm2946, %v3851, -1e+30
        %v3873 = vsel %vm2947, %v3856, -1e+30
        %v3874 = vsel %vm2948, %v3859, -1e+30
        %v3875 = vsel %vm2949, %v3864, -1e+30
        %v3876 = vsel %vm3046, %v3869, -inf
        %3877 = vmax.xlane.f32.xlu0 %v3876
        %v3878 = vpop.xlane.xlu0 %3877
        %v3879 = vsel %vm3046, %v3870, -inf
        %3880 = vmax.xlane.f32.xlu0 %v3879
        %v3881 = vpop.xlane.xlu0 %3880
        %v3882 = vsel %vm3046, %v3871, -inf
        %3883 = vmax.xlane.f32.xlu0 %v3882
        %v3884 = vpop.xlane.xlu0 %3883
        %v3885 = vsel %vm3046, %v3872, -inf
        %3886 = vmax.xlane.f32.xlu0 %v3885
        %v3887 = vpop.xlane.xlu0 %3886
        %v3888 = vsel %vm3046, %v3873, -inf
        %3889 = vmax.xlane.f32.xlu0 %v3888
        %v3890 = vpop.xlane.xlu0 %3889
        %v3891 = vsel %vm3046, %v3874, -inf
        %3892 = vmax.xlane.f32.xlu0 %v3891
        %v3893 = vpop.xlane.xlu0 %3892
        %v3894 = vsel %vm3046, %v3875, -inf
        %3895 = vmax.xlane.f32.xlu0 %v3894
        %v3896 = vpop.xlane.xlu0 %3895
        %v3897 = vsub.f32 %v3869, %v3878
        %v3898 = vsub.f32 %v3870, %v3881
        %v3899 = vsub.f32 %v3871, %v3884
        %v3900 = vsub.f32 %v3872, %v3887
        %v3901 = vsub.f32 %v3873, %v3890
        %v3902 = vsub.f32 %v3874, %v3893
        %v3903 = vsub.f32 %v3875, %v3896
        %v3904 = vmul.f32 %v3897, 1.442695
        %v3905 = vpow.pop %v3904
        %v3906 = vmul.f32 %v3898, 1.442695
        %v3907 = vpow.pop %v3906
        %v3908 = vmul.f32 %v3899, 1.442695
        %v3909 = vpow.pop %v3908
        %v3910 = vmul.f32 %v3900, 1.442695
        %v3911 = vpow.pop %v3910
        %v3912 = vmul.f32 %v3901, 1.442695
        %v3913 = vpow.pop %v3912
        %v3914 = vmul.f32 %v3902, 1.442695
        %v3915 = vpow.pop %v3914
        %v3916 = vmul.f32 %v3903, 1.442695
        %v3917 = vpow.pop %v3916
        %v3918 = vsel %vm3046, %v3905, 0.0
        %3919 = vadd.xlane.f32.xlu0 %v3918
        %v3920 = vpop.xlane.xlu0 %3919
        %v3921 = vsel %vm3046, %v3907, 0.0
        %3922 = vadd.xlane.f32.xlu0 %v3921
        %v3923 = vpop.xlane.xlu0 %3922
        %v3924 = vsel %vm3046, %v3909, 0.0
        %3925 = vadd.xlane.f32.xlu0 %v3924
        %v3926 = vpop.xlane.xlu0 %3925
        %v3927 = vsel %vm3046, %v3911, 0.0
        %3928 = vadd.xlane.f32.xlu0 %v3927
        %v3929 = vpop.xlane.xlu0 %3928
        %v3930 = vsel %vm3046, %v3913, 0.0
        %3931 = vadd.xlane.f32.xlu0 %v3930
        %v3932 = vpop.xlane.xlu0 %3931
        %v3933 = vsel %vm3046, %v3915, 0.0
        %3934 = vadd.xlane.f32.xlu0 %v3933
        %v3935 = vpop.xlane.xlu0 %3934
        %v3936 = vsel %vm3046, %v3917, 0.0
        %3937 = vadd.xlane.f32.xlu0 %v3936
        %v3938 = vpop.xlane.xlu0 %3937
        %v3939 = vrcp.pop %v3920
        %v3940 = vrcp.pop %v3923
        %v3941 = vrcp.pop %v3926
        %v3942 = vrcp.pop %v3929
        %v3943 = vrcp.pop %v3932
        %v3944 = vrcp.pop %v3935
        %v3945 = vrcp.pop %v3938
        %v3946 = vmul.f32 %v3905, %v3939
        %v3947 = vmul.f32 %v3907, %v3940
        %v3948 = vmul.f32 %v3909, %v3941
        %v3949 = vmul.f32 %v3911, %v3942
        %v3950 = vmul.f32 %v3913, %v3943
        %v3951 = vmul.f32 %v3915, %v3944
        %v3952 = vmul.f32 %v3917, %v3945
        %v3953 = vpack.c.bf16 %v3947, %v3946
        %v3954 = vpack.c.bf16 %v3949, %v3948
        %v3955 = vpack.c.bf16 %v3951, %v3950
        %v3956 = vpack.c.bf16 %v3952, %v3952
        %3961 = vrot.lane.b32.xlu0 %v2922, 64
        %v3962 = vpop.permute.xlu0 %3961
        %3963 = vrot.lane.b32.xlu0 %v2925, 64
        %v3964 = vpop.permute.xlu0 %3963
        %3965 = vrot.lane.b32.xlu0 %v2928, 64
        %v3966 = vpop.permute.xlu0 %3965
        %3967 = vrot.lane.b32.xlu0 %v2931, 64
        %v3968 = vpop.permute.xlu0 %3967
        %v3973 = vsel %vm3046, %v3953, 0
        %v3976 = vsel %vm3046, %v3954, 0
        %v3979 = vsel %vm3046, %v3955, 0
        %v3982 = vsel %vm3046, %v3956, 0
        %v3985 = vsel %vm3140, %v3968, 0
        %3987 = vmatprep.subr.bf16.mxu0 0
        %3988 = vmatpush1.bf16.msra.mxu0 0
        %3989 = vmatprep.subr.bf16.mxu0 0
        %3990 = vmatpush1.bf16.msra.mxu0 0
        %3991 = vmatprep.subr.bf16.mxu0 0
        %3992 = vmatpush1.bf16.msra.mxu0 0
        %3993 = vmatprep.subr.bf16.mxu0 0
        %3994 = vmatpush1.bf16.msra.mxu0 0
        %3995 = vmatprep.subr.bf16.mxu0 0
        %3996 = vmatpush1.bf16.msra.mxu0 %v3985
        %3997 = vmatprep.subr.bf16.mxu0 0
        %3998 = vmatpush1.bf16.msra.mxu0 %v3966
        %3999 = vmatprep.subr.bf16.mxu0 0
        %4000 = vmatpush1.bf16.msra.mxu0 %v3964
        %4001 = vmatprep.subr.bf16.mxu0 0
        %4002 = vmatpush1.bf16.msra.mxu0 %v3962
        %4003 = vmatprep.subr.bf16.mxu0 0
        %4004 = vmatpush2.bf16.msra.mxu0 0
        %4005 = vmatprep.subr.bf16.mxu0 0
        %4006 = vmatpush2.bf16.msra.mxu0 0
        %4007 = vmatprep.subr.bf16.mxu0 0
        %4008 = vmatpush2.bf16.msra.mxu0 0
        %4009 = vmatprep.subr.bf16.mxu0 0
        %4010 = vmatpush2.bf16.msra.mxu0 0
        %4011 = vmatprep.subr.bf16.mxu0 0
        %4012 = vmatpush2.bf16.msra.mxu0 0
        %4013 = vmatprep.subr.bf16.mxu0 0
        %4014 = vmatpush2.bf16.msra.mxu0 0
        %4015 = vmatprep.subr.bf16.mxu0 0
        %4016 = vmatpush2.bf16.msra.mxu0 0
        %4017 = vmatprep.subr.bf16.mxu0 0
        %4018 = vmatpush2.bf16.msra.mxu0 0
        %4019 = vmatprep.mubr.bf16.mxu0 0
        %4020 = vmatmul.mubr.bf16.gmra.mxu0 %v3973
        %v4021 = vpop.f32.mrf.mxu0
        %v4022 = vadd.f32 0.0, %v4021
        %v4023 = vpop.f32.mrf.mxu0
        %v4024 = vpop.f32.mrf.mxu0
        %v4025 = vadd.f32 0.0, %v4024
        %v4026 = vpop.f32.mrf.mxu0
        %4027 = vmatprep.mubr.bf16.mxu0 0
        %4028 = vmatmul.mubr.bf16.gmra.mxu0 %v3976
        %v4029 = vpop.f32.mrf.mxu0
        %v4030 = vadd.f32 0.0, %v4029
        %v4031 = vpop.f32.mrf.mxu0
        %v4032 = vpop.f32.mrf.mxu0
        %v4033 = vadd.f32 0.0, %v4032
        %v4034 = vpop.f32.mrf.mxu0
        %4035 = vmatprep.mubr.bf16.mxu0 0
        %4036 = vmatmul.mubr.bf16.gmra.mxu0 %v3979
        %v4037 = vpop.f32.mrf.mxu0
        %v4038 = vadd.f32 0.0, %v4037
        %v4039 = vpop.f32.mrf.mxu0
        %v4040 = vpop.f32.mrf.mxu0
        %v4041 = vadd.f32 0.0, %v4040
        %v4042 = vpop.f32.mrf.mxu0
        %4043 = vmatprep.mubr.bf16.mxu0 0
        %4044 = vmatmul.mubr.bf16.gmra.mxu0 %v3982
        %v4045 = vpop.f32.mrf.mxu0
        %v4046 = vadd.f32 0.0, %v4045
        %v4047 = vpop.f32.mrf.mxu0
        %v4048 = vpop.f32.mrf.mxu0
        %v4049 = vpop.f32.mrf.mxu0
        %4050 = vdwg.mxu0
        %v4052 = vsel %vm2950, %v2899, 0
        %v4055 = vsel %vm2950, %v2902, 0
        %v4058 = vsel %vm2950, %v2905, 0
        %v4061 = vsel %vm2950, %v2908, 0
        %v4064 = vsel %vm2950, %v2911, 0
        %v4067 = vsel %vm2950, %v2914, 0
        %v4070 = vsel %vm2950, %v2917, 0
        %v4073 = vsel %vm2950, %v2920, 0
        %4075 = vmatprep.subr.bf16.mxu0 0
        %4076 = vmatpush1.bf16.xpose.msra.mxu0 0
        %4077 = vmatprep.subr.bf16.mxu0 0
        %4078 = vmatpush1.bf16.xpose.msra.mxu0 0
        %4079 = vmatprep.subr.bf16.mxu0 0
        %4080 = vmatpush1.bf16.xpose.msra.mxu0 0
        %4081 = vmatprep.subr.bf16.mxu0 0
        %4082 = vmatpush1.bf16.xpose.msra.mxu0 0
        %4083 = vmatprep.subr.bf16.mxu0 0
        %4084 = vmatpush1.bf16.xpose.msra.mxu0 %v4073
        %4085 = vmatprep.subr.bf16.mxu0 0
        %4086 = vmatpush1.bf16.xpose.msra.mxu0 %v4070
        %4087 = vmatprep.subr.bf16.mxu0 0
        %4088 = vmatpush1.bf16.xpose.msra.mxu0 %v4067
        %4089 = vmatprep.subr.bf16.mxu0 0
        %4090 = vmatpush1.bf16.xpose.msra.mxu0 %v4064
        %4091 = vmatprep.subr.bf16.mxu0 0
        %4092 = vmatpush2.bf16.xpose.msra.mxu0 0
        %4093 = vmatprep.subr.bf16.mxu0 0
        %4094 = vmatpush2.bf16.xpose.msra.mxu0 0
        %4095 = vmatprep.subr.bf16.mxu0 0
        %4096 = vmatpush2.bf16.xpose.msra.mxu0 0
        %4097 = vmatprep.subr.bf16.mxu0 0
        %4098 = vmatpush2.bf16.xpose.msra.mxu0 0
        %4099 = vmatprep.subr.bf16.mxu0 0
        %4100 = vmatpush2.bf16.xpose.msra.mxu0 0
        %4101 = vmatprep.subr.bf16.mxu0 0
        %4102 = vmatpush2.bf16.xpose.msra.mxu0 0
        %4103 = vmatprep.subr.bf16.mxu0 0
        %4104 = vmatpush2.bf16.xpose.msra.mxu0 0
        %4105 = vmatprep.subr.bf16.mxu0 0
        %4106 = vmatpush2.bf16.xpose.msra.mxu0 0
        %4107 = vmatprep.mubr.bf16.mxu0 0
        %4108 = vmatmul.mubr.bf16.gmra.mxu0 %v4052
        %v4109 = vpop.f32.mrf.mxu0
        %v4110 = vadd.f32 0.0, %v4109
        %v4111 = vpop.f32.mrf.mxu0
        %v4112 = vpop.f32.mrf.mxu0
        %v4113 = vadd.f32 0.0, %v4112
        %v4114 = vpop.f32.mrf.mxu0
        %4115 = vmatprep.mubr.bf16.mxu0 0
        %4116 = vmatmul.mubr.bf16.gmra.mxu0 %v4055
        %v4117 = vpop.f32.mrf.mxu0
        %v4118 = vadd.f32 0.0, %v4117
        %v4119 = vpop.f32.mrf.mxu0
        %v4120 = vpop.f32.mrf.mxu0
        %v4121 = vadd.f32 0.0, %v4120
        %v4122 = vpop.f32.mrf.mxu0
        %4123 = vmatprep.mubr.bf16.mxu0 0
        %4124 = vmatmul.mubr.bf16.gmra.mxu0 %v4058
        %v4125 = vpop.f32.mrf.mxu0
        %v4126 = vadd.f32 0.0, %v4125
        %v4127 = vpop.f32.mrf.mxu0
        %v4128 = vpop.f32.mrf.mxu0
        %v4129 = vadd.f32 0.0, %v4128
        %v4130 = vpop.f32.mrf.mxu0
        %4131 = vmatprep.mubr.bf16.mxu0 0
        %4132 = vmatmul.mubr.bf16.gmra.mxu0 %v4061
        %v4133 = vpop.f32.mrf.mxu0
        %v4134 = vadd.f32 0.0, %v4133
        %v4135 = vpop.f32.mrf.mxu0
        %v4136 = vpop.f32.mrf.mxu0
        %v4137 = vpop.f32.mrf.mxu0
        %4138 = vdwg.mxu0
        %v4139 = vsel %vm2943, %v4110, -1e+30
        %v4140 = vsel %vm2944, %v4113, -1e+30
        %v4141 = vsel %vm2945, %v4118, -1e+30
        %v4142 = vsel %vm2946, %v4121, -1e+30
        %v4143 = vsel %vm2947, %v4126, -1e+30
        %v4144 = vsel %vm2948, %v4129, -1e+30
        %v4145 = vsel %vm2949, %v4134, -1e+30
        %v4146 = vsel %vm3046, %v4139, -inf
        %4147 = vmax.xlane.f32.xlu0 %v4146
        %v4148 = vpop.xlane.xlu0 %4147
        %v4149 = vsel %vm3046, %v4140, -inf
        %4150 = vmax.xlane.f32.xlu0 %v4149
        %v4151 = vpop.xlane.xlu0 %4150
        %v4152 = vsel %vm3046, %v4141, -inf
        %4153 = vmax.xlane.f32.xlu0 %v4152
        %v4154 = vpop.xlane.xlu0 %4153
        %v4155 = vsel %vm3046, %v4142, -inf
        %4156 = vmax.xlane.f32.xlu0 %v4155
        %v4157 = vpop.xlane.xlu0 %4156
        %v4158 = vsel %vm3046, %v4143, -inf
        %4159 = vmax.xlane.f32.xlu0 %v4158
        %v4160 = vpop.xlane.xlu0 %4159
        %v4161 = vsel %vm3046, %v4144, -inf
        %4162 = vmax.xlane.f32.xlu0 %v4161
        %v4163 = vpop.xlane.xlu0 %4162
        %v4164 = vsel %vm3046, %v4145, -inf
        %4165 = vmax.xlane.f32.xlu0 %v4164
        %v4166 = vpop.xlane.xlu0 %4165
        %v4167 = vsub.f32 %v4139, %v4148
        %v4168 = vsub.f32 %v4140, %v4151
        %v4169 = vsub.f32 %v4141, %v4154
        %v4170 = vsub.f32 %v4142, %v4157
        %v4171 = vsub.f32 %v4143, %v4160
        %v4172 = vsub.f32 %v4144, %v4163
        %v4173 = vsub.f32 %v4145, %v4166
        %v4174 = vmul.f32 %v4167, 1.442695
        %v4175 = vpow.pop %v4174
        %v4176 = vmul.f32 %v4168, 1.442695
        %v4177 = vpow.pop %v4176
        %v4178 = vmul.f32 %v4169, 1.442695
        %v4179 = vpow.pop %v4178
        %v4180 = vmul.f32 %v4170, 1.442695
        %v4181 = vpow.pop %v4180
        %v4182 = vmul.f32 %v4171, 1.442695
        %v4183 = vpow.pop %v4182
        %v4184 = vmul.f32 %v4172, 1.442695
        %v4185 = vpow.pop %v4184
        %v4186 = vmul.f32 %v4173, 1.442695
        %v4187 = vpow.pop %v4186
        %v4188 = vsel %vm3046, %v4175, 0.0
        %4189 = vadd.xlane.f32.xlu0 %v4188
        %v4190 = vpop.xlane.xlu0 %4189
        %v4191 = vsel %vm3046, %v4177, 0.0
        %4192 = vadd.xlane.f32.xlu0 %v4191
        %v4193 = vpop.xlane.xlu0 %4192
        %v4194 = vsel %vm3046, %v4179, 0.0
        %4195 = vadd.xlane.f32.xlu0 %v4194
        %v4196 = vpop.xlane.xlu0 %4195
        %v4197 = vsel %vm3046, %v4181, 0.0
        %4198 = vadd.xlane.f32.xlu0 %v4197
        %v4199 = vpop.xlane.xlu0 %4198
        %v4200 = vsel %vm3046, %v4183, 0.0
        %4201 = vadd.xlane.f32.xlu0 %v4200
        %v4202 = vpop.xlane.xlu0 %4201
        %v4203 = vsel %vm3046, %v4185, 0.0
        %4204 = vadd.xlane.f32.xlu0 %v4203
        %v4205 = vpop.xlane.xlu0 %4204
        %v4206 = vsel %vm3046, %v4187, 0.0
        %4207 = vadd.xlane.f32.xlu0 %v4206
        %v4208 = vpop.xlane.xlu0 %4207
        %v4209 = vrcp.pop %v4190
        %v4210 = vrcp.pop %v4193
        %v4211 = vrcp.pop %v4196
        %v4212 = vrcp.pop %v4199
        %v4213 = vrcp.pop %v4202
        %v4214 = vrcp.pop %v4205
        %v4215 = vrcp.pop %v4208
        %v4216 = vmul.f32 %v4175, %v4209
        %v4217 = vmul.f32 %v4177, %v4210
        %v4218 = vmul.f32 %v4179, %v4211
        %v4219 = vmul.f32 %v4181, %v4212
        %v4220 = vmul.f32 %v4183, %v4213
        %v4221 = vmul.f32 %v4185, %v4214
        %v4222 = vmul.f32 %v4187, %v4215
        %v4223 = vpack.c.bf16 %v4217, %v4216
        %v4224 = vpack.c.bf16 %v4219, %v4218
        %v4225 = vpack.c.bf16 %v4221, %v4220
        %v4226 = vpack.c.bf16 %v4222, %v4222
        %v4228 = vsel %vm3046, %v4223, 0
        %v4231 = vsel %vm3046, %v4224, 0
        %v4234 = vsel %vm3046, %v4225, 0
        %v4237 = vsel %vm3046, %v4226, 0
        %v4240 = vsel %vm3140, %v2932, 0
        %4242 = vmatprep.subr.bf16.mxu0 0
        %4243 = vmatpush1.bf16.msra.mxu0 0
        %4244 = vmatprep.subr.bf16.mxu0 0
        %4245 = vmatpush1.bf16.msra.mxu0 0
        %4246 = vmatprep.subr.bf16.mxu0 0
        %4247 = vmatpush1.bf16.msra.mxu0 0
        %4248 = vmatprep.subr.bf16.mxu0 0
        %4249 = vmatpush1.bf16.msra.mxu0 0
        %4250 = vmatprep.subr.bf16.mxu0 0
        %4251 = vmatpush1.bf16.msra.mxu0 %v4240
        %4252 = vmatprep.subr.bf16.mxu0 0
        %4253 = vmatpush1.bf16.msra.mxu0 %v2929
        %4254 = vmatprep.subr.bf16.mxu0 0
        %4255 = vmatpush1.bf16.msra.mxu0 %v2926
        %4256 = vmatprep.subr.bf16.mxu0 0
        %4257 = vmatpush1.bf16.msra.mxu0 %v2923
        %4258 = vmatprep.subr.bf16.mxu0 0
        %4259 = vmatpush2.bf16.msra.mxu0 0
        %4260 = vmatprep.subr.bf16.mxu0 0
        %4261 = vmatpush2.bf16.msra.mxu0 0
        %4262 = vmatprep.subr.bf16.mxu0 0
        %4263 = vmatpush2.bf16.msra.mxu0 0
        %4264 = vmatprep.subr.bf16.mxu0 0
        %4265 = vmatpush2.bf16.msra.mxu0 0
        %4266 = vmatprep.subr.bf16.mxu0 0
        %4267 = vmatpush2.bf16.msra.mxu0 0
        %4268 = vmatprep.subr.bf16.mxu0 0
        %4269 = vmatpush2.bf16.msra.mxu0 0
        %4270 = vmatprep.subr.bf16.mxu0 0
        %4271 = vmatpush2.bf16.msra.mxu0 0
        %4272 = vmatprep.subr.bf16.mxu0 0
        %4273 = vmatpush2.bf16.msra.mxu0 0
        %4274 = vmatprep.mubr.bf16.mxu0 0
        %4275 = vmatmul.mubr.bf16.gmra.mxu0 %v4228
        %v4276 = vpop.f32.mrf.mxu0
        %v4277 = vadd.f32 0.0, %v4276
        %v4278 = vpop.f32.mrf.mxu0
        %v4279 = vpop.f32.mrf.mxu0
        %v4280 = vadd.f32 0.0, %v4279
        %v4281 = vpop.f32.mrf.mxu0
        %4282 = vmatprep.mubr.bf16.mxu0 0
        %4283 = vmatmul.mubr.bf16.gmra.mxu0 %v4231
        %v4284 = vpop.f32.mrf.mxu0
        %v4285 = vadd.f32 0.0, %v4284
        %v4286 = vpop.f32.mrf.mxu0
        %v4287 = vpop.f32.mrf.mxu0
        %v4288 = vadd.f32 0.0, %v4287
        %v4289 = vpop.f32.mrf.mxu0
        %4290 = vmatprep.mubr.bf16.mxu0 0
        %4291 = vmatmul.mubr.bf16.gmra.mxu0 %v4234
        %v4292 = vpop.f32.mrf.mxu0
        %v4293 = vadd.f32 0.0, %v4292
        %v4294 = vpop.f32.mrf.mxu0
        %v4295 = vpop.f32.mrf.mxu0
        %v4296 = vadd.f32 0.0, %v4295
        %v4297 = vpop.f32.mrf.mxu0
        %4298 = vmatprep.mubr.bf16.mxu0 0
        %4299 = vmatmul.mubr.bf16.gmra.mxu0 %v4237
        %v4300 = vpop.f32.mrf.mxu0
        %v4301 = vadd.f32 0.0, %v4300
        %v4302 = vpop.f32.mrf.mxu0
        %v4303 = vpop.f32.mrf.mxu0
        %v4304 = vpop.f32.mrf.mxu0
        %4305 = vdwg.mxu0
        %4310 = vrot.lane.b32.xlu0 %v2899, 64
        %v4311 = vpop.permute.xlu0 %4310
        %4312 = vrot.lane.b32.xlu0 %v2902, 64
        %v4313 = vpop.permute.xlu0 %4312
        %4314 = vrot.lane.b32.xlu0 %v2905, 64
        %v4315 = vpop.permute.xlu0 %4314
        %4316 = vrot.lane.b32.xlu0 %v2908, 64
        %v4317 = vpop.permute.xlu0 %4316
        %4322 = vrot.lane.b32.xlu0 %v2911, 64
        %v4323 = vpop.permute.xlu0 %4322
        %4324 = vrot.lane.b32.xlu0 %v2914, 64
        %v4325 = vpop.permute.xlu0 %4324
        %4326 = vrot.lane.b32.xlu0 %v2917, 64
        %v4327 = vpop.permute.xlu0 %4326
        %4328 = vrot.lane.b32.xlu0 %v2920, 64
        %v4329 = vpop.permute.xlu0 %4328
        %v4331 = vsel %vm2950, %v4311, 0
        %v4334 = vsel %vm2950, %v4313, 0
        %v4337 = vsel %vm2950, %v4315, 0
        %v4340 = vsel %vm2950, %v4317, 0
        %v4343 = vsel %vm2950, %v4323, 0
        %v4346 = vsel %vm2950, %v4325, 0
        %v4349 = vsel %vm2950, %v4327, 0
        %v4352 = vsel %vm2950, %v4329, 0
        %4354 = vmatprep.subr.bf16.mxu0 0
        %4355 = vmatpush1.bf16.xpose.msra.mxu0 0
        %4356 = vmatprep.subr.bf16.mxu0 0
        %4357 = vmatpush1.bf16.xpose.msra.mxu0 0
        %4358 = vmatprep.subr.bf16.mxu0 0
        %4359 = vmatpush1.bf16.xpose.msra.mxu0 0
        %4360 = vmatprep.subr.bf16.mxu0 0
        %4361 = vmatpush1.bf16.xpose.msra.mxu0 0
        %4362 = vmatprep.subr.bf16.mxu0 0
        %4363 = vmatpush1.bf16.xpose.msra.mxu0 %v4352
        %4364 = vmatprep.subr.bf16.mxu0 0
        %4365 = vmatpush1.bf16.xpose.msra.mxu0 %v4349
        %4366 = vmatprep.subr.bf16.mxu0 0
        %4367 = vmatpush1.bf16.xpose.msra.mxu0 %v4346
        %4368 = vmatprep.subr.bf16.mxu0 0
        %4369 = vmatpush1.bf16.xpose.msra.mxu0 %v4343
        %4370 = vmatprep.subr.bf16.mxu0 0
        %4371 = vmatpush2.bf16.xpose.msra.mxu0 0
        %4372 = vmatprep.subr.bf16.mxu0 0
        %4373 = vmatpush2.bf16.xpose.msra.mxu0 0
        %4374 = vmatprep.subr.bf16.mxu0 0
        %4375 = vmatpush2.bf16.xpose.msra.mxu0 0
        %4376 = vmatprep.subr.bf16.mxu0 0
        %4377 = vmatpush2.bf16.xpose.msra.mxu0 0
        %4378 = vmatprep.subr.bf16.mxu0 0
        %4379 = vmatpush2.bf16.xpose.msra.mxu0 0
        %4380 = vmatprep.subr.bf16.mxu0 0
        %4381 = vmatpush2.bf16.xpose.msra.mxu0 0
        %4382 = vmatprep.subr.bf16.mxu0 0
        %4383 = vmatpush2.bf16.xpose.msra.mxu0 0
        %4384 = vmatprep.subr.bf16.mxu0 0
        %4385 = vmatpush2.bf16.xpose.msra.mxu0 0
        %4386 = vmatprep.mubr.bf16.mxu0 0
        %4387 = vmatmul.mubr.bf16.gmra.mxu0 %v4331
        %v4388 = vpop.f32.mrf.mxu0
        %v4389 = vadd.f32 0.0, %v4388
        %v4390 = vpop.f32.mrf.mxu0
        %v4391 = vpop.f32.mrf.mxu0
        %v4392 = vadd.f32 0.0, %v4391
        %v4393 = vpop.f32.mrf.mxu0
        %4394 = vmatprep.mubr.bf16.mxu0 0
        %4395 = vmatmul.mubr.bf16.gmra.mxu0 %v4334
        %v4396 = vpop.f32.mrf.mxu0
        %v4397 = vadd.f32 0.0, %v4396
        %v4398 = vpop.f32.mrf.mxu0
        %v4399 = vpop.f32.mrf.mxu0
        %v4400 = vadd.f32 0.0, %v4399
        %v4401 = vpop.f32.mrf.mxu0
        %4402 = vmatprep.mubr.bf16.mxu0 0
        %4403 = vmatmul.mubr.bf16.gmra.mxu0 %v4337
        %v4404 = vpop.f32.mrf.mxu0
        %v4405 = vadd.f32 0.0, %v4404
        %v4406 = vpop.f32.mrf.mxu0
        %v4407 = vpop.f32.mrf.mxu0
        %v4408 = vadd.f32 0.0, %v4407
        %v4409 = vpop.f32.mrf.mxu0
        %4410 = vmatprep.mubr.bf16.mxu0 0
        %4411 = vmatmul.mubr.bf16.gmra.mxu0 %v4340
        %v4412 = vpop.f32.mrf.mxu0
        %v4413 = vadd.f32 0.0, %v4412
        %v4414 = vpop.f32.mrf.mxu0
        %v4415 = vpop.f32.mrf.mxu0
        %v4416 = vpop.f32.mrf.mxu0
        %4417 = vdwg.mxu0
        %v4418 = vsel %vm2943, %v4389, -1e+30
        %v4419 = vsel %vm2944, %v4392, -1e+30
        %v4420 = vsel %vm2945, %v4397, -1e+30
        %v4421 = vsel %vm2946, %v4400, -1e+30
        %v4422 = vsel %vm2947, %v4405, -1e+30
        %v4423 = vsel %vm2948, %v4408, -1e+30
        %v4424 = vsel %vm2949, %v4413, -1e+30
        %v4425 = vsel %vm3046, %v4418, -inf
        %4426 = vmax.xlane.f32.xlu0 %v4425
        %v4427 = vpop.xlane.xlu0 %4426
        %v4428 = vsel %vm3046, %v4419, -inf
        %4429 = vmax.xlane.f32.xlu0 %v4428
        %v4430 = vpop.xlane.xlu0 %4429
        %v4431 = vsel %vm3046, %v4420, -inf
        %4432 = vmax.xlane.f32.xlu0 %v4431
        %v4433 = vpop.xlane.xlu0 %4432
        %v4434 = vsel %vm3046, %v4421, -inf
        %4435 = vmax.xlane.f32.xlu0 %v4434
        %v4436 = vpop.xlane.xlu0 %4435
        %v4437 = vsel %vm3046, %v4422, -inf
        %4438 = vmax.xlane.f32.xlu0 %v4437
        %v4439 = vpop.xlane.xlu0 %4438
        %v4440 = vsel %vm3046, %v4423, -inf
        %4441 = vmax.xlane.f32.xlu0 %v4440
        %v4442 = vpop.xlane.xlu0 %4441
        %v4443 = vsel %vm3046, %v4424, -inf
        %4444 = vmax.xlane.f32.xlu0 %v4443
        %v4445 = vpop.xlane.xlu0 %4444
        %v4446 = vsub.f32 %v4418, %v4427
        %v4447 = vsub.f32 %v4419, %v4430
        %v4448 = vsub.f32 %v4420, %v4433
        %v4449 = vsub.f32 %v4421, %v4436
        %v4450 = vsub.f32 %v4422, %v4439
        %v4451 = vsub.f32 %v4423, %v4442
        %v4452 = vsub.f32 %v4424, %v4445
        %v4453 = vmul.f32 %v4446, 1.442695
        %v4454 = vpow.pop %v4453
        %v4455 = vmul.f32 %v4447, 1.442695
        %v4456 = vpow.pop %v4455
        %v4457 = vmul.f32 %v4448, 1.442695
        %v4458 = vpow.pop %v4457
        %v4459 = vmul.f32 %v4449, 1.442695
        %v4460 = vpow.pop %v4459
        %v4461 = vmul.f32 %v4450, 1.442695
        %v4462 = vpow.pop %v4461
        %v4463 = vmul.f32 %v4451, 1.442695
        %v4464 = vpow.pop %v4463
        %v4465 = vmul.f32 %v4452, 1.442695
        %v4466 = vpow.pop %v4465
        %v4467 = vsel %vm3046, %v4454, 0.0
        %4468 = vadd.xlane.f32.xlu0 %v4467
        %v4469 = vpop.xlane.xlu0 %4468
        %v4470 = vsel %vm3046, %v4456, 0.0
        %4471 = vadd.xlane.f32.xlu0 %v4470
        %v4472 = vpop.xlane.xlu0 %4471
        %v4473 = vsel %vm3046, %v4458, 0.0
        %4474 = vadd.xlane.f32.xlu0 %v4473
        %v4475 = vpop.xlane.xlu0 %4474
        %v4476 = vsel %vm3046, %v4460, 0.0
        %4477 = vadd.xlane.f32.xlu0 %v4476
        %v4478 = vpop.xlane.xlu0 %4477
        %v4479 = vsel %vm3046, %v4462, 0.0
        %4480 = vadd.xlane.f32.xlu0 %v4479
        %v4481 = vpop.xlane.xlu0 %4480
        %v4482 = vsel %vm3046, %v4464, 0.0
        %4483 = vadd.xlane.f32.xlu0 %v4482
        %v4484 = vpop.xlane.xlu0 %4483
        %v4485 = vsel %vm3046, %v4466, 0.0
        %4486 = vadd.xlane.f32.xlu0 %v4485
        %v4487 = vpop.xlane.xlu0 %4486
        %v4488 = vrcp.pop %v4469
        %v4489 = vrcp.pop %v4472
        %v4490 = vrcp.pop %v4475
        %v4491 = vrcp.pop %v4478
        %v4492 = vrcp.pop %v4481
        %v4493 = vrcp.pop %v4484
        %v4494 = vrcp.pop %v4487
        %v4495 = vmul.f32 %v4454, %v4488
        %v4496 = vmul.f32 %v4456, %v4489
        %v4497 = vmul.f32 %v4458, %v4490
        %v4498 = vmul.f32 %v4460, %v4491
        %v4499 = vmul.f32 %v4462, %v4492
        %v4500 = vmul.f32 %v4464, %v4493
        %v4501 = vmul.f32 %v4466, %v4494
        %v4502 = vpack.c.bf16 %v4496, %v4495
        %v4503 = vpack.c.bf16 %v4498, %v4497
        %v4504 = vpack.c.bf16 %v4500, %v4499
        %v4505 = vpack.c.bf16 %v4501, %v4501
        %4510 = vrot.lane.b32.xlu0 %v2923, 64
        %v4511 = vpop.permute.xlu0 %4510
        %4512 = vrot.lane.b32.xlu0 %v2926, 64
        %v4513 = vpop.permute.xlu0 %4512
        %4514 = vrot.lane.b32.xlu0 %v2929, 64
        %v4515 = vpop.permute.xlu0 %4514
        %4516 = vrot.lane.b32.xlu0 %v2932, 64
        %v4517 = vpop.permute.xlu0 %4516
        %v4522 = vsel %vm3046, %v4502, 0
        %v4525 = vsel %vm3046, %v4503, 0
        %v4528 = vsel %vm3046, %v4504, 0
        %v4531 = vsel %vm3046, %v4505, 0
        %v4534 = vsel %vm3140, %v4517, 0
        %4536 = vmatprep.subr.bf16.mxu0 0
        %4537 = vmatpush1.bf16.msra.mxu0 0
        %4538 = vmatprep.subr.bf16.mxu0 0
        %4539 = vmatpush1.bf16.msra.mxu0 0
        %4540 = vmatprep.subr.bf16.mxu0 0
        %4541 = vmatpush1.bf16.msra.mxu0 0
        %4542 = vmatprep.subr.bf16.mxu0 0
        %4543 = vmatpush1.bf16.msra.mxu0 0
        %4544 = vmatprep.subr.bf16.mxu0 0
        %4545 = vmatpush1.bf16.msra.mxu0 %v4534
        %4546 = vmatprep.subr.bf16.mxu0 0
        %4547 = vmatpush1.bf16.msra.mxu0 %v4515
        %4548 = vmatprep.subr.bf16.mxu0 0
        %4549 = vmatpush1.bf16.msra.mxu0 %v4513
        %4550 = vmatprep.subr.bf16.mxu0 0
        %4551 = vmatpush1.bf16.msra.mxu0 %v4511
        %4552 = vmatprep.subr.bf16.mxu0 0
        %4553 = vmatpush2.bf16.msra.mxu0 0
        %4554 = vmatprep.subr.bf16.mxu0 0
        %4555 = vmatpush2.bf16.msra.mxu0 0
        %4556 = vmatprep.subr.bf16.mxu0 0
        %4557 = vmatpush2.bf16.msra.mxu0 0
        %4558 = vmatprep.subr.bf16.mxu0 0
        %4559 = vmatpush2.bf16.msra.mxu0 0
        %4560 = vmatprep.subr.bf16.mxu0 0
        %4561 = vmatpush2.bf16.msra.mxu0 0
        %4562 = vmatprep.subr.bf16.mxu0 0
        %4563 = vmatpush2.bf16.msra.mxu0 0
        %4564 = vmatprep.subr.bf16.mxu0 0
        %4565 = vmatpush2.bf16.msra.mxu0 0
        %4566 = vmatprep.subr.bf16.mxu0 0
        %4567 = vmatpush2.bf16.msra.mxu0 0
        %4568 = vmatprep.mubr.bf16.mxu0 0
        %4569 = vmatmul.mubr.bf16.gmra.mxu0 %v4522
        %v4570 = vpop.f32.mrf.mxu0
        %v4571 = vadd.f32 0.0, %v4570
        %v4572 = vpop.f32.mrf.mxu0
        %v4573 = vpop.f32.mrf.mxu0
        %v4574 = vadd.f32 0.0, %v4573
        %v4575 = vpop.f32.mrf.mxu0
        %4576 = vmatprep.mubr.bf16.mxu0 0
        %4577 = vmatmul.mubr.bf16.gmra.mxu0 %v4525
        %v4578 = vpop.f32.mrf.mxu0
        %v4579 = vadd.f32 0.0, %v4578
        %v4580 = vpop.f32.mrf.mxu0
        %v4581 = vpop.f32.mrf.mxu0
        %v4582 = vadd.f32 0.0, %v4581
        %v4583 = vpop.f32.mrf.mxu0
        %4584 = vmatprep.mubr.bf16.mxu0 0
        %4585 = vmatmul.mubr.bf16.gmra.mxu0 %v4528
        %v4586 = vpop.f32.mrf.mxu0
        %v4587 = vadd.f32 0.0, %v4586
        %v4588 = vpop.f32.mrf.mxu0
        %v4589 = vpop.f32.mrf.mxu0
        %v4590 = vadd.f32 0.0, %v4589
        %v4591 = vpop.f32.mrf.mxu0
        %4592 = vmatprep.mubr.bf16.mxu0 0
        %4593 = vmatmul.mubr.bf16.gmra.mxu0 %v4531
        %v4594 = vpop.f32.mrf.mxu0
        %v4595 = vadd.f32 0.0, %v4594
        %v4596 = vpop.f32.mrf.mxu0
        %v4597 = vpop.f32.mrf.mxu0
        %v4598 = vpop.f32.mrf.mxu0
        %4599 = vdwg.mxu0
        %4607 = vrot.lane.b32.xlu0 %v3473, 64
        %v4608 = vpop.permute.xlu0 %4607
        %4609 = vrot.lane.b32.xlu0 %v3476, 64
        %v4610 = vpop.permute.xlu0 %4609
        %4611 = vrot.lane.b32.xlu0 %v3481, 64
        %v4612 = vpop.permute.xlu0 %4611
        %4613 = vrot.lane.b32.xlu0 %v3484, 64
        %v4614 = vpop.permute.xlu0 %4613
        %4615 = vrot.lane.b32.xlu0 %v3489, 64
        %v4616 = vpop.permute.xlu0 %4615
        %4617 = vrot.lane.b32.xlu0 %v3492, 64
        %v4618 = vpop.permute.xlu0 %4617
        %4619 = vrot.lane.b32.xlu0 %v3497, 64
        %v4620 = vpop.permute.xlu0 %4619
        %4635 = vrot.lane.b32.xlu0 %v4022, 64
        %v4636 = vpop.permute.xlu0 %4635
        %4637 = vrot.lane.b32.xlu0 %v4025, 64
        %v4638 = vpop.permute.xlu0 %4637
        %4639 = vrot.lane.b32.xlu0 %v4030, 64
        %v4640 = vpop.permute.xlu0 %4639
        %4641 = vrot.lane.b32.xlu0 %v4033, 64
        %v4642 = vpop.permute.xlu0 %4641
        %4643 = vrot.lane.b32.xlu0 %v4038, 64
        %v4644 = vpop.permute.xlu0 %4643
        %4645 = vrot.lane.b32.xlu0 %v4041, 64
        %v4646 = vpop.permute.xlu0 %4645
        %4647 = vrot.lane.b32.xlu0 %v4046, 64
        %v4648 = vpop.permute.xlu0 %4647
        %4663 = vrot.lane.b32.xlu0 %v4571, 64
        %v4664 = vpop.permute.xlu0 %4663
        %4665 = vrot.lane.b32.xlu0 %v4574, 64
        %v4666 = vpop.permute.xlu0 %4665
        %4667 = vrot.lane.b32.xlu0 %v4579, 64
        %v4668 = vpop.permute.xlu0 %4667
        %4669 = vrot.lane.b32.xlu0 %v4582, 64
        %v4670 = vpop.permute.xlu0 %4669
        %4671 = vrot.lane.b32.xlu0 %v4587, 64
        %v4672 = vpop.permute.xlu0 %4671
        %4673 = vrot.lane.b32.xlu0 %v4590, 64
        %v4674 = vpop.permute.xlu0 %4673
        %4675 = vrot.lane.b32.xlu0 %v4595, 64
        %v4676 = vpop.permute.xlu0 %4675
        %v4684 = vsel %vm2950, %v3179, %v4608
        %v4685 = vsel %vm2950, %v3182, %v4610
        %v4686 = vsel %vm2950, %v3187, %v4612
        %v4687 = vsel %vm2950, %v3190, %v4614
        %v4688 = vsel %vm2950, %v3195, %v4616
        %v4689 = vsel %vm2950, %v3198, %v4618
        %v4690 = vsel %vm2950, %v3203, %v4620
        %v4691 = vsel %vm2950, %v3728, %v4636
        %v4692 = vsel %vm2950, %v3731, %v4638
        %v4693 = vsel %vm2950, %v3736, %v4640
        %v4694 = vsel %vm2950, %v3739, %v4642
        %v4695 = vsel %vm2950, %v3744, %v4644
        %v4696 = vsel %vm2950, %v3747, %v4646
        %v4697 = vsel %vm2950, %v3752, %v4648
        %v4698 = vsel %vm2950, %v4277, %v4664
        %v4699 = vsel %vm2950, %v4280, %v4666
        %v4700 = vsel %vm2950, %v4285, %v4668
        %v4701 = vsel %vm2950, %v4288, %v4670
        %v4702 = vsel %vm2950, %v4293, %v4672
        %v4703 = vsel %vm2950, %v4296, %v4674
        %v4704 = vsel %vm2950, %v4301, %v4676
        %v4705 = vpack.c.bf16 %v4685, %v4684
        %v4706 = vpack.c.bf16 %v4692, %v4691
        %v4707 = vpack.c.bf16 %v4699, %v4698
        %v4708 = vpack.c.bf16 %v4687, %v4686
        %v4709 = vpack.c.bf16 %v4694, %v4693
        %v4710 = vpack.c.bf16 %v4701, %v4700
        %v4711 = vpack.c.bf16 %v4689, %v4688
        %v4712 = vpack.c.bf16 %v4696, %v4695
        %v4713 = vpack.c.bf16 %v4703, %v4702
        %v4714 = vpack.c.bf16 %v4690, %v4690
        %v4715 = vpack.c.bf16 %v4697, %v4697
        %v4716 = vpack.c.bf16 %v4704, %v4704
        %v4717 = vld [vmem:[#allocation10] sm:$0xff]
        %v4718 = vld [vmem:[#allocation10 + $0x8] sm:$0xf]
        %v4719 = vld [vmem:[#allocation10 + $0xc] sm:$0xff]
        %v4720 = vld [vmem:[#allocation10 + $0x14] sm:$0xf]
        %v4721 = vld [vmem:[#allocation10 + $0x18] sm:$0xff]
        %v4722 = vld [vmem:[#allocation10 + $0x20] sm:$0xf]
        %v4723 = vld [vmem:[#allocation10 + $0x24] sm:$0xff]
        %v4724 = vld [vmem:[#allocation10 + $0x2c] sm:$0xf]
        %v4725 = vld [vmem:[#allocation10 + $0x30] sm:$0xff]
        %v4726 = vld [vmem:[#allocation10 + $0x38] sm:$0xf]
        %v4727 = vld [vmem:[#allocation10 + $0x3c] sm:$0xff]
        %v4728 = vld [vmem:[#allocation10 + $0x44] sm:$0xf]
        %v4729 = vld [vmem:[#allocation10 + $0x48] sm:$0xff]
        %v4730 = vld [vmem:[#allocation10 + $0x50] sm:$0xf]
        %v4731 = vld [vmem:[#allocation10 + $0x54] sm:$0xff]
        %v4732 = vld [vmem:[#allocation10 + $0x5c] sm:$0xf]
        %v4733 = vld [vmem:[#allocation10 + $0x60] sm:$0xff]
        %v4734 = vld [vmem:[#allocation10 + $0x68] sm:$0xf]
        %v4735 = vld [vmem:[#allocation10 + $0x6c] sm:$0xff]
        %v4736 = vld [vmem:[#allocation10 + $0x74] sm:$0xf]
        %v4737 = vld [vmem:[#allocation10 + $0x78] sm:$0xff]
        %v4738 = vld [vmem:[#allocation10 + $0x80] sm:$0xf]
        %v4739 = vld [vmem:[#allocation10 + $0x84] sm:$0xff]
        %v4740 = vld [vmem:[#allocation10 + $0x8c] sm:$0xf]
        %v4741 = vld [vmem:[#allocation10 + $0x90] sm:$0xff]
        %v4742 = vld [vmem:[#allocation10 + $0x98] sm:$0xf]
        %v4743 = vld [vmem:[#allocation10 + $0x9c] sm:$0xff]
        %v4744 = vld [vmem:[#allocation10 + $0xa4] sm:$0xf]
        %v4745 = vld [vmem:[#allocation10 + $0xa8] sm:$0xff]
        %v4746 = vld [vmem:[#allocation10 + $0xb0] sm:$0xf]
        %v4747 = vld [vmem:[#allocation10 + $0xb4] sm:$0xff]
        %v4748 = vld [vmem:[#allocation10 + $0xbc] sm:$0xf]
        %v4749 = vld [vmem:[#allocation10 + $0xc0] sm:$0xff]
        %v4750 = vld [vmem:[#allocation10 + $0xc8] sm:$0xf]
        %v4751 = vld [vmem:[#allocation10 + $0xcc] sm:$0xff]
        %v4752 = vld [vmem:[#allocation10 + $0xd4] sm:$0xf]
        %v4753 = vld [vmem:[#allocation10 + $0xd8] sm:$0xff]
        %v4754 = vld [vmem:[#allocation10 + $0xe0] sm:$0xf]
        %v4755 = vld [vmem:[#allocation10 + $0xe4] sm:$0xff]
        %v4756 = vld [vmem:[#allocation10 + $0xec] sm:$0xf]
        %v4757 = vld [vmem:[#allocation10 + $0xf0] sm:$0xff]
        %v4758 = vld [vmem:[#allocation10 + $0xf8] sm:$0xf]
        %v4759 = vld [vmem:[#allocation10 + $0xfc] sm:$0xff]
        %v4760 = vld [vmem:[#allocation10 + $0x104] sm:$0xf]
        %v4761 = vld [vmem:[#allocation10 + $0x108] sm:$0xff]
        %v4762 = vld [vmem:[#allocation10 + $0x110] sm:$0xf]
        %v4763 = vld [vmem:[#allocation10 + $0x114] sm:$0xff]
        %v4764 = vld [vmem:[#allocation10 + $0x11c] sm:$0xf]
        %v4765 = vld [vmem:[#allocation10 + $0x120] sm:$0xff]
        %v4766 = vld [vmem:[#allocation10 + $0x128] sm:$0xf]
        %v4767 = vld [vmem:[#allocation10 + $0x12c] sm:$0xff]
        %v4768 = vld [vmem:[#allocation10 + $0x134] sm:$0xf]
        %v4769 = vld [vmem:[#allocation10 + $0x138] sm:$0xff]
        %v4770 = vld [vmem:[#allocation10 + $0x140] sm:$0xf]
        %v4771 = vld [vmem:[#allocation10 + $0x144] sm:$0xff]
        %v4772 = vld [vmem:[#allocation10 + $0x14c] sm:$0xf]
        %v4773 = vld [vmem:[#allocation10 + $0x150] sm:$0xff]
        %v4774 = vld [vmem:[#allocation10 + $0x158] sm:$0xf]
        %v4775 = vld [vmem:[#allocation10 + $0x15c] sm:$0xff]
        %v4776 = vld [vmem:[#allocation10 + $0x164] sm:$0xf]
        %v4777 = vld [vmem:[#allocation10 + $0x168] sm:$0xff]
        %v4778 = vld [vmem:[#allocation10 + $0x170] sm:$0xf]
        %v4779 = vld [vmem:[#allocation10 + $0x174] sm:$0xff]
        %v4780 = vld [vmem:[#allocation10 + $0x17c] sm:$0xf]
        %v4781 = vld [vmem:[#allocation10 + $0x180] sm:$0xff]
        %v4782 = vld [vmem:[#allocation10 + $0x188] sm:$0xf]
        %v4783 = vld [vmem:[#allocation10 + $0x18c] sm:$0xff]
        %v4784 = vld [vmem:[#allocation10 + $0x194] sm:$0xf]
        %v4785 = vld [vmem:[#allocation10 + $0x198] sm:$0xff]
        %v4786 = vld [vmem:[#allocation10 + $0x1a0] sm:$0xf]
        %v4787 = vld [vmem:[#allocation10 + $0x1a4] sm:$0xff]
        %v4788 = vld [vmem:[#allocation10 + $0x1ac] sm:$0xf]
        %v4789 = vld [vmem:[#allocation10 + $0x1b0] sm:$0xff]
        %v4790 = vld [vmem:[#allocation10 + $0x1b8] sm:$0xf]
        %v4791 = vld [vmem:[#allocation10 + $0x1bc] sm:$0xff]
        %v4792 = vld [vmem:[#allocation10 + $0x1c4] sm:$0xf]
        %v4793 = vld [vmem:[#allocation10 + $0x1c8] sm:$0xff]
        %v4794 = vld [vmem:[#allocation10 + $0x1d0] sm:$0xf]
        %v4795 = vld [vmem:[#allocation10 + $0x1d4] sm:$0xff]
        %v4796 = vld [vmem:[#allocation10 + $0x1dc] sm:$0xf]
        %v4797 = vld [vmem:[#allocation10 + $0x1e0] sm:$0xff]
        %v4798 = vld [vmem:[#allocation10 + $0x1e8] sm:$0xf]
        %v4799 = vld [vmem:[#allocation10 + $0x1ec] sm:$0xff]
        %v4800 = vld [vmem:[#allocation10 + $0x1f4] sm:$0xf]
        %v4801 = vld [vmem:[#allocation10 + $0x1f8] sm:$0xff]
        %v4802 = vld [vmem:[#allocation10 + $0x200] sm:$0xf]
        %v4803 = vld [vmem:[#allocation10 + $0x204] sm:$0xff]
        %v4804 = vld [vmem:[#allocation10 + $0x20c] sm:$0xf]
        %v4805 = vld [vmem:[#allocation10 + $0x210] sm:$0xff]
        %v4806 = vld [vmem:[#allocation10 + $0x218] sm:$0xf]
        %v4807 = vld [vmem:[#allocation10 + $0x21c] sm:$0xff]
        %v4808 = vld [vmem:[#allocation10 + $0x224] sm:$0xf]
        %v4809 = vld [vmem:[#allocation10 + $0x228] sm:$0xff]
        %v4810 = vld [vmem:[#allocation10 + $0x230] sm:$0xf]
        %v4811 = vld [vmem:[#allocation10 + $0x234] sm:$0xff]
        %v4812 = vld [vmem:[#allocation10 + $0x23c] sm:$0xf]
        %v4813 = vld [vmem:[#allocation11] sm:$0x7]
        %v4815 = vlaneseq
        %v4816 = vshrl.u32 %v4815, 7
        %v4817 = vsub.s32 0, %v4816
        %v4818 = vrot.slane %v4813, %v4817
        %v4819 = vlaneseq
        %v4820 = vshrl.u32 %v4819, 7
        %v4821 = vsub.s32 1, %v4820
        %v4822 = vrot.slane %v4813, %v4821
        %v4823 = vlaneseq
        %v4824 = vshrl.u32 %v4823, 7
        %v4825 = vsub.s32 2, %v4824
        %v4826 = vrot.slane %v4813, %v4825
        %v4926 = vunpack.c.l.b16 %v4717
        %v4927 = vunpack.c.h.b16 %v4717
        %v4928 = vunpack.c.l.b16 %v4718
        %v4929 = vunpack.c.l.b16 %v4719
        %v4930 = vunpack.c.h.b16 %v4719
        %v4931 = vunpack.c.l.b16 %v4720
        %v4932 = vunpack.c.l.b16 %v4721
        %v4933 = vunpack.c.h.b16 %v4721
        %v4934 = vunpack.c.l.b16 %v4722
        %v4935 = vunpack.c.l.b16 %v4723
        %v4936 = vunpack.c.h.b16 %v4723
        %v4937 = vunpack.c.l.b16 %v4724
        %v4938 = vunpack.c.l.b16 %v4725
        %v4939 = vunpack.c.h.b16 %v4725
        %v4940 = vunpack.c.l.b16 %v4726
        %v4941 = vunpack.c.l.b16 %v4727
        %v4942 = vunpack.c.h.b16 %v4727
        %v4943 = vunpack.c.l.b16 %v4728
        %v4944 = vunpack.c.l.b16 %v4729
        %v4945 = vunpack.c.h.b16 %v4729
        %v4946 = vunpack.c.l.b16 %v4730
        %v4947 = vunpack.c.l.b16 %v4731
        %v4948 = vunpack.c.h.b16 %v4731
        %v4949 = vunpack.c.l.b16 %v4732
        %v4950 = vunpack.c.l.b16 %v4733
        %v4951 = vunpack.c.h.b16 %v4733
        %v4952 = vunpack.c.l.b16 %v4734
        %v4953 = vunpack.c.l.b16 %v4735
        %v4954 = vunpack.c.h.b16 %v4735
        %v4955 = vunpack.c.l.b16 %v4736
        %v4956 = vunpack.c.l.b16 %v4737
        %v4957 = vunpack.c.h.b16 %v4737
        %v4958 = vunpack.c.l.b16 %v4738
        %v4959 = vunpack.c.l.b16 %v4739
        %v4960 = vunpack.c.h.b16 %v4739
        %v4961 = vunpack.c.l.b16 %v4740
        %v4962 = vunpack.c.l.b16 %v4741
        %v4963 = vunpack.c.h.b16 %v4741
        %v4964 = vunpack.c.l.b16 %v4742
        %v4965 = vunpack.c.l.b16 %v4743
        %v4966 = vunpack.c.h.b16 %v4743
        %v4967 = vunpack.c.l.b16 %v4744
        %v4968 = vunpack.c.l.b16 %v4745
        %v4969 = vunpack.c.h.b16 %v4745
        %v4970 = vunpack.c.l.b16 %v4746
        %v4971 = vunpack.c.l.b16 %v4747
        %v4972 = vunpack.c.h.b16 %v4747
        %v4973 = vunpack.c.l.b16 %v4748
        %v4974 = vunpack.c.l.b16 %v4749
        %v4975 = vunpack.c.h.b16 %v4749
        %v4976 = vunpack.c.l.b16 %v4750
        %v4977 = vunpack.c.l.b16 %v4751
        %v4978 = vunpack.c.h.b16 %v4751
        %v4979 = vunpack.c.l.b16 %v4752
        %v4980 = vunpack.c.l.b16 %v4753
        %v4981 = vunpack.c.h.b16 %v4753
        %v4982 = vunpack.c.l.b16 %v4754
        %v4983 = vunpack.c.l.b16 %v4755
        %v4984 = vunpack.c.h.b16 %v4755
        %v4985 = vunpack.c.l.b16 %v4756
        %v4986 = vunpack.c.l.b16 %v4757
        %v4987 = vunpack.c.h.b16 %v4757
        %v4988 = vunpack.c.l.b16 %v4758
        %v4989 = vunpack.c.l.b16 %v4759
        %v4990 = vunpack.c.h.b16 %v4759
        %v4991 = vunpack.c.l.b16 %v4760
        %v4992 = vunpack.c.l.b16 %v4761
        %v4993 = vunpack.c.h.b16 %v4761
        %v4994 = vunpack.c.l.b16 %v4762
        %v4995 = vunpack.c.l.b16 %v4763
        %v4996 = vunpack.c.h.b16 %v4763
        %v4997 = vunpack.c.l.b16 %v4764
        %v4998 = vunpack.c.l.b16 %v4765
        %v4999 = vunpack.c.h.b16 %v4765
        %v5000 = vunpack.c.l.b16 %v4766
        %v5001 = vunpack.c.l.b16 %v4767
        %v5002 = vunpack.c.h.b16 %v4767
        %v5003 = vunpack.c.l.b16 %v4768
        %v5004 = vunpack.c.l.b16 %v4769
        %v5005 = vunpack.c.h.b16 %v4769
        %v5006 = vunpack.c.l.b16 %v4770
        %v5007 = vunpack.c.l.b16 %v4771
        %v5008 = vunpack.c.h.b16 %v4771
        %v5009 = vunpack.c.l.b16 %v4772
        %v5010 = vunpack.c.l.b16 %v4773
        %v5011 = vunpack.c.h.b16 %v4773
        %v5012 = vunpack.c.l.b16 %v4774
        %v5013 = vunpack.c.l.b16 %v4775
        %v5014 = vunpack.c.h.b16 %v4775
        %v5015 = vunpack.c.l.b16 %v4776
        %v5016 = vunpack.c.l.b16 %v4777
        %v5017 = vunpack.c.h.b16 %v4777
        %v5018 = vunpack.c.l.b16 %v4778
        %v5019 = vunpack.c.l.b16 %v4779
        %v5020 = vunpack.c.h.b16 %v4779
        %v5021 = vunpack.c.l.b16 %v4780
        %v5022 = vunpack.c.l.b16 %v4781
        %v5023 = vunpack.c.h.b16 %v4781
        %v5024 = vunpack.c.l.b16 %v4782
        %v5025 = vunpack.c.l.b16 %v4783
        %v5026 = vunpack.c.h.b16 %v4783
        %v5027 = vunpack.c.l.b16 %v4784
        %v5028 = vunpack.c.l.b16 %v4785
        %v5029 = vunpack.c.h.b16 %v4785
        %v5030 = vunpack.c.l.b16 %v4786
        %v5031 = vunpack.c.l.b16 %v4787
        %v5032 = vunpack.c.h.b16 %v4787
        %v5033 = vunpack.c.l.b16 %v4788
        %v5034 = vunpack.c.l.b16 %v4789
        %v5035 = vunpack.c.h.b16 %v4789
        %v5036 = vunpack.c.l.b16 %v4790
        %v5037 = vunpack.c.l.b16 %v4791
        %v5038 = vunpack.c.h.b16 %v4791
        %v5039 = vunpack.c.l.b16 %v4792
        %v5040 = vunpack.c.l.b16 %v4793
        %v5041 = vunpack.c.h.b16 %v4793
        %v5042 = vunpack.c.l.b16 %v4794
        %v5043 = vunpack.c.l.b16 %v4795
        %v5044 = vunpack.c.h.b16 %v4795
        %v5045 = vunpack.c.l.b16 %v4796
        %v5046 = vunpack.c.l.b16 %v4797
        %v5047 = vunpack.c.h.b16 %v4797
        %v5048 = vunpack.c.l.b16 %v4798
        %v5049 = vunpack.c.l.b16 %v4799
        %v5050 = vunpack.c.h.b16 %v4799
        %v5051 = vunpack.c.l.b16 %v4800
        %v5052 = vunpack.c.l.b16 %v4801
        %v5053 = vunpack.c.h.b16 %v4801
        %v5054 = vunpack.c.l.b16 %v4802
        %v5055 = vunpack.c.l.b16 %v4803
        %v5056 = vunpack.c.h.b16 %v4803
        %v5057 = vunpack.c.l.b16 %v4804
        %v5058 = vunpack.c.l.b16 %v4805
        %v5059 = vunpack.c.h.b16 %v4805
        %v5060 = vunpack.c.l.b16 %v4806
        %v5061 = vunpack.c.l.b16 %v4807
        %v5062 = vunpack.c.h.b16 %v4807
        %v5063 = vunpack.c.l.b16 %v4808
        %v5064 = vunpack.c.l.b16 %v4809
        %v5065 = vunpack.c.h.b16 %v4809
        %v5066 = vunpack.c.l.b16 %v4810
        %v5067 = vunpack.c.l.b16 %v4811
        %v5068 = vunpack.c.h.b16 %v4811
        %v5069 = vunpack.c.l.b16 %v4812
        %v5070 = vpack.c.b16 %v4929, %v4926
        %v5071 = vpack.c.b16 %v4930, %v4927
        %v5072 = vpack.c.b16 %v4931, %v4928
        %v5073 = vpack.c.b16 %v4935, %v4932
        %v5074 = vpack.c.b16 %v4936, %v4933
        %v5075 = vpack.c.b16 %v4937, %v4934
        %v5076 = vpack.c.b16 %v4941, %v4938
        %v5077 = vpack.c.b16 %v4942, %v4939
        %v5078 = vpack.c.b16 %v4943, %v4940
        %v5079 = vpack.c.b16 %v4947, %v4944
        %v5080 = vpack.c.b16 %v4948, %v4945
        %v5081 = vpack.c.b16 %v4949, %v4946
        %v5082 = vpack.c.b16 %v4953, %v4950
        %v5083 = vpack.c.b16 %v4954, %v4951
        %v5084 = vpack.c.b16 %v4955, %v4952
        %v5085 = vpack.c.b16 %v4959, %v4956
        %v5086 = vpack.c.b16 %v4960, %v4957
        %v5087 = vpack.c.b16 %v4961, %v4958
        %v5088 = vpack.c.b16 %v4965, %v4962
        %v5089 = vpack.c.b16 %v4966, %v4963
        %v5090 = vpack.c.b16 %v4967, %v4964
        %v5091 = vpack.c.b16 %v4971, %v4968
        %v5092 = vpack.c.b16 %v4972, %v4969
        %v5093 = vpack.c.b16 %v4973, %v4970
        %v5094 = vpack.c.b16 %v4977, %v4974
        %v5095 = vpack.c.b16 %v4978, %v4975
        %v5096 = vpack.c.b16 %v4979, %v4976
        %v5097 = vpack.c.b16 %v4983, %v4980
        %v5098 = vpack.c.b16 %v4984, %v4981
        %v5099 = vpack.c.b16 %v4985, %v4982
        %v5100 = vpack.c.b16 %v4989, %v4986
        %v5101 = vpack.c.b16 %v4990, %v4987
        %v5102 = vpack.c.b16 %v4991, %v4988
        %v5103 = vpack.c.b16 %v4995, %v4992
        %v5104 = vpack.c.b16 %v4996, %v4993
        %v5105 = vpack.c.b16 %v4997, %v4994
        %v5106 = vpack.c.b16 %v5001, %v4998
        %v5107 = vpack.c.b16 %v5002, %v4999
        %v5108 = vpack.c.b16 %v5003, %v5000
        %v5109 = vpack.c.b16 %v5007, %v5004
        %v5110 = vpack.c.b16 %v5008, %v5005
        %v5111 = vpack.c.b16 %v5009, %v5006
        %v5112 = vpack.c.b16 %v5013, %v5010
        %v5113 = vpack.c.b16 %v5014, %v5011
        %v5114 = vpack.c.b16 %v5015, %v5012
        %v5115 = vpack.c.b16 %v5019, %v5016
        %v5116 = vpack.c.b16 %v5020, %v5017
        %v5117 = vpack.c.b16 %v5021, %v5018
        %v5118 = vpack.c.b16 %v5025, %v5022
        %v5119 = vpack.c.b16 %v5026, %v5023
        %v5120 = vpack.c.b16 %v5027, %v5024
        %v5121 = vpack.c.b16 %v5031, %v5028
        %v5122 = vpack.c.b16 %v5032, %v5029
        %v5123 = vpack.c.b16 %v5033, %v5030
        %v5124 = vpack.c.b16 %v5037, %v5034
        %v5125 = vpack.c.b16 %v5038, %v5035
        %v5126 = vpack.c.b16 %v5039, %v5036
        %v5127 = vpack.c.b16 %v5043, %v5040
        %v5128 = vpack.c.b16 %v5044, %v5041
        %v5129 = vpack.c.b16 %v5045, %v5042
        %v5130 = vpack.c.b16 %v5049, %v5046
        %v5131 = vpack.c.b16 %v5050, %v5047
        %v5132 = vpack.c.b16 %v5051, %v5048
        %v5133 = vpack.c.b16 %v5055, %v5052
        %v5134 = vpack.c.b16 %v5056, %v5053
        %v5135 = vpack.c.b16 %v5057, %v5054
        %v5136 = vpack.c.b16 %v5061, %v5058
        %v5137 = vpack.c.b16 %v5062, %v5059
        %v5138 = vpack.c.b16 %v5063, %v5060
        %v5139 = vpack.c.b16 %v5067, %v5064
        %v5140 = vpack.c.b16 %v5068, %v5065
        %v5141 = vpack.c.b16 %v5069, %v5066
        %5214 = vmatprep.subr.bf16.mxu0 %v5092
        %5215 = vmatpush1.bf16.msra.mxu0 %v5091
        %5216 = vmatprep.subr.bf16.mxu0 %v5089
        %5217 = vmatpush1.bf16.msra.mxu0 %v5088
        %5218 = vmatprep.subr.bf16.mxu0 %v5086
        %5219 = vmatpush1.bf16.msra.mxu0 %v5085
        %5220 = vmatprep.subr.bf16.mxu0 %v5083
        %5221 = vmatpush1.bf16.msra.mxu0 %v5082
        %5222 = vmatprep.subr.bf16.mxu0 %v5080
        %5223 = vmatpush1.bf16.msra.mxu0 %v5079
        %5224 = vmatprep.subr.bf16.mxu0 %v5077
        %5225 = vmatpush1.bf16.msra.mxu0 %v5076
        %5226 = vmatprep.subr.bf16.mxu0 %v5074
        %5227 = vmatpush1.bf16.msra.mxu0 %v5073
        %5228 = vmatprep.subr.bf16.mxu0 %v5071
        %5229 = vmatpush1.bf16.msra.mxu0 %v5070
        %5230 = vmatprep.subr.bf16.mxu0 %v5116
        %5231 = vmatpush2.bf16.msra.mxu0 %v5115
        %5232 = vmatprep.subr.bf16.mxu0 %v5113
        %5233 = vmatpush2.bf16.msra.mxu0 %v5112
        %5234 = vmatprep.subr.bf16.mxu0 %v5110
        %5235 = vmatpush2.bf16.msra.mxu0 %v5109
        %5236 = vmatprep.subr.bf16.mxu0 %v5107
        %5237 = vmatpush2.bf16.msra.mxu0 %v5106
        %5238 = vmatprep.subr.bf16.mxu0 %v5104
        %5239 = vmatpush2.bf16.msra.mxu0 %v5103
        %5240 = vmatprep.subr.bf16.mxu0 %v5101
        %5241 = vmatpush2.bf16.msra.mxu0 %v5100
        %5242 = vmatprep.subr.bf16.mxu0 %v5098
        %5243 = vmatpush2.bf16.msra.mxu0 %v5097
        %5244 = vmatprep.subr.bf16.mxu0 %v5095
        %5245 = vmatpush2.bf16.msra.mxu0 %v5094
        %5246 = vmatprep.mubr.bf16.mxu0 %v4706
        %5247 = vmatmul.mubr.bf16.gmra.mxu0 %v4705
        %v5248 = vpop.f32.mrf.mxu0
        %v5249 = vadd.f32 %v4818, %v5248
        %v5250 = vpop.f32.mrf.mxu0
        %v5251 = vadd.f32 %v4822, %v5250
        %v5252 = vpop.f32.mrf.mxu0
        %v5253 = vadd.f32 %v4818, %v5252
        %v5254 = vpop.f32.mrf.mxu0
        %v5255 = vadd.f32 %v4822, %v5254
        %5256 = vmatprep.mubr.bf16.mxu0 %v4709
        %5257 = vmatmul.mubr.bf16.gmra.mxu0 %v4708
        %v5258 = vpop.f32.mrf.mxu0
        %v5259 = vadd.f32 %v4818, %v5258
        %v5260 = vpop.f32.mrf.mxu0
        %v5261 = vadd.f32 %v4822, %v5260
        %v5262 = vpop.f32.mrf.mxu0
        %v5263 = vadd.f32 %v4818, %v5262
        %v5264 = vpop.f32.mrf.mxu0
        %v5265 = vadd.f32 %v4822, %v5264
        %5266 = vmatprep.mubr.bf16.mxu0 %v4712
        %5267 = vmatmul.mubr.bf16.gmra.mxu0 %v4711
        %v5268 = vpop.f32.mrf.mxu0
        %v5269 = vadd.f32 %v4818, %v5268
        %v5270 = vpop.f32.mrf.mxu0
        %v5271 = vadd.f32 %v4822, %v5270
        %v5272 = vpop.f32.mrf.mxu0
        %v5273 = vadd.f32 %v4818, %v5272
        %v5274 = vpop.f32.mrf.mxu0
        %v5275 = vadd.f32 %v4822, %v5274
        %5276 = vmatprep.mubr.bf16.mxu0 %v4715
        %5277 = vmatmul.mubr.bf16.gmra.mxu0 %v4714
        %v5278 = vpop.f32.mrf.mxu0
        %v5279 = vadd.f32 %v4818, %v5278
        %v5280 = vpop.f32.mrf.mxu0
        %v5281 = vadd.f32 %v4822, %v5280
        %v5282 = vpop.f32.mrf.mxu0
        %v5283 = vpop.f32.mrf.mxu0
        %5284 = vdwg.mxu0
        %5285 = vmatprep.subr.bf16.mxu0 %v5140
        %5286 = vmatpush1.bf16.msra.mxu0 %v5139
        %5287 = vmatprep.subr.bf16.mxu0 %v5137
        %5288 = vmatpush1.bf16.msra.mxu0 %v5136
        %5289 = vmatprep.subr.bf16.mxu0 %v5134
        %5290 = vmatpush1.bf16.msra.mxu0 %v5133
        %5291 = vmatprep.subr.bf16.mxu0 %v5131
        %5292 = vmatpush1.bf16.msra.mxu0 %v5130
        %5293 = vmatprep.subr.bf16.mxu0 %v5128
        %5294 = vmatpush1.bf16.msra.mxu0 %v5127
        %5295 = vmatprep.subr.bf16.mxu0 %v5125
        %5296 = vmatpush1.bf16.msra.mxu0 %v5124
        %5297 = vmatprep.subr.bf16.mxu0 %v5122
        %5298 = vmatpush1.bf16.msra.mxu0 %v5121
        %5299 = vmatprep.subr.bf16.mxu0 %v5119
        %5300 = vmatpush1.bf16.msra.mxu0 %v5118
        %5301 = vmatprep.subr.bf16.mxu0 0
        %5302 = vmatpush2.bf16.msra.mxu0 0
        %5303 = vmatprep.subr.bf16.mxu0 0
        %5304 = vmatpush2.bf16.msra.mxu0 0
        %5305 = vmatprep.subr.bf16.mxu0 0
        %5306 = vmatpush2.bf16.msra.mxu0 0
        %5307 = vmatprep.subr.bf16.mxu0 0
        %5308 = vmatpush2.bf16.msra.mxu0 0
        %5309 = vmatprep.subr.bf16.mxu0 0
        %5310 = vmatpush2.bf16.msra.mxu0 0
        %5311 = vmatprep.subr.bf16.mxu0 0
        %5312 = vmatpush2.bf16.msra.mxu0 0
        %5313 = vmatprep.subr.bf16.mxu0 0
        %5314 = vmatpush2.bf16.msra.mxu0 0
        %5315 = vmatprep.subr.bf16.mxu0 0
        %5316 = vmatpush2.bf16.msra.mxu0 0
        %5317 = vmatprep.mubr.bf16.mxu0 0
        %5318 = vmatmul.mubr.bf16.gmra.mxu0 %v4707
        %v5319 = vpop.f32.mrf.mxu0
        %v5320 = vadd.f32 %v5249, %v5319
        %v5321 = vpop.f32.mrf.mxu0
        %v5322 = vadd.f32 %v5251, %v5321
        %v5323 = vpop.f32.mrf.mxu0
        %v5324 = vadd.f32 %v5253, %v5323
        %v5325 = vpop.f32.mrf.mxu0
        %v5326 = vadd.f32 %v5255, %v5325
        %5327 = vmatprep.mubr.bf16.mxu0 0
        %5328 = vmatmul.mubr.bf16.gmra.mxu0 %v4710
        %v5329 = vpop.f32.mrf.mxu0
        %v5330 = vadd.f32 %v5259, %v5329
        %v5331 = vpop.f32.mrf.mxu0
        %v5332 = vadd.f32 %v5261, %v5331
        %v5333 = vpop.f32.mrf.mxu0
        %v5334 = vadd.f32 %v5263, %v5333
        %v5335 = vpop.f32.mrf.mxu0
        %v5336 = vadd.f32 %v5265, %v5335
        %5337 = vmatprep.mubr.bf16.mxu0 0
        %5338 = vmatmul.mubr.bf16.gmra.mxu0 %v4713
        %v5339 = vpop.f32.mrf.mxu0
        %v5340 = vadd.f32 %v5269, %v5339
        %v5341 = vpop.f32.mrf.mxu0
        %v5342 = vadd.f32 %v5271, %v5341
        %v5343 = vpop.f32.mrf.mxu0
        %v5344 = vadd.f32 %v5273, %v5343
        %v5345 = vpop.f32.mrf.mxu0
        %v5346 = vadd.f32 %v5275, %v5345
        %5347 = vmatprep.mubr.bf16.mxu0 0
        %5348 = vmatmul.mubr.bf16.gmra.mxu0 %v4716
        %v5349 = vpop.f32.mrf.mxu0
        %v5350 = vadd.f32 %v5279, %v5349
        %v5351 = vpop.f32.mrf.mxu0
        %v5352 = vadd.f32 %v5281, %v5351
        %v5353 = vpop.f32.mrf.mxu0
        %v5354 = vpop.f32.mrf.mxu0
        %5355 = vdwg.mxu0
        %5356 = vmatprep.subr.bf16.mxu0 0
        %5357 = vmatpush1.bf16.msra.mxu0 %v5093
        %5358 = vmatprep.subr.bf16.mxu0 0
        %5359 = vmatpush1.bf16.msra.mxu0 %v5090
        %5360 = vmatprep.subr.bf16.mxu0 0
        %5361 = vmatpush1.bf16.msra.mxu0 %v5087
        %5362 = vmatprep.subr.bf16.mxu0 0
        %5363 = vmatpush1.bf16.msra.mxu0 %v5084
        %5364 = vmatprep.subr.bf16.mxu0 0
        %5365 = vmatpush1.bf16.msra.mxu0 %v5081
        %5366 = vmatprep.subr.bf16.mxu0 0
        %5367 = vmatpush1.bf16.msra.mxu0 %v5078
        %5368 = vmatprep.subr.bf16.mxu0 0
        %5369 = vmatpush1.bf16.msra.mxu0 %v5075
        %5370 = vmatprep.subr.bf16.mxu0 0
        %5371 = vmatpush1.bf16.msra.mxu0 %v5072
        %5372 = vmatprep.subr.bf16.mxu0 0
        %5373 = vmatpush2.bf16.msra.mxu0 %v5117
        %5374 = vmatprep.subr.bf16.mxu0 0
        %5375 = vmatpush2.bf16.msra.mxu0 %v5114
        %5376 = vmatprep.subr.bf16.mxu0 0
        %5377 = vmatpush2.bf16.msra.mxu0 %v5111
        %5378 = vmatprep.subr.bf16.mxu0 0
        %5379 = vmatpush2.bf16.msra.mxu0 %v5108
        %5380 = vmatprep.subr.bf16.mxu0 0
        %5381 = vmatpush2.bf16.msra.mxu0 %v5105
        %5382 = vmatprep.subr.bf16.mxu0 0
        %5383 = vmatpush2.bf16.msra.mxu0 %v5102
        %5384 = vmatprep.subr.bf16.mxu0 0
        %5385 = vmatpush2.bf16.msra.mxu0 %v5099
        %5386 = vmatprep.subr.bf16.mxu0 0
        %5387 = vmatpush2.bf16.msra.mxu0 %v5096
        %5388 = vmatprep.mubr.bf16.mxu0 %v4706
        %5389 = vmatmul.mubr.bf16.gmra.mxu0 %v4705
        %v5390 = vpop.f32.mrf.mxu0
        %v5391 = vadd.f32 %v4826, %v5390
        %v5392 = vpop.f32.mrf.mxu0
        %v5393 = vpop.f32.mrf.mxu0
        %v5394 = vadd.f32 %v4826, %v5393
        %v5395 = vpop.f32.mrf.mxu0
        %5396 = vmatprep.mubr.bf16.mxu0 %v4709
        %5397 = vmatmul.mubr.bf16.gmra.mxu0 %v4708
        %v5398 = vpop.f32.mrf.mxu0
        %v5399 = vadd.f32 %v4826, %v5398
        %v5400 = vpop.f32.mrf.mxu0
        %v5401 = vpop.f32.mrf.mxu0
        %v5402 = vadd.f32 %v4826, %v5401
        %v5403 = vpop.f32.mrf.mxu0
        %5404 = vmatprep.mubr.bf16.mxu0 %v4712
        %5405 = vmatmul.mubr.bf16.gmra.mxu0 %v4711
        %v5406 = vpop.f32.mrf.mxu0
        %v5407 = vadd.f32 %v4826, %v5406
        %v5408 = vpop.f32.mrf.mxu0
        %v5409 = vpop.f32.mrf.mxu0
        %v5410 = vadd.f32 %v4826, %v5409
        %v5411 = vpop.f32.mrf.mxu0
        %5412 = vmatprep.mubr.bf16.mxu0 %v4715
        %5413 = vmatmul.mubr.bf16.gmra.mxu0 %v4714
        %v5414 = vpop.f32.mrf.mxu0
        %v5415 = vadd.f32 %v4826, %v5414
        %v5416 = vpop.f32.mrf.mxu0
        %v5417 = vpop.f32.mrf.mxu0
        %v5418 = vpop.f32.mrf.mxu0
        %5419 = vdwg.mxu0
        %5420 = vmatprep.subr.bf16.mxu0 0
        %5421 = vmatpush1.bf16.msra.mxu0 %v5141
        %5422 = vmatprep.subr.bf16.mxu0 0
        %5423 = vmatpush1.bf16.msra.mxu0 %v5138
        %5424 = vmatprep.subr.bf16.mxu0 0
        %5425 = vmatpush1.bf16.msra.mxu0 %v5135
        %5426 = vmatprep.subr.bf16.mxu0 0
        %5427 = vmatpush1.bf16.msra.mxu0 %v5132
        %5428 = vmatprep.subr.bf16.mxu0 0
        %5429 = vmatpush1.bf16.msra.mxu0 %v5129
        %5430 = vmatprep.subr.bf16.mxu0 0
        %5431 = vmatpush1.bf16.msra.mxu0 %v5126
        %5432 = vmatprep.subr.bf16.mxu0 0
        %5433 = vmatpush1.bf16.msra.mxu0 %v5123
        %5434 = vmatprep.subr.bf16.mxu0 0
        %5435 = vmatpush1.bf16.msra.mxu0 %v5120
        %5436 = vmatprep.subr.bf16.mxu0 0
        %5437 = vmatpush2.bf16.msra.mxu0 0
        %5438 = vmatprep.subr.bf16.mxu0 0
        %5439 = vmatpush2.bf16.msra.mxu0 0
        %5440 = vmatprep.subr.bf16.mxu0 0
        %5441 = vmatpush2.bf16.msra.mxu0 0
        %5442 = vmatprep.subr.bf16.mxu0 0
        %5443 = vmatpush2.bf16.msra.mxu0 0
        %5444 = vmatprep.subr.bf16.mxu0 0
        %5445 = vmatpush2.bf16.msra.mxu0 0
        %5446 = vmatprep.subr.bf16.mxu0 0
        %5447 = vmatpush2.bf16.msra.mxu0 0
        %5448 = vmatprep.subr.bf16.mxu0 0
        %5449 = vmatpush2.bf16.msra.mxu0 0
        %5450 = vmatprep.subr.bf16.mxu0 0
        %5451 = vmatpush2.bf16.msra.mxu0 0
        %5452 = vmatprep.mubr.bf16.mxu0 0
        %5453 = vmatmul.mubr.bf16.gmra.mxu0 %v4707
        %v5454 = vpop.f32.mrf.mxu0
        %v5455 = vadd.f32 %v5391, %v5454
        %v5456 = vpop.f32.mrf.mxu0
        %v5457 = vpop.f32.mrf.mxu0
        %v5458 = vadd.f32 %v5394, %v5457
        %v5459 = vpop.f32.mrf.mxu0
        %5460 = vmatprep.mubr.bf16.mxu0 0
        %5461 = vmatmul.mubr.bf16.gmra.mxu0 %v4710
        %v5462 = vpop.f32.mrf.mxu0
        %v5463 = vadd.f32 %v5399, %v5462
        %v5464 = vpop.f32.mrf.mxu0
        %v5465 = vpop.f32.mrf.mxu0
        %v5466 = vadd.f32 %v5402, %v5465
        %v5467 = vpop.f32.mrf.mxu0
        %5468 = vmatprep.mubr.bf16.mxu0 0
        %5469 = vmatmul.mubr.bf16.gmra.mxu0 %v4713
        %v5470 = vpop.f32.mrf.mxu0
        %v5471 = vadd.f32 %v5407, %v5470
        %v5472 = vpop.f32.mrf.mxu0
        %v5473 = vpop.f32.mrf.mxu0
        %v5474 = vadd.f32 %v5410, %v5473
        %v5475 = vpop.f32.mrf.mxu0
        %5476 = vmatprep.mubr.bf16.mxu0 0
        %5477 = vmatmul.mubr.bf16.gmra.mxu0 %v4716
        %v5478 = vpop.f32.mrf.mxu0
        %v5479 = vadd.f32 %v5415, %v5478
        %v5480 = vpop.f32.mrf.mxu0
        %v5481 = vpop.f32.mrf.mxu0
        %v5482 = vpop.f32.mrf.mxu0
        %5483 = vdwg.mxu0
        %v5484 = vadd.f32 %v5320, %v579
        %v5485 = vadd.f32 %v5322, %v580
        %v5486 = vadd.f32 %v5455, %v581
        %v5487 = vadd.f32 %v5324, %v582
        %v5488 = vadd.f32 %v5326, %v583
        %v5489 = vadd.f32 %v5458, %v584
        %v5490 = vadd.f32 %v5330, %v585
        %v5491 = vadd.f32 %v5332, %v586
        %v5492 = vadd.f32 %v5463, %v587
        %v5493 = vadd.f32 %v5334, %v588
        %v5494 = vadd.f32 %v5336, %v589
        %v5495 = vadd.f32 %v5466, %v590
        %v5496 = vadd.f32 %v5340, %v591
        %v5497 = vadd.f32 %v5342, %v592
        %v5498 = vadd.f32 %v5471, %v593
        %v5499 = vadd.f32 %v5344, %v594
        %v5500 = vadd.f32 %v5346, %v595
        %v5501 = vadd.f32 %v5474, %v596
        %v5502 = vadd.f32 %v5350, %v597
        %v5503 = vadd.f32 %v5352, %v598
        %v5504 = vadd.f32 %v5479, %v599
        %v5505 = vld [vmem:[#allocation13] sm:$0x7]
        %v5506 = vld [vmem:[#allocation14] sm:$0x7]
        %v5507 = vadd.f32 %v5484, %v5485
        %v5508 = vadd.f32 %v5507, %v5486
        %5509 = vadd.xlane.f32.xlu0 %v5508
        %v5510 = vpop.xlane.xlu0 %5509
        %v5511 = vadd.f32 %v5487, %v5488
        %v5512 = vadd.f32 %v5511, %v5489
        %5513 = vadd.xlane.f32.xlu0 %v5512
        %v5514 = vpop.xlane.xlu0 %5513
        %v5515 = vadd.f32 %v5490, %v5491
        %v5516 = vadd.f32 %v5515, %v5492
        %5517 = vadd.xlane.f32.xlu0 %v5516
        %v5518 = vpop.xlane.xlu0 %5517
        %v5519 = vadd.f32 %v5493, %v5494
        %v5520 = vadd.f32 %v5519, %v5495
        %5521 = vadd.xlane.f32.xlu0 %v5520
        %v5522 = vpop.xlane.xlu0 %5521
        %v5523 = vadd.f32 %v5496, %v5497
        %v5524 = vadd.f32 %v5523, %v5498
        %5525 = vadd.xlane.f32.xlu0 %v5524
        %v5526 = vpop.xlane.xlu0 %5525
        %v5527 = vadd.f32 %v5499, %v5500
        %v5528 = vadd.f32 %v5527, %v5501
        %5529 = vadd.xlane.f32.xlu0 %v5528
        %v5530 = vpop.xlane.xlu0 %5529
        %v5531 = vadd.f32 %v5502, %v5503
        %v5532 = vadd.f32 %v5531, %v5504
        %5533 = vadd.xlane.f32.xlu0 %v5532
        %v5534 = vpop.xlane.xlu0 %5533
        %v5535 = vmul.f32 %v5510, %v630
        %v5536 = vmul.f32 %v5514, %v630
        %v5537 = vmul.f32 %v5518, %v630
        %v5538 = vmul.f32 %v5522, %v630
        %v5539 = vmul.f32 %v5526, %v630
        %v5540 = vmul.f32 %v5530, %v630
        %v5541 = vmul.f32 %v5534, %v630
        %v5542 = vsub.f32 %v5484, %v5535
        %v5543 = vsub.f32 %v5485, %v5535
        %v5544 = vsub.f32 %v5486, %v5535
        %v5545 = vsub.f32 %v5487, %v5536
        %v5546 = vsub.f32 %v5488, %v5536
        %v5547 = vsub.f32 %v5489, %v5536
        %v5548 = vsub.f32 %v5490, %v5537
        %v5549 = vsub.f32 %v5491, %v5537
        %v5550 = vsub.f32 %v5492, %v5537
        %v5551 = vsub.f32 %v5493, %v5538
        %v5552 = vsub.f32 %v5494, %v5538
        %v5553 = vsub.f32 %v5495, %v5538
        %v5554 = vsub.f32 %v5496, %v5539
        %v5555 = vsub.f32 %v5497, %v5539
        %v5556 = vsub.f32 %v5498, %v5539
        %v5557 = vsub.f32 %v5499, %v5540
        %v5558 = vsub.f32 %v5500, %v5540
        %v5559 = vsub.f32 %v5501, %v5540
        %v5560 = vsub.f32 %v5502, %v5541
        %v5561 = vsub.f32 %v5503, %v5541
        %v5562 = vsub.f32 %v5504, %v5541
        %v5563 = vmul.f32 %v5542, %v5542
        %v5564 = vmul.f32 %v5543, %v5543
        %v5565 = vmul.f32 %v5544, %v5544
        %v5566 = vmul.f32 %v5545, %v5545
        %v5567 = vmul.f32 %v5546, %v5546
        %v5568 = vmul.f32 %v5547, %v5547
        %v5569 = vmul.f32 %v5548, %v5548
        %v5570 = vmul.f32 %v5549, %v5549
        %v5571 = vmul.f32 %v5550, %v5550
        %v5572 = vmul.f32 %v5551, %v5551
        %v5573 = vmul.f32 %v5552, %v5552
        %v5574 = vmul.f32 %v5553, %v5553
        %v5575 = vmul.f32 %v5554, %v5554
        %v5576 = vmul.f32 %v5555, %v5555
        %v5577 = vmul.f32 %v5556, %v5556
        %v5578 = vmul.f32 %v5557, %v5557
        %v5579 = vmul.f32 %v5558, %v5558
        %v5580 = vmul.f32 %v5559, %v5559
        %v5581 = vmul.f32 %v5560, %v5560
        %v5582 = vmul.f32 %v5561, %v5561
        %v5583 = vmul.f32 %v5562, %v5562
        %v5584 = vadd.f32 %v5563, %v5564
        %v5585 = vadd.f32 %v5584, %v5565
        %5586 = vadd.xlane.f32.xlu0 %v5585
        %v5587 = vpop.xlane.xlu0 %5586
        %v5588 = vadd.f32 %v5566, %v5567
        %v5589 = vadd.f32 %v5588, %v5568
        %5590 = vadd.xlane.f32.xlu0 %v5589
        %v5591 = vpop.xlane.xlu0 %5590
        %v5592 = vadd.f32 %v5569, %v5570
        %v5593 = vadd.f32 %v5592, %v5571
        %5594 = vadd.xlane.f32.xlu0 %v5593
        %v5595 = vpop.xlane.xlu0 %5594
        %v5596 = vadd.f32 %v5572, %v5573
        %v5597 = vadd.f32 %v5596, %v5574
        %5598 = vadd.xlane.f32.xlu0 %v5597
        %v5599 = vpop.xlane.xlu0 %5598
        %v5600 = vadd.f32 %v5575, %v5576
        %v5601 = vadd.f32 %v5600, %v5577
        %5602 = vadd.xlane.f32.xlu0 %v5601
        %v5603 = vpop.xlane.xlu0 %5602
        %v5604 = vadd.f32 %v5578, %v5579
        %v5605 = vadd.f32 %v5604, %v5580
        %5606 = vadd.xlane.f32.xlu0 %v5605
        %v5607 = vpop.xlane.xlu0 %5606
        %v5608 = vadd.f32 %v5581, %v5582
        %v5609 = vadd.f32 %v5608, %v5583
        %5610 = vadd.xlane.f32.xlu0 %v5609
        %v5611 = vpop.xlane.xlu0 %5610
        %v5612 = vmul.f32 %v5587, %v630
        %v5613 = vmul.f32 %v5591, %v630
        %v5614 = vmul.f32 %v5595, %v630
        %v5615 = vmul.f32 %v5599, %v630
        %v5616 = vmul.f32 %v5603, %v630
        %v5617 = vmul.f32 %v5607, %v630
        %v5618 = vmul.f32 %v5611, %v630
        %v5619 = vadd.f32 %v5612, 1e-05
        %v5620 = vadd.f32 %v5613, 1e-05
        %v5621 = vadd.f32 %v5614, 1e-05
        %v5622 = vadd.f32 %v5615, 1e-05
        %v5623 = vadd.f32 %v5616, 1e-05
        %v5624 = vadd.f32 %v5617, 1e-05
        %v5625 = vadd.f32 %v5618, 1e-05
        %v5626 = vrsqrt.pop %v5619
        %v5627 = vrsqrt.pop %v5620
        %v5628 = vrsqrt.pop %v5621
        %v5629 = vrsqrt.pop %v5622
        %v5630 = vrsqrt.pop %v5623
        %v5631 = vrsqrt.pop %v5624
        %v5632 = vrsqrt.pop %v5625
        %v5633 = vmul.f32 %v5542, %v5626
        %v5634 = vmul.f32 %v5543, %v5626
        %v5635 = vmul.f32 %v5544, %v5626
        %v5636 = vmul.f32 %v5545, %v5627
        %v5637 = vmul.f32 %v5546, %v5627
        %v5638 = vmul.f32 %v5547, %v5627
        %v5639 = vmul.f32 %v5548, %v5628
        %v5640 = vmul.f32 %v5549, %v5628
        %v5641 = vmul.f32 %v5550, %v5628
        %v5642 = vmul.f32 %v5551, %v5629
        %v5643 = vmul.f32 %v5552, %v5629
        %v5644 = vmul.f32 %v5553, %v5629
        %v5645 = vmul.f32 %v5554, %v5630
        %v5646 = vmul.f32 %v5555, %v5630
        %v5647 = vmul.f32 %v5556, %v5630
        %v5648 = vmul.f32 %v5557, %v5631
        %v5649 = vmul.f32 %v5558, %v5631
        %v5650 = vmul.f32 %v5559, %v5631
        %v5651 = vmul.f32 %v5560, %v5632
        %v5652 = vmul.f32 %v5561, %v5632
        %v5653 = vmul.f32 %v5562, %v5632
        %v5655 = vlaneseq
        %v5656 = vshrl.u32 %v5655, 7
        %v5657 = vsub.s32 0, %v5656
        %v5658 = vrot.slane %v5505, %v5657
        %v5659 = vlaneseq
        %v5660 = vshrl.u32 %v5659, 7
        %v5661 = vsub.s32 1, %v5660
        %v5662 = vrot.slane %v5505, %v5661
        %v5663 = vlaneseq
        %v5664 = vshrl.u32 %v5663, 7
        %v5665 = vsub.s32 2, %v5664
        %v5666 = vrot.slane %v5505, %v5665
        %v5670 = vmul.f32 %v5633, %v5658
        %v5671 = vmul.f32 %v5634, %v5662
        %v5672 = vmul.f32 %v5635, %v5666
        %v5673 = vmul.f32 %v5636, %v5658
        %v5674 = vmul.f32 %v5637, %v5662
        %v5675 = vmul.f32 %v5638, %v5666
        %v5676 = vmul.f32 %v5639, %v5658
        %v5677 = vmul.f32 %v5640, %v5662
        %v5678 = vmul.f32 %v5641, %v5666
        %v5679 = vmul.f32 %v5642, %v5658
        %v5680 = vmul.f32 %v5643, %v5662
        %v5681 = vmul.f32 %v5644, %v5666
        %v5682 = vmul.f32 %v5645, %v5658
        %v5683 = vmul.f32 %v5646, %v5662
        %v5684 = vmul.f32 %v5647, %v5666
        %v5685 = vmul.f32 %v5648, %v5658
        %v5686 = vmul.f32 %v5649, %v5662
        %v5687 = vmul.f32 %v5650, %v5666
        %v5688 = vmul.f32 %v5651, %v5658
        %v5689 = vmul.f32 %v5652, %v5662
        %v5690 = vmul.f32 %v5653, %v5666
        %v5692 = vlaneseq
        %v5693 = vshrl.u32 %v5692, 7
        %v5694 = vsub.s32 0, %v5693
        %v5695 = vrot.slane %v5506, %v5694
        %v5696 = vlaneseq
        %v5697 = vshrl.u32 %v5696, 7
        %v5698 = vsub.s32 1, %v5697
        %v5699 = vrot.slane %v5506, %v5698
        %v5700 = vlaneseq
        %v5701 = vshrl.u32 %v5700, 7
        %v5702 = vsub.s32 2, %v5701
        %v5703 = vrot.slane %v5506, %v5702
        %v5707 = vadd.f32 %v5670, %v5695
        %v5708 = vadd.f32 %v5671, %v5699
        %v5709 = vadd.f32 %v5672, %v5703
        %v5710 = vadd.f32 %v5673, %v5695
        %v5711 = vadd.f32 %v5674, %v5699
        %v5712 = vadd.f32 %v5675, %v5703
        %v5713 = vadd.f32 %v5676, %v5695
        %v5714 = vadd.f32 %v5677, %v5699
        %v5715 = vadd.f32 %v5678, %v5703
        %v5716 = vadd.f32 %v5679, %v5695
        %v5717 = vadd.f32 %v5680, %v5699
        %v5718 = vadd.f32 %v5681, %v5703
        %v5719 = vadd.f32 %v5682, %v5695
        %v5720 = vadd.f32 %v5683, %v5699
        %v5721 = vadd.f32 %v5684, %v5703
        %v5722 = vadd.f32 %v5685, %v5695
        %v5723 = vadd.f32 %v5686, %v5699
        %v5724 = vadd.f32 %v5687, %v5703
        %v5725 = vadd.f32 %v5688, %v5695
        %v5726 = vadd.f32 %v5689, %v5699
        %v5727 = vadd.f32 %v5690, %v5703
        %v5728 = vpack.c.bf16 %v5710, %v5707
        %v5729 = vpack.c.bf16 %v5711, %v5708
        %v5730 = vpack.c.bf16 %v5712, %v5709
        %v5731 = vpack.c.bf16 %v5716, %v5713
        %v5732 = vpack.c.bf16 %v5717, %v5714
        %v5733 = vpack.c.bf16 %v5718, %v5715
        %v5734 = vpack.c.bf16 %v5722, %v5719
        %v5735 = vpack.c.bf16 %v5723, %v5720
        %v5736 = vpack.c.bf16 %v5724, %v5721
        %v5737 = vpack.c.bf16 %v5725, %v5725
        %v5738 = vpack.c.bf16 %v5726, %v5726
        %v5739 = vpack.c.bf16 %v5727, %v5727
        %v5740 = vld [vmem:[#allocation16] sm:$0xff]
        %v5741 = vld [vmem:[#allocation16 + $0x8] sm:$0xff]
        %v5742 = vld [vmem:[#allocation16 + $0x10] sm:$0xff]
        %v5743 = vld [vmem:[#allocation16 + $0x18] sm:$0xff]
        %v5744 = vld [vmem:[#allocation16 + $0x20] sm:$0xff]
        %v5745 = vld [vmem:[#allocation16 + $0x28] sm:$0xff]
        %v5746 = vld [vmem:[#allocation16 + $0x30] sm:$0xff]
        %v5747 = vld [vmem:[#allocation16 + $0x38] sm:$0xff]
        %v5748 = vld [vmem:[#allocation16 + $0x40] sm:$0xff]
        %v5749 = vld [vmem:[#allocation16 + $0x48] sm:$0xff]
        %v5750 = vld [vmem:[#allocation16 + $0x50] sm:$0xff]
        %v5751 = vld [vmem:[#allocation16 + $0x58] sm:$0xff]
        %v5752 = vld [vmem:[#allocation16 + $0x60] sm:$0xff]
        %v5753 = vld [vmem:[#allocation16 + $0x68] sm:$0xff]
        %v5754 = vld [vmem:[#allocation16 + $0x70] sm:$0xff]
        %v5755 = vld [vmem:[#allocation16 + $0x78] sm:$0xff]
        %v5756 = vld [vmem:[#allocation16 + $0x80] sm:$0xff]
        %v5757 = vld [vmem:[#allocation16 + $0x88] sm:$0xff]
        %v5758 = vld [vmem:[#allocation16 + $0x90] sm:$0xff]
        %v5759 = vld [vmem:[#allocation16 + $0x98] sm:$0xff]
        %v5760 = vld [vmem:[#allocation16 + $0xa0] sm:$0xff]
        %v5761 = vld [vmem:[#allocation16 + $0xa8] sm:$0xff]
        %v5762 = vld [vmem:[#allocation16 + $0xb0] sm:$0xff]
        %v5763 = vld [vmem:[#allocation16 + $0xb8] sm:$0xff]
        %v5764 = vld [vmem:[#allocation16 + $0xc0] sm:$0xff]
        %v5765 = vld [vmem:[#allocation16 + $0xc8] sm:$0xff]
        %v5766 = vld [vmem:[#allocation16 + $0xd0] sm:$0xff]
        %v5767 = vld [vmem:[#allocation16 + $0xd8] sm:$0xff]
        %v5768 = vld [vmem:[#allocation16 + $0xe0] sm:$0xff]
        %v5769 = vld [vmem:[#allocation16 + $0xe8] sm:$0xff]
        %v5770 = vld [vmem:[#allocation16 + $0xf0] sm:$0xff]
        %v5771 = vld [vmem:[#allocation16 + $0xf8] sm:$0xff]
        %v5772 = vld [vmem:[#allocation16 + $0x100] sm:$0xff]
        %v5773 = vld [vmem:[#allocation16 + $0x108] sm:$0xff]
        %v5774 = vld [vmem:[#allocation16 + $0x110] sm:$0xff]
        %v5775 = vld [vmem:[#allocation16 + $0x118] sm:$0xff]
        %v5776 = vld [vmem:[#allocation16 + $0x120] sm:$0xff]
        %v5777 = vld [vmem:[#allocation16 + $0x128] sm:$0xff]
        %v5778 = vld [vmem:[#allocation16 + $0x130] sm:$0xff]
        %v5779 = vld [vmem:[#allocation16 + $0x138] sm:$0xff]
        %v5780 = vld [vmem:[#allocation16 + $0x140] sm:$0xff]
        %v5781 = vld [vmem:[#allocation16 + $0x148] sm:$0xff]
        %v5782 = vld [vmem:[#allocation16 + $0x150] sm:$0xff]
        %v5783 = vld [vmem:[#allocation16 + $0x158] sm:$0xff]
        %v5784 = vld [vmem:[#allocation16 + $0x160] sm:$0xff]
        %v5785 = vld [vmem:[#allocation16 + $0x168] sm:$0xff]
        %v5786 = vld [vmem:[#allocation16 + $0x170] sm:$0xff]
        %v5787 = vld [vmem:[#allocation16 + $0x178] sm:$0xff]
        %v5788 = vld [vmem:[#allocation16 + $0x180] sm:$0xff]
        %v5789 = vld [vmem:[#allocation16 + $0x188] sm:$0xff]
        %v5790 = vld [vmem:[#allocation16 + $0x190] sm:$0xff]
        %v5791 = vld [vmem:[#allocation16 + $0x198] sm:$0xff]
        %v5792 = vld [vmem:[#allocation16 + $0x1a0] sm:$0xff]
        %v5793 = vld [vmem:[#allocation16 + $0x1a8] sm:$0xff]
        %v5794 = vld [vmem:[#allocation16 + $0x1b0] sm:$0xff]
        %v5795 = vld [vmem:[#allocation16 + $0x1b8] sm:$0xff]
        %v5796 = vld [vmem:[#allocation16 + $0x1c0] sm:$0xff]
        %v5797 = vld [vmem:[#allocation16 + $0x1c8] sm:$0xff]
        %v5798 = vld [vmem:[#allocation16 + $0x1d0] sm:$0xff]
        %v5799 = vld [vmem:[#allocation16 + $0x1d8] sm:$0xff]
        %v5800 = vld [vmem:[#allocation16 + $0x1e0] sm:$0xff]
        %v5801 = vld [vmem:[#allocation16 + $0x1e8] sm:$0xff]
        %v5802 = vld [vmem:[#allocation16 + $0x1f0] sm:$0xff]
        %v5803 = vld [vmem:[#allocation16 + $0x1f8] sm:$0xff]
        %v5804 = vld [vmem:[#allocation16 + $0x200] sm:$0xff]
        %v5805 = vld [vmem:[#allocation16 + $0x208] sm:$0xff]
        %v5806 = vld [vmem:[#allocation16 + $0x210] sm:$0xff]
        %v5807 = vld [vmem:[#allocation16 + $0x218] sm:$0xff]
        %v5808 = vld [vmem:[#allocation16 + $0x220] sm:$0xff]
        %v5809 = vld [vmem:[#allocation16 + $0x228] sm:$0xff]
        %v5810 = vld [vmem:[#allocation16 + $0x230] sm:$0xff]
        %v5811 = vld [vmem:[#allocation16 + $0x238] sm:$0xff]
        %v5812 = vld [vmem:[#allocation16 + $0x240] sm:$0xff]
        %v5813 = vld [vmem:[#allocation16 + $0x248] sm:$0xff]
        %v5814 = vld [vmem:[#allocation16 + $0x250] sm:$0xff]
        %v5815 = vld [vmem:[#allocation16 + $0x258] sm:$0xff]
        %v5816 = vld [vmem:[#allocation16 + $0x260] sm:$0xff]
        %v5817 = vld [vmem:[#allocation16 + $0x268] sm:$0xff]
        %v5818 = vld [vmem:[#allocation16 + $0x270] sm:$0xff]
        %v5819 = vld [vmem:[#allocation16 + $0x278] sm:$0xff]
        %v5820 = vld [vmem:[#allocation16 + $0x280] sm:$0xff]
        %v5821 = vld [vmem:[#allocation16 + $0x288] sm:$0xff]
        %v5822 = vld [vmem:[#allocation16 + $0x290] sm:$0xff]
        %v5823 = vld [vmem:[#allocation16 + $0x298] sm:$0xff]
        %v5824 = vld [vmem:[#allocation16 + $0x2a0] sm:$0xff]
        %v5825 = vld [vmem:[#allocation16 + $0x2a8] sm:$0xff]
        %v5826 = vld [vmem:[#allocation16 + $0x2b0] sm:$0xff]
        %v5827 = vld [vmem:[#allocation16 + $0x2b8] sm:$0xff]
        %v5828 = vld [vmem:[#allocation16 + $0x2c0] sm:$0xff]
        %v5829 = vld [vmem:[#allocation16 + $0x2c8] sm:$0xff]
        %v5830 = vld [vmem:[#allocation16 + $0x2d0] sm:$0xff]
        %v5831 = vld [vmem:[#allocation16 + $0x2d8] sm:$0xff]
        %v5832 = vld [vmem:[#allocation16 + $0x2e0] sm:$0xff]
        %v5833 = vld [vmem:[#allocation16 + $0x2e8] sm:$0xff]
        %v5834 = vld [vmem:[#allocation16 + $0x2f0] sm:$0xff]
        %v5835 = vld [vmem:[#allocation16 + $0x2f8] sm:$0xff]
        %v5836 = vld [vmem:[#allocation16 + $0x300] sm:$0xff]
        %v5837 = vld [vmem:[#allocation16 + $0x308] sm:$0xff]
        %v5838 = vld [vmem:[#allocation16 + $0x310] sm:$0xff]
        %v5839 = vld [vmem:[#allocation16 + $0x318] sm:$0xff]
        %v5840 = vld [vmem:[#allocation16 + $0x320] sm:$0xff]
        %v5841 = vld [vmem:[#allocation16 + $0x328] sm:$0xff]
        %v5842 = vld [vmem:[#allocation16 + $0x330] sm:$0xff]
        %v5843 = vld [vmem:[#allocation16 + $0x338] sm:$0xff]
        %v5844 = vld [vmem:[#allocation16 + $0x340] sm:$0xff]
        %v5845 = vld [vmem:[#allocation16 + $0x348] sm:$0xff]
        %v5846 = vld [vmem:[#allocation16 + $0x350] sm:$0xff]
        %v5847 = vld [vmem:[#allocation16 + $0x358] sm:$0xff]
        %v5848 = vld [vmem:[#allocation16 + $0x360] sm:$0xff]
        %v5849 = vld [vmem:[#allocation16 + $0x368] sm:$0xff]
        %v5850 = vld [vmem:[#allocation16 + $0x370] sm:$0xff]
        %v5851 = vld [vmem:[#allocation16 + $0x378] sm:$0xff]
        %v5852 = vld [vmem:[#allocation16 + $0x380] sm:$0xff]
        %v5853 = vld [vmem:[#allocation16 + $0x388] sm:$0xff]
        %v5854 = vld [vmem:[#allocation16 + $0x390] sm:$0xff]
        %v5855 = vld [vmem:[#allocation16 + $0x398] sm:$0xff]
        %v5856 = vld [vmem:[#allocation16 + $0x3a0] sm:$0xff]
        %v5857 = vld [vmem:[#allocation16 + $0x3a8] sm:$0xff]
        %v5858 = vld [vmem:[#allocation16 + $0x3b0] sm:$0xff]
        %v5859 = vld [vmem:[#allocation16 + $0x3b8] sm:$0xff]
        %v5860 = vld [vmem:[#allocation16 + $0x3c0] sm:$0xff]
        %v5861 = vld [vmem:[#allocation16 + $0x3c8] sm:$0xff]
        %v5862 = vld [vmem:[#allocation16 + $0x3d0] sm:$0xff]
        %v5863 = vld [vmem:[#allocation16 + $0x3d8] sm:$0xff]
        %v5864 = vld [vmem:[#allocation16 + $0x3e0] sm:$0xff]
        %v5865 = vld [vmem:[#allocation16 + $0x3e8] sm:$0xff]
        %v5866 = vld [vmem:[#allocation16 + $0x3f0] sm:$0xff]
        %v5867 = vld [vmem:[#allocation16 + $0x3f8] sm:$0xff]
        %v5868 = vld [vmem:[#allocation16 + $0x400] sm:$0xff]
        %v5869 = vld [vmem:[#allocation16 + $0x408] sm:$0xff]
        %v5870 = vld [vmem:[#allocation16 + $0x410] sm:$0xff]
        %v5871 = vld [vmem:[#allocation16 + $0x418] sm:$0xff]
        %v5872 = vld [vmem:[#allocation16 + $0x420] sm:$0xff]
        %v5873 = vld [vmem:[#allocation16 + $0x428] sm:$0xff]
        %v5874 = vld [vmem:[#allocation16 + $0x430] sm:$0xff]
        %v5875 = vld [vmem:[#allocation16 + $0x438] sm:$0xff]
        %v5876 = vld [vmem:[#allocation16 + $0x440] sm:$0xff]
        %v5877 = vld [vmem:[#allocation16 + $0x448] sm:$0xff]
        %v5878 = vld [vmem:[#allocation16 + $0x450] sm:$0xff]
        %v5879 = vld [vmem:[#allocation16 + $0x458] sm:$0xff]
        %v5880 = vld [vmem:[#allocation16 + $0x460] sm:$0xff]
        %v5881 = vld [vmem:[#allocation16 + $0x468] sm:$0xff]
        %v5882 = vld [vmem:[#allocation16 + $0x470] sm:$0xff]
        %v5883 = vld [vmem:[#allocation16 + $0x478] sm:$0xff]
        %v5884 = vld [vmem:[#allocation16 + $0x480] sm:$0xff]
        %v5885 = vld [vmem:[#allocation16 + $0x488] sm:$0xff]
        %v5886 = vld [vmem:[#allocation16 + $0x490] sm:$0xff]
        %v5887 = vld [vmem:[#allocation16 + $0x498] sm:$0xff]
        %v5888 = vld [vmem:[#allocation16 + $0x4a0] sm:$0xff]
        %v5889 = vld [vmem:[#allocation16 + $0x4a8] sm:$0xff]
        %v5890 = vld [vmem:[#allocation16 + $0x4b0] sm:$0xff]
        %v5891 = vld [vmem:[#allocation16 + $0x4b8] sm:$0xff]
        %v5892 = vld [vmem:[#allocation16 + $0x4c0] sm:$0xff]
        %v5893 = vld [vmem:[#allocation16 + $0x4c8] sm:$0xff]
        %v5894 = vld [vmem:[#allocation16 + $0x4d0] sm:$0xff]
        %v5895 = vld [vmem:[#allocation16 + $0x4d8] sm:$0xff]
        %v5896 = vld [vmem:[#allocation16 + $0x4e0] sm:$0xff]
        %v5897 = vld [vmem:[#allocation16 + $0x4e8] sm:$0xff]
        %v5898 = vld [vmem:[#allocation16 + $0x4f0] sm:$0xff]
        %v5899 = vld [vmem:[#allocation16 + $0x4f8] sm:$0xff]
        %v5900 = vld [vmem:[#allocation16 + $0x500] sm:$0xff]
        %v5901 = vld [vmem:[#allocation16 + $0x508] sm:$0xff]
        %v5902 = vld [vmem:[#allocation16 + $0x510] sm:$0xff]
        %v5903 = vld [vmem:[#allocation16 + $0x518] sm:$0xff]
        %v5904 = vld [vmem:[#allocation16 + $0x520] sm:$0xff]
        %v5905 = vld [vmem:[#allocation16 + $0x528] sm:$0xff]
        %v5906 = vld [vmem:[#allocation16 + $0x530] sm:$0xff]
        %v5907 = vld [vmem:[#allocation16 + $0x538] sm:$0xff]
        %v5908 = vld [vmem:[#allocation16 + $0x540] sm:$0xff]
        %v5909 = vld [vmem:[#allocation16 + $0x548] sm:$0xff]
        %v5910 = vld [vmem:[#allocation16 + $0x550] sm:$0xff]
        %v5911 = vld [vmem:[#allocation16 + $0x558] sm:$0xff]
        %v5912 = vld [vmem:[#allocation16 + $0x560] sm:$0xff]
        %v5913 = vld [vmem:[#allocation16 + $0x568] sm:$0xff]
        %v5914 = vld [vmem:[#allocation16 + $0x570] sm:$0xff]
        %v5915 = vld [vmem:[#allocation16 + $0x578] sm:$0xff]
        %v5916 = vld [vmem:[#allocation16 + $0x580] sm:$0xff]
        %v5917 = vld [vmem:[#allocation16 + $0x588] sm:$0xff]
        %v5918 = vld [vmem:[#allocation16 + $0x590] sm:$0xff]
        %v5919 = vld [vmem:[#allocation16 + $0x598] sm:$0xff]
        %v5920 = vld [vmem:[#allocation16 + $0x5a0] sm:$0xff]
        %v5921 = vld [vmem:[#allocation16 + $0x5a8] sm:$0xff]
        %v5922 = vld [vmem:[#allocation16 + $0x5b0] sm:$0xff]
        %v5923 = vld [vmem:[#allocation16 + $0x5b8] sm:$0xff]
        %v5924 = vld [vmem:[#allocation16 + $0x5c0] sm:$0xff]
        %v5925 = vld [vmem:[#allocation16 + $0x5c8] sm:$0xff]
        %v5926 = vld [vmem:[#allocation16 + $0x5d0] sm:$0xff]
        %v5927 = vld [vmem:[#allocation16 + $0x5d8] sm:$0xff]
        %v5928 = vld [vmem:[#allocation16 + $0x5e0] sm:$0xff]
        %v5929 = vld [vmem:[#allocation16 + $0x5e8] sm:$0xff]
        %v5930 = vld [vmem:[#allocation16 + $0x5f0] sm:$0xff]
        %v5931 = vld [vmem:[#allocation16 + $0x5f8] sm:$0xff]
        %v5932 = vld [vmem:[#allocation16 + $0x600] sm:$0xff]
        %v5933 = vld [vmem:[#allocation16 + $0x608] sm:$0xff]
        %v5934 = vld [vmem:[#allocation16 + $0x610] sm:$0xff]
        %v5935 = vld [vmem:[#allocation16 + $0x618] sm:$0xff]
        %v5936 = vld [vmem:[#allocation16 + $0x620] sm:$0xff]
        %v5937 = vld [vmem:[#allocation16 + $0x628] sm:$0xff]
        %v5938 = vld [vmem:[#allocation16 + $0x630] sm:$0xff]
        %v5939 = vld [vmem:[#allocation16 + $0x638] sm:$0xff]
        %v5940 = vld [vmem:[#allocation16 + $0x640] sm:$0xff]
        %v5941 = vld [vmem:[#allocation16 + $0x648] sm:$0xff]
        %v5942 = vld [vmem:[#allocation16 + $0x650] sm:$0xff]
        %v5943 = vld [vmem:[#allocation16 + $0x658] sm:$0xff]
        %v5944 = vld [vmem:[#allocation16 + $0x660] sm:$0xff]
        %v5945 = vld [vmem:[#allocation16 + $0x668] sm:$0xff]
        %v5946 = vld [vmem:[#allocation16 + $0x670] sm:$0xff]
        %v5947 = vld [vmem:[#allocation16 + $0x678] sm:$0xff]
        %v5948 = vld [vmem:[#allocation16 + $0x680] sm:$0xff]
        %v5949 = vld [vmem:[#allocation16 + $0x688] sm:$0xff]
        %v5950 = vld [vmem:[#allocation16 + $0x690] sm:$0xff]
        %v5951 = vld [vmem:[#allocation16 + $0x698] sm:$0xff]
        %v5952 = vld [vmem:[#allocation16 + $0x6a0] sm:$0xff]
        %v5953 = vld [vmem:[#allocation16 + $0x6a8] sm:$0xff]
        %v5954 = vld [vmem:[#allocation16 + $0x6b0] sm:$0xff]
        %v5955 = vld [vmem:[#allocation16 + $0x6b8] sm:$0xff]
        %v5956 = vld [vmem:[#allocation16 + $0x6c0] sm:$0xff]
        %v5957 = vld [vmem:[#allocation16 + $0x6c8] sm:$0xff]
        %v5958 = vld [vmem:[#allocation16 + $0x6d0] sm:$0xff]
        %v5959 = vld [vmem:[#allocation16 + $0x6d8] sm:$0xff]
        %v5960 = vld [vmem:[#allocation16 + $0x6e0] sm:$0xff]
        %v5961 = vld [vmem:[#allocation16 + $0x6e8] sm:$0xff]
        %v5962 = vld [vmem:[#allocation16 + $0x6f0] sm:$0xff]
        %v5963 = vld [vmem:[#allocation16 + $0x6f8] sm:$0xff]
        %v5964 = vld [vmem:[#allocation16 + $0x700] sm:$0xff]
        %v5965 = vld [vmem:[#allocation16 + $0x708] sm:$0xff]
        %v5966 = vld [vmem:[#allocation16 + $0x710] sm:$0xff]
        %v5967 = vld [vmem:[#allocation16 + $0x718] sm:$0xff]
        %v5968 = vld [vmem:[#allocation16 + $0x720] sm:$0xff]
        %v5969 = vld [vmem:[#allocation16 + $0x728] sm:$0xff]
        %v5970 = vld [vmem:[#allocation16 + $0x730] sm:$0xff]
        %v5971 = vld [vmem:[#allocation16 + $0x738] sm:$0xff]
        %v5972 = vld [vmem:[#allocation16 + $0x740] sm:$0xff]
        %v5973 = vld [vmem:[#allocation16 + $0x748] sm:$0xff]
        %v5974 = vld [vmem:[#allocation16 + $0x750] sm:$0xff]
        %v5975 = vld [vmem:[#allocation16 + $0x758] sm:$0xff]
        %v5976 = vld [vmem:[#allocation16 + $0x760] sm:$0xff]
        %v5977 = vld [vmem:[#allocation16 + $0x768] sm:$0xff]
        %v5978 = vld [vmem:[#allocation16 + $0x770] sm:$0xff]
        %v5979 = vld [vmem:[#allocation16 + $0x778] sm:$0xff]
        %v5980 = vld [vmem:[#allocation16 + $0x780] sm:$0xff]
        %v5981 = vld [vmem:[#allocation16 + $0x788] sm:$0xff]
        %v5982 = vld [vmem:[#allocation16 + $0x790] sm:$0xff]
        %v5983 = vld [vmem:[#allocation16 + $0x798] sm:$0xff]
        %v5984 = vld [vmem:[#allocation16 + $0x7a0] sm:$0xff]
        %v5985 = vld [vmem:[#allocation16 + $0x7a8] sm:$0xff]
        %v5986 = vld [vmem:[#allocation16 + $0x7b0] sm:$0xff]
        %v5987 = vld [vmem:[#allocation16 + $0x7b8] sm:$0xff]
        %v5988 = vld [vmem:[#allocation16 + $0x7c0] sm:$0xff]
        %v5989 = vld [vmem:[#allocation16 + $0x7c8] sm:$0xff]
        %v5990 = vld [vmem:[#allocation16 + $0x7d0] sm:$0xff]
        %v5991 = vld [vmem:[#allocation16 + $0x7d8] sm:$0xff]
        %v5992 = vld [vmem:[#allocation16 + $0x7e0] sm:$0xff]
        %v5993 = vld [vmem:[#allocation16 + $0x7e8] sm:$0xff]
        %v5994 = vld [vmem:[#allocation16 + $0x7f0] sm:$0xff]
        %v5995 = vld [vmem:[#allocation16 + $0x7f8] sm:$0xff]
        %v5996 = vld [vmem:[#allocation16 + $0x800] sm:$0xff]
        %v5997 = vld [vmem:[#allocation16 + $0x808] sm:$0xff]
        %v5998 = vld [vmem:[#allocation16 + $0x810] sm:$0xff]
        %v5999 = vld [vmem:[#allocation16 + $0x818] sm:$0xff]
        %v6000 = vld [vmem:[#allocation16 + $0x820] sm:$0xff]
        %v6001 = vld [vmem:[#allocation16 + $0x828] sm:$0xff]
        %v6002 = vld [vmem:[#allocation16 + $0x830] sm:$0xff]
        %v6003 = vld [vmem:[#allocation16 + $0x838] sm:$0xff]
        %v6004 = vld [vmem:[#allocation16 + $0x840] sm:$0xff]
        %v6005 = vld [vmem:[#allocation16 + $0x848] sm:$0xff]
        %v6006 = vld [vmem:[#allocation16 + $0x850] sm:$0xff]
        %v6007 = vld [vmem:[#allocation16 + $0x858] sm:$0xff]
        %v6008 = vld [vmem:[#allocation16 + $0x860] sm:$0xff]
        %v6009 = vld [vmem:[#allocation16 + $0x868] sm:$0xff]
        %v6010 = vld [vmem:[#allocation16 + $0x870] sm:$0xff]
        %v6011 = vld [vmem:[#allocation16 + $0x878] sm:$0xff]
        %v6012 = vld [vmem:[#allocation16 + $0x880] sm:$0xff]
        %v6013 = vld [vmem:[#allocation16 + $0x888] sm:$0xff]
        %v6014 = vld [vmem:[#allocation16 + $0x890] sm:$0xff]
        %v6015 = vld [vmem:[#allocation16 + $0x898] sm:$0xff]
        %v6016 = vld [vmem:[#allocation16 + $0x8a0] sm:$0xff]
        %v6017 = vld [vmem:[#allocation16 + $0x8a8] sm:$0xff]
        %v6018 = vld [vmem:[#allocation16 + $0x8b0] sm:$0xff]
        %v6019 = vld [vmem:[#allocation16 + $0x8b8] sm:$0xff]
        %v6020 = vld [vmem:[#allocation16 + $0x8c0] sm:$0xff]
        %v6021 = vld [vmem:[#allocation16 + $0x8c8] sm:$0xff]
        %v6022 = vld [vmem:[#allocation16 + $0x8d0] sm:$0xff]
        %v6023 = vld [vmem:[#allocation16 + $0x8d8] sm:$0xff]
        %v6024 = vld [vmem:[#allocation16 + $0x8e0] sm:$0xff]
        %v6025 = vld [vmem:[#allocation16 + $0x8e8] sm:$0xff]
        %v6026 = vld [vmem:[#allocation16 + $0x8f0] sm:$0xff]
        %v6027 = vld [vmem:[#allocation16 + $0x8f8] sm:$0xff]
        %v6028 = vld [vmem:[#allocation17] sm:$0xff]
        %v6029 = vld [vmem:[#allocation17 + $0x8] sm:$0xf]
        %v6032 = vlaneseq
        %v6033 = vshrl.u32 %v6032, 7
        %v6034 = vsub.s32 0, %v6033
        %v6035 = vrot.slane %v6028, %v6034
        %v6036 = vlaneseq
        %v6037 = vshrl.u32 %v6036, 7
        %v6038 = vsub.s32 1, %v6037
        %v6039 = vrot.slane %v6028, %v6038
        %v6040 = vlaneseq
        %v6041 = vshrl.u32 %v6040, 7
        %v6042 = vsub.s32 2, %v6041
        %v6043 = vrot.slane %v6028, %v6042
        %v6044 = vlaneseq
        %v6045 = vshrl.u32 %v6044, 7
        %v6046 = vsub.s32 3, %v6045
        %v6047 = vrot.slane %v6028, %v6046
        %v6048 = vlaneseq
        %v6049 = vshrl.u32 %v6048, 7
        %v6050 = vsub.s32 4, %v6049
        %v6051 = vrot.slane %v6028, %v6050
        %v6052 = vlaneseq
        %v6053 = vshrl.u32 %v6052, 7
        %v6054 = vsub.s32 5, %v6053
        %v6055 = vrot.slane %v6028, %v6054
        %v6056 = vlaneseq
        %v6057 = vshrl.u32 %v6056, 7
        %v6058 = vsub.s32 6, %v6057
        %v6059 = vrot.slane %v6028, %v6058
        %v6060 = vlaneseq
        %v6061 = vshrl.u32 %v6060, 7
        %v6062 = vsub.s32 7, %v6061
        %v6063 = vrot.slane %v6028, %v6062
        %v6064 = vlaneseq
        %v6065 = vshrl.u32 %v6064, 7
        %v6066 = vsub.s32 0, %v6065
        %v6067 = vrot.slane %v6029, %v6066
        %v6068 = vlaneseq
        %v6069 = vshrl.u32 %v6068, 7
        %v6070 = vsub.s32 1, %v6069
        %v6071 = vrot.slane %v6029, %v6070
        %v6072 = vlaneseq
        %v6073 = vshrl.u32 %v6072, 7
        %v6074 = vsub.s32 2, %v6073
        %v6075 = vrot.slane %v6029, %v6074
        %v6076 = vlaneseq
        %v6077 = vshrl.u32 %v6076, 7
        %v6078 = vsub.s32 3, %v6077
        %v6079 = vrot.slane %v6029, %v6078
        %v6380 = vunpack.c.l.b16 %v5740
        %v6381 = vunpack.c.h.b16 %v5740
        %v6382 = vunpack.c.l.b16 %v5741
        %v6383 = vunpack.c.h.b16 %v5741
        %v6384 = vunpack.c.l.b16 %v5742
        %v6385 = vunpack.c.h.b16 %v5742
        %v6386 = vunpack.c.l.b16 %v5743
        %v6387 = vunpack.c.h.b16 %v5743
        %v6388 = vunpack.c.l.b16 %v5744
        %v6389 = vunpack.c.h.b16 %v5744
        %v6390 = vunpack.c.l.b16 %v5745
        %v6391 = vunpack.c.h.b16 %v5745
        %v6392 = vunpack.c.l.b16 %v5746
        %v6393 = vunpack.c.h.b16 %v5746
        %v6394 = vunpack.c.l.b16 %v5747
        %v6395 = vunpack.c.h.b16 %v5747
        %v6396 = vunpack.c.l.b16 %v5748
        %v6397 = vunpack.c.h.b16 %v5748
        %v6398 = vunpack.c.l.b16 %v5749
        %v6399 = vunpack.c.h.b16 %v5749
        %v6400 = vunpack.c.l.b16 %v5750
        %v6401 = vunpack.c.h.b16 %v5750
        %v6402 = vunpack.c.l.b16 %v5751
        %v6403 = vunpack.c.h.b16 %v5751
        %v6404 = vunpack.c.l.b16 %v5752
        %v6405 = vunpack.c.h.b16 %v5752
        %v6406 = vunpack.c.l.b16 %v5753
        %v6407 = vunpack.c.h.b16 %v5753
        %v6408 = vunpack.c.l.b16 %v5754
        %v6409 = vunpack.c.h.b16 %v5754
        %v6410 = vunpack.c.l.b16 %v5755
        %v6411 = vunpack.c.h.b16 %v5755
        %v6412 = vunpack.c.l.b16 %v5756
        %v6413 = vunpack.c.h.b16 %v5756
        %v6414 = vunpack.c.l.b16 %v5757
        %v6415 = vunpack.c.h.b16 %v5757
        %v6416 = vunpack.c.l.b16 %v5758
        %v6417 = vunpack.c.h.b16 %v5758
        %v6418 = vunpack.c.l.b16 %v5759
        %v6419 = vunpack.c.h.b16 %v5759
        %v6420 = vunpack.c.l.b16 %v5760
        %v6421 = vunpack.c.h.b16 %v5760
        %v6422 = vunpack.c.l.b16 %v5761
        %v6423 = vunpack.c.h.b16 %v5761
        %v6424 = vunpack.c.l.b16 %v5762
        %v6425 = vunpack.c.h.b16 %v5762
        %v6426 = vunpack.c.l.b16 %v5763
        %v6427 = vunpack.c.h.b16 %v5763
        %v6428 = vunpack.c.l.b16 %v5764
        %v6429 = vunpack.c.h.b16 %v5764
        %v6430 = vunpack.c.l.b16 %v5765
        %v6431 = vunpack.c.h.b16 %v5765
        %v6432 = vunpack.c.l.b16 %v5766
        %v6433 = vunpack.c.h.b16 %v5766
        %v6434 = vunpack.c.l.b16 %v5767
        %v6435 = vunpack.c.h.b16 %v5767
        %v6436 = vunpack.c.l.b16 %v5768
        %v6437 = vunpack.c.h.b16 %v5768
        %v6438 = vunpack.c.l.b16 %v5769
        %v6439 = vunpack.c.h.b16 %v5769
        %v6440 = vunpack.c.l.b16 %v5770
        %v6441 = vunpack.c.h.b16 %v5770
        %v6442 = vunpack.c.l.b16 %v5771
        %v6443 = vunpack.c.h.b16 %v5771
        %v6444 = vunpack.c.l.b16 %v5772
        %v6445 = vunpack.c.h.b16 %v5772
        %v6446 = vunpack.c.l.b16 %v5773
        %v6447 = vunpack.c.h.b16 %v5773
        %v6448 = vunpack.c.l.b16 %v5774
        %v6449 = vunpack.c.h.b16 %v5774
        %v6450 = vunpack.c.l.b16 %v5775
        %v6451 = vunpack.c.h.b16 %v5775
        %v6452 = vunpack.c.l.b16 %v5776
        %v6453 = vunpack.c.h.b16 %v5776
        %v6454 = vunpack.c.l.b16 %v5777
        %v6455 = vunpack.c.h.b16 %v5777
        %v6456 = vunpack.c.l.b16 %v5778
        %v6457 = vunpack.c.h.b16 %v5778
        %v6458 = vunpack.c.l.b16 %v5779
        %v6459 = vunpack.c.h.b16 %v5779
        %v6460 = vunpack.c.l.b16 %v5780
        %v6461 = vunpack.c.h.b16 %v5780
        %v6462 = vunpack.c.l.b16 %v5781
        %v6463 = vunpack.c.h.b16 %v5781
        %v6464 = vunpack.c.l.b16 %v5782
        %v6465 = vunpack.c.h.b16 %v5782
        %v6466 = vunpack.c.l.b16 %v5783
        %v6467 = vunpack.c.h.b16 %v5783
        %v6468 = vunpack.c.l.b16 %v5784
        %v6469 = vunpack.c.h.b16 %v5784
        %v6470 = vunpack.c.l.b16 %v5785
        %v6471 = vunpack.c.h.b16 %v5785
        %v6472 = vunpack.c.l.b16 %v5786
        %v6473 = vunpack.c.h.b16 %v5786
        %v6474 = vunpack.c.l.b16 %v5787
        %v6475 = vunpack.c.h.b16 %v5787
        %v6476 = vunpack.c.l.b16 %v5788
        %v6477 = vunpack.c.h.b16 %v5788
        %v6478 = vunpack.c.l.b16 %v5789
        %v6479 = vunpack.c.h.b16 %v5789
        %v6480 = vunpack.c.l.b16 %v5790
        %v6481 = vunpack.c.h.b16 %v5790
        %v6482 = vunpack.c.l.b16 %v5791
        %v6483 = vunpack.c.h.b16 %v5791
        %v6484 = vunpack.c.l.b16 %v5792
        %v6485 = vunpack.c.h.b16 %v5792
        %v6486 = vunpack.c.l.b16 %v5793
        %v6487 = vunpack.c.h.b16 %v5793
        %v6488 = vunpack.c.l.b16 %v5794
        %v6489 = vunpack.c.h.b16 %v5794
        %v6490 = vunpack.c.l.b16 %v5795
        %v6491 = vunpack.c.h.b16 %v5795
        %v6492 = vunpack.c.l.b16 %v5796
        %v6493 = vunpack.c.h.b16 %v5796
        %v6494 = vunpack.c.l.b16 %v5797
        %v6495 = vunpack.c.h.b16 %v5797
        %v6496 = vunpack.c.l.b16 %v5798
        %v6497 = vunpack.c.h.b16 %v5798
        %v6498 = vunpack.c.l.b16 %v5799
        %v6499 = vunpack.c.h.b16 %v5799
        %v6500 = vunpack.c.l.b16 %v5800
        %v6501 = vunpack.c.h.b16 %v5800
        %v6502 = vunpack.c.l.b16 %v5801
        %v6503 = vunpack.c.h.b16 %v5801
        %v6504 = vunpack.c.l.b16 %v5802
        %v6505 = vunpack.c.h.b16 %v5802
        %v6506 = vunpack.c.l.b16 %v5803
        %v6507 = vunpack.c.h.b16 %v5803
        %v6508 = vunpack.c.l.b16 %v5804
        %v6509 = vunpack.c.h.b16 %v5804
        %v6510 = vunpack.c.l.b16 %v5805
        %v6511 = vunpack.c.h.b16 %v5805
        %v6512 = vunpack.c.l.b16 %v5806
        %v6513 = vunpack.c.h.b16 %v5806
        %v6514 = vunpack.c.l.b16 %v5807
        %v6515 = vunpack.c.h.b16 %v5807
        %v6516 = vunpack.c.l.b16 %v5808
        %v6517 = vunpack.c.h.b16 %v5808
        %v6518 = vunpack.c.l.b16 %v5809
        %v6519 = vunpack.c.h.b16 %v5809
        %v6520 = vunpack.c.l.b16 %v5810
        %v6521 = vunpack.c.h.b16 %v5810
        %v6522 = vunpack.c.l.b16 %v5811
        %v6523 = vunpack.c.h.b16 %v5811
        %v6524 = vunpack.c.l.b16 %v5812
        %v6525 = vunpack.c.h.b16 %v5812
        %v6526 = vunpack.c.l.b16 %v5813
        %v6527 = vunpack.c.h.b16 %v5813
        %v6528 = vunpack.c.l.b16 %v5814
        %v6529 = vunpack.c.h.b16 %v5814
        %v6530 = vunpack.c.l.b16 %v5815
        %v6531 = vunpack.c.h.b16 %v5815
        %v6532 = vunpack.c.l.b16 %v5816
        %v6533 = vunpack.c.h.b16 %v5816
        %v6534 = vunpack.c.l.b16 %v5817
        %v6535 = vunpack.c.h.b16 %v5817
        %v6536 = vunpack.c.l.b16 %v5818
        %v6537 = vunpack.c.h.b16 %v5818
        %v6538 = vunpack.c.l.b16 %v5819
        %v6539 = vunpack.c.h.b16 %v5819
        %v6540 = vunpack.c.l.b16 %v5820
        %v6541 = vunpack.c.h.b16 %v5820
        %v6542 = vunpack.c.l.b16 %v5821
        %v6543 = vunpack.c.h.b16 %v5821
        %v6544 = vunpack.c.l.b16 %v5822
        %v6545 = vunpack.c.h.b16 %v5822
        %v6546 = vunpack.c.l.b16 %v5823
        %v6547 = vunpack.c.h.b16 %v5823
        %v6548 = vunpack.c.l.b16 %v5824
        %v6549 = vunpack.c.h.b16 %v5824
        %v6550 = vunpack.c.l.b16 %v5825
        %v6551 = vunpack.c.h.b16 %v5825
        %v6552 = vunpack.c.l.b16 %v5826
        %v6553 = vunpack.c.h.b16 %v5826
        %v6554 = vunpack.c.l.b16 %v5827
        %v6555 = vunpack.c.h.b16 %v5827
        %v6556 = vunpack.c.l.b16 %v5828
        %v6557 = vunpack.c.h.b16 %v5828
        %v6558 = vunpack.c.l.b16 %v5829
        %v6559 = vunpack.c.h.b16 %v5829
        %v6560 = vunpack.c.l.b16 %v5830
        %v6561 = vunpack.c.h.b16 %v5830
        %v6562 = vunpack.c.l.b16 %v5831
        %v6563 = vunpack.c.h.b16 %v5831
        %v6564 = vunpack.c.l.b16 %v5832
        %v6565 = vunpack.c.h.b16 %v5832
        %v6566 = vunpack.c.l.b16 %v5833
        %v6567 = vunpack.c.h.b16 %v5833
        %v6568 = vunpack.c.l.b16 %v5834
        %v6569 = vunpack.c.h.b16 %v5834
        %v6570 = vunpack.c.l.b16 %v5835
        %v6571 = vunpack.c.h.b16 %v5835
        %v6572 = vunpack.c.l.b16 %v5836
        %v6573 = vunpack.c.h.b16 %v5836
        %v6574 = vunpack.c.l.b16 %v5837
        %v6575 = vunpack.c.h.b16 %v5837
        %v6576 = vunpack.c.l.b16 %v5838
        %v6577 = vunpack.c.h.b16 %v5838
        %v6578 = vunpack.c.l.b16 %v5839
        %v6579 = vunpack.c.h.b16 %v5839
        %v6580 = vunpack.c.l.b16 %v5840
        %v6581 = vunpack.c.h.b16 %v5840
        %v6582 = vunpack.c.l.b16 %v5841
        %v6583 = vunpack.c.h.b16 %v5841
        %v6584 = vunpack.c.l.b16 %v5842
        %v6585 = vunpack.c.h.b16 %v5842
        %v6586 = vunpack.c.l.b16 %v5843
        %v6587 = vunpack.c.h.b16 %v5843
        %v6588 = vunpack.c.l.b16 %v5844
        %v6589 = vunpack.c.h.b16 %v5844
        %v6590 = vunpack.c.l.b16 %v5845
        %v6591 = vunpack.c.h.b16 %v5845
        %v6592 = vunpack.c.l.b16 %v5846
        %v6593 = vunpack.c.h.b16 %v5846
        %v6594 = vunpack.c.l.b16 %v5847
        %v6595 = vunpack.c.h.b16 %v5847
        %v6596 = vunpack.c.l.b16 %v5848
        %v6597 = vunpack.c.h.b16 %v5848
        %v6598 = vunpack.c.l.b16 %v5849
        %v6599 = vunpack.c.h.b16 %v5849
        %v6600 = vunpack.c.l.b16 %v5850
        %v6601 = vunpack.c.h.b16 %v5850
        %v6602 = vunpack.c.l.b16 %v5851
        %v6603 = vunpack.c.h.b16 %v5851
        %v6604 = vunpack.c.l.b16 %v5852
        %v6605 = vunpack.c.h.b16 %v5852
        %v6606 = vunpack.c.l.b16 %v5853
        %v6607 = vunpack.c.h.b16 %v5853
        %v6608 = vunpack.c.l.b16 %v5854
        %v6609 = vunpack.c.h.b16 %v5854
        %v6610 = vunpack.c.l.b16 %v5855
        %v6611 = vunpack.c.h.b16 %v5855
        %v6612 = vunpack.c.l.b16 %v5856
        %v6613 = vunpack.c.h.b16 %v5856
        %v6614 = vunpack.c.l.b16 %v5857
        %v6615 = vunpack.c.h.b16 %v5857
        %v6616 = vunpack.c.l.b16 %v5858
        %v6617 = vunpack.c.h.b16 %v5858
        %v6618 = vunpack.c.l.b16 %v5859
        %v6619 = vunpack.c.h.b16 %v5859
        %v6620 = vunpack.c.l.b16 %v5860
        %v6621 = vunpack.c.h.b16 %v5860
        %v6622 = vunpack.c.l.b16 %v5861
        %v6623 = vunpack.c.h.b16 %v5861
        %v6624 = vunpack.c.l.b16 %v5862
        %v6625 = vunpack.c.h.b16 %v5862
        %v6626 = vunpack.c.l.b16 %v5863
        %v6627 = vunpack.c.h.b16 %v5863
        %v6628 = vunpack.c.l.b16 %v5864
        %v6629 = vunpack.c.h.b16 %v5864
        %v6630 = vunpack.c.l.b16 %v5865
        %v6631 = vunpack.c.h.b16 %v5865
        %v6632 = vunpack.c.l.b16 %v5866
        %v6633 = vunpack.c.h.b16 %v5866
        %v6634 = vunpack.c.l.b16 %v5867
        %v6635 = vunpack.c.h.b16 %v5867
        %v6636 = vunpack.c.l.b16 %v5868
        %v6637 = vunpack.c.h.b16 %v5868
        %v6638 = vunpack.c.l.b16 %v5869
        %v6639 = vunpack.c.h.b16 %v5869
        %v6640 = vunpack.c.l.b16 %v5870
        %v6641 = vunpack.c.h.b16 %v5870
        %v6642 = vunpack.c.l.b16 %v5871
        %v6643 = vunpack.c.h.b16 %v5871
        %v6644 = vunpack.c.l.b16 %v5872
        %v6645 = vunpack.c.h.b16 %v5872
        %v6646 = vunpack.c.l.b16 %v5873
        %v6647 = vunpack.c.h.b16 %v5873
        %v6648 = vunpack.c.l.b16 %v5874
        %v6649 = vunpack.c.h.b16 %v5874
        %v6650 = vunpack.c.l.b16 %v5875
        %v6651 = vunpack.c.h.b16 %v5875
        %v6652 = vunpack.c.l.b16 %v5876
        %v6653 = vunpack.c.h.b16 %v5876
        %v6654 = vunpack.c.l.b16 %v5877
        %v6655 = vunpack.c.h.b16 %v5877
        %v6656 = vunpack.c.l.b16 %v5878
        %v6657 = vunpack.c.h.b16 %v5878
        %v6658 = vunpack.c.l.b16 %v5879
        %v6659 = vunpack.c.h.b16 %v5879
        %v6660 = vunpack.c.l.b16 %v5880
        %v6661 = vunpack.c.h.b16 %v5880
        %v6662 = vunpack.c.l.b16 %v5881
        %v6663 = vunpack.c.h.b16 %v5881
        %v6664 = vunpack.c.l.b16 %v5882
        %v6665 = vunpack.c.h.b16 %v5882
        %v6666 = vunpack.c.l.b16 %v5883
        %v6667 = vunpack.c.h.b16 %v5883
        %v6668 = vunpack.c.l.b16 %v5884
        %v6669 = vunpack.c.h.b16 %v5884
        %v6670 = vunpack.c.l.b16 %v5885
        %v6671 = vunpack.c.h.b16 %v5885
        %v6672 = vunpack.c.l.b16 %v5886
        %v6673 = vunpack.c.h.b16 %v5886
        %v6674 = vunpack.c.l.b16 %v5887
        %v6675 = vunpack.c.h.b16 %v5887
        %v6676 = vunpack.c.l.b16 %v5888
        %v6677 = vunpack.c.h.b16 %v5888
        %v6678 = vunpack.c.l.b16 %v5889
        %v6679 = vunpack.c.h.b16 %v5889
        %v6680 = vunpack.c.l.b16 %v5890
        %v6681 = vunpack.c.h.b16 %v5890
        %v6682 = vunpack.c.l.b16 %v5891
        %v6683 = vunpack.c.h.b16 %v5891
        %v6684 = vunpack.c.l.b16 %v5892
        %v6685 = vunpack.c.h.b16 %v5892
        %v6686 = vunpack.c.l.b16 %v5893
        %v6687 = vunpack.c.h.b16 %v5893
        %v6688 = vunpack.c.l.b16 %v5894
        %v6689 = vunpack.c.h.b16 %v5894
        %v6690 = vunpack.c.l.b16 %v5895
        %v6691 = vunpack.c.h.b16 %v5895
        %v6692 = vunpack.c.l.b16 %v5896
        %v6693 = vunpack.c.h.b16 %v5896
        %v6694 = vunpack.c.l.b16 %v5897
        %v6695 = vunpack.c.h.b16 %v5897
        %v6696 = vunpack.c.l.b16 %v5898
        %v6697 = vunpack.c.h.b16 %v5898
        %v6698 = vunpack.c.l.b16 %v5899
        %v6699 = vunpack.c.h.b16 %v5899
        %v6700 = vunpack.c.l.b16 %v5900
        %v6701 = vunpack.c.h.b16 %v5900
        %v6702 = vunpack.c.l.b16 %v5901
        %v6703 = vunpack.c.h.b16 %v5901
        %v6704 = vunpack.c.l.b16 %v5902
        %v6705 = vunpack.c.h.b16 %v5902
        %v6706 = vunpack.c.l.b16 %v5903
        %v6707 = vunpack.c.h.b16 %v5903
        %v6708 = vunpack.c.l.b16 %v5904
        %v6709 = vunpack.c.h.b16 %v5904
        %v6710 = vunpack.c.l.b16 %v5905
        %v6711 = vunpack.c.h.b16 %v5905
        %v6712 = vunpack.c.l.b16 %v5906
        %v6713 = vunpack.c.h.b16 %v5906
        %v6714 = vunpack.c.l.b16 %v5907
        %v6715 = vunpack.c.h.b16 %v5907
        %v6716 = vunpack.c.l.b16 %v5908
        %v6717 = vunpack.c.h.b16 %v5908
        %v6718 = vunpack.c.l.b16 %v5909
        %v6719 = vunpack.c.h.b16 %v5909
        %v6720 = vunpack.c.l.b16 %v5910
        %v6721 = vunpack.c.h.b16 %v5910
        %v6722 = vunpack.c.l.b16 %v5911
        %v6723 = vunpack.c.h.b16 %v5911
        %v6724 = vunpack.c.l.b16 %v5912
        %v6725 = vunpack.c.h.b16 %v5912
        %v6726 = vunpack.c.l.b16 %v5913
        %v6727 = vunpack.c.h.b16 %v5913
        %v6728 = vunpack.c.l.b16 %v5914
        %v6729 = vunpack.c.h.b16 %v5914
        %v6730 = vunpack.c.l.b16 %v5915
        %v6731 = vunpack.c.h.b16 %v5915
        %v6732 = vunpack.c.l.b16 %v5916
        %v6733 = vunpack.c.h.b16 %v5916
        %v6734 = vunpack.c.l.b16 %v5917
        %v6735 = vunpack.c.h.b16 %v5917
        %v6736 = vunpack.c.l.b16 %v5918
        %v6737 = vunpack.c.h.b16 %v5918
        %v6738 = vunpack.c.l.b16 %v5919
        %v6739 = vunpack.c.h.b16 %v5919
        %v6740 = vunpack.c.l.b16 %v5920
        %v6741 = vunpack.c.h.b16 %v5920
        %v6742 = vunpack.c.l.b16 %v5921
        %v6743 = vunpack.c.h.b16 %v5921
        %v6744 = vunpack.c.l.b16 %v5922
        %v6745 = vunpack.c.h.b16 %v5922
        %v6746 = vunpack.c.l.b16 %v5923
        %v6747 = vunpack.c.h.b16 %v5923
        %v6748 = vunpack.c.l.b16 %v5924
        %v6749 = vunpack.c.h.b16 %v5924
        %v6750 = vunpack.c.l.b16 %v5925
        %v6751 = vunpack.c.h.b16 %v5925
        %v6752 = vunpack.c.l.b16 %v5926
        %v6753 = vunpack.c.h.b16 %v5926
        %v6754 = vunpack.c.l.b16 %v5927
        %v6755 = vunpack.c.h.b16 %v5927
        %v6756 = vunpack.c.l.b16 %v5928
        %v6757 = vunpack.c.h.b16 %v5928
        %v6758 = vunpack.c.l.b16 %v5929
        %v6759 = vunpack.c.h.b16 %v5929
        %v6760 = vunpack.c.l.b16 %v5930
        %v6761 = vunpack.c.h.b16 %v5930
        %v6762 = vunpack.c.l.b16 %v5931
        %v6763 = vunpack.c.h.b16 %v5931
        %v6764 = vunpack.c.l.b16 %v5932
        %v6765 = vunpack.c.h.b16 %v5932
        %v6766 = vunpack.c.l.b16 %v5933
        %v6767 = vunpack.c.h.b16 %v5933
        %v6768 = vunpack.c.l.b16 %v5934
        %v6769 = vunpack.c.h.b16 %v5934
        %v6770 = vunpack.c.l.b16 %v5935
        %v6771 = vunpack.c.h.b16 %v5935
        %v6772 = vunpack.c.l.b16 %v5936
        %v6773 = vunpack.c.h.b16 %v5936
        %v6774 = vunpack.c.l.b16 %v5937
        %v6775 = vunpack.c.h.b16 %v5937
        %v6776 = vunpack.c.l.b16 %v5938
        %v6777 = vunpack.c.h.b16 %v5938
        %v6778 = vunpack.c.l.b16 %v5939
        %v6779 = vunpack.c.h.b16 %v5939
        %v6780 = vunpack.c.l.b16 %v5940
        %v6781 = vunpack.c.h.b16 %v5940
        %v6782 = vunpack.c.l.b16 %v5941
        %v6783 = vunpack.c.h.b16 %v5941
        %v6784 = vunpack.c.l.b16 %v5942
        %v6785 = vunpack.c.h.b16 %v5942
        %v6786 = vunpack.c.l.b16 %v5943
        %v6787 = vunpack.c.h.b16 %v5943
        %v6788 = vunpack.c.l.b16 %v5944
        %v6789 = vunpack.c.h.b16 %v5944
        %v6790 = vunpack.c.l.b16 %v5945
        %v6791 = vunpack.c.h.b16 %v5945
        %v6792 = vunpack.c.l.b16 %v5946
        %v6793 = vunpack.c.h.b16 %v5946
        %v6794 = vunpack.c.l.b16 %v5947
        %v6795 = vunpack.c.h.b16 %v5947
        %v6796 = vunpack.c.l.b16 %v5948
        %v6797 = vunpack.c.h.b16 %v5948
        %v6798 = vunpack.c.l.b16 %v5949
        %v6799 = vunpack.c.h.b16 %v5949
        %v6800 = vunpack.c.l.b16 %v5950
        %v6801 = vunpack.c.h.b16 %v5950
        %v6802 = vunpack.c.l.b16 %v5951
        %v6803 = vunpack.c.h.b16 %v5951
        %v6804 = vunpack.c.l.b16 %v5952
        %v6805 = vunpack.c.h.b16 %v5952
        %v6806 = vunpack.c.l.b16 %v5953
        %v6807 = vunpack.c.h.b16 %v5953
        %v6808 = vunpack.c.l.b16 %v5954
        %v6809 = vunpack.c.h.b16 %v5954
        %v6810 = vunpack.c.l.b16 %v5955
        %v6811 = vunpack.c.h.b16 %v5955
        %v6812 = vunpack.c.l.b16 %v5956
        %v6813 = vunpack.c.h.b16 %v5956
        %v6814 = vunpack.c.l.b16 %v5957
        %v6815 = vunpack.c.h.b16 %v5957
        %v6816 = vunpack.c.l.b16 %v5958
        %v6817 = vunpack.c.h.b16 %v5958
        %v6818 = vunpack.c.l.b16 %v5959
        %v6819 = vunpack.c.h.b16 %v5959
        %v6820 = vunpack.c.l.b16 %v5960
        %v6821 = vunpack.c.h.b16 %v5960
        %v6822 = vunpack.c.l.b16 %v5961
        %v6823 = vunpack.c.h.b16 %v5961
        %v6824 = vunpack.c.l.b16 %v5962
        %v6825 = vunpack.c.h.b16 %v5962
        %v6826 = vunpack.c.l.b16 %v5963
        %v6827 = vunpack.c.h.b16 %v5963
        %v6828 = vunpack.c.l.b16 %v5964
        %v6829 = vunpack.c.h.b16 %v5964
        %v6830 = vunpack.c.l.b16 %v5965
        %v6831 = vunpack.c.h.b16 %v5965
        %v6832 = vunpack.c.l.b16 %v5966
        %v6833 = vunpack.c.h.b16 %v5966
        %v6834 = vunpack.c.l.b16 %v5967
        %v6835 = vunpack.c.h.b16 %v5967
        %v6836 = vunpack.c.l.b16 %v5968
        %v6837 = vunpack.c.h.b16 %v5968
        %v6838 = vunpack.c.l.b16 %v5969
        %v6839 = vunpack.c.h.b16 %v5969
        %v6840 = vunpack.c.l.b16 %v5970
        %v6841 = vunpack.c.h.b16 %v5970
        %v6842 = vunpack.c.l.b16 %v5971
        %v6843 = vunpack.c.h.b16 %v5971
        %v6844 = vunpack.c.l.b16 %v5972
        %v6845 = vunpack.c.h.b16 %v5972
        %v6846 = vunpack.c.l.b16 %v5973
        %v6847 = vunpack.c.h.b16 %v5973
        %v6848 = vunpack.c.l.b16 %v5974
        %v6849 = vunpack.c.h.b16 %v5974
        %v6850 = vunpack.c.l.b16 %v5975
        %v6851 = vunpack.c.h.b16 %v5975
        %v6852 = vunpack.c.l.b16 %v5976
        %v6853 = vunpack.c.h.b16 %v5976
        %v6854 = vunpack.c.l.b16 %v5977
        %v6855 = vunpack.c.h.b16 %v5977
        %v6856 = vunpack.c.l.b16 %v5978
        %v6857 = vunpack.c.h.b16 %v5978
        %v6858 = vunpack.c.l.b16 %v5979
        %v6859 = vunpack.c.h.b16 %v5979
        %v6860 = vunpack.c.l.b16 %v5980
        %v6861 = vunpack.c.h.b16 %v5980
        %v6862 = vunpack.c.l.b16 %v5981
        %v6863 = vunpack.c.h.b16 %v5981
        %v6864 = vunpack.c.l.b16 %v5982
        %v6865 = vunpack.c.h.b16 %v5982
        %v6866 = vunpack.c.l.b16 %v5983
        %v6867 = vunpack.c.h.b16 %v5983
        %v6868 = vunpack.c.l.b16 %v5984
        %v6869 = vunpack.c.h.b16 %v5984
        %v6870 = vunpack.c.l.b16 %v5985
        %v6871 = vunpack.c.h.b16 %v5985
        %v6872 = vunpack.c.l.b16 %v5986
        %v6873 = vunpack.c.h.b16 %v5986
        %v6874 = vunpack.c.l.b16 %v5987
        %v6875 = vunpack.c.h.b16 %v5987
        %v6876 = vunpack.c.l.b16 %v5988
        %v6877 = vunpack.c.h.b16 %v5988
        %v6878 = vunpack.c.l.b16 %v5989
        %v6879 = vunpack.c.h.b16 %v5989
        %v6880 = vunpack.c.l.b16 %v5990
        %v6881 = vunpack.c.h.b16 %v5990
        %v6882 = vunpack.c.l.b16 %v5991
        %v6883 = vunpack.c.h.b16 %v5991
        %v6884 = vunpack.c.l.b16 %v5992
        %v6885 = vunpack.c.h.b16 %v5992
        %v6886 = vunpack.c.l.b16 %v5993
        %v6887 = vunpack.c.h.b16 %v5993
        %v6888 = vunpack.c.l.b16 %v5994
        %v6889 = vunpack.c.h.b16 %v5994
        %v6890 = vunpack.c.l.b16 %v5995
        %v6891 = vunpack.c.h.b16 %v5995
        %v6892 = vunpack.c.l.b16 %v5996
        %v6893 = vunpack.c.h.b16 %v5996
        %v6894 = vunpack.c.l.b16 %v5997
        %v6895 = vunpack.c.h.b16 %v5997
        %v6896 = vunpack.c.l.b16 %v5998
        %v6897 = vunpack.c.h.b16 %v5998
        %v6898 = vunpack.c.l.b16 %v5999
        %v6899 = vunpack.c.h.b16 %v5999
        %v6900 = vunpack.c.l.b16 %v6000
        %v6901 = vunpack.c.h.b16 %v6000
        %v6902 = vunpack.c.l.b16 %v6001
        %v6903 = vunpack.c.h.b16 %v6001
        %v6904 = vunpack.c.l.b16 %v6002
        %v6905 = vunpack.c.h.b16 %v6002
        %v6906 = vunpack.c.l.b16 %v6003
        %v6907 = vunpack.c.h.b16 %v6003
        %v6908 = vunpack.c.l.b16 %v6004
        %v6909 = vunpack.c.h.b16 %v6004
        %v6910 = vunpack.c.l.b16 %v6005
        %v6911 = vunpack.c.h.b16 %v6005
        %v6912 = vunpack.c.l.b16 %v6006
        %v6913 = vunpack.c.h.b16 %v6006
        %v6914 = vunpack.c.l.b16 %v6007
        %v6915 = vunpack.c.h.b16 %v6007
        %v6916 = vunpack.c.l.b16 %v6008
        %v6917 = vunpack.c.h.b16 %v6008
        %v6918 = vunpack.c.l.b16 %v6009
        %v6919 = vunpack.c.h.b16 %v6009
        %v6920 = vunpack.c.l.b16 %v6010
        %v6921 = vunpack.c.h.b16 %v6010
        %v6922 = vunpack.c.l.b16 %v6011
        %v6923 = vunpack.c.h.b16 %v6011
        %v6924 = vunpack.c.l.b16 %v6012
        %v6925 = vunpack.c.h.b16 %v6012
        %v6926 = vunpack.c.l.b16 %v6013
        %v6927 = vunpack.c.h.b16 %v6013
        %v6928 = vunpack.c.l.b16 %v6014
        %v6929 = vunpack.c.h.b16 %v6014
        %v6930 = vunpack.c.l.b16 %v6015
        %v6931 = vunpack.c.h.b16 %v6015
        %v6932 = vunpack.c.l.b16 %v6016
        %v6933 = vunpack.c.h.b16 %v6016
        %v6934 = vunpack.c.l.b16 %v6017
        %v6935 = vunpack.c.h.b16 %v6017
        %v6936 = vunpack.c.l.b16 %v6018
        %v6937 = vunpack.c.h.b16 %v6018
        %v6938 = vunpack.c.l.b16 %v6019
        %v6939 = vunpack.c.h.b16 %v6019
        %v6940 = vunpack.c.l.b16 %v6020
        %v6941 = vunpack.c.h.b16 %v6020
        %v6942 = vunpack.c.l.b16 %v6021
        %v6943 = vunpack.c.h.b16 %v6021
        %v6944 = vunpack.c.l.b16 %v6022
        %v6945 = vunpack.c.h.b16 %v6022
        %v6946 = vunpack.c.l.b16 %v6023
        %v6947 = vunpack.c.h.b16 %v6023
        %v6948 = vunpack.c.l.b16 %v6024
        %v6949 = vunpack.c.h.b16 %v6024
        %v6950 = vunpack.c.l.b16 %v6025
        %v6951 = vunpack.c.h.b16 %v6025
        %v6952 = vunpack.c.l.b16 %v6026
        %v6953 = vunpack.c.h.b16 %v6026
        %v6954 = vunpack.c.l.b16 %v6027
        %v6955 = vunpack.c.h.b16 %v6027
        %v6956 = vpack.c.b16 %v6392, %v6380
        %v6957 = vpack.c.b16 %v6393, %v6381
        %v6958 = vpack.c.b16 %v6394, %v6382
        %v6959 = vpack.c.b16 %v6395, %v6383
        %v6960 = vpack.c.b16 %v6396, %v6384
        %v6961 = vpack.c.b16 %v6397, %v6385
        %v6962 = vpack.c.b16 %v6398, %v6386
        %v6963 = vpack.c.b16 %v6399, %v6387
        %v6964 = vpack.c.b16 %v6400, %v6388
        %v6965 = vpack.c.b16 %v6401, %v6389
        %v6966 = vpack.c.b16 %v6402, %v6390
        %v6967 = vpack.c.b16 %v6403, %v6391
        %v6968 = vpack.c.b16 %v6416, %v6404
        %v6969 = vpack.c.b16 %v6417, %v6405
        %v6970 = vpack.c.b16 %v6418, %v6406
        %v6971 = vpack.c.b16 %v6419, %v6407
        %v6972 = vpack.c.b16 %v6420, %v6408
        %v6973 = vpack.c.b16 %v6421, %v6409
        %v6974 = vpack.c.b16 %v6422, %v6410
        %v6975 = vpack.c.b16 %v6423, %v6411
        %v6976 = vpack.c.b16 %v6424, %v6412
        %v6977 = vpack.c.b16 %v6425, %v6413
        %v6978 = vpack.c.b16 %v6426, %v6414
        %v6979 = vpack.c.b16 %v6427, %v6415
        %v6980 = vpack.c.b16 %v6440, %v6428
        %v6981 = vpack.c.b16 %v6441, %v6429
        %v6982 = vpack.c.b16 %v6442, %v6430
        %v6983 = vpack.c.b16 %v6443, %v6431
        %v6984 = vpack.c.b16 %v6444, %v6432
        %v6985 = vpack.c.b16 %v6445, %v6433
        %v6986 = vpack.c.b16 %v6446, %v6434
        %v6987 = vpack.c.b16 %v6447, %v6435
        %v6988 = vpack.c.b16 %v6448, %v6436
        %v6989 = vpack.c.b16 %v6449, %v6437
        %v6990 = vpack.c.b16 %v6450, %v6438
        %v6991 = vpack.c.b16 %v6451, %v6439
        %v6992 = vpack.c.b16 %v6464, %v6452
        %v6993 = vpack.c.b16 %v6465, %v6453
        %v6994 = vpack.c.b16 %v6466, %v6454
        %v6995 = vpack.c.b16 %v6467, %v6455
        %v6996 = vpack.c.b16 %v6468, %v6456
        %v6997 = vpack.c.b16 %v6469, %v6457
        %v6998 = vpack.c.b16 %v6470, %v6458
        %v6999 = vpack.c.b16 %v6471, %v6459
        %v7000 = vpack.c.b16 %v6472, %v6460
        %v7001 = vpack.c.b16 %v6473, %v6461
        %v7002 = vpack.c.b16 %v6474, %v6462
        %v7003 = vpack.c.b16 %v6475, %v6463
        %v7004 = vpack.c.b16 %v6488, %v6476
        %v7005 = vpack.c.b16 %v6489, %v6477
        %v7006 = vpack.c.b16 %v6490, %v6478
        %v7007 = vpack.c.b16 %v6491, %v6479
        %v7008 = vpack.c.b16 %v6492, %v6480
        %v7009 = vpack.c.b16 %v6493, %v6481
        %v7010 = vpack.c.b16 %v6494, %v6482
        %v7011 = vpack.c.b16 %v6495, %v6483
        %v7012 = vpack.c.b16 %v6496, %v6484
        %v7013 = vpack.c.b16 %v6497, %v6485
        %v7014 = vpack.c.b16 %v6498, %v6486
        %v7015 = vpack.c.b16 %v6499, %v6487
        %v7016 = vpack.c.b16 %v6512, %v6500
        %v7017 = vpack.c.b16 %v6513, %v6501
        %v7018 = vpack.c.b16 %v6514, %v6502
        %v7019 = vpack.c.b16 %v6515, %v6503
        %v7020 = vpack.c.b16 %v6516, %v6504
        %v7021 = vpack.c.b16 %v6517, %v6505
        %v7022 = vpack.c.b16 %v6518, %v6506
        %v7023 = vpack.c.b16 %v6519, %v6507
        %v7024 = vpack.c.b16 %v6520, %v6508
        %v7025 = vpack.c.b16 %v6521, %v6509
        %v7026 = vpack.c.b16 %v6522, %v6510
        %v7027 = vpack.c.b16 %v6523, %v6511
        %v7028 = vpack.c.b16 %v6536, %v6524
        %v7029 = vpack.c.b16 %v6537, %v6525
        %v7030 = vpack.c.b16 %v6538, %v6526
        %v7031 = vpack.c.b16 %v6539, %v6527
        %v7032 = vpack.c.b16 %v6540, %v6528
        %v7033 = vpack.c.b16 %v6541, %v6529
        %v7034 = vpack.c.b16 %v6542, %v6530
        %v7035 = vpack.c.b16 %v6543, %v6531
        %v7036 = vpack.c.b16 %v6544, %v6532
        %v7037 = vpack.c.b16 %v6545, %v6533
        %v7038 = vpack.c.b16 %v6546, %v6534
        %v7039 = vpack.c.b16 %v6547, %v6535
        %v7040 = vpack.c.b16 %v6560, %v6548
        %v7041 = vpack.c.b16 %v6561, %v6549
        %v7042 = vpack.c.b16 %v6562, %v6550
        %v7043 = vpack.c.b16 %v6563, %v6551
        %v7044 = vpack.c.b16 %v6564, %v6552
        %v7045 = vpack.c.b16 %v6565, %v6553
        %v7046 = vpack.c.b16 %v6566, %v6554
        %v7047 = vpack.c.b16 %v6567, %v6555
        %v7048 = vpack.c.b16 %v6568, %v6556
        %v7049 = vpack.c.b16 %v6569, %v6557
        %v7050 = vpack.c.b16 %v6570, %v6558
        %v7051 = vpack.c.b16 %v6571, %v6559
        %v7052 = vpack.c.b16 %v6584, %v6572
        %v7053 = vpack.c.b16 %v6585, %v6573
        %v7054 = vpack.c.b16 %v6586, %v6574
        %v7055 = vpack.c.b16 %v6587, %v6575
        %v7056 = vpack.c.b16 %v6588, %v6576
        %v7057 = vpack.c.b16 %v6589, %v6577
        %v7058 = vpack.c.b16 %v6590, %v6578
        %v7059 = vpack.c.b16 %v6591, %v6579
        %v7060 = vpack.c.b16 %v6592, %v6580
        %v7061 = vpack.c.b16 %v6593, %v6581
        %v7062 = vpack.c.b16 %v6594, %v6582
        %v7063 = vpack.c.b16 %v6595, %v6583
        %v7064 = vpack.c.b16 %v6608, %v6596
        %v7065 = vpack.c.b16 %v6609, %v6597
        %v7066 = vpack.c.b16 %v6610, %v6598
        %v7067 = vpack.c.b16 %v6611, %v6599
        %v7068 = vpack.c.b16 %v6612, %v6600
        %v7069 = vpack.c.b16 %v6613, %v6601
        %v7070 = vpack.c.b16 %v6614, %v6602
        %v7071 = vpack.c.b16 %v6615, %v6603
        %v7072 = vpack.c.b16 %v6616, %v6604
        %v7073 = vpack.c.b16 %v6617, %v6605
        %v7074 = vpack.c.b16 %v6618, %v6606
        %v7075 = vpack.c.b16 %v6619, %v6607
        %v7076 = vpack.c.b16 %v6632, %v6620
        %v7077 = vpack.c.b16 %v6633, %v6621
        %v7078 = vpack.c.b16 %v6634, %v6622
        %v7079 = vpack.c.b16 %v6635, %v6623
        %v7080 = vpack.c.b16 %v6636, %v6624
        %v7081 = vpack.c.b16 %v6637, %v6625
        %v7082 = vpack.c.b16 %v6638, %v6626
        %v7083 = vpack.c.b16 %v6639, %v6627
        %v7084 = vpack.c.b16 %v6640, %v6628
        %v7085 = vpack.c.b16 %v6641, %v6629
        %v7086 = vpack.c.b16 %v6642, %v6630
        %v7087 = vpack.c.b16 %v6643, %v6631
        %v7088 = vpack.c.b16 %v6656, %v6644
        %v7089 = vpack.c.b16 %v6657, %v6645
        %v7090 = vpack.c.b16 %v6658, %v6646
        %v7091 = vpack.c.b16 %v6659, %v6647
        %v7092 = vpack.c.b16 %v6660, %v6648
        %v7093 = vpack.c.b16 %v6661, %v6649
        %v7094 = vpack.c.b16 %v6662, %v6650
        %v7095 = vpack.c.b16 %v6663, %v6651
        %v7096 = vpack.c.b16 %v6664, %v6652
        %v7097 = vpack.c.b16 %v6665, %v6653
        %v7098 = vpack.c.b16 %v6666, %v6654
        %v7099 = vpack.c.b16 %v6667, %v6655
        %v7100 = vpack.c.b16 %v6680, %v6668
        %v7101 = vpack.c.b16 %v6681, %v6669
        %v7102 = vpack.c.b16 %v6682, %v6670
        %v7103 = vpack.c.b16 %v6683, %v6671
        %v7104 = vpack.c.b16 %v6684, %v6672
        %v7105 = vpack.c.b16 %v6685, %v6673
        %v7106 = vpack.c.b16 %v6686, %v6674
        %v7107 = vpack.c.b16 %v6687, %v6675
        %v7108 = vpack.c.b16 %v6688, %v6676
        %v7109 = vpack.c.b16 %v6689, %v6677
        %v7110 = vpack.c.b16 %v6690, %v6678
        %v7111 = vpack.c.b16 %v6691, %v6679
        %v7112 = vpack.c.b16 %v6704, %v6692
        %v7113 = vpack.c.b16 %v6705, %v6693
        %v7114 = vpack.c.b16 %v6706, %v6694
        %v7115 = vpack.c.b16 %v6707, %v6695
        %v7116 = vpack.c.b16 %v6708, %v6696
        %v7117 = vpack.c.b16 %v6709, %v6697
        %v7118 = vpack.c.b16 %v6710, %v6698
        %v7119 = vpack.c.b16 %v6711, %v6699
        %v7120 = vpack.c.b16 %v6712, %v6700
        %v7121 = vpack.c.b16 %v6713, %v6701
        %v7122 = vpack.c.b16 %v6714, %v6702
        %v7123 = vpack.c.b16 %v6715, %v6703
        %v7124 = vpack.c.b16 %v6728, %v6716
        %v7125 = vpack.c.b16 %v6729, %v6717
        %v7126 = vpack.c.b16 %v6730, %v6718
        %v7127 = vpack.c.b16 %v6731, %v6719
        %v7128 = vpack.c.b16 %v6732, %v6720
        %v7129 = vpack.c.b16 %v6733, %v6721
        %v7130 = vpack.c.b16 %v6734, %v6722
        %v7131 = vpack.c.b16 %v6735, %v6723
        %v7132 = vpack.c.b16 %v6736, %v6724
        %v7133 = vpack.c.b16 %v6737, %v6725
        %v7134 = vpack.c.b16 %v6738, %v6726
        %v7135 = vpack.c.b16 %v6739, %v6727
        %v7136 = vpack.c.b16 %v6752, %v6740
        %v7137 = vpack.c.b16 %v6753, %v6741
        %v7138 = vpack.c.b16 %v6754, %v6742
        %v7139 = vpack.c.b16 %v6755, %v6743
        %v7140 = vpack.c.b16 %v6756, %v6744
        %v7141 = vpack.c.b16 %v6757, %v6745
        %v7142 = vpack.c.b16 %v6758, %v6746
        %v7143 = vpack.c.b16 %v6759, %v6747
        %v7144 = vpack.c.b16 %v6760, %v6748
        %v7145 = vpack.c.b16 %v6761, %v6749
        %v7146 = vpack.c.b16 %v6762, %v6750
        %v7147 = vpack.c.b16 %v6763, %v6751
        %v7148 = vpack.c.b16 %v6776, %v6764
        %v7149 = vpack.c.b16 %v6777, %v6765
        %v7150 = vpack.c.b16 %v6778, %v6766
        %v7151 = vpack.c.b16 %v6779, %v6767
        %v7152 = vpack.c.b16 %v6780, %v6768
        %v7153 = vpack.c.b16 %v6781, %v6769
        %v7154 = vpack.c.b16 %v6782, %v6770
        %v7155 = vpack.c.b16 %v6783, %v6771
        %v7156 = vpack.c.b16 %v6784, %v6772
        %v7157 = vpack.c.b16 %v6785, %v6773
        %v7158 = vpack.c.b16 %v6786, %v6774
        %v7159 = vpack.c.b16 %v6787, %v6775
        %v7160 = vpack.c.b16 %v6800, %v6788
        %v7161 = vpack.c.b16 %v6801, %v6789
        %v7162 = vpack.c.b16 %v6802, %v6790
        %v7163 = vpack.c.b16 %v6803, %v6791
        %v7164 = vpack.c.b16 %v6804, %v6792
        %v7165 = vpack.c.b16 %v6805, %v6793
        %v7166 = vpack.c.b16 %v6806, %v6794
        %v7167 = vpack.c.b16 %v6807, %v6795
        %v7168 = vpack.c.b16 %v6808, %v6796
        %v7169 = vpack.c.b16 %v6809, %v6797
        %v7170 = vpack.c.b16 %v6810, %v6798
        %v7171 = vpack.c.b16 %v6811, %v6799
        %v7172 = vpack.c.b16 %v6824, %v6812
        %v7173 = vpack.c.b16 %v6825, %v6813
        %v7174 = vpack.c.b16 %v6826, %v6814
        %v7175 = vpack.c.b16 %v6827, %v6815
        %v7176 = vpack.c.b16 %v6828, %v6816
        %v7177 = vpack.c.b16 %v6829, %v6817
        %v7178 = vpack.c.b16 %v6830, %v6818
        %v7179 = vpack.c.b16 %v6831, %v6819
        %v7180 = vpack.c.b16 %v6832, %v6820
        %v7181 = vpack.c.b16 %v6833, %v6821
        %v7182 = vpack.c.b16 %v6834, %v6822
        %v7183 = vpack.c.b16 %v6835, %v6823
        %v7184 = vpack.c.b16 %v6848, %v6836
        %v7185 = vpack.c.b16 %v6849, %v6837
        %v7186 = vpack.c.b16 %v6850, %v6838
        %v7187 = vpack.c.b16 %v6851, %v6839
        %v7188 = vpack.c.b16 %v6852, %v6840
        %v7189 = vpack.c.b16 %v6853, %v6841
        %v7190 = vpack.c.b16 %v6854, %v6842
        %v7191 = vpack.c.b16 %v6855, %v6843
        %v7192 = vpack.c.b16 %v6856, %v6844
        %v7193 = vpack.c.b16 %v6857, %v6845
        %v7194 = vpack.c.b16 %v6858, %v6846
        %v7195 = vpack.c.b16 %v6859, %v6847
        %v7196 = vpack.c.b16 %v6872, %v6860
        %v7197 = vpack.c.b16 %v6873, %v6861
        %v7198 = vpack.c.b16 %v6874, %v6862
        %v7199 = vpack.c.b16 %v6875, %v6863
        %v7200 = vpack.c.b16 %v6876, %v6864
        %v7201 = vpack.c.b16 %v6877, %v6865
        %v7202 = vpack.c.b16 %v6878, %v6866
        %v7203 = vpack.c.b16 %v6879, %v6867
        %v7204 = vpack.c.b16 %v6880, %v6868
        %v7205 = vpack.c.b16 %v6881, %v6869
        %v7206 = vpack.c.b16 %v6882, %v6870
        %v7207 = vpack.c.b16 %v6883, %v6871
        %v7208 = vpack.c.b16 %v6896, %v6884
        %v7209 = vpack.c.b16 %v6897, %v6885
        %v7210 = vpack.c.b16 %v6898, %v6886
        %v7211 = vpack.c.b16 %v6899, %v6887
        %v7212 = vpack.c.b16 %v6900, %v6888
        %v7213 = vpack.c.b16 %v6901, %v6889
        %v7214 = vpack.c.b16 %v6902, %v6890
        %v7215 = vpack.c.b16 %v6903, %v6891
        %v7216 = vpack.c.b16 %v6904, %v6892
        %v7217 = vpack.c.b16 %v6905, %v6893
        %v7218 = vpack.c.b16 %v6906, %v6894
        %v7219 = vpack.c.b16 %v6907, %v6895
        %v7220 = vpack.c.b16 %v6920, %v6908
        %v7221 = vpack.c.b16 %v6921, %v6909
        %v7222 = vpack.c.b16 %v6922, %v6910
        %v7223 = vpack.c.b16 %v6923, %v6911
        %v7224 = vpack.c.b16 %v6924, %v6912
        %v7225 = vpack.c.b16 %v6925, %v6913
        %v7226 = vpack.c.b16 %v6926, %v6914
        %v7227 = vpack.c.b16 %v6927, %v6915
        %v7228 = vpack.c.b16 %v6928, %v6916
        %v7229 = vpack.c.b16 %v6929, %v6917
        %v7230 = vpack.c.b16 %v6930, %v6918
        %v7231 = vpack.c.b16 %v6931, %v6919
        %v7232 = vpack.c.b16 %v6944, %v6932
        %v7233 = vpack.c.b16 %v6945, %v6933
        %v7234 = vpack.c.b16 %v6946, %v6934
        %v7235 = vpack.c.b16 %v6947, %v6935
        %v7236 = vpack.c.b16 %v6948, %v6936
        %v7237 = vpack.c.b16 %v6949, %v6937
        %v7238 = vpack.c.b16 %v6950, %v6938
        %v7239 = vpack.c.b16 %v6951, %v6939
        %v7240 = vpack.c.b16 %v6952, %v6940
        %v7241 = vpack.c.b16 %v6953, %v6941
        %v7242 = vpack.c.b16 %v6954, %v6942
        %v7243 = vpack.c.b16 %v6955, %v6943
        %7532 = vmatprep.subr.bf16.mxu0 %v7041
        %7533 = vmatpush1.bf16.msra.mxu0 %v7040
        %7534 = vmatprep.subr.bf16.mxu0 %v7029
        %7535 = vmatpush1.bf16.msra.mxu0 %v7028
        %7536 = vmatprep.subr.bf16.mxu0 %v7017
        %7537 = vmatpush1.bf16.msra.mxu0 %v7016
        %7538 = vmatprep.subr.bf16.mxu0 %v7005
        %7539 = vmatpush1.bf16.msra.mxu0 %v7004
        %7540 = vmatprep.subr.bf16.mxu0 %v6993
        %7541 = vmatpush1.bf16.msra.mxu0 %v6992
        %7542 = vmatprep.subr.bf16.mxu0 %v6981
        %7543 = vmatpush1.bf16.msra.mxu0 %v6980
        %7544 = vmatprep.subr.bf16.mxu0 %v6969
        %7545 = vmatpush1.bf16.msra.mxu0 %v6968
        %7546 = vmatprep.subr.bf16.mxu0 %v6957
        %7547 = vmatpush1.bf16.msra.mxu0 %v6956
        %7548 = vmatprep.subr.bf16.mxu0 %v7137
        %7549 = vmatpush2.bf16.msra.mxu0 %v7136
        %7550 = vmatprep.subr.bf16.mxu0 %v7125
        %7551 = vmatpush2.bf16.msra.mxu0 %v7124
        %7552 = vmatprep.subr.bf16.mxu0 %v7113
        %7553 = vmatpush2.bf16.msra.mxu0 %v7112
        %7554 = vmatprep.subr.bf16.mxu0 %v7101
        %7555 = vmatpush2.bf16.msra.mxu0 %v7100
        %7556 = vmatprep.subr.bf16.mxu0 %v7089
        %7557 = vmatpush2.bf16.msra.mxu0 %v7088
        %7558 = vmatprep.subr.bf16.mxu0 %v7077
        %7559 = vmatpush2.bf16.msra.mxu0 %v7076
        %7560 = vmatprep.subr.bf16.mxu0 %v7065
        %7561 = vmatpush2.bf16.msra.mxu0 %v7064
        %7562 = vmatprep.subr.bf16.mxu0 %v7053
        %7563 = vmatpush2.bf16.msra.mxu0 %v7052
        %7564 = vmatprep.mubr.bf16.mxu0 %v5729
        %7565 = vmatmul.mubr.bf16.gmra.mxu0 %v5728
        %v7566 = vpop.f32.mrf.mxu0
        %v7567 = vadd.f32 %v6035, %v7566
        %v7568 = vpop.f32.mrf.mxu0
        %v7569 = vadd.f32 %v6039, %v7568
        %v7570 = vpop.f32.mrf.mxu0
        %v7571 = vadd.f32 %v6035, %v7570
        %v7572 = vpop.f32.mrf.mxu0
        %v7573 = vadd.f32 %v6039, %v7572
        %7574 = vmatprep.mubr.bf16.mxu0 %v5732
        %7575 = vmatmul.mubr.bf16.gmra.mxu0 %v5731
        %v7576 = vpop.f32.mrf.mxu0
        %v7577 = vadd.f32 %v6035, %v7576
        %v7578 = vpop.f32.mrf.mxu0
        %v7579 = vadd.f32 %v6039, %v7578
        %v7580 = vpop.f32.mrf.mxu0
        %v7581 = vadd.f32 %v6035, %v7580
        %v7582 = vpop.f32.mrf.mxu0
        %v7583 = vadd.f32 %v6039, %v7582
        %7584 = vmatprep.mubr.bf16.mxu0 %v5735
        %7585 = vmatmul.mubr.bf16.gmra.mxu0 %v5734
        %v7586 = vpop.f32.mrf.mxu0
        %v7587 = vadd.f32 %v6035, %v7586
        %v7588 = vpop.f32.mrf.mxu0
        %v7589 = vadd.f32 %v6039, %v7588
        %v7590 = vpop.f32.mrf.mxu0
        %v7591 = vadd.f32 %v6035, %v7590
        %v7592 = vpop.f32.mrf.mxu0
        %v7593 = vadd.f32 %v6039, %v7592
        %7594 = vmatprep.mubr.bf16.mxu0 %v5738
        %7595 = vmatmul.mubr.bf16.gmra.mxu0 %v5737
        %v7596 = vpop.f32.mrf.mxu0
        %v7597 = vadd.f32 %v6035, %v7596
        %v7598 = vpop.f32.mrf.mxu0
        %v7599 = vadd.f32 %v6039, %v7598
        %v7600 = vpop.f32.mrf.mxu0
        %v7601 = vpop.f32.mrf.mxu0
        %7602 = vdwg.mxu0
        %7603 = vmatprep.subr.bf16.mxu0 %v7233
        %7604 = vmatpush1.bf16.msra.mxu0 %v7232
        %7605 = vmatprep.subr.bf16.mxu0 %v7221
        %7606 = vmatpush1.bf16.msra.mxu0 %v7220
        %7607 = vmatprep.subr.bf16.mxu0 %v7209
        %7608 = vmatpush1.bf16.msra.mxu0 %v7208
        %7609 = vmatprep.subr.bf16.mxu0 %v7197
        %7610 = vmatpush1.bf16.msra.mxu0 %v7196
        %7611 = vmatprep.subr.bf16.mxu0 %v7185
        %7612 = vmatpush1.bf16.msra.mxu0 %v7184
        %7613 = vmatprep.subr.bf16.mxu0 %v7173
        %7614 = vmatpush1.bf16.msra.mxu0 %v7172
        %7615 = vmatprep.subr.bf16.mxu0 %v7161
        %7616 = vmatpush1.bf16.msra.mxu0 %v7160
        %7617 = vmatprep.subr.bf16.mxu0 %v7149
        %7618 = vmatpush1.bf16.msra.mxu0 %v7148
        %7619 = vmatprep.subr.bf16.mxu0 0
        %7620 = vmatpush2.bf16.msra.mxu0 0
        %7621 = vmatprep.subr.bf16.mxu0 0
        %7622 = vmatpush2.bf16.msra.mxu0 0
        %7623 = vmatprep.subr.bf16.mxu0 0
        %7624 = vmatpush2.bf16.msra.mxu0 0
        %7625 = vmatprep.subr.bf16.mxu0 0
        %7626 = vmatpush2.bf16.msra.mxu0 0
        %7627 = vmatprep.subr.bf16.mxu0 0
        %7628 = vmatpush2.bf16.msra.mxu0 0
        %7629 = vmatprep.subr.bf16.mxu0 0
        %7630 = vmatpush2.bf16.msra.mxu0 0
        %7631 = vmatprep.subr.bf16.mxu0 0
        %7632 = vmatpush2.bf16.msra.mxu0 0
        %7633 = vmatprep.subr.bf16.mxu0 0
        %7634 = vmatpush2.bf16.msra.mxu0 0
        %7635 = vmatprep.mubr.bf16.mxu0 0
        %7636 = vmatmul.mubr.bf16.gmra.mxu0 %v5730
        %v7637 = vpop.f32.mrf.mxu0
        %v7638 = vadd.f32 %v7567, %v7637
        %v7639 = vpop.f32.mrf.mxu0
        %v7640 = vadd.f32 %v7569, %v7639
        %v7641 = vpop.f32.mrf.mxu0
        %v7642 = vadd.f32 %v7571, %v7641
        %v7643 = vpop.f32.mrf.mxu0
        %v7644 = vadd.f32 %v7573, %v7643
        %7645 = vmatprep.mubr.bf16.mxu0 0
        %7646 = vmatmul.mubr.bf16.gmra.mxu0 %v5733
        %v7647 = vpop.f32.mrf.mxu0
        %v7648 = vadd.f32 %v7577, %v7647
        %v7649 = vpop.f32.mrf.mxu0
        %v7650 = vadd.f32 %v7579, %v7649
        %v7651 = vpop.f32.mrf.mxu0
        %v7652 = vadd.f32 %v7581, %v7651
        %v7653 = vpop.f32.mrf.mxu0
        %v7654 = vadd.f32 %v7583, %v7653
        %7655 = vmatprep.mubr.bf16.mxu0 0
        %7656 = vmatmul.mubr.bf16.gmra.mxu0 %v5736
        %v7657 = vpop.f32.mrf.mxu0
        %v7658 = vadd.f32 %v7587, %v7657
        %v7659 = vpop.f32.mrf.mxu0
        %v7660 = vadd.f32 %v7589, %v7659
        %v7661 = vpop.f32.mrf.mxu0
        %v7662 = vadd.f32 %v7591, %v7661
        %v7663 = vpop.f32.mrf.mxu0
        %v7664 = vadd.f32 %v7593, %v7663
        %7665 = vmatprep.mubr.bf16.mxu0 0
        %7666 = vmatmul.mubr.bf16.gmra.mxu0 %v5739
        %v7667 = vpop.f32.mrf.mxu0
        %v7668 = vadd.f32 %v7597, %v7667
        %v7669 = vpop.f32.mrf.mxu0
        %v7670 = vadd.f32 %v7599, %v7669
        %v7671 = vpop.f32.mrf.mxu0
        %v7672 = vpop.f32.mrf.mxu0
        %7673 = vdwg.mxu0
        %7674 = vmatprep.subr.bf16.mxu0 %v7043
        %7675 = vmatpush1.bf16.msra.mxu0 %v7042
        %7676 = vmatprep.subr.bf16.mxu0 %v7031
        %7677 = vmatpush1.bf16.msra.mxu0 %v7030
        %7678 = vmatprep.subr.bf16.mxu0 %v7019
        %7679 = vmatpush1.bf16.msra.mxu0 %v7018
        %7680 = vmatprep.subr.bf16.mxu0 %v7007
        %7681 = vmatpush1.bf16.msra.mxu0 %v7006
        %7682 = vmatprep.subr.bf16.mxu0 %v6995
        %7683 = vmatpush1.bf16.msra.mxu0 %v6994
        %7684 = vmatprep.subr.bf16.mxu0 %v6983
        %7685 = vmatpush1.bf16.msra.mxu0 %v6982
        %7686 = vmatprep.subr.bf16.mxu0 %v6971
        %7687 = vmatpush1.bf16.msra.mxu0 %v6970
        %7688 = vmatprep.subr.bf16.mxu0 %v6959
        %7689 = vmatpush1.bf16.msra.mxu0 %v6958
        %7690 = vmatprep.subr.bf16.mxu0 %v7139
        %7691 = vmatpush2.bf16.msra.mxu0 %v7138
        %7692 = vmatprep.subr.bf16.mxu0 %v7127
        %7693 = vmatpush2.bf16.msra.mxu0 %v7126
        %7694 = vmatprep.subr.bf16.mxu0 %v7115
        %7695 = vmatpush2.bf16.msra.mxu0 %v7114
        %7696 = vmatprep.subr.bf16.mxu0 %v7103
        %7697 = vmatpush2.bf16.msra.mxu0 %v7102
        %7698 = vmatprep.subr.bf16.mxu0 %v7091
        %7699 = vmatpush2.bf16.msra.mxu0 %v7090
        %7700 = vmatprep.subr.bf16.mxu0 %v7079
        %7701 = vmatpush2.bf16.msra.mxu0 %v7078
        %7702 = vmatprep.subr.bf16.mxu0 %v7067
        %7703 = vmatpush2.bf16.msra.mxu0 %v7066
        %7704 = vmatprep.subr.bf16.mxu0 %v7055
        %7705 = vmatpush2.bf16.msra.mxu0 %v7054
        %7706 = vmatprep.mubr.bf16.mxu0 %v5729
        %7707 = vmatmul.mubr.bf16.gmra.mxu0 %v5728
        %v7708 = vpop.f32.mrf.mxu0
        %v7709 = vadd.f32 %v6043, %v7708
        %v7710 = vpop.f32.mrf.mxu0
        %v7711 = vadd.f32 %v6047, %v7710
        %v7712 = vpop.f32.mrf.mxu0
        %v7713 = vadd.f32 %v6043, %v7712
        %v7714 = vpop.f32.mrf.mxu0
        %v7715 = vadd.f32 %v6047, %v7714
        %7716 = vmatprep.mubr.bf16.mxu0 %v5732
        %7717 = vmatmul.mubr.bf16.gmra.mxu0 %v5731
        %v7718 = vpop.f32.mrf.mxu0
        %v7719 = vadd.f32 %v6043, %v7718
        %v7720 = vpop.f32.mrf.mxu0
        %v7721 = vadd.f32 %v6047, %v7720
        %v7722 = vpop.f32.mrf.mxu0
        %v7723 = vadd.f32 %v6043, %v7722
        %v7724 = vpop.f32.mrf.mxu0
        %v7725 = vadd.f32 %v6047, %v7724
        %7726 = vmatprep.mubr.bf16.mxu0 %v5735
        %7727 = vmatmul.mubr.bf16.gmra.mxu0 %v5734
        %v7728 = vpop.f32.mrf.mxu0
        %v7729 = vadd.f32 %v6043, %v7728
        %v7730 = vpop.f32.mrf.mxu0
        %v7731 = vadd.f32 %v6047, %v7730
        %v7732 = vpop.f32.mrf.mxu0
        %v7733 = vadd.f32 %v6043, %v7732
        %v7734 = vpop.f32.mrf.mxu0
        %v7735 = vadd.f32 %v6047, %v7734
        %7736 = vmatprep.mubr.bf16.mxu0 %v5738
        %7737 = vmatmul.mubr.bf16.gmra.mxu0 %v5737
        %v7738 = vpop.f32.mrf.mxu0
        %v7739 = vadd.f32 %v6043, %v7738
        %v7740 = vpop.f32.mrf.mxu0
        %v7741 = vadd.f32 %v6047, %v7740
        %v7742 = vpop.f32.mrf.mxu0
        %v7743 = vpop.f32.mrf.mxu0
        %7744 = vdwg.mxu0
        %7745 = vmatprep.subr.bf16.mxu0 %v7235
        %7746 = vmatpush1.bf16.msra.mxu0 %v7234
        %7747 = vmatprep.subr.bf16.mxu0 %v7223
        %7748 = vmatpush1.bf16.msra.mxu0 %v7222
        %7749 = vmatprep.subr.bf16.mxu0 %v7211
        %7750 = vmatpush1.bf16.msra.mxu0 %v7210
        %7751 = vmatprep.subr.bf16.mxu0 %v7199
        %7752 = vmatpush1.bf16.msra.mxu0 %v7198
        %7753 = vmatprep.subr.bf16.mxu0 %v7187
        %7754 = vmatpush1.bf16.msra.mxu0 %v7186
        %7755 = vmatprep.subr.bf16.mxu0 %v7175
        %7756 = vmatpush1.bf16.msra.mxu0 %v7174
        %7757 = vmatprep.subr.bf16.mxu0 %v7163
        %7758 = vmatpush1.bf16.msra.mxu0 %v7162
        %7759 = vmatprep.subr.bf16.mxu0 %v7151
        %7760 = vmatpush1.bf16.msra.mxu0 %v7150
        %7761 = vmatprep.subr.bf16.mxu0 0
        %7762 = vmatpush2.bf16.msra.mxu0 0
        %7763 = vmatprep.subr.bf16.mxu0 0
        %7764 = vmatpush2.bf16.msra.mxu0 0
        %7765 = vmatprep.subr.bf16.mxu0 0
        %7766 = vmatpush2.bf16.msra.mxu0 0
        %7767 = vmatprep.subr.bf16.mxu0 0
        %7768 = vmatpush2.bf16.msra.mxu0 0
        %7769 = vmatprep.subr.bf16.mxu0 0
        %7770 = vmatpush2.bf16.msra.mxu0 0
        %7771 = vmatprep.subr.bf16.mxu0 0
        %7772 = vmatpush2.bf16.msra.mxu0 0
        %7773 = vmatprep.subr.bf16.mxu0 0
        %7774 = vmatpush2.bf16.msra.mxu0 0
        %7775 = vmatprep.subr.bf16.mxu0 0
        %7776 = vmatpush2.bf16.msra.mxu0 0
        %7777 = vmatprep.mubr.bf16.mxu0 0
        %7778 = vmatmul.mubr.bf16.gmra.mxu0 %v5730
        %v7779 = vpop.f32.mrf.mxu0
        %v7780 = vadd.f32 %v7709, %v7779
        %v7781 = vpop.f32.mrf.mxu0
        %v7782 = vadd.f32 %v7711, %v7781
        %v7783 = vpop.f32.mrf.mxu0
        %v7784 = vadd.f32 %v7713, %v7783
        %v7785 = vpop.f32.mrf.mxu0
        %v7786 = vadd.f32 %v7715, %v7785
        %7787 = vmatprep.mubr.bf16.mxu0 0
        %7788 = vmatmul.mubr.bf16.gmra.mxu0 %v5733
        %v7789 = vpop.f32.mrf.mxu0
        %v7790 = vadd.f32 %v7719, %v7789
        %v7791 = vpop.f32.mrf.mxu0
        %v7792 = vadd.f32 %v7721, %v7791
        %v7793 = vpop.f32.mrf.mxu0
        %v7794 = vadd.f32 %v7723, %v7793
        %v7795 = vpop.f32.mrf.mxu0
        %v7796 = vadd.f32 %v7725, %v7795
        %7797 = vmatprep.mubr.bf16.mxu0 0
        %7798 = vmatmul.mubr.bf16.gmra.mxu0 %v5736
        %v7799 = vpop.f32.mrf.mxu0
        %v7800 = vadd.f32 %v7729, %v7799
        %v7801 = vpop.f32.mrf.mxu0
        %v7802 = vadd.f32 %v7731, %v7801
        %v7803 = vpop.f32.mrf.mxu0
        %v7804 = vadd.f32 %v7733, %v7803
        %v7805 = vpop.f32.mrf.mxu0
        %v7806 = vadd.f32 %v7735, %v7805
        %7807 = vmatprep.mubr.bf16.mxu0 0
        %7808 = vmatmul.mubr.bf16.gmra.mxu0 %v5739
        %v7809 = vpop.f32.mrf.mxu0
        %v7810 = vadd.f32 %v7739, %v7809
        %v7811 = vpop.f32.mrf.mxu0
        %v7812 = vadd.f32 %v7741, %v7811
        %v7813 = vpop.f32.mrf.mxu0
        %v7814 = vpop.f32.mrf.mxu0
        %7815 = vdwg.mxu0
        %7816 = vmatprep.subr.bf16.mxu0 %v7045
        %7817 = vmatpush1.bf16.msra.mxu0 %v7044
        %7818 = vmatprep.subr.bf16.mxu0 %v7033
        %7819 = vmatpush1.bf16.msra.mxu0 %v7032
        %7820 = vmatprep.subr.bf16.mxu0 %v7021
        %7821 = vmatpush1.bf16.msra.mxu0 %v7020
        %7822 = vmatprep.subr.bf16.mxu0 %v7009
        %7823 = vmatpush1.bf16.msra.mxu0 %v7008
        %7824 = vmatprep.subr.bf16.mxu0 %v6997
        %7825 = vmatpush1.bf16.msra.mxu0 %v6996
        %7826 = vmatprep.subr.bf16.mxu0 %v6985
        %7827 = vmatpush1.bf16.msra.mxu0 %v6984
        %7828 = vmatprep.subr.bf16.mxu0 %v6973
        %7829 = vmatpush1.bf16.msra.mxu0 %v6972
        %7830 = vmatprep.subr.bf16.mxu0 %v6961
        %7831 = vmatpush1.bf16.msra.mxu0 %v6960
        %7832 = vmatprep.subr.bf16.mxu0 %v7141
        %7833 = vmatpush2.bf16.msra.mxu0 %v7140
        %7834 = vmatprep.subr.bf16.mxu0 %v7129
        %7835 = vmatpush2.bf16.msra.mxu0 %v7128
        %7836 = vmatprep.subr.bf16.mxu0 %v7117
        %7837 = vmatpush2.bf16.msra.mxu0 %v7116
        %7838 = vmatprep.subr.bf16.mxu0 %v7105
        %7839 = vmatpush2.bf16.msra.mxu0 %v7104
        %7840 = vmatprep.subr.bf16.mxu0 %v7093
        %7841 = vmatpush2.bf16.msra.mxu0 %v7092
        %7842 = vmatprep.subr.bf16.mxu0 %v7081
        %7843 = vmatpush2.bf16.msra.mxu0 %v7080
        %7844 = vmatprep.subr.bf16.mxu0 %v7069
        %7845 = vmatpush2.bf16.msra.mxu0 %v7068
        %7846 = vmatprep.subr.bf16.mxu0 %v7057
        %7847 = vmatpush2.bf16.msra.mxu0 %v7056
        %7848 = vmatprep.mubr.bf16.mxu0 %v5729
        %7849 = vmatmul.mubr.bf16.gmra.mxu0 %v5728
        %v7850 = vpop.f32.mrf.mxu0
        %v7851 = vadd.f32 %v6051, %v7850
        %v7852 = vpop.f32.mrf.mxu0
        %v7853 = vadd.f32 %v6055, %v7852
        %v7854 = vpop.f32.mrf.mxu0
        %v7855 = vadd.f32 %v6051, %v7854
        %v7856 = vpop.f32.mrf.mxu0
        %v7857 = vadd.f32 %v6055, %v7856
        %7858 = vmatprep.mubr.bf16.mxu0 %v5732
        %7859 = vmatmul.mubr.bf16.gmra.mxu0 %v5731
        %v7860 = vpop.f32.mrf.mxu0
        %v7861 = vadd.f32 %v6051, %v7860
        %v7862 = vpop.f32.mrf.mxu0
        %v7863 = vadd.f32 %v6055, %v7862
        %v7864 = vpop.f32.mrf.mxu0
        %v7865 = vadd.f32 %v6051, %v7864
        %v7866 = vpop.f32.mrf.mxu0
        %v7867 = vadd.f32 %v6055, %v7866
        %7868 = vmatprep.mubr.bf16.mxu0 %v5735
        %7869 = vmatmul.mubr.bf16.gmra.mxu0 %v5734
        %v7870 = vpop.f32.mrf.mxu0
        %v7871 = vadd.f32 %v6051, %v7870
        %v7872 = vpop.f32.mrf.mxu0
        %v7873 = vadd.f32 %v6055, %v7872
        %v7874 = vpop.f32.mrf.mxu0
        %v7875 = vadd.f32 %v6051, %v7874
        %v7876 = vpop.f32.mrf.mxu0
        %v7877 = vadd.f32 %v6055, %v7876
        %7878 = vmatprep.mubr.bf16.mxu0 %v5738
        %7879 = vmatmul.mubr.bf16.gmra.mxu0 %v5737
        %v7880 = vpop.f32.mrf.mxu0
        %v7881 = vadd.f32 %v6051, %v7880
        %v7882 = vpop.f32.mrf.mxu0
        %v7883 = vadd.f32 %v6055, %v7882
        %v7884 = vpop.f32.mrf.mxu0
        %v7885 = vpop.f32.mrf.mxu0
        %7886 = vdwg.mxu0
        %7887 = vmatprep.subr.bf16.mxu0 %v7237
        %7888 = vmatpush1.bf16.msra.mxu0 %v7236
        %7889 = vmatprep.subr.bf16.mxu0 %v7225
        %7890 = vmatpush1.bf16.msra.mxu0 %v7224
        %7891 = vmatprep.subr.bf16.mxu0 %v7213
        %7892 = vmatpush1.bf16.msra.mxu0 %v7212
        %7893 = vmatprep.subr.bf16.mxu0 %v7201
        %7894 = vmatpush1.bf16.msra.mxu0 %v7200
        %7895 = vmatprep.subr.bf16.mxu0 %v7189
        %7896 = vmatpush1.bf16.msra.mxu0 %v7188
        %7897 = vmatprep.subr.bf16.mxu0 %v7177
        %7898 = vmatpush1.bf16.msra.mxu0 %v7176
        %7899 = vmatprep.subr.bf16.mxu0 %v7165
        %7900 = vmatpush1.bf16.msra.mxu0 %v7164
        %7901 = vmatprep.subr.bf16.mxu0 %v7153
        %7902 = vmatpush1.bf16.msra.mxu0 %v7152
        %7903 = vmatprep.subr.bf16.mxu0 0
        %7904 = vmatpush2.bf16.msra.mxu0 0
        %7905 = vmatprep.subr.bf16.mxu0 0
        %7906 = vmatpush2.bf16.msra.mxu0 0
        %7907 = vmatprep.subr.bf16.mxu0 0
        %7908 = vmatpush2.bf16.msra.mxu0 0
        %7909 = vmatprep.subr.bf16.mxu0 0
        %7910 = vmatpush2.bf16.msra.mxu0 0
        %7911 = vmatprep.subr.bf16.mxu0 0
        %7912 = vmatpush2.bf16.msra.mxu0 0
        %7913 = vmatprep.subr.bf16.mxu0 0
        %7914 = vmatpush2.bf16.msra.mxu0 0
        %7915 = vmatprep.subr.bf16.mxu0 0
        %7916 = vmatpush2.bf16.msra.mxu0 0
        %7917 = vmatprep.subr.bf16.mxu0 0
        %7918 = vmatpush2.bf16.msra.mxu0 0
        %7919 = vmatprep.mubr.bf16.mxu0 0
        %7920 = vmatmul.mubr.bf16.gmra.mxu0 %v5730
        %v7921 = vpop.f32.mrf.mxu0
        %v7922 = vadd.f32 %v7851, %v7921
        %v7923 = vpop.f32.mrf.mxu0
        %v7924 = vadd.f32 %v7853, %v7923
        %v7925 = vpop.f32.mrf.mxu0
        %v7926 = vadd.f32 %v7855, %v7925
        %v7927 = vpop.f32.mrf.mxu0
        %v7928 = vadd.f32 %v7857, %v7927
        %7929 = vmatprep.mubr.bf16.mxu0 0
        %7930 = vmatmul.mubr.bf16.gmra.mxu0 %v5733
        %v7931 = vpop.f32.mrf.mxu0
        %v7932 = vadd.f32 %v7861, %v7931
        %v7933 = vpop.f32.mrf.mxu0
        %v7934 = vadd.f32 %v7863, %v7933
        %v7935 = vpop.f32.mrf.mxu0
        %v7936 = vadd.f32 %v7865, %v7935
        %v7937 = vpop.f32.mrf.mxu0
        %v7938 = vadd.f32 %v7867, %v7937
        %7939 = vmatprep.mubr.bf16.mxu0 0
        %7940 = vmatmul.mubr.bf16.gmra.mxu0 %v5736
        %v7941 = vpop.f32.mrf.mxu0
        %v7942 = vadd.f32 %v7871, %v7941
        %v7943 = vpop.f32.mrf.mxu0
        %v7944 = vadd.f32 %v7873, %v7943
        %v7945 = vpop.f32.mrf.mxu0
        %v7946 = vadd.f32 %v7875, %v7945
        %v7947 = vpop.f32.mrf.mxu0
        %v7948 = vadd.f32 %v7877, %v7947
        %7949 = vmatprep.mubr.bf16.mxu0 0
        %7950 = vmatmul.mubr.bf16.gmra.mxu0 %v5739
        %v7951 = vpop.f32.mrf.mxu0
        %v7952 = vadd.f32 %v7881, %v7951
        %v7953 = vpop.f32.mrf.mxu0
        %v7954 = vadd.f32 %v7883, %v7953
        %v7955 = vpop.f32.mrf.mxu0
        %v7956 = vpop.f32.mrf.mxu0
        %7957 = vdwg.mxu0
        %7958 = vmatprep.subr.bf16.mxu0 %v7047
        %7959 = vmatpush1.bf16.msra.mxu0 %v7046
        %7960 = vmatprep.subr.bf16.mxu0 %v7035
        %7961 = vmatpush1.bf16.msra.mxu0 %v7034
        %7962 = vmatprep.subr.bf16.mxu0 %v7023
        %7963 = vmatpush1.bf16.msra.mxu0 %v7022
        %7964 = vmatprep.subr.bf16.mxu0 %v7011
        %7965 = vmatpush1.bf16.msra.mxu0 %v7010
        %7966 = vmatprep.subr.bf16.mxu0 %v6999
        %7967 = vmatpush1.bf16.msra.mxu0 %v6998
        %7968 = vmatprep.subr.bf16.mxu0 %v6987
        %7969 = vmatpush1.bf16.msra.mxu0 %v6986
        %7970 = vmatprep.subr.bf16.mxu0 %v6975
        %7971 = vmatpush1.bf16.msra.mxu0 %v6974
        %7972 = vmatprep.subr.bf16.mxu0 %v6963
        %7973 = vmatpush1.bf16.msra.mxu0 %v6962
        %7974 = vmatprep.subr.bf16.mxu0 %v7143
        %7975 = vmatpush2.bf16.msra.mxu0 %v7142
        %7976 = vmatprep.subr.bf16.mxu0 %v7131
        %7977 = vmatpush2.bf16.msra.mxu0 %v7130
        %7978 = vmatprep.subr.bf16.mxu0 %v7119
        %7979 = vmatpush2.bf16.msra.mxu0 %v7118
        %7980 = vmatprep.subr.bf16.mxu0 %v7107
        %7981 = vmatpush2.bf16.msra.mxu0 %v7106
        %7982 = vmatprep.subr.bf16.mxu0 %v7095
        %7983 = vmatpush2.bf16.msra.mxu0 %v7094
        %7984 = vmatprep.subr.bf16.mxu0 %v7083
        %7985 = vmatpush2.bf16.msra.mxu0 %v7082
        %7986 = vmatprep.subr.bf16.mxu0 %v7071
        %7987 = vmatpush2.bf16.msra.mxu0 %v7070
        %7988 = vmatprep.subr.bf16.mxu0 %v7059
        %7989 = vmatpush2.bf16.msra.mxu0 %v7058
        %7990 = vmatprep.mubr.bf16.mxu0 %v5729
        %7991 = vmatmul.mubr.bf16.gmra.mxu0 %v5728
        %v7992 = vpop.f32.mrf.mxu0
        %v7993 = vadd.f32 %v6059, %v7992
        %v7994 = vpop.f32.mrf.mxu0
        %v7995 = vadd.f32 %v6063, %v7994
        %v7996 = vpop.f32.mrf.mxu0
        %v7997 = vadd.f32 %v6059, %v7996
        %v7998 = vpop.f32.mrf.mxu0
        %v7999 = vadd.f32 %v6063, %v7998
        %8000 = vmatprep.mubr.bf16.mxu0 %v5732
        %8001 = vmatmul.mubr.bf16.gmra.mxu0 %v5731
        %v8002 = vpop.f32.mrf.mxu0
        %v8003 = vadd.f32 %v6059, %v8002
        %v8004 = vpop.f32.mrf.mxu0
        %v8005 = vadd.f32 %v6063, %v8004
        %v8006 = vpop.f32.mrf.mxu0
        %v8007 = vadd.f32 %v6059, %v8006
        %v8008 = vpop.f32.mrf.mxu0
        %v8009 = vadd.f32 %v6063, %v8008
        %8010 = vmatprep.mubr.bf16.mxu0 %v5735
        %8011 = vmatmul.mubr.bf16.gmra.mxu0 %v5734
        %v8012 = vpop.f32.mrf.mxu0
        %v8013 = vadd.f32 %v6059, %v8012
        %v8014 = vpop.f32.mrf.mxu0
        %v8015 = vadd.f32 %v6063, %v8014
        %v8016 = vpop.f32.mrf.mxu0
        %v8017 = vadd.f32 %v6059, %v8016
        %v8018 = vpop.f32.mrf.mxu0
        %v8019 = vadd.f32 %v6063, %v8018
        %8020 = vmatprep.mubr.bf16.mxu0 %v5738
        %8021 = vmatmul.mubr.bf16.gmra.mxu0 %v5737
        %v8022 = vpop.f32.mrf.mxu0
        %v8023 = vadd.f32 %v6059, %v8022
        %v8024 = vpop.f32.mrf.mxu0
        %v8025 = vadd.f32 %v6063, %v8024
        %v8026 = vpop.f32.mrf.mxu0
        %v8027 = vpop.f32.mrf.mxu0
        %8028 = vdwg.mxu0
        %8029 = vmatprep.subr.bf16.mxu0 %v7239
        %8030 = vmatpush1.bf16.msra.mxu0 %v7238
        %8031 = vmatprep.subr.bf16.mxu0 %v7227
        %8032 = vmatpush1.bf16.msra.mxu0 %v7226
        %8033 = vmatprep.subr.bf16.mxu0 %v7215
        %8034 = vmatpush1.bf16.msra.mxu0 %v7214
        %8035 = vmatprep.subr.bf16.mxu0 %v7203
        %8036 = vmatpush1.bf16.msra.mxu0 %v7202
        %8037 = vmatprep.subr.bf16.mxu0 %v7191
        %8038 = vmatpush1.bf16.msra.mxu0 %v7190
        %8039 = vmatprep.subr.bf16.mxu0 %v7179
        %8040 = vmatpush1.bf16.msra.mxu0 %v7178
        %8041 = vmatprep.subr.bf16.mxu0 %v7167
        %8042 = vmatpush1.bf16.msra.mxu0 %v7166
        %8043 = vmatprep.subr.bf16.mxu0 %v7155
        %8044 = vmatpush1.bf16.msra.mxu0 %v7154
        %8045 = vmatprep.subr.bf16.mxu0 0
        %8046 = vmatpush2.bf16.msra.mxu0 0
        %8047 = vmatprep.subr.bf16.mxu0 0
        %8048 = vmatpush2.bf16.msra.mxu0 0
        %8049 = vmatprep.subr.bf16.mxu0 0
        %8050 = vmatpush2.bf16.msra.mxu0 0
        %8051 = vmatprep.subr.bf16.mxu0 0
        %8052 = vmatpush2.bf16.msra.mxu0 0
        %8053 = vmatprep.subr.bf16.mxu0 0
        %8054 = vmatpush2.bf16.msra.mxu0 0
        %8055 = vmatprep.subr.bf16.mxu0 0
        %8056 = vmatpush2.bf16.msra.mxu0 0
        %8057 = vmatprep.subr.bf16.mxu0 0
        %8058 = vmatpush2.bf16.msra.mxu0 0
        %8059 = vmatprep.subr.bf16.mxu0 0
        %8060 = vmatpush2.bf16.msra.mxu0 0
        %8061 = vmatprep.mubr.bf16.mxu0 0
        %8062 = vmatmul.mubr.bf16.gmra.mxu0 %v5730
        %v8063 = vpop.f32.mrf.mxu0
        %v8064 = vadd.f32 %v7993, %v8063
        %v8065 = vpop.f32.mrf.mxu0
        %v8066 = vadd.f32 %v7995, %v8065
        %v8067 = vpop.f32.mrf.mxu0
        %v8068 = vadd.f32 %v7997, %v8067
        %v8069 = vpop.f32.mrf.mxu0
        %v8070 = vadd.f32 %v7999, %v8069
        %8071 = vmatprep.mubr.bf16.mxu0 0
        %8072 = vmatmul.mubr.bf16.gmra.mxu0 %v5733
        %v8073 = vpop.f32.mrf.mxu0
        %v8074 = vadd.f32 %v8003, %v8073
        %v8075 = vpop.f32.mrf.mxu0
        %v8076 = vadd.f32 %v8005, %v8075
        %v8077 = vpop.f32.mrf.mxu0
        %v8078 = vadd.f32 %v8007, %v8077
        %v8079 = vpop.f32.mrf.mxu0
        %v8080 = vadd.f32 %v8009, %v8079
        %8081 = vmatprep.mubr.bf16.mxu0 0
        %8082 = vmatmul.mubr.bf16.gmra.mxu0 %v5736
        %v8083 = vpop.f32.mrf.mxu0
        %v8084 = vadd.f32 %v8013, %v8083
        %v8085 = vpop.f32.mrf.mxu0
        %v8086 = vadd.f32 %v8015, %v8085
        %v8087 = vpop.f32.mrf.mxu0
        %v8088 = vadd.f32 %v8017, %v8087
        %v8089 = vpop.f32.mrf.mxu0
        %v8090 = vadd.f32 %v8019, %v8089
        %8091 = vmatprep.mubr.bf16.mxu0 0
        %8092 = vmatmul.mubr.bf16.gmra.mxu0 %v5739
        %v8093 = vpop.f32.mrf.mxu0
        %v8094 = vadd.f32 %v8023, %v8093
        %v8095 = vpop.f32.mrf.mxu0
        %v8096 = vadd.f32 %v8025, %v8095
        %v8097 = vpop.f32.mrf.mxu0
        %v8098 = vpop.f32.mrf.mxu0
        %8099 = vdwg.mxu0
        %8100 = vmatprep.subr.bf16.mxu0 %v7049
        %8101 = vmatpush1.bf16.msra.mxu0 %v7048
        %8102 = vmatprep.subr.bf16.mxu0 %v7037
        %8103 = vmatpush1.bf16.msra.mxu0 %v7036
        %8104 = vmatprep.subr.bf16.mxu0 %v7025
        %8105 = vmatpush1.bf16.msra.mxu0 %v7024
        %8106 = vmatprep.subr.bf16.mxu0 %v7013
        %8107 = vmatpush1.bf16.msra.mxu0 %v7012
        %8108 = vmatprep.subr.bf16.mxu0 %v7001
        %8109 = vmatpush1.bf16.msra.mxu0 %v7000
        %8110 = vmatprep.subr.bf16.mxu0 %v6989
        %8111 = vmatpush1.bf16.msra.mxu0 %v6988
        %8112 = vmatprep.subr.bf16.mxu0 %v6977
        %8113 = vmatpush1.bf16.msra.mxu0 %v6976
        %8114 = vmatprep.subr.bf16.mxu0 %v6965
        %8115 = vmatpush1.bf16.msra.mxu0 %v6964
        %8116 = vmatprep.subr.bf16.mxu0 %v7145
        %8117 = vmatpush2.bf16.msra.mxu0 %v7144
        %8118 = vmatprep.subr.bf16.mxu0 %v7133
        %8119 = vmatpush2.bf16.msra.mxu0 %v7132
        %8120 = vmatprep.subr.bf16.mxu0 %v7121
        %8121 = vmatpush2.bf16.msra.mxu0 %v7120
        %8122 = vmatprep.subr.bf16.mxu0 %v7109
        %8123 = vmatpush2.bf16.msra.mxu0 %v7108
        %8124 = vmatprep.subr.bf16.mxu0 %v7097
        %8125 = vmatpush2.bf16.msra.mxu0 %v7096
        %8126 = vmatprep.subr.bf16.mxu0 %v7085
        %8127 = vmatpush2.bf16.msra.mxu0 %v7084
        %8128 = vmatprep.subr.bf16.mxu0 %v7073
        %8129 = vmatpush2.bf16.msra.mxu0 %v7072
        %8130 = vmatprep.subr.bf16.mxu0 %v7061
        %8131 = vmatpush2.bf16.msra.mxu0 %v7060
        %8132 = vmatprep.mubr.bf16.mxu0 %v5729
        %8133 = vmatmul.mubr.bf16.gmra.mxu0 %v5728
        %v8134 = vpop.f32.mrf.mxu0
        %v8135 = vadd.f32 %v6067, %v8134
        %v8136 = vpop.f32.mrf.mxu0
        %v8137 = vadd.f32 %v6071, %v8136
        %v8138 = vpop.f32.mrf.mxu0
        %v8139 = vadd.f32 %v6067, %v8138
        %v8140 = vpop.f32.mrf.mxu0
        %v8141 = vadd.f32 %v6071, %v8140
        %8142 = vmatprep.mubr.bf16.mxu0 %v5732
        %8143 = vmatmul.mubr.bf16.gmra.mxu0 %v5731
        %v8144 = vpop.f32.mrf.mxu0
        %v8145 = vadd.f32 %v6067, %v8144
        %v8146 = vpop.f32.mrf.mxu0
        %v8147 = vadd.f32 %v6071, %v8146
        %v8148 = vpop.f32.mrf.mxu0
        %v8149 = vadd.f32 %v6067, %v8148
        %v8150 = vpop.f32.mrf.mxu0
        %v8151 = vadd.f32 %v6071, %v8150
        %8152 = vmatprep.mubr.bf16.mxu0 %v5735
        %8153 = vmatmul.mubr.bf16.gmra.mxu0 %v5734
        %v8154 = vpop.f32.mrf.mxu0
        %v8155 = vadd.f32 %v6067, %v8154
        %v8156 = vpop.f32.mrf.mxu0
        %v8157 = vadd.f32 %v6071, %v8156
        %v8158 = vpop.f32.mrf.mxu0
        %v8159 = vadd.f32 %v6067, %v8158
        %v8160 = vpop.f32.mrf.mxu0
        %v8161 = vadd.f32 %v6071, %v8160
        %8162 = vmatprep.mubr.bf16.mxu0 %v5738
        %8163 = vmatmul.mubr.bf16.gmra.mxu0 %v5737
        %v8164 = vpop.f32.mrf.mxu0
        %v8165 = vadd.f32 %v6067, %v8164
        %v8166 = vpop.f32.mrf.mxu0
        %v8167 = vadd.f32 %v6071, %v8166
        %v8168 = vpop.f32.mrf.mxu0
        %v8169 = vpop.f32.mrf.mxu0
        %8170 = vdwg.mxu0
        %8171 = vmatprep.subr.bf16.mxu0 %v7241
        %8172 = vmatpush1.bf16.msra.mxu0 %v7240
        %8173 = vmatprep.subr.bf16.mxu0 %v7229
        %8174 = vmatpush1.bf16.msra.mxu0 %v7228
        %8175 = vmatprep.subr.bf16.mxu0 %v7217
        %8176 = vmatpush1.bf16.msra.mxu0 %v7216
        %8177 = vmatprep.subr.bf16.mxu0 %v7205
        %8178 = vmatpush1.bf16.msra.mxu0 %v7204
        %8179 = vmatprep.subr.bf16.mxu0 %v7193
        %8180 = vmatpush1.bf16.msra.mxu0 %v7192
        %8181 = vmatprep.subr.bf16.mxu0 %v7181
        %8182 = vmatpush1.bf16.msra.mxu0 %v7180
        %8183 = vmatprep.subr.bf16.mxu0 %v7169
        %8184 = vmatpush1.bf16.msra.mxu0 %v7168
        %8185 = vmatprep.subr.bf16.mxu0 %v7157
        %8186 = vmatpush1.bf16.msra.mxu0 %v7156
        %8187 = vmatprep.subr.bf16.mxu0 0
        %8188 = vmatpush2.bf16.msra.mxu0 0
        %8189 = vmatprep.subr.bf16.mxu0 0
        %8190 = vmatpush2.bf16.msra.mxu0 0
        %8191 = vmatprep.subr.bf16.mxu0 0
        %8192 = vmatpush2.bf16.msra.mxu0 0
        %8193 = vmatprep.subr.bf16.mxu0 0
        %8194 = vmatpush2.bf16.msra.mxu0 0
        %8195 = vmatprep.subr.bf16.mxu0 0
        %8196 = vmatpush2.bf16.msra.mxu0 0
        %8197 = vmatprep.subr.bf16.mxu0 0
        %8198 = vmatpush2.bf16.msra.mxu0 0
        %8199 = vmatprep.subr.bf16.mxu0 0
        %8200 = vmatpush2.bf16.msra.mxu0 0
        %8201 = vmatprep.subr.bf16.mxu0 0
        %8202 = vmatpush2.bf16.msra.mxu0 0
        %8203 = vmatprep.mubr.bf16.mxu0 0
        %8204 = vmatmul.mubr.bf16.gmra.mxu0 %v5730
        %v8205 = vpop.f32.mrf.mxu0
        %v8206 = vadd.f32 %v8135, %v8205
        %v8207 = vpop.f32.mrf.mxu0
        %v8208 = vadd.f32 %v8137, %v8207
        %v8209 = vpop.f32.mrf.mxu0
        %v8210 = vadd.f32 %v8139, %v8209
        %v8211 = vpop.f32.mrf.mxu0
        %v8212 = vadd.f32 %v8141, %v8211
        %8213 = vmatprep.mubr.bf16.mxu0 0
        %8214 = vmatmul.mubr.bf16.gmra.mxu0 %v5733
        %v8215 = vpop.f32.mrf.mxu0
        %v8216 = vadd.f32 %v8145, %v8215
        %v8217 = vpop.f32.mrf.mxu0
        %v8218 = vadd.f32 %v8147, %v8217
        %v8219 = vpop.f32.mrf.mxu0
        %v8220 = vadd.f32 %v8149, %v8219
        %v8221 = vpop.f32.mrf.mxu0
        %v8222 = vadd.f32 %v8151, %v8221
        %8223 = vmatprep.mubr.bf16.mxu0 0
        %8224 = vmatmul.mubr.bf16.gmra.mxu0 %v5736
        %v8225 = vpop.f32.mrf.mxu0
        %v8226 = vadd.f32 %v8155, %v8225
        %v8227 = vpop.f32.mrf.mxu0
        %v8228 = vadd.f32 %v8157, %v8227
        %v8229 = vpop.f32.mrf.mxu0
        %v8230 = vadd.f32 %v8159, %v8229
        %v8231 = vpop.f32.mrf.mxu0
        %v8232 = vadd.f32 %v8161, %v8231
        %8233 = vmatprep.mubr.bf16.mxu0 0
        %8234 = vmatmul.mubr.bf16.gmra.mxu0 %v5739
        %v8235 = vpop.f32.mrf.mxu0
        %v8236 = vadd.f32 %v8165, %v8235
        %v8237 = vpop.f32.mrf.mxu0
        %v8238 = vadd.f32 %v8167, %v8237
        %v8239 = vpop.f32.mrf.mxu0
        %v8240 = vpop.f32.mrf.mxu0
        %8241 = vdwg.mxu0
        %8242 = vmatprep.subr.bf16.mxu0 %v7051
        %8243 = vmatpush1.bf16.msra.mxu0 %v7050
        %8244 = vmatprep.subr.bf16.mxu0 %v7039
        %8245 = vmatpush1.bf16.msra.mxu0 %v7038
        %8246 = vmatprep.subr.bf16.mxu0 %v7027
        %8247 = vmatpush1.bf16.msra.mxu0 %v7026
        %8248 = vmatprep.subr.bf16.mxu0 %v7015
        %8249 = vmatpush1.bf16.msra.mxu0 %v7014
        %8250 = vmatprep.subr.bf16.mxu0 %v7003
        %8251 = vmatpush1.bf16.msra.mxu0 %v7002
        %8252 = vmatprep.subr.bf16.mxu0 %v6991
        %8253 = vmatpush1.bf16.msra.mxu0 %v6990
        %8254 = vmatprep.subr.bf16.mxu0 %v6979
        %8255 = vmatpush1.bf16.msra.mxu0 %v6978
        %8256 = vmatprep.subr.bf16.mxu0 %v6967
        %8257 = vmatpush1.bf16.msra.mxu0 %v6966
        %8258 = vmatprep.subr.bf16.mxu0 %v7147
        %8259 = vmatpush2.bf16.msra.mxu0 %v7146
        %8260 = vmatprep.subr.bf16.mxu0 %v7135
        %8261 = vmatpush2.bf16.msra.mxu0 %v7134
        %8262 = vmatprep.subr.bf16.mxu0 %v7123
        %8263 = vmatpush2.bf16.msra.mxu0 %v7122
        %8264 = vmatprep.subr.bf16.mxu0 %v7111
        %8265 = vmatpush2.bf16.msra.mxu0 %v7110
        %8266 = vmatprep.subr.bf16.mxu0 %v7099
        %8267 = vmatpush2.bf16.msra.mxu0 %v7098
        %8268 = vmatprep.subr.bf16.mxu0 %v7087
        %8269 = vmatpush2.bf16.msra.mxu0 %v7086
        %8270 = vmatprep.subr.bf16.mxu0 %v7075
        %8271 = vmatpush2.bf16.msra.mxu0 %v7074
        %8272 = vmatprep.subr.bf16.mxu0 %v7063
        %8273 = vmatpush2.bf16.msra.mxu0 %v7062
        %8274 = vmatprep.mubr.bf16.mxu0 %v5729
        %8275 = vmatmul.mubr.bf16.gmra.mxu0 %v5728
        %v8276 = vpop.f32.mrf.mxu0
        %v8277 = vadd.f32 %v6075, %v8276
        %v8278 = vpop.f32.mrf.mxu0
        %v8279 = vadd.f32 %v6079, %v8278
        %v8280 = vpop.f32.mrf.mxu0
        %v8281 = vadd.f32 %v6075, %v8280
        %v8282 = vpop.f32.mrf.mxu0
        %v8283 = vadd.f32 %v6079, %v8282
        %8284 = vmatprep.mubr.bf16.mxu0 %v5732
        %8285 = vmatmul.mubr.bf16.gmra.mxu0 %v5731
        %v8286 = vpop.f32.mrf.mxu0
        %v8287 = vadd.f32 %v6075, %v8286
        %v8288 = vpop.f32.mrf.mxu0
        %v8289 = vadd.f32 %v6079, %v8288
        %v8290 = vpop.f32.mrf.mxu0
        %v8291 = vadd.f32 %v6075, %v8290
        %v8292 = vpop.f32.mrf.mxu0
        %v8293 = vadd.f32 %v6079, %v8292
        %8294 = vmatprep.mubr.bf16.mxu0 %v5735
        %8295 = vmatmul.mubr.bf16.gmra.mxu0 %v5734
        %v8296 = vpop.f32.mrf.mxu0
        %v8297 = vadd.f32 %v6075, %v8296
        %v8298 = vpop.f32.mrf.mxu0
        %v8299 = vadd.f32 %v6079, %v8298
        %v8300 = vpop.f32.mrf.mxu0
        %v8301 = vadd.f32 %v6075, %v8300
        %v8302 = vpop.f32.mrf.mxu0
        %v8303 = vadd.f32 %v6079, %v8302
        %8304 = vmatprep.mubr.bf16.mxu0 %v5738
        %8305 = vmatmul.mubr.bf16.gmra.mxu0 %v5737
        %v8306 = vpop.f32.mrf.mxu0
        %v8307 = vadd.f32 %v6075, %v8306
        %v8308 = vpop.f32.mrf.mxu0
        %v8309 = vadd.f32 %v6079, %v8308
        %v8310 = vpop.f32.mrf.mxu0
        %v8311 = vpop.f32.mrf.mxu0
        %8312 = vdwg.mxu0
        %8313 = vmatprep.subr.bf16.mxu0 %v7243
        %8314 = vmatpush1.bf16.msra.mxu0 %v7242
        %8315 = vmatprep.subr.bf16.mxu0 %v7231
        %8316 = vmatpush1.bf16.msra.mxu0 %v7230
        %8317 = vmatprep.subr.bf16.mxu0 %v7219
        %8318 = vmatpush1.bf16.msra.mxu0 %v7218
        %8319 = vmatprep.subr.bf16.mxu0 %v7207
        %8320 = vmatpush1.bf16.msra.mxu0 %v7206
        %8321 = vmatprep.subr.bf16.mxu0 %v7195
        %8322 = vmatpush1.bf16.msra.mxu0 %v7194
        %8323 = vmatprep.subr.bf16.mxu0 %v7183
        %8324 = vmatpush1.bf16.msra.mxu0 %v7182
        %8325 = vmatprep.subr.bf16.mxu0 %v7171
        %8326 = vmatpush1.bf16.msra.mxu0 %v7170
        %8327 = vmatprep.subr.bf16.mxu0 %v7159
        %8328 = vmatpush1.bf16.msra.mxu0 %v7158
        %8329 = vmatprep.subr.bf16.mxu0 0
        %8330 = vmatpush2.bf16.msra.mxu0 0
        %8331 = vmatprep.subr.bf16.mxu0 0
        %8332 = vmatpush2.bf16.msra.mxu0 0
        %8333 = vmatprep.subr.bf16.mxu0 0
        %8334 = vmatpush2.bf16.msra.mxu0 0
        %8335 = vmatprep.subr.bf16.mxu0 0
        %8336 = vmatpush2.bf16.msra.mxu0 0
        %8337 = vmatprep.subr.bf16.mxu0 0
        %8338 = vmatpush2.bf16.msra.mxu0 0
        %8339 = vmatprep.subr.bf16.mxu0 0
        %8340 = vmatpush2.bf16.msra.mxu0 0
        %8341 = vmatprep.subr.bf16.mxu0 0
        %8342 = vmatpush2.bf16.msra.mxu0 0
        %8343 = vmatprep.subr.bf16.mxu0 0
        %8344 = vmatpush2.bf16.msra.mxu0 0
        %8345 = vmatprep.mubr.bf16.mxu0 0
        %8346 = vmatmul.mubr.bf16.gmra.mxu0 %v5730
        %v8347 = vpop.f32.mrf.mxu0
        %v8348 = vadd.f32 %v8277, %v8347
        %v8349 = vpop.f32.mrf.mxu0
        %v8350 = vadd.f32 %v8279, %v8349
        %v8351 = vpop.f32.mrf.mxu0
        %v8352 = vadd.f32 %v8281, %v8351
        %v8353 = vpop.f32.mrf.mxu0
        %v8354 = vadd.f32 %v8283, %v8353
        %8355 = vmatprep.mubr.bf16.mxu0 0
        %8356 = vmatmul.mubr.bf16.gmra.mxu0 %v5733
        %v8357 = vpop.f32.mrf.mxu0
        %v8358 = vadd.f32 %v8287, %v8357
        %v8359 = vpop.f32.mrf.mxu0
        %v8360 = vadd.f32 %v8289, %v8359
        %v8361 = vpop.f32.mrf.mxu0
        %v8362 = vadd.f32 %v8291, %v8361
        %v8363 = vpop.f32.mrf.mxu0
        %v8364 = vadd.f32 %v8293, %v8363
        %8365 = vmatprep.mubr.bf16.mxu0 0
        %8366 = vmatmul.mubr.bf16.gmra.mxu0 %v5736
        %v8367 = vpop.f32.mrf.mxu0
        %v8368 = vadd.f32 %v8297, %v8367
        %v8369 = vpop.f32.mrf.mxu0
        %v8370 = vadd.f32 %v8299, %v8369
        %v8371 = vpop.f32.mrf.mxu0
        %v8372 = vadd.f32 %v8301, %v8371
        %v8373 = vpop.f32.mrf.mxu0
        %v8374 = vadd.f32 %v8303, %v8373
        %8375 = vmatprep.mubr.bf16.mxu0 0
        %8376 = vmatmul.mubr.bf16.gmra.mxu0 %v5739
        %v8377 = vpop.f32.mrf.mxu0
        %v8378 = vadd.f32 %v8307, %v8377
        %v8379 = vpop.f32.mrf.mxu0
        %v8380 = vadd.f32 %v8309, %v8379
        %v8381 = vpop.f32.mrf.mxu0
        %v8382 = vpop.f32.mrf.mxu0
        %8383 = vdwg.mxu0
        %v8384 = vmax.f32 %v7638, 0.0
        %v8385 = vmax.f32 %v7640, 0.0
        %v8386 = vmax.f32 %v7780, 0.0
        %v8387 = vmax.f32 %v7782, 0.0
        %v8388 = vmax.f32 %v7922, 0.0
        %v8389 = vmax.f32 %v7924, 0.0
        %v8390 = vmax.f32 %v8064, 0.0
        %v8391 = vmax.f32 %v8066, 0.0
        %v8392 = vmax.f32 %v8206, 0.0
        %v8393 = vmax.f32 %v8208, 0.0
        %v8394 = vmax.f32 %v8348, 0.0
        %v8395 = vmax.f32 %v8350, 0.0
        %v8396 = vmax.f32 %v7642, 0.0
        %v8397 = vmax.f32 %v7644, 0.0
        %v8398 = vmax.f32 %v7784, 0.0
        %v8399 = vmax.f32 %v7786, 0.0
        %v8400 = vmax.f32 %v7926, 0.0
        %v8401 = vmax.f32 %v7928, 0.0
        %v8402 = vmax.f32 %v8068, 0.0
        %v8403 = vmax.f32 %v8070, 0.0
        %v8404 = vmax.f32 %v8210, 0.0
        %v8405 = vmax.f32 %v8212, 0.0
        %v8406 = vmax.f32 %v8352, 0.0
        %v8407 = vmax.f32 %v8354, 0.0
        %v8408 = vmax.f32 %v7648, 0.0
        %v8409 = vmax.f32 %v7650, 0.0
        %v8410 = vmax.f32 %v7790, 0.0
        %v8411 = vmax.f32 %v7792, 0.0
        %v8412 = vmax.f32 %v7932, 0.0
        %v8413 = vmax.f32 %v7934, 0.0
        %v8414 = vmax.f32 %v8074, 0.0
        %v8415 = vmax.f32 %v8076, 0.0
        %v8416 = vmax.f32 %v8216, 0.0
        %v8417 = vmax.f32 %v8218, 0.0
        %v8418 = vmax.f32 %v8358, 0.0
        %v8419 = vmax.f32 %v8360, 0.0
        %v8420 = vmax.f32 %v7652, 0.0
        %v8421 = vmax.f32 %v7654, 0.0
        %v8422 = vmax.f32 %v7794, 0.0
        %v8423 = vmax.f32 %v7796, 0.0
        %v8424 = vmax.f32 %v7936, 0.0
        %v8425 = vmax.f32 %v7938, 0.0
        %v8426 = vmax.f32 %v8078, 0.0
        %v8427 = vmax.f32 %v8080, 0.0
        %v8428 = vmax.f32 %v8220, 0.0
        %v8429 = vmax.f32 %v8222, 0.0
        %v8430 = vmax.f32 %v8362, 0.0
        %v8431 = vmax.f32 %v8364, 0.0
        %v8432 = vmax.f32 %v7658, 0.0
        %v8433 = vmax.f32 %v7660, 0.0
        %v8434 = vmax.f32 %v7800, 0.0
        %v8435 = vmax.f32 %v7802, 0.0
        %v8436 = vmax.f32 %v7942, 0.0
        %v8437 = vmax.f32 %v7944, 0.0
        %v8438 = vmax.f32 %v8084, 0.0
        %v8439 = vmax.f32 %v8086, 0.0
        %v8440 = vmax.f32 %v8226, 0.0
        %v8441 = vmax.f32 %v8228, 0.0
        %v8442 = vmax.f32 %v8368, 0.0
        %v8443 = vmax.f32 %v8370, 0.0
        %v8444 = vmax.f32 %v7662, 0.0
        %v8445 = vmax.f32 %v7664, 0.0
        %v8446 = vmax.f32 %v7804, 0.0
        %v8447 = vmax.f32 %v7806, 0.0
        %v8448 = vmax.f32 %v7946, 0.0
        %v8449 = vmax.f32 %v7948, 0.0
        %v8450 = vmax.f32 %v8088, 0.0
        %v8451 = vmax.f32 %v8090, 0.0
        %v8452 = vmax.f32 %v8230, 0.0
        %v8453 = vmax.f32 %v8232, 0.0
        %v8454 = vmax.f32 %v8372, 0.0
        %v8455 = vmax.f32 %v8374, 0.0
        %v8456 = vmax.f32 %v7668, 0.0
        %v8457 = vmax.f32 %v7670, 0.0
        %v8458 = vmax.f32 %v7810, 0.0
        %v8459 = vmax.f32 %v7812, 0.0
        %v8460 = vmax.f32 %v7952, 0.0
        %v8461 = vmax.f32 %v7954, 0.0
        %v8462 = vmax.f32 %v8094, 0.0
        %v8463 = vmax.f32 %v8096, 0.0
        %v8464 = vmax.f32 %v8236, 0.0
        %v8465 = vmax.f32 %v8238, 0.0
        %v8466 = vmax.f32 %v8378, 0.0
        %v8467 = vmax.f32 %v8380, 0.0
        %v8468 = vpack.c.bf16 %v8396, %v8384
        %v8469 = vpack.c.bf16 %v8397, %v8385
        %v8470 = vpack.c.bf16 %v8398, %v8386
        %v8471 = vpack.c.bf16 %v8399, %v8387
        %v8472 = vpack.c.bf16 %v8400, %v8388
        %v8473 = vpack.c.bf16 %v8401, %v8389
        %v8474 = vpack.c.bf16 %v8402, %v8390
        %v8475 = vpack.c.bf16 %v8403, %v8391
        %v8476 = vpack.c.bf16 %v8404, %v8392
        %v8477 = vpack.c.bf16 %v8405, %v8393
        %v8478 = vpack.c.bf16 %v8406, %v8394
        %v8479 = vpack.c.bf16 %v8407, %v8395
        %v8480 = vpack.c.bf16 %v8420, %v8408
        %v8481 = vpack.c.bf16 %v8421, %v8409
        %v8482 = vpack.c.bf16 %v8422, %v8410
        %v8483 = vpack.c.bf16 %v8423, %v8411
        %v8484 = vpack.c.bf16 %v8424, %v8412
        %v8485 = vpack.c.bf16 %v8425, %v8413
        %v8486 = vpack.c.bf16 %v8426, %v8414
        %v8487 = vpack.c.bf16 %v8427, %v8415
        %v8488 = vpack.c.bf16 %v8428, %v8416
        %v8489 = vpack.c.bf16 %v8429, %v8417
        %v8490 = vpack.c.bf16 %v8430, %v8418
        %v8491 = vpack.c.bf16 %v8431, %v8419
        %v8492 = vpack.c.bf16 %v8444, %v8432
        %v8493 = vpack.c.bf16 %v8445, %v8433
        %v8494 = vpack.c.bf16 %v8446, %v8434
        %v8495 = vpack.c.bf16 %v8447, %v8435
        %v8496 = vpack.c.bf16 %v8448, %v8436
        %v8497 = vpack.c.bf16 %v8449, %v8437
        %v8498 = vpack.c.bf16 %v8450, %v8438
        %v8499 = vpack.c.bf16 %v8451, %v8439
        %v8500 = vpack.c.bf16 %v8452, %v8440
        %v8501 = vpack.c.bf16 %v8453, %v8441
        %v8502 = vpack.c.bf16 %v8454, %v8442
        %v8503 = vpack.c.bf16 %v8455, %v8443
        %v8504 = vpack.c.bf16 %v8456, %v8456
        %v8505 = vpack.c.bf16 %v8457, %v8457
        %v8506 = vpack.c.bf16 %v8458, %v8458
        %v8507 = vpack.c.bf16 %v8459, %v8459
        %v8508 = vpack.c.bf16 %v8460, %v8460
        %v8509 = vpack.c.bf16 %v8461, %v8461
        %v8510 = vpack.c.bf16 %v8462, %v8462
        %v8511 = vpack.c.bf16 %v8463, %v8463
        %v8512 = vpack.c.bf16 %v8464, %v8464
        %v8513 = vpack.c.bf16 %v8465, %v8465
        %v8514 = vpack.c.bf16 %v8466, %v8466
        %v8515 = vpack.c.bf16 %v8467, %v8467
        %v8516 = vld [vmem:[#allocation19] sm:$0xff]
        %v8517 = vld [vmem:[#allocation19 + $0x8] sm:$0xf]
        %v8518 = vld [vmem:[#allocation19 + $0xc] sm:$0xff]
        %v8519 = vld [vmem:[#allocation19 + $0x14] sm:$0xf]
        %v8520 = vld [vmem:[#allocation19 + $0x18] sm:$0xff]
        %v8521 = vld [vmem:[#allocation19 + $0x20] sm:$0xf]
        %v8522 = vld [vmem:[#allocation19 + $0x24] sm:$0xff]
        %v8523 = vld [vmem:[#allocation19 + $0x2c] sm:$0xf]
        %v8524 = vld [vmem:[#allocation19 + $0x30] sm:$0xff]
        %v8525 = vld [vmem:[#allocation19 + $0x38] sm:$0xf]
        %v8526 = vld [vmem:[#allocation19 + $0x3c] sm:$0xff]
        %v8527 = vld [vmem:[#allocation19 + $0x44] sm:$0xf]
        %v8528 = vld [vmem:[#allocation19 + $0x48] sm:$0xff]
        %v8529 = vld [vmem:[#allocation19 + $0x50] sm:$0xf]
        %v8530 = vld [vmem:[#allocation19 + $0x54] sm:$0xff]
        %v8531 = vld [vmem:[#allocation19 + $0x5c] sm:$0xf]
        %v8532 = vld [vmem:[#allocation19 + $0x60] sm:$0xff]
        %v8533 = vld [vmem:[#allocation19 + $0x68] sm:$0xf]
        %v8534 = vld [vmem:[#allocation19 + $0x6c] sm:$0xff]
        %v8535 = vld [vmem:[#allocation19 + $0x74] sm:$0xf]
        %v8536 = vld [vmem:[#allocation19 + $0x78] sm:$0xff]
        %v8537 = vld [vmem:[#allocation19 + $0x80] sm:$0xf]
        %v8538 = vld [vmem:[#allocation19 + $0x84] sm:$0xff]
        %v8539 = vld [vmem:[#allocation19 + $0x8c] sm:$0xf]
        %v8540 = vld [vmem:[#allocation19 + $0x90] sm:$0xff]
        %v8541 = vld [vmem:[#allocation19 + $0x98] sm:$0xf]
        %v8542 = vld [vmem:[#allocation19 + $0x9c] sm:$0xff]
        %v8543 = vld [vmem:[#allocation19 + $0xa4] sm:$0xf]
        %v8544 = vld [vmem:[#allocation19 + $0xa8] sm:$0xff]
        %v8545 = vld [vmem:[#allocation19 + $0xb0] sm:$0xf]
        %v8546 = vld [vmem:[#allocation19 + $0xb4] sm:$0xff]
        %v8547 = vld [vmem:[#allocation19 + $0xbc] sm:$0xf]
        %v8548 = vld [vmem:[#allocation19 + $0xc0] sm:$0xff]
        %v8549 = vld [vmem:[#allocation19 + $0xc8] sm:$0xf]
        %v8550 = vld [vmem:[#allocation19 + $0xcc] sm:$0xff]
        %v8551 = vld [vmem:[#allocation19 + $0xd4] sm:$0xf]
        %v8552 = vld [vmem:[#allocation19 + $0xd8] sm:$0xff]
        %v8553 = vld [vmem:[#allocation19 + $0xe0] sm:$0xf]
        %v8554 = vld [vmem:[#allocation19 + $0xe4] sm:$0xff]
        %v8555 = vld [vmem:[#allocation19 + $0xec] sm:$0xf]
        %v8556 = vld [vmem:[#allocation19 + $0xf0] sm:$0xff]
        %v8557 = vld [vmem:[#allocation19 + $0xf8] sm:$0xf]
        %v8558 = vld [vmem:[#allocation19 + $0xfc] sm:$0xff]
        %v8559 = vld [vmem:[#allocation19 + $0x104] sm:$0xf]
        %v8560 = vld [vmem:[#allocation19 + $0x108] sm:$0xff]
        %v8561 = vld [vmem:[#allocation19 + $0x110] sm:$0xf]
        %v8562 = vld [vmem:[#allocation19 + $0x114] sm:$0xff]
        %v8563 = vld [vmem:[#allocation19 + $0x11c] sm:$0xf]
        %v8564 = vld [vmem:[#allocation19 + $0x120] sm:$0xff]
        %v8565 = vld [vmem:[#allocation19 + $0x128] sm:$0xf]
        %v8566 = vld [vmem:[#allocation19 + $0x12c] sm:$0xff]
        %v8567 = vld [vmem:[#allocation19 + $0x134] sm:$0xf]
        %v8568 = vld [vmem:[#allocation19 + $0x138] sm:$0xff]
        %v8569 = vld [vmem:[#allocation19 + $0x140] sm:$0xf]
        %v8570 = vld [vmem:[#allocation19 + $0x144] sm:$0xff]
        %v8571 = vld [vmem:[#allocation19 + $0x14c] sm:$0xf]
        %v8572 = vld [vmem:[#allocation19 + $0x150] sm:$0xff]
        %v8573 = vld [vmem:[#allocation19 + $0x158] sm:$0xf]
        %v8574 = vld [vmem:[#allocation19 + $0x15c] sm:$0xff]
        %v8575 = vld [vmem:[#allocation19 + $0x164] sm:$0xf]
        %v8576 = vld [vmem:[#allocation19 + $0x168] sm:$0xff]
        %v8577 = vld [vmem:[#allocation19 + $0x170] sm:$0xf]
        %v8578 = vld [vmem:[#allocation19 + $0x174] sm:$0xff]
        %v8579 = vld [vmem:[#allocation19 + $0x17c] sm:$0xf]
        %v8580 = vld [vmem:[#allocation19 + $0x180] sm:$0xff]
        %v8581 = vld [vmem:[#allocation19 + $0x188] sm:$0xf]
        %v8582 = vld [vmem:[#allocation19 + $0x18c] sm:$0xff]
        %v8583 = vld [vmem:[#allocation19 + $0x194] sm:$0xf]
        %v8584 = vld [vmem:[#allocation19 + $0x198] sm:$0xff]
        %v8585 = vld [vmem:[#allocation19 + $0x1a0] sm:$0xf]
        %v8586 = vld [vmem:[#allocation19 + $0x1a4] sm:$0xff]
        %v8587 = vld [vmem:[#allocation19 + $0x1ac] sm:$0xf]
        %v8588 = vld [vmem:[#allocation19 + $0x1b0] sm:$0xff]
        %v8589 = vld [vmem:[#allocation19 + $0x1b8] sm:$0xf]
        %v8590 = vld [vmem:[#allocation19 + $0x1bc] sm:$0xff]
        %v8591 = vld [vmem:[#allocation19 + $0x1c4] sm:$0xf]
        %v8592 = vld [vmem:[#allocation19 + $0x1c8] sm:$0xff]
        %v8593 = vld [vmem:[#allocation19 + $0x1d0] sm:$0xf]
        %v8594 = vld [vmem:[#allocation19 + $0x1d4] sm:$0xff]
        %v8595 = vld [vmem:[#allocation19 + $0x1dc] sm:$0xf]
        %v8596 = vld [vmem:[#allocation19 + $0x1e0] sm:$0xff]
        %v8597 = vld [vmem:[#allocation19 + $0x1e8] sm:$0xf]
        %v8598 = vld [vmem:[#allocation19 + $0x1ec] sm:$0xff]
        %v8599 = vld [vmem:[#allocation19 + $0x1f4] sm:$0xf]
        %v8600 = vld [vmem:[#allocation19 + $0x1f8] sm:$0xff]
        %v8601 = vld [vmem:[#allocation19 + $0x200] sm:$0xf]
        %v8602 = vld [vmem:[#allocation19 + $0x204] sm:$0xff]
        %v8603 = vld [vmem:[#allocation19 + $0x20c] sm:$0xf]
        %v8604 = vld [vmem:[#allocation19 + $0x210] sm:$0xff]
        %v8605 = vld [vmem:[#allocation19 + $0x218] sm:$0xf]
        %v8606 = vld [vmem:[#allocation19 + $0x21c] sm:$0xff]
        %v8607 = vld [vmem:[#allocation19 + $0x224] sm:$0xf]
        %v8608 = vld [vmem:[#allocation19 + $0x228] sm:$0xff]
        %v8609 = vld [vmem:[#allocation19 + $0x230] sm:$0xf]
        %v8610 = vld [vmem:[#allocation19 + $0x234] sm:$0xff]
        %v8611 = vld [vmem:[#allocation19 + $0x23c] sm:$0xf]
        %v8612 = vld [vmem:[#allocation19 + $0x240] sm:$0xff]
        %v8613 = vld [vmem:[#allocation19 + $0x248] sm:$0xf]
        %v8614 = vld [vmem:[#allocation19 + $0x24c] sm:$0xff]
        %v8615 = vld [vmem:[#allocation19 + $0x254] sm:$0xf]
        %v8616 = vld [vmem:[#allocation19 + $0x258] sm:$0xff]
        %v8617 = vld [vmem:[#allocation19 + $0x260] sm:$0xf]
        %v8618 = vld [vmem:[#allocation19 + $0x264] sm:$0xff]
        %v8619 = vld [vmem:[#allocation19 + $0x26c] sm:$0xf]
        %v8620 = vld [vmem:[#allocation19 + $0x270] sm:$0xff]
        %v8621 = vld [vmem:[#allocation19 + $0x278] sm:$0xf]
        %v8622 = vld [vmem:[#allocation19 + $0x27c] sm:$0xff]
        %v8623 = vld [vmem:[#allocation19 + $0x284] sm:$0xf]
        %v8624 = vld [vmem:[#allocation19 + $0x288] sm:$0xff]
        %v8625 = vld [vmem:[#allocation19 + $0x290] sm:$0xf]
        %v8626 = vld [vmem:[#allocation19 + $0x294] sm:$0xff]
        %v8627 = vld [vmem:[#allocation19 + $0x29c] sm:$0xf]
        %v8628 = vld [vmem:[#allocation19 + $0x2a0] sm:$0xff]
        %v8629 = vld [vmem:[#allocation19 + $0x2a8] sm:$0xf]
        %v8630 = vld [vmem:[#allocation19 + $0x2ac] sm:$0xff]
        %v8631 = vld [vmem:[#allocation19 + $0x2b4] sm:$0xf]
        %v8632 = vld [vmem:[#allocation19 + $0x2b8] sm:$0xff]
        %v8633 = vld [vmem:[#allocation19 + $0x2c0] sm:$0xf]
        %v8634 = vld [vmem:[#allocation19 + $0x2c4] sm:$0xff]
        %v8635 = vld [vmem:[#allocation19 + $0x2cc] sm:$0xf]
        %v8636 = vld [vmem:[#allocation19 + $0x2d0] sm:$0xff]
        %v8637 = vld [vmem:[#allocation19 + $0x2d8] sm:$0xf]
        %v8638 = vld [vmem:[#allocation19 + $0x2dc] sm:$0xff]
        %v8639 = vld [vmem:[#allocation19 + $0x2e4] sm:$0xf]
        %v8640 = vld [vmem:[#allocation19 + $0x2e8] sm:$0xff]
        %v8641 = vld [vmem:[#allocation19 + $0x2f0] sm:$0xf]
        %v8642 = vld [vmem:[#allocation19 + $0x2f4] sm:$0xff]
        %v8643 = vld [vmem:[#allocation19 + $0x2fc] sm:$0xf]
        %v8644 = vld [vmem:[#allocation19 + $0x300] sm:$0xff]
        %v8645 = vld [vmem:[#allocation19 + $0x308] sm:$0xf]
        %v8646 = vld [vmem:[#allocation19 + $0x30c] sm:$0xff]
        %v8647 = vld [vmem:[#allocation19 + $0x314] sm:$0xf]
        %v8648 = vld [vmem:[#allocation19 + $0x318] sm:$0xff]
        %v8649 = vld [vmem:[#allocation19 + $0x320] sm:$0xf]
        %v8650 = vld [vmem:[#allocation19 + $0x324] sm:$0xff]
        %v8651 = vld [vmem:[#allocation19 + $0x32c] sm:$0xf]
        %v8652 = vld [vmem:[#allocation19 + $0x330] sm:$0xff]
        %v8653 = vld [vmem:[#allocation19 + $0x338] sm:$0xf]
        %v8654 = vld [vmem:[#allocation19 + $0x33c] sm:$0xff]
        %v8655 = vld [vmem:[#allocation19 + $0x344] sm:$0xf]
        %v8656 = vld [vmem:[#allocation19 + $0x348] sm:$0xff]
        %v8657 = vld [vmem:[#allocation19 + $0x350] sm:$0xf]
        %v8658 = vld [vmem:[#allocation19 + $0x354] sm:$0xff]
        %v8659 = vld [vmem:[#allocation19 + $0x35c] sm:$0xf]
        %v8660 = vld [vmem:[#allocation19 + $0x360] sm:$0xff]
        %v8661 = vld [vmem:[#allocation19 + $0x368] sm:$0xf]
        %v8662 = vld [vmem:[#allocation19 + $0x36c] sm:$0xff]
        %v8663 = vld [vmem:[#allocation19 + $0x374] sm:$0xf]
        %v8664 = vld [vmem:[#allocation19 + $0x378] sm:$0xff]
        %v8665 = vld [vmem:[#allocation19 + $0x380] sm:$0xf]
        %v8666 = vld [vmem:[#allocation19 + $0x384] sm:$0xff]
        %v8667 = vld [vmem:[#allocation19 + $0x38c] sm:$0xf]
        %v8668 = vld [vmem:[#allocation19 + $0x390] sm:$0xff]
        %v8669 = vld [vmem:[#allocation19 + $0x398] sm:$0xf]
        %v8670 = vld [vmem:[#allocation19 + $0x39c] sm:$0xff]
        %v8671 = vld [vmem:[#allocation19 + $0x3a4] sm:$0xf]
        %v8672 = vld [vmem:[#allocation19 + $0x3a8] sm:$0xff]
        %v8673 = vld [vmem:[#allocation19 + $0x3b0] sm:$0xf]
        %v8674 = vld [vmem:[#allocation19 + $0x3b4] sm:$0xff]
        %v8675 = vld [vmem:[#allocation19 + $0x3bc] sm:$0xf]
        %v8676 = vld [vmem:[#allocation19 + $0x3c0] sm:$0xff]
        %v8677 = vld [vmem:[#allocation19 + $0x3c8] sm:$0xf]
        %v8678 = vld [vmem:[#allocation19 + $0x3cc] sm:$0xff]
        %v8679 = vld [vmem:[#allocation19 + $0x3d4] sm:$0xf]
        %v8680 = vld [vmem:[#allocation19 + $0x3d8] sm:$0xff]
        %v8681 = vld [vmem:[#allocation19 + $0x3e0] sm:$0xf]
        %v8682 = vld [vmem:[#allocation19 + $0x3e4] sm:$0xff]
        %v8683 = vld [vmem:[#allocation19 + $0x3ec] sm:$0xf]
        %v8684 = vld [vmem:[#allocation19 + $0x3f0] sm:$0xff]
        %v8685 = vld [vmem:[#allocation19 + $0x3f8] sm:$0xf]
        %v8686 = vld [vmem:[#allocation19 + $0x3fc] sm:$0xff]
        %v8687 = vld [vmem:[#allocation19 + $0x404] sm:$0xf]
        %v8688 = vld [vmem:[#allocation19 + $0x408] sm:$0xff]
        %v8689 = vld [vmem:[#allocation19 + $0x410] sm:$0xf]
        %v8690 = vld [vmem:[#allocation19 + $0x414] sm:$0xff]
        %v8691 = vld [vmem:[#allocation19 + $0x41c] sm:$0xf]
        %v8692 = vld [vmem:[#allocation19 + $0x420] sm:$0xff]
        %v8693 = vld [vmem:[#allocation19 + $0x428] sm:$0xf]
        %v8694 = vld [vmem:[#allocation19 + $0x42c] sm:$0xff]
        %v8695 = vld [vmem:[#allocation19 + $0x434] sm:$0xf]
        %v8696 = vld [vmem:[#allocation19 + $0x438] sm:$0xff]
        %v8697 = vld [vmem:[#allocation19 + $0x440] sm:$0xf]
        %v8698 = vld [vmem:[#allocation19 + $0x444] sm:$0xff]
        %v8699 = vld [vmem:[#allocation19 + $0x44c] sm:$0xf]
        %v8700 = vld [vmem:[#allocation19 + $0x450] sm:$0xff]
        %v8701 = vld [vmem:[#allocation19 + $0x458] sm:$0xf]
        %v8702 = vld [vmem:[#allocation19 + $0x45c] sm:$0xff]
        %v8703 = vld [vmem:[#allocation19 + $0x464] sm:$0xf]
        %v8704 = vld [vmem:[#allocation19 + $0x468] sm:$0xff]
        %v8705 = vld [vmem:[#allocation19 + $0x470] sm:$0xf]
        %v8706 = vld [vmem:[#allocation19 + $0x474] sm:$0xff]
        %v8707 = vld [vmem:[#allocation19 + $0x47c] sm:$0xf]
        %v8708 = vld [vmem:[#allocation19 + $0x480] sm:$0xff]
        %v8709 = vld [vmem:[#allocation19 + $0x488] sm:$0xf]
        %v8710 = vld [vmem:[#allocation19 + $0x48c] sm:$0xff]
        %v8711 = vld [vmem:[#allocation19 + $0x494] sm:$0xf]
        %v8712 = vld [vmem:[#allocation19 + $0x498] sm:$0xff]
        %v8713 = vld [vmem:[#allocation19 + $0x4a0] sm:$0xf]
        %v8714 = vld [vmem:[#allocation19 + $0x4a4] sm:$0xff]
        %v8715 = vld [vmem:[#allocation19 + $0x4ac] sm:$0xf]
        %v8716 = vld [vmem:[#allocation19 + $0x4b0] sm:$0xff]
        %v8717 = vld [vmem:[#allocation19 + $0x4b8] sm:$0xf]
        %v8718 = vld [vmem:[#allocation19 + $0x4bc] sm:$0xff]
        %v8719 = vld [vmem:[#allocation19 + $0x4c4] sm:$0xf]
        %v8720 = vld [vmem:[#allocation19 + $0x4c8] sm:$0xff]
        %v8721 = vld [vmem:[#allocation19 + $0x4d0] sm:$0xf]
        %v8722 = vld [vmem:[#allocation19 + $0x4d4] sm:$0xff]
        %v8723 = vld [vmem:[#allocation19 + $0x4dc] sm:$0xf]
        %v8724 = vld [vmem:[#allocation19 + $0x4e0] sm:$0xff]
        %v8725 = vld [vmem:[#allocation19 + $0x4e8] sm:$0xf]
        %v8726 = vld [vmem:[#allocation19 + $0x4ec] sm:$0xff]
        %v8727 = vld [vmem:[#allocation19 + $0x4f4] sm:$0xf]
        %v8728 = vld [vmem:[#allocation19 + $0x4f8] sm:$0xff]
        %v8729 = vld [vmem:[#allocation19 + $0x500] sm:$0xf]
        %v8730 = vld [vmem:[#allocation19 + $0x504] sm:$0xff]
        %v8731 = vld [vmem:[#allocation19 + $0x50c] sm:$0xf]
        %v8732 = vld [vmem:[#allocation19 + $0x510] sm:$0xff]
        %v8733 = vld [vmem:[#allocation19 + $0x518] sm:$0xf]
        %v8734 = vld [vmem:[#allocation19 + $0x51c] sm:$0xff]
        %v8735 = vld [vmem:[#allocation19 + $0x524] sm:$0xf]
        %v8736 = vld [vmem:[#allocation19 + $0x528] sm:$0xff]
        %v8737 = vld [vmem:[#allocation19 + $0x530] sm:$0xf]
        %v8738 = vld [vmem:[#allocation19 + $0x534] sm:$0xff]
        %v8739 = vld [vmem:[#allocation19 + $0x53c] sm:$0xf]
        %v8740 = vld [vmem:[#allocation19 + $0x540] sm:$0xff]
        %v8741 = vld [vmem:[#allocation19 + $0x548] sm:$0xf]
        %v8742 = vld [vmem:[#allocation19 + $0x54c] sm:$0xff]
        %v8743 = vld [vmem:[#allocation19 + $0x554] sm:$0xf]
        %v8744 = vld [vmem:[#allocation19 + $0x558] sm:$0xff]
        %v8745 = vld [vmem:[#allocation19 + $0x560] sm:$0xf]
        %v8746 = vld [vmem:[#allocation19 + $0x564] sm:$0xff]
        %v8747 = vld [vmem:[#allocation19 + $0x56c] sm:$0xf]
        %v8748 = vld [vmem:[#allocation19 + $0x570] sm:$0xff]
        %v8749 = vld [vmem:[#allocation19 + $0x578] sm:$0xf]
        %v8750 = vld [vmem:[#allocation19 + $0x57c] sm:$0xff]
        %v8751 = vld [vmem:[#allocation19 + $0x584] sm:$0xf]
        %v8752 = vld [vmem:[#allocation19 + $0x588] sm:$0xff]
        %v8753 = vld [vmem:[#allocation19 + $0x590] sm:$0xf]
        %v8754 = vld [vmem:[#allocation19 + $0x594] sm:$0xff]
        %v8755 = vld [vmem:[#allocation19 + $0x59c] sm:$0xf]
        %v8756 = vld [vmem:[#allocation19 + $0x5a0] sm:$0xff]
        %v8757 = vld [vmem:[#allocation19 + $0x5a8] sm:$0xf]
        %v8758 = vld [vmem:[#allocation19 + $0x5ac] sm:$0xff]
        %v8759 = vld [vmem:[#allocation19 + $0x5b4] sm:$0xf]
        %v8760 = vld [vmem:[#allocation19 + $0x5b8] sm:$0xff]
        %v8761 = vld [vmem:[#allocation19 + $0x5c0] sm:$0xf]
        %v8762 = vld [vmem:[#allocation19 + $0x5c4] sm:$0xff]
        %v8763 = vld [vmem:[#allocation19 + $0x5cc] sm:$0xf]
        %v8764 = vld [vmem:[#allocation19 + $0x5d0] sm:$0xff]
        %v8765 = vld [vmem:[#allocation19 + $0x5d8] sm:$0xf]
        %v8766 = vld [vmem:[#allocation19 + $0x5dc] sm:$0xff]
        %v8767 = vld [vmem:[#allocation19 + $0x5e4] sm:$0xf]
        %v8768 = vld [vmem:[#allocation19 + $0x5e8] sm:$0xff]
        %v8769 = vld [vmem:[#allocation19 + $0x5f0] sm:$0xf]
        %v8770 = vld [vmem:[#allocation19 + $0x5f4] sm:$0xff]
        %v8771 = vld [vmem:[#allocation19 + $0x5fc] sm:$0xf]
        %v8772 = vld [vmem:[#allocation19 + $0x600] sm:$0xff]
        %v8773 = vld [vmem:[#allocation19 + $0x608] sm:$0xf]
        %v8774 = vld [vmem:[#allocation19 + $0x60c] sm:$0xff]
        %v8775 = vld [vmem:[#allocation19 + $0x614] sm:$0xf]
        %v8776 = vld [vmem:[#allocation19 + $0x618] sm:$0xff]
        %v8777 = vld [vmem:[#allocation19 + $0x620] sm:$0xf]
        %v8778 = vld [vmem:[#allocation19 + $0x624] sm:$0xff]
        %v8779 = vld [vmem:[#allocation19 + $0x62c] sm:$0xf]
        %v8780 = vld [vmem:[#allocation19 + $0x630] sm:$0xff]
        %v8781 = vld [vmem:[#allocation19 + $0x638] sm:$0xf]
        %v8782 = vld [vmem:[#allocation19 + $0x63c] sm:$0xff]
        %v8783 = vld [vmem:[#allocation19 + $0x644] sm:$0xf]
        %v8784 = vld [vmem:[#allocation19 + $0x648] sm:$0xff]
        %v8785 = vld [vmem:[#allocation19 + $0x650] sm:$0xf]
        %v8786 = vld [vmem:[#allocation19 + $0x654] sm:$0xff]
        %v8787 = vld [vmem:[#allocation19 + $0x65c] sm:$0xf]
        %v8788 = vld [vmem:[#allocation19 + $0x660] sm:$0xff]
        %v8789 = vld [vmem:[#allocation19 + $0x668] sm:$0xf]
        %v8790 = vld [vmem:[#allocation19 + $0x66c] sm:$0xff]
        %v8791 = vld [vmem:[#allocation19 + $0x674] sm:$0xf]
        %v8792 = vld [vmem:[#allocation19 + $0x678] sm:$0xff]
        %v8793 = vld [vmem:[#allocation19 + $0x680] sm:$0xf]
        %v8794 = vld [vmem:[#allocation19 + $0x684] sm:$0xff]
        %v8795 = vld [vmem:[#allocation19 + $0x68c] sm:$0xf]
        %v8796 = vld [vmem:[#allocation19 + $0x690] sm:$0xff]
        %v8797 = vld [vmem:[#allocation19 + $0x698] sm:$0xf]
        %v8798 = vld [vmem:[#allocation19 + $0x69c] sm:$0xff]
        %v8799 = vld [vmem:[#allocation19 + $0x6a4] sm:$0xf]
        %v8800 = vld [vmem:[#allocation19 + $0x6a8] sm:$0xff]
        %v8801 = vld [vmem:[#allocation19 + $0x6b0] sm:$0xf]
        %v8802 = vld [vmem:[#allocation19 + $0x6b4] sm:$0xff]
        %v8803 = vld [vmem:[#allocation19 + $0x6bc] sm:$0xf]
        %v8804 = vld [vmem:[#allocation19 + $0x6c0] sm:$0xff]
        %v8805 = vld [vmem:[#allocation19 + $0x6c8] sm:$0xf]
        %v8806 = vld [vmem:[#allocation19 + $0x6cc] sm:$0xff]
        %v8807 = vld [vmem:[#allocation19 + $0x6d4] sm:$0xf]
        %v8808 = vld [vmem:[#allocation19 + $0x6d8] sm:$0xff]
        %v8809 = vld [vmem:[#allocation19 + $0x6e0] sm:$0xf]
        %v8810 = vld [vmem:[#allocation19 + $0x6e4] sm:$0xff]
        %v8811 = vld [vmem:[#allocation19 + $0x6ec] sm:$0xf]
        %v8812 = vld [vmem:[#allocation19 + $0x6f0] sm:$0xff]
        %v8813 = vld [vmem:[#allocation19 + $0x6f8] sm:$0xf]
        %v8814 = vld [vmem:[#allocation19 + $0x6fc] sm:$0xff]
        %v8815 = vld [vmem:[#allocation19 + $0x704] sm:$0xf]
        %v8816 = vld [vmem:[#allocation19 + $0x708] sm:$0xff]
        %v8817 = vld [vmem:[#allocation19 + $0x710] sm:$0xf]
        %v8818 = vld [vmem:[#allocation19 + $0x714] sm:$0xff]
        %v8819 = vld [vmem:[#allocation19 + $0x71c] sm:$0xf]
        %v8820 = vld [vmem:[#allocation19 + $0x720] sm:$0xff]
        %v8821 = vld [vmem:[#allocation19 + $0x728] sm:$0xf]
        %v8822 = vld [vmem:[#allocation19 + $0x72c] sm:$0xff]
        %v8823 = vld [vmem:[#allocation19 + $0x734] sm:$0xf]
        %v8824 = vld [vmem:[#allocation19 + $0x738] sm:$0xff]
        %v8825 = vld [vmem:[#allocation19 + $0x740] sm:$0xf]
        %v8826 = vld [vmem:[#allocation19 + $0x744] sm:$0xff]
        %v8827 = vld [vmem:[#allocation19 + $0x74c] sm:$0xf]
        %v8828 = vld [vmem:[#allocation19 + $0x750] sm:$0xff]
        %v8829 = vld [vmem:[#allocation19 + $0x758] sm:$0xf]
        %v8830 = vld [vmem:[#allocation19 + $0x75c] sm:$0xff]
        %v8831 = vld [vmem:[#allocation19 + $0x764] sm:$0xf]
        %v8832 = vld [vmem:[#allocation19 + $0x768] sm:$0xff]
        %v8833 = vld [vmem:[#allocation19 + $0x770] sm:$0xf]
        %v8834 = vld [vmem:[#allocation19 + $0x774] sm:$0xff]
        %v8835 = vld [vmem:[#allocation19 + $0x77c] sm:$0xf]
        %v8836 = vld [vmem:[#allocation19 + $0x780] sm:$0xff]
        %v8837 = vld [vmem:[#allocation19 + $0x788] sm:$0xf]
        %v8838 = vld [vmem:[#allocation19 + $0x78c] sm:$0xff]
        %v8839 = vld [vmem:[#allocation19 + $0x794] sm:$0xf]
        %v8840 = vld [vmem:[#allocation19 + $0x798] sm:$0xff]
        %v8841 = vld [vmem:[#allocation19 + $0x7a0] sm:$0xf]
        %v8842 = vld [vmem:[#allocation19 + $0x7a4] sm:$0xff]
        %v8843 = vld [vmem:[#allocation19 + $0x7ac] sm:$0xf]
        %v8844 = vld [vmem:[#allocation19 + $0x7b0] sm:$0xff]
        %v8845 = vld [vmem:[#allocation19 + $0x7b8] sm:$0xf]
        %v8846 = vld [vmem:[#allocation19 + $0x7bc] sm:$0xff]
        %v8847 = vld [vmem:[#allocation19 + $0x7c4] sm:$0xf]
        %v8848 = vld [vmem:[#allocation19 + $0x7c8] sm:$0xff]
        %v8849 = vld [vmem:[#allocation19 + $0x7d0] sm:$0xf]
        %v8850 = vld [vmem:[#allocation19 + $0x7d4] sm:$0xff]
        %v8851 = vld [vmem:[#allocation19 + $0x7dc] sm:$0xf]
        %v8852 = vld [vmem:[#allocation19 + $0x7e0] sm:$0xff]
        %v8853 = vld [vmem:[#allocation19 + $0x7e8] sm:$0xf]
        %v8854 = vld [vmem:[#allocation19 + $0x7ec] sm:$0xff]
        %v8855 = vld [vmem:[#allocation19 + $0x7f4] sm:$0xf]
        %v8856 = vld [vmem:[#allocation19 + $0x7f8] sm:$0xff]
        %v8857 = vld [vmem:[#allocation19 + $0x800] sm:$0xf]
        %v8858 = vld [vmem:[#allocation19 + $0x804] sm:$0xff]
        %v8859 = vld [vmem:[#allocation19 + $0x80c] sm:$0xf]
        %v8860 = vld [vmem:[#allocation19 + $0x810] sm:$0xff]
        %v8861 = vld [vmem:[#allocation19 + $0x818] sm:$0xf]
        %v8862 = vld [vmem:[#allocation19 + $0x81c] sm:$0xff]
        %v8863 = vld [vmem:[#allocation19 + $0x824] sm:$0xf]
        %v8864 = vld [vmem:[#allocation19 + $0x828] sm:$0xff]
        %v8865 = vld [vmem:[#allocation19 + $0x830] sm:$0xf]
        %v8866 = vld [vmem:[#allocation19 + $0x834] sm:$0xff]
        %v8867 = vld [vmem:[#allocation19 + $0x83c] sm:$0xf]
        %v8868 = vld [vmem:[#allocation19 + $0x840] sm:$0xff]
        %v8869 = vld [vmem:[#allocation19 + $0x848] sm:$0xf]
        %v8870 = vld [vmem:[#allocation19 + $0x84c] sm:$0xff]
        %v8871 = vld [vmem:[#allocation19 + $0x854] sm:$0xf]
        %v8872 = vld [vmem:[#allocation19 + $0x858] sm:$0xff]
        %v8873 = vld [vmem:[#allocation19 + $0x860] sm:$0xf]
        %v8874 = vld [vmem:[#allocation19 + $0x864] sm:$0xff]
        %v8875 = vld [vmem:[#allocation19 + $0x86c] sm:$0xf]
        %v8876 = vld [vmem:[#allocation19 + $0x870] sm:$0xff]
        %v8877 = vld [vmem:[#allocation19 + $0x878] sm:$0xf]
        %v8878 = vld [vmem:[#allocation19 + $0x87c] sm:$0xff]
        %v8879 = vld [vmem:[#allocation19 + $0x884] sm:$0xf]
        %v8880 = vld [vmem:[#allocation19 + $0x888] sm:$0xff]
        %v8881 = vld [vmem:[#allocation19 + $0x890] sm:$0xf]
        %v8882 = vld [vmem:[#allocation19 + $0x894] sm:$0xff]
        %v8883 = vld [vmem:[#allocation19 + $0x89c] sm:$0xf]
        %v8884 = vld [vmem:[#allocation19 + $0x8a0] sm:$0xff]
        %v8885 = vld [vmem:[#allocation19 + $0x8a8] sm:$0xf]
        %v8886 = vld [vmem:[#allocation19 + $0x8ac] sm:$0xff]
        %v8887 = vld [vmem:[#allocation19 + $0x8b4] sm:$0xf]
        %v8888 = vld [vmem:[#allocation19 + $0x8b8] sm:$0xff]
        %v8889 = vld [vmem:[#allocation19 + $0x8c0] sm:$0xf]
        %v8890 = vld [vmem:[#allocation19 + $0x8c4] sm:$0xff]
        %v8891 = vld [vmem:[#allocation19 + $0x8cc] sm:$0xf]
        %v8892 = vld [vmem:[#allocation19 + $0x8d0] sm:$0xff]
        %v8893 = vld [vmem:[#allocation19 + $0x8d8] sm:$0xf]
        %v8894 = vld [vmem:[#allocation19 + $0x8dc] sm:$0xff]
        %v8895 = vld [vmem:[#allocation19 + $0x8e4] sm:$0xf]
        %v8896 = vld [vmem:[#allocation19 + $0x8e8] sm:$0xff]
        %v8897 = vld [vmem:[#allocation19 + $0x8f0] sm:$0xf]
        %v8898 = vld [vmem:[#allocation19 + $0x8f4] sm:$0xff]
        %v8899 = vld [vmem:[#allocation19 + $0x8fc] sm:$0xf]
        %v8900 = vld [vmem:[#allocation20] sm:$0x7]
        %v8902 = vlaneseq
        %v8903 = vshrl.u32 %v8902, 7
        %v8904 = vsub.s32 0, %v8903
        %v8905 = vrot.slane %v8900, %v8904
        %v8906 = vlaneseq
        %v8907 = vshrl.u32 %v8906, 7
        %v8908 = vsub.s32 1, %v8907
        %v8909 = vrot.slane %v8900, %v8908
        %v8910 = vlaneseq
        %v8911 = vshrl.u32 %v8910, 7
        %v8912 = vsub.s32 2, %v8911
        %v8913 = vrot.slane %v8900, %v8912
        %v9301 = vunpack.c.l.b16 %v8516
        %v9302 = vunpack.c.h.b16 %v8516
        %v9303 = vunpack.c.l.b16 %v8517
        %v9304 = vunpack.c.l.b16 %v8518
        %v9305 = vunpack.c.h.b16 %v8518
        %v9306 = vunpack.c.l.b16 %v8519
        %v9307 = vunpack.c.l.b16 %v8520
        %v9308 = vunpack.c.h.b16 %v8520
        %v9309 = vunpack.c.l.b16 %v8521
        %v9310 = vunpack.c.l.b16 %v8522
        %v9311 = vunpack.c.h.b16 %v8522
        %v9312 = vunpack.c.l.b16 %v8523
        %v9313 = vunpack.c.l.b16 %v8524
        %v9314 = vunpack.c.h.b16 %v8524
        %v9315 = vunpack.c.l.b16 %v8525
        %v9316 = vunpack.c.l.b16 %v8526
        %v9317 = vunpack.c.h.b16 %v8526
        %v9318 = vunpack.c.l.b16 %v8527
        %v9319 = vunpack.c.l.b16 %v8528
        %v9320 = vunpack.c.h.b16 %v8528
        %v9321 = vunpack.c.l.b16 %v8529
        %v9322 = vunpack.c.l.b16 %v8530
        %v9323 = vunpack.c.h.b16 %v8530
        %v9324 = vunpack.c.l.b16 %v8531
        %v9325 = vunpack.c.l.b16 %v8532
        %v9326 = vunpack.c.h.b16 %v8532
        %v9327 = vunpack.c.l.b16 %v8533
        %v9328 = vunpack.c.l.b16 %v8534
        %v9329 = vunpack.c.h.b16 %v8534
        %v9330 = vunpack.c.l.b16 %v8535
        %v9331 = vunpack.c.l.b16 %v8536
        %v9332 = vunpack.c.h.b16 %v8536
        %v9333 = vunpack.c.l.b16 %v8537
        %v9334 = vunpack.c.l.b16 %v8538
        %v9335 = vunpack.c.h.b16 %v8538
        %v9336 = vunpack.c.l.b16 %v8539
        %v9337 = vunpack.c.l.b16 %v8540
        %v9338 = vunpack.c.h.b16 %v8540
        %v9339 = vunpack.c.l.b16 %v8541
        %v9340 = vunpack.c.l.b16 %v8542
        %v9341 = vunpack.c.h.b16 %v8542
        %v9342 = vunpack.c.l.b16 %v8543
        %v9343 = vunpack.c.l.b16 %v8544
        %v9344 = vunpack.c.h.b16 %v8544
        %v9345 = vunpack.c.l.b16 %v8545
        %v9346 = vunpack.c.l.b16 %v8546
        %v9347 = vunpack.c.h.b16 %v8546
        %v9348 = vunpack.c.l.b16 %v8547
        %v9349 = vunpack.c.l.b16 %v8548
        %v9350 = vunpack.c.h.b16 %v8548
        %v9351 = vunpack.c.l.b16 %v8549
        %v9352 = vunpack.c.l.b16 %v8550
        %v9353 = vunpack.c.h.b16 %v8550
        %v9354 = vunpack.c.l.b16 %v8551
        %v9355 = vunpack.c.l.b16 %v8552
        %v9356 = vunpack.c.h.b16 %v8552
        %v9357 = vunpack.c.l.b16 %v8553
        %v9358 = vunpack.c.l.b16 %v8554
        %v9359 = vunpack.c.h.b16 %v8554
        %v9360 = vunpack.c.l.b16 %v8555
        %v9361 = vunpack.c.l.b16 %v8556
        %v9362 = vunpack.c.h.b16 %v8556
        %v9363 = vunpack.c.l.b16 %v8557
        %v9364 = vunpack.c.l.b16 %v8558
        %v9365 = vunpack.c.h.b16 %v8558
        %v9366 = vunpack.c.l.b16 %v8559
        %v9367 = vunpack.c.l.b16 %v8560
        %v9368 = vunpack.c.h.b16 %v8560
        %v9369 = vunpack.c.l.b16 %v8561
        %v9370 = vunpack.c.l.b16 %v8562
        %v9371 = vunpack.c.h.b16 %v8562
        %v9372 = vunpack.c.l.b16 %v8563
        %v9373 = vunpack.c.l.b16 %v8564
        %v9374 = vunpack.c.h.b16 %v8564
        %v9375 = vunpack.c.l.b16 %v8565
        %v9376 = vunpack.c.l.b16 %v8566
        %v9377 = vunpack.c.h.b16 %v8566
        %v9378 = vunpack.c.l.b16 %v8567
        %v9379 = vunpack.c.l.b16 %v8568
        %v9380 = vunpack.c.h.b16 %v8568
        %v9381 = vunpack.c.l.b16 %v8569
        %v9382 = vunpack.c.l.b16 %v8570
        %v9383 = vunpack.c.h.b16 %v8570
        %v9384 = vunpack.c.l.b16 %v8571
        %v9385 = vunpack.c.l.b16 %v8572
        %v9386 = vunpack.c.h.b16 %v8572
        %v9387 = vunpack.c.l.b16 %v8573
        %v9388 = vunpack.c.l.b16 %v8574
        %v9389 = vunpack.c.h.b16 %v8574
        %v9390 = vunpack.c.l.b16 %v8575
        %v9391 = vunpack.c.l.b16 %v8576
        %v9392 = vunpack.c.h.b16 %v8576
        %v9393 = vunpack.c.l.b16 %v8577
        %v9394 = vunpack.c.l.b16 %v8578
        %v9395 = vunpack.c.h.b16 %v8578
        %v9396 = vunpack.c.l.b16 %v8579
        %v9397 = vunpack.c.l.b16 %v8580
        %v9398 = vunpack.c.h.b16 %v8580
        %v9399 = vunpack.c.l.b16 %v8581
        %v9400 = vunpack.c.l.b16 %v8582
        %v9401 = vunpack.c.h.b16 %v8582
        %v9402 = vunpack.c.l.b16 %v8583
        %v9403 = vunpack.c.l.b16 %v8584
        %v9404 = vunpack.c.h.b16 %v8584
        %v9405 = vunpack.c.l.b16 %v8585
        %v9406 = vunpack.c.l.b16 %v8586
        %v9407 = vunpack.c.h.b16 %v8586
        %v9408 = vunpack.c.l.b16 %v8587
        %v9409 = vunpack.c.l.b16 %v8588
        %v9410 = vunpack.c.h.b16 %v8588
        %v9411 = vunpack.c.l.b16 %v8589
        %v9412 = vunpack.c.l.b16 %v8590
        %v9413 = vunpack.c.h.b16 %v8590
        %v9414 = vunpack.c.l.b16 %v8591
        %v9415 = vunpack.c.l.b16 %v8592
        %v9416 = vunpack.c.h.b16 %v8592
        %v9417 = vunpack.c.l.b16 %v8593
        %v9418 = vunpack.c.l.b16 %v8594
        %v9419 = vunpack.c.h.b16 %v8594
        %v9420 = vunpack.c.l.b16 %v8595
        %v9421 = vunpack.c.l.b16 %v8596
        %v9422 = vunpack.c.h.b16 %v8596
        %v9423 = vunpack.c.l.b16 %v8597
        %v9424 = vunpack.c.l.b16 %v8598
        %v9425 = vunpack.c.h.b16 %v8598
        %v9426 = vunpack.c.l.b16 %v8599
        %v9427 = vunpack.c.l.b16 %v8600
        %v9428 = vunpack.c.h.b16 %v8600
        %v9429 = vunpack.c.l.b16 %v8601
        %v9430 = vunpack.c.l.b16 %v8602
        %v9431 = vunpack.c.h.b16 %v8602
        %v9432 = vunpack.c.l.b16 %v8603
        %v9433 = vunpack.c.l.b16 %v8604
        %v9434 = vunpack.c.h.b16 %v8604
        %v9435 = vunpack.c.l.b16 %v8605
        %v9436 = vunpack.c.l.b16 %v8606
        %v9437 = vunpack.c.h.b16 %v8606
        %v9438 = vunpack.c.l.b16 %v8607
        %v9439 = vunpack.c.l.b16 %v8608
        %v9440 = vunpack.c.h.b16 %v8608
        %v9441 = vunpack.c.l.b16 %v8609
        %v9442 = vunpack.c.l.b16 %v8610
        %v9443 = vunpack.c.h.b16 %v8610
        %v9444 = vunpack.c.l.b16 %v8611
        %v9445 = vunpack.c.l.b16 %v8612
        %v9446 = vunpack.c.h.b16 %v8612
        %v9447 = vunpack.c.l.b16 %v8613
        %v9448 = vunpack.c.l.b16 %v8614
        %v9449 = vunpack.c.h.b16 %v8614
        %v9450 = vunpack.c.l.b16 %v8615
        %v9451 = vunpack.c.l.b16 %v8616
        %v9452 = vunpack.c.h.b16 %v8616
        %v9453 = vunpack.c.l.b16 %v8617
        %v9454 = vunpack.c.l.b16 %v8618
        %v9455 = vunpack.c.h.b16 %v8618
        %v9456 = vunpack.c.l.b16 %v8619
        %v9457 = vunpack.c.l.b16 %v8620
        %v9458 = vunpack.c.h.b16 %v8620
        %v9459 = vunpack.c.l.b16 %v8621
        %v9460 = vunpack.c.l.b16 %v8622
        %v9461 = vunpack.c.h.b16 %v8622
        %v9462 = vunpack.c.l.b16 %v8623
        %v9463 = vunpack.c.l.b16 %v8624
        %v9464 = vunpack.c.h.b16 %v8624
        %v9465 = vunpack.c.l.b16 %v8625
        %v9466 = vunpack.c.l.b16 %v8626
        %v9467 = vunpack.c.h.b16 %v8626
        %v9468 = vunpack.c.l.b16 %v8627
        %v9469 = vunpack.c.l.b16 %v8628
        %v9470 = vunpack.c.h.b16 %v8628
        %v9471 = vunpack.c.l.b16 %v8629
        %v9472 = vunpack.c.l.b16 %v8630
        %v9473 = vunpack.c.h.b16 %v8630
        %v9474 = vunpack.c.l.b16 %v8631
        %v9475 = vunpack.c.l.b16 %v8632
        %v9476 = vunpack.c.h.b16 %v8632
        %v9477 = vunpack.c.l.b16 %v8633
        %v9478 = vunpack.c.l.b16 %v8634
        %v9479 = vunpack.c.h.b16 %v8634
        %v9480 = vunpack.c.l.b16 %v8635
        %v9481 = vunpack.c.l.b16 %v8636
        %v9482 = vunpack.c.h.b16 %v8636
        %v9483 = vunpack.c.l.b16 %v8637
        %v9484 = vunpack.c.l.b16 %v8638
        %v9485 = vunpack.c.h.b16 %v8638
        %v9486 = vunpack.c.l.b16 %v8639
        %v9487 = vunpack.c.l.b16 %v8640
        %v9488 = vunpack.c.h.b16 %v8640
        %v9489 = vunpack.c.l.b16 %v8641
        %v9490 = vunpack.c.l.b16 %v8642
        %v9491 = vunpack.c.h.b16 %v8642
        %v9492 = vunpack.c.l.b16 %v8643
        %v9493 = vunpack.c.l.b16 %v8644
        %v9494 = vunpack.c.h.b16 %v8644
        %v9495 = vunpack.c.l.b16 %v8645
        %v9496 = vunpack.c.l.b16 %v8646
        %v9497 = vunpack.c.h.b16 %v8646
        %v9498 = vunpack.c.l.b16 %v8647
        %v9499 = vunpack.c.l.b16 %v8648
        %v9500 = vunpack.c.h.b16 %v8648
        %v9501 = vunpack.c.l.b16 %v8649
        %v9502 = vunpack.c.l.b16 %v8650
        %v9503 = vunpack.c.h.b16 %v8650
        %v9504 = vunpack.c.l.b16 %v8651
        %v9505 = vunpack.c.l.b16 %v8652
        %v9506 = vunpack.c.h.b16 %v8652
        %v9507 = vunpack.c.l.b16 %v8653
        %v9508 = vunpack.c.l.b16 %v8654
        %v9509 = vunpack.c.h.b16 %v8654
        %v9510 = vunpack.c.l.b16 %v8655
        %v9511 = vunpack.c.l.b16 %v8656
        %v9512 = vunpack.c.h.b16 %v8656
        %v9513 = vunpack.c.l.b16 %v8657
        %v9514 = vunpack.c.l.b16 %v8658
        %v9515 = vunpack.c.h.b16 %v8658
        %v9516 = vunpack.c.l.b16 %v8659
        %v9517 = vunpack.c.l.b16 %v8660
        %v9518 = vunpack.c.h.b16 %v8660
        %v9519 = vunpack.c.l.b16 %v8661
        %v9520 = vunpack.c.l.b16 %v8662
        %v9521 = vunpack.c.h.b16 %v8662
        %v9522 = vunpack.c.l.b16 %v8663
        %v9523 = vunpack.c.l.b16 %v8664
        %v9524 = vunpack.c.h.b16 %v8664
        %v9525 = vunpack.c.l.b16 %v8665
        %v9526 = vunpack.c.l.b16 %v8666
        %v9527 = vunpack.c.h.b16 %v8666
        %v9528 = vunpack.c.l.b16 %v8667
        %v9529 = vunpack.c.l.b16 %v8668
        %v9530 = vunpack.c.h.b16 %v8668
        %v9531 = vunpack.c.l.b16 %v8669
        %v9532 = vunpack.c.l.b16 %v8670
        %v9533 = vunpack.c.h.b16 %v8670
        %v9534 = vunpack.c.l.b16 %v8671
        %v9535 = vunpack.c.l.b16 %v8672
        %v9536 = vunpack.c.h.b16 %v8672
        %v9537 = vunpack.c.l.b16 %v8673
        %v9538 = vunpack.c.l.b16 %v8674
        %v9539 = vunpack.c.h.b16 %v8674
        %v9540 = vunpack.c.l.b16 %v8675
        %v9541 = vunpack.c.l.b16 %v8676
        %v9542 = vunpack.c.h.b16 %v8676
        %v9543 = vunpack.c.l.b16 %v8677
        %v9544 = vunpack.c.l.b16 %v8678
        %v9545 = vunpack.c.h.b16 %v8678
        %v9546 = vunpack.c.l.b16 %v8679
        %v9547 = vunpack.c.l.b16 %v8680
        %v9548 = vunpack.c.h.b16 %v8680
        %v9549 = vunpack.c.l.b16 %v8681
        %v9550 = vunpack.c.l.b16 %v8682
        %v9551 = vunpack.c.h.b16 %v8682
        %v9552 = vunpack.c.l.b16 %v8683
        %v9553 = vunpack.c.l.b16 %v8684
        %v9554 = vunpack.c.h.b16 %v8684
        %v9555 = vunpack.c.l.b16 %v8685
        %v9556 = vunpack.c.l.b16 %v8686
        %v9557 = vunpack.c.h.b16 %v8686
        %v9558 = vunpack.c.l.b16 %v8687
        %v9559 = vunpack.c.l.b16 %v8688
        %v9560 = vunpack.c.h.b16 %v8688
        %v9561 = vunpack.c.l.b16 %v8689
        %v9562 = vunpack.c.l.b16 %v8690
        %v9563 = vunpack.c.h.b16 %v8690
        %v9564 = vunpack.c.l.b16 %v8691
        %v9565 = vunpack.c.l.b16 %v8692
        %v9566 = vunpack.c.h.b16 %v8692
        %v9567 = vunpack.c.l.b16 %v8693
        %v9568 = vunpack.c.l.b16 %v8694
        %v9569 = vunpack.c.h.b16 %v8694
        %v9570 = vunpack.c.l.b16 %v8695
        %v9571 = vunpack.c.l.b16 %v8696
        %v9572 = vunpack.c.h.b16 %v8696
        %v9573 = vunpack.c.l.b16 %v8697
        %v9574 = vunpack.c.l.b16 %v8698
        %v9575 = vunpack.c.h.b16 %v8698
        %v9576 = vunpack.c.l.b16 %v8699
        %v9577 = vunpack.c.l.b16 %v8700
        %v9578 = vunpack.c.h.b16 %v8700
        %v9579 = vunpack.c.l.b16 %v8701
        %v9580 = vunpack.c.l.b16 %v8702
        %v9581 = vunpack.c.h.b16 %v8702
        %v9582 = vunpack.c.l.b16 %v8703
        %v9583 = vunpack.c.l.b16 %v8704
        %v9584 = vunpack.c.h.b16 %v8704
        %v9585 = vunpack.c.l.b16 %v8705
        %v9586 = vunpack.c.l.b16 %v8706
        %v9587 = vunpack.c.h.b16 %v8706
        %v9588 = vunpack.c.l.b16 %v8707
        %v9589 = vunpack.c.l.b16 %v8708
        %v9590 = vunpack.c.h.b16 %v8708
        %v9591 = vunpack.c.l.b16 %v8709
        %v9592 = vunpack.c.l.b16 %v8710
        %v9593 = vunpack.c.h.b16 %v8710
        %v9594 = vunpack.c.l.b16 %v8711
        %v9595 = vunpack.c.l.b16 %v8712
        %v9596 = vunpack.c.h.b16 %v8712
        %v9597 = vunpack.c.l.b16 %v8713
        %v9598 = vunpack.c.l.b16 %v8714
        %v9599 = vunpack.c.h.b16 %v8714
        %v9600 = vunpack.c.l.b16 %v8715
        %v9601 = vunpack.c.l.b16 %v8716
        %v9602 = vunpack.c.h.b16 %v8716
        %v9603 = vunpack.c.l.b16 %v8717
        %v9604 = vunpack.c.l.b16 %v8718
        %v9605 = vunpack.c.h.b16 %v8718
        %v9606 = vunpack.c.l.b16 %v8719
        %v9607 = vunpack.c.l.b16 %v8720
        %v9608 = vunpack.c.h.b16 %v8720
        %v9609 = vunpack.c.l.b16 %v8721
        %v9610 = vunpack.c.l.b16 %v8722
        %v9611 = vunpack.c.h.b16 %v8722
        %v9612 = vunpack.c.l.b16 %v8723
        %v9613 = vunpack.c.l.b16 %v8724
        %v9614 = vunpack.c.h.b16 %v8724
        %v9615 = vunpack.c.l.b16 %v8725
        %v9616 = vunpack.c.l.b16 %v8726
        %v9617 = vunpack.c.h.b16 %v8726
        %v9618 = vunpack.c.l.b16 %v8727
        %v9619 = vunpack.c.l.b16 %v8728
        %v9620 = vunpack.c.h.b16 %v8728
        %v9621 = vunpack.c.l.b16 %v8729
        %v9622 = vunpack.c.l.b16 %v8730
        %v9623 = vunpack.c.h.b16 %v8730
        %v9624 = vunpack.c.l.b16 %v8731
        %v9625 = vunpack.c.l.b16 %v8732
        %v9626 = vunpack.c.h.b16 %v8732
        %v9627 = vunpack.c.l.b16 %v8733
        %v9628 = vunpack.c.l.b16 %v8734
        %v9629 = vunpack.c.h.b16 %v8734
        %v9630 = vunpack.c.l.b16 %v8735
        %v9631 = vunpack.c.l.b16 %v8736
        %v9632 = vunpack.c.h.b16 %v8736
        %v9633 = vunpack.c.l.b16 %v8737
        %v9634 = vunpack.c.l.b16 %v8738
        %v9635 = vunpack.c.h.b16 %v8738
        %v9636 = vunpack.c.l.b16 %v8739
        %v9637 = vunpack.c.l.b16 %v8740
        %v9638 = vunpack.c.h.b16 %v8740
        %v9639 = vunpack.c.l.b16 %v8741
        %v9640 = vunpack.c.l.b16 %v8742
        %v9641 = vunpack.c.h.b16 %v8742
        %v9642 = vunpack.c.l.b16 %v8743
        %v9643 = vunpack.c.l.b16 %v8744
        %v9644 = vunpack.c.h.b16 %v8744
        %v9645 = vunpack.c.l.b16 %v8745
        %v9646 = vunpack.c.l.b16 %v8746
        %v9647 = vunpack.c.h.b16 %v8746
        %v9648 = vunpack.c.l.b16 %v8747
        %v9649 = vunpack.c.l.b16 %v8748
        %v9650 = vunpack.c.h.b16 %v8748
        %v9651 = vunpack.c.l.b16 %v8749
        %v9652 = vunpack.c.l.b16 %v8750
        %v9653 = vunpack.c.h.b16 %v8750
        %v9654 = vunpack.c.l.b16 %v8751
        %v9655 = vunpack.c.l.b16 %v8752
        %v9656 = vunpack.c.h.b16 %v8752
        %v9657 = vunpack.c.l.b16 %v8753
        %v9658 = vunpack.c.l.b16 %v8754
        %v9659 = vunpack.c.h.b16 %v8754
        %v9660 = vunpack.c.l.b16 %v8755
        %v9661 = vunpack.c.l.b16 %v8756
        %v9662 = vunpack.c.h.b16 %v8756
        %v9663 = vunpack.c.l.b16 %v8757
        %v9664 = vunpack.c.l.b16 %v8758
        %v9665 = vunpack.c.h.b16 %v8758
        %v9666 = vunpack.c.l.b16 %v8759
        %v9667 = vunpack.c.l.b16 %v8760
        %v9668 = vunpack.c.h.b16 %v8760
        %v9669 = vunpack.c.l.b16 %v8761
        %v9670 = vunpack.c.l.b16 %v8762
        %v9671 = vunpack.c.h.b16 %v8762
        %v9672 = vunpack.c.l.b16 %v8763
        %v9673 = vunpack.c.l.b16 %v8764
        %v9674 = vunpack.c.h.b16 %v8764
        %v9675 = vunpack.c.l.b16 %v8765
        %v9676 = vunpack.c.l.b16 %v8766
        %v9677 = vunpack.c.h.b16 %v8766
        %v9678 = vunpack.c.l.b16 %v8767
        %v9679 = vunpack.c.l.b16 %v8768
        %v9680 = vunpack.c.h.b16 %v8768
        %v9681 = vunpack.c.l.b16 %v8769
        %v9682 = vunpack.c.l.b16 %v8770
        %v9683 = vunpack.c.h.b16 %v8770
        %v9684 = vunpack.c.l.b16 %v8771
        %v9685 = vunpack.c.l.b16 %v8772
        %v9686 = vunpack.c.h.b16 %v8772
        %v9687 = vunpack.c.l.b16 %v8773
        %v9688 = vunpack.c.l.b16 %v8774
        %v9689 = vunpack.c.h.b16 %v8774
        %v9690 = vunpack.c.l.b16 %v8775
        %v9691 = vunpack.c.l.b16 %v8776
        %v9692 = vunpack.c.h.b16 %v8776
        %v9693 = vunpack.c.l.b16 %v8777
        %v9694 = vunpack.c.l.b16 %v8778
        %v9695 = vunpack.c.h.b16 %v8778
        %v9696 = vunpack.c.l.b16 %v8779
        %v9697 = vunpack.c.l.b16 %v8780
        %v9698 = vunpack.c.h.b16 %v8780
        %v9699 = vunpack.c.l.b16 %v8781
        %v9700 = vunpack.c.l.b16 %v8782
        %v9701 = vunpack.c.h.b16 %v8782
        %v9702 = vunpack.c.l.b16 %v8783
        %v9703 = vunpack.c.l.b16 %v8784
        %v9704 = vunpack.c.h.b16 %v8784
        %v9705 = vunpack.c.l.b16 %v8785
        %v9706 = vunpack.c.l.b16 %v8786
        %v9707 = vunpack.c.h.b16 %v8786
        %v9708 = vunpack.c.l.b16 %v8787
        %v9709 = vunpack.c.l.b16 %v8788
        %v9710 = vunpack.c.h.b16 %v8788
        %v9711 = vunpack.c.l.b16 %v8789
        %v9712 = vunpack.c.l.b16 %v8790
        %v9713 = vunpack.c.h.b16 %v8790
        %v9714 = vunpack.c.l.b16 %v8791
        %v9715 = vunpack.c.l.b16 %v8792
        %v9716 = vunpack.c.h.b16 %v8792
        %v9717 = vunpack.c.l.b16 %v8793
        %v9718 = vunpack.c.l.b16 %v8794
        %v9719 = vunpack.c.h.b16 %v8794
        %v9720 = vunpack.c.l.b16 %v8795
        %v9721 = vunpack.c.l.b16 %v8796
        %v9722 = vunpack.c.h.b16 %v8796
        %v9723 = vunpack.c.l.b16 %v8797
        %v9724 = vunpack.c.l.b16 %v8798
        %v9725 = vunpack.c.h.b16 %v8798
        %v9726 = vunpack.c.l.b16 %v8799
        %v9727 = vunpack.c.l.b16 %v8800
        %v9728 = vunpack.c.h.b16 %v8800
        %v9729 = vunpack.c.l.b16 %v8801
        %v9730 = vunpack.c.l.b16 %v8802
        %v9731 = vunpack.c.h.b16 %v8802
        %v9732 = vunpack.c.l.b16 %v8803
        %v9733 = vunpack.c.l.b16 %v8804
        %v9734 = vunpack.c.h.b16 %v8804
        %v9735 = vunpack.c.l.b16 %v8805
        %v9736 = vunpack.c.l.b16 %v8806
        %v9737 = vunpack.c.h.b16 %v8806
        %v9738 = vunpack.c.l.b16 %v8807
        %v9739 = vunpack.c.l.b16 %v8808
        %v9740 = vunpack.c.h.b16 %v8808
        %v9741 = vunpack.c.l.b16 %v8809
        %v9742 = vunpack.c.l.b16 %v8810
        %v9743 = vunpack.c.h.b16 %v8810
        %v9744 = vunpack.c.l.b16 %v8811
        %v9745 = vunpack.c.l.b16 %v8812
        %v9746 = vunpack.c.h.b16 %v8812
        %v9747 = vunpack.c.l.b16 %v8813
        %v9748 = vunpack.c.l.b16 %v8814
        %v9749 = vunpack.c.h.b16 %v8814
        %v9750 = vunpack.c.l.b16 %v8815
        %v9751 = vunpack.c.l.b16 %v8816
        %v9752 = vunpack.c.h.b16 %v8816
        %v9753 = vunpack.c.l.b16 %v8817
        %v9754 = vunpack.c.l.b16 %v8818
        %v9755 = vunpack.c.h.b16 %v8818
        %v9756 = vunpack.c.l.b16 %v8819
        %v9757 = vunpack.c.l.b16 %v8820
        %v9758 = vunpack.c.h.b16 %v8820
        %v9759 = vunpack.c.l.b16 %v8821
        %v9760 = vunpack.c.l.b16 %v8822
        %v9761 = vunpack.c.h.b16 %v8822
        %v9762 = vunpack.c.l.b16 %v8823
        %v9763 = vunpack.c.l.b16 %v8824
        %v9764 = vunpack.c.h.b16 %v8824
        %v9765 = vunpack.c.l.b16 %v8825
        %v9766 = vunpack.c.l.b16 %v8826
        %v9767 = vunpack.c.h.b16 %v8826
        %v9768 = vunpack.c.l.b16 %v8827
        %v9769 = vunpack.c.l.b16 %v8828
        %v9770 = vunpack.c.h.b16 %v8828
        %v9771 = vunpack.c.l.b16 %v8829
        %v9772 = vunpack.c.l.b16 %v8830
        %v9773 = vunpack.c.h.b16 %v8830
        %v9774 = vunpack.c.l.b16 %v8831
        %v9775 = vunpack.c.l.b16 %v8832
        %v9776 = vunpack.c.h.b16 %v8832
        %v9777 = vunpack.c.l.b16 %v8833
        %v9778 = vunpack.c.l.b16 %v8834
        %v9779 = vunpack.c.h.b16 %v8834
        %v9780 = vunpack.c.l.b16 %v8835
        %v9781 = vunpack.c.l.b16 %v8836
        %v9782 = vunpack.c.h.b16 %v8836
        %v9783 = vunpack.c.l.b16 %v8837
        %v9784 = vunpack.c.l.b16 %v8838
        %v9785 = vunpack.c.h.b16 %v8838
        %v9786 = vunpack.c.l.b16 %v8839
        %v9787 = vunpack.c.l.b16 %v8840
        %v9788 = vunpack.c.h.b16 %v8840
        %v9789 = vunpack.c.l.b16 %v8841
        %v9790 = vunpack.c.l.b16 %v8842
        %v9791 = vunpack.c.h.b16 %v8842
        %v9792 = vunpack.c.l.b16 %v8843
        %v9793 = vunpack.c.l.b16 %v8844
        %v9794 = vunpack.c.h.b16 %v8844
        %v9795 = vunpack.c.l.b16 %v8845
        %v9796 = vunpack.c.l.b16 %v8846
        %v9797 = vunpack.c.h.b16 %v8846
        %v9798 = vunpack.c.l.b16 %v8847
        %v9799 = vunpack.c.l.b16 %v8848
        %v9800 = vunpack.c.h.b16 %v8848
        %v9801 = vunpack.c.l.b16 %v8849
        %v9802 = vunpack.c.l.b16 %v8850
        %v9803 = vunpack.c.h.b16 %v8850
        %v9804 = vunpack.c.l.b16 %v8851
        %v9805 = vunpack.c.l.b16 %v8852
        %v9806 = vunpack.c.h.b16 %v8852
        %v9807 = vunpack.c.l.b16 %v8853
        %v9808 = vunpack.c.l.b16 %v8854
        %v9809 = vunpack.c.h.b16 %v8854
        %v9810 = vunpack.c.l.b16 %v8855
        %v9811 = vunpack.c.l.b16 %v8856
        %v9812 = vunpack.c.h.b16 %v8856
        %v9813 = vunpack.c.l.b16 %v8857
        %v9814 = vunpack.c.l.b16 %v8858
        %v9815 = vunpack.c.h.b16 %v8858
        %v9816 = vunpack.c.l.b16 %v8859
        %v9817 = vunpack.c.l.b16 %v8860
        %v9818 = vunpack.c.h.b16 %v8860
        %v9819 = vunpack.c.l.b16 %v8861
        %v9820 = vunpack.c.l.b16 %v8862
        %v9821 = vunpack.c.h.b16 %v8862
        %v9822 = vunpack.c.l.b16 %v8863
        %v9823 = vunpack.c.l.b16 %v8864
        %v9824 = vunpack.c.h.b16 %v8864
        %v9825 = vunpack.c.l.b16 %v8865
        %v9826 = vunpack.c.l.b16 %v8866
        %v9827 = vunpack.c.h.b16 %v8866
        %v9828 = vunpack.c.l.b16 %v8867
        %v9829 = vunpack.c.l.b16 %v8868
        %v9830 = vunpack.c.h.b16 %v8868
        %v9831 = vunpack.c.l.b16 %v8869
        %v9832 = vunpack.c.l.b16 %v8870
        %v9833 = vunpack.c.h.b16 %v8870
        %v9834 = vunpack.c.l.b16 %v8871
        %v9835 = vunpack.c.l.b16 %v8872
        %v9836 = vunpack.c.h.b16 %v8872
        %v9837 = vunpack.c.l.b16 %v8873
        %v9838 = vunpack.c.l.b16 %v8874
        %v9839 = vunpack.c.h.b16 %v8874
        %v9840 = vunpack.c.l.b16 %v8875
        %v9841 = vunpack.c.l.b16 %v8876
        %v9842 = vunpack.c.h.b16 %v8876
        %v9843 = vunpack.c.l.b16 %v8877
        %v9844 = vunpack.c.l.b16 %v8878
        %v9845 = vunpack.c.h.b16 %v8878
        %v9846 = vunpack.c.l.b16 %v8879
        %v9847 = vunpack.c.l.b16 %v8880
        %v9848 = vunpack.c.h.b16 %v8880
        %v9849 = vunpack.c.l.b16 %v8881
        %v9850 = vunpack.c.l.b16 %v8882
        %v9851 = vunpack.c.h.b16 %v8882
        %v9852 = vunpack.c.l.b16 %v8883
        %v9853 = vunpack.c.l.b16 %v8884
        %v9854 = vunpack.c.h.b16 %v8884
        %v9855 = vunpack.c.l.b16 %v8885
        %v9856 = vunpack.c.l.b16 %v8886
        %v9857 = vunpack.c.h.b16 %v8886
        %v9858 = vunpack.c.l.b16 %v8887
        %v9859 = vunpack.c.l.b16 %v8888
        %v9860 = vunpack.c.h.b16 %v8888
        %v9861 = vunpack.c.l.b16 %v8889
        %v9862 = vunpack.c.l.b16 %v8890
        %v9863 = vunpack.c.h.b16 %v8890
        %v9864 = vunpack.c.l.b16 %v8891
        %v9865 = vunpack.c.l.b16 %v8892
        %v9866 = vunpack.c.h.b16 %v8892
        %v9867 = vunpack.c.l.b16 %v8893
        %v9868 = vunpack.c.l.b16 %v8894
        %v9869 = vunpack.c.h.b16 %v8894
        %v9870 = vunpack.c.l.b16 %v8895
        %v9871 = vunpack.c.l.b16 %v8896
        %v9872 = vunpack.c.h.b16 %v8896
        %v9873 = vunpack.c.l.b16 %v8897
        %v9874 = vunpack.c.l.b16 %v8898
        %v9875 = vunpack.c.h.b16 %v8898
        %v9876 = vunpack.c.l.b16 %v8899
        %v9877 = vpack.c.b16 %v9304, %v9301
        %v9878 = vpack.c.b16 %v9305, %v9302
        %v9879 = vpack.c.b16 %v9306, %v9303
        %v9880 = vpack.c.b16 %v9310, %v9307
        %v9881 = vpack.c.b16 %v9311, %v9308
        %v9882 = vpack.c.b16 %v9312, %v9309
        %v9883 = vpack.c.b16 %v9316, %v9313
        %v9884 = vpack.c.b16 %v9317, %v9314
        %v9885 = vpack.c.b16 %v9318, %v9315
        %v9886 = vpack.c.b16 %v9322, %v9319
        %v9887 = vpack.c.b16 %v9323, %v9320
        %v9888 = vpack.c.b16 %v9324, %v9321
        %v9889 = vpack.c.b16 %v9328, %v9325
        %v9890 = vpack.c.b16 %v9329, %v9326
        %v9891 = vpack.c.b16 %v9330, %v9327
        %v9892 = vpack.c.b16 %v9334, %v9331
        %v9893 = vpack.c.b16 %v9335, %v9332
        %v9894 = vpack.c.b16 %v9336, %v9333
        %v9895 = vpack.c.b16 %v9340, %v9337
        %v9896 = vpack.c.b16 %v9341, %v9338
        %v9897 = vpack.c.b16 %v9342, %v9339
        %v9898 = vpack.c.b16 %v9346, %v9343
        %v9899 = vpack.c.b16 %v9347, %v9344
        %v9900 = vpack.c.b16 %v9348, %v9345
        %v9901 = vpack.c.b16 %v9352, %v9349
        %v9902 = vpack.c.b16 %v9353, %v9350
        %v9903 = vpack.c.b16 %v9354, %v9351
        %v9904 = vpack.c.b16 %v9358, %v9355
        %v9905 = vpack.c.b16 %v9359, %v9356
        %v9906 = vpack.c.b16 %v9360, %v9357
        %v9907 = vpack.c.b16 %v9364, %v9361
        %v9908 = vpack.c.b16 %v9365, %v9362
        %v9909 = vpack.c.b16 %v9366, %v9363
        %v9910 = vpack.c.b16 %v9370, %v9367
        %v9911 = vpack.c.b16 %v9371, %v9368
        %v9912 = vpack.c.b16 %v9372, %v9369
        %v9913 = vpack.c.b16 %v9376, %v9373
        %v9914 = vpack.c.b16 %v9377, %v9374
        %v9915 = vpack.c.b16 %v9378, %v9375
        %v9916 = vpack.c.b16 %v9382, %v9379
        %v9917 = vpack.c.b16 %v9383, %v9380
        %v9918 = vpack.c.b16 %v9384, %v9381
        %v9919 = vpack.c.b16 %v9388, %v9385
        %v9920 = vpack.c.b16 %v9389, %v9386
        %v9921 = vpack.c.b16 %v9390, %v9387
        %v9922 = vpack.c.b16 %v9394, %v9391
        %v9923 = vpack.c.b16 %v9395, %v9392
        %v9924 = vpack.c.b16 %v9396, %v9393
        %v9925 = vpack.c.b16 %v9400, %v9397
        %v9926 = vpack.c.b16 %v9401, %v9398
        %v9927 = vpack.c.b16 %v9402, %v9399
        %v9928 = vpack.c.b16 %v9406, %v9403
        %v9929 = vpack.c.b16 %v9407, %v9404
        %v9930 = vpack.c.b16 %v9408, %v9405
        %v9931 = vpack.c.b16 %v9412, %v9409
        %v9932 = vpack.c.b16 %v9413, %v9410
        %v9933 = vpack.c.b16 %v9414, %v9411
        %v9934 = vpack.c.b16 %v9418, %v9415
        %v9935 = vpack.c.b16 %v9419, %v9416
        %v9936 = vpack.c.b16 %v9420, %v9417
        %v9937 = vpack.c.b16 %v9424, %v9421
        %v9938 = vpack.c.b16 %v9425, %v9422
        %v9939 = vpack.c.b16 %v9426, %v9423
        %v9940 = vpack.c.b16 %v9430, %v9427
        %v9941 = vpack.c.b16 %v9431, %v9428
        %v9942 = vpack.c.b16 %v9432, %v9429
        %v9943 = vpack.c.b16 %v9436, %v9433
        %v9944 = vpack.c.b16 %v9437, %v9434
        %v9945 = vpack.c.b16 %v9438, %v9435
        %v9946 = vpack.c.b16 %v9442, %v9439
        %v9947 = vpack.c.b16 %v9443, %v9440
        %v9948 = vpack.c.b16 %v9444, %v9441
        %v9949 = vpack.c.b16 %v9448, %v9445
        %v9950 = vpack.c.b16 %v9449, %v9446
        %v9951 = vpack.c.b16 %v9450, %v9447
        %v9952 = vpack.c.b16 %v9454, %v9451
        %v9953 = vpack.c.b16 %v9455, %v9452
        %v9954 = vpack.c.b16 %v9456, %v9453
        %v9955 = vpack.c.b16 %v9460, %v9457
        %v9956 = vpack.c.b16 %v9461, %v9458
        %v9957 = vpack.c.b16 %v9462, %v9459
        %v9958 = vpack.c.b16 %v9466, %v9463
        %v9959 = vpack.c.b16 %v9467, %v9464
        %v9960 = vpack.c.b16 %v9468, %v9465
        %v9961 = vpack.c.b16 %v9472, %v9469
        %v9962 = vpack.c.b16 %v9473, %v9470
        %v9963 = vpack.c.b16 %v9474, %v9471
        %v9964 = vpack.c.b16 %v9478, %v9475
        %v9965 = vpack.c.b16 %v9479, %v9476
        %v9966 = vpack.c.b16 %v9480, %v9477
        %v9967 = vpack.c.b16 %v9484, %v9481
        %v9968 = vpack.c.b16 %v9485, %v9482
        %v9969 = vpack.c.b16 %v9486, %v9483
        %v9970 = vpack.c.b16 %v9490, %v9487
        %v9971 = vpack.c.b16 %v9491, %v9488
        %v9972 = vpack.c.b16 %v9492, %v9489
        %v9973 = vpack.c.b16 %v9496, %v9493
        %v9974 = vpack.c.b16 %v9497, %v9494
        %v9975 = vpack.c.b16 %v9498, %v9495
        %v9976 = vpack.c.b16 %v9502, %v9499
        %v9977 = vpack.c.b16 %v9503, %v9500
        %v9978 = vpack.c.b16 %v9504, %v9501
        %v9979 = vpack.c.b16 %v9508, %v9505
        %v9980 = vpack.c.b16 %v9509, %v9506
        %v9981 = vpack.c.b16 %v9510, %v9507
        %v9982 = vpack.c.b16 %v9514, %v9511
        %v9983 = vpack.c.b16 %v9515, %v9512
        %v9984 = vpack.c.b16 %v9516, %v9513
        %v9985 = vpack.c.b16 %v9520, %v9517
        %v9986 = vpack.c.b16 %v9521, %v9518
        %v9987 = vpack.c.b16 %v9522, %v9519
        %v9988 = vpack.c.b16 %v9526, %v9523
        %v9989 = vpack.c.b16 %v9527, %v9524
        %v9990 = vpack.c.b16 %v9528, %v9525
        %v9991 = vpack.c.b16 %v9532, %v9529
        %v9992 = vpack.c.b16 %v9533, %v9530
        %v9993 = vpack.c.b16 %v9534, %v9531
        %v9994 = vpack.c.b16 %v9538, %v9535
        %v9995 = vpack.c.b16 %v9539, %v9536
        %v9996 = vpack.c.b16 %v9540, %v9537
        %v9997 = vpack.c.b16 %v9544, %v9541
        %v9998 = vpack.c.b16 %v9545, %v9542
        %v9999 = vpack.c.b16 %v9546, %v9543
        %v10000 = vpack.c.b16 %v9550, %v9547
        %v10001 = vpack.c.b16 %v9551, %v9548
        %v10002 = vpack.c.b16 %v9552, %v9549
        %v10003 = vpack.c.b16 %v9556, %v9553
        %v10004 = vpack.c.b16 %v9557, %v9554
        %v10005 = vpack.c.b16 %v9558, %v9555
        %v10006 = vpack.c.b16 %v9562, %v9559
        %v10007 = vpack.c.b16 %v9563, %v9560
        %v10008 = vpack.c.b16 %v9564, %v9561
        %v10009 = vpack.c.b16 %v9568, %v9565
        %v10010 = vpack.c.b16 %v9569, %v9566
        %v10011 = vpack.c.b16 %v9570, %v9567
        %v10012 = vpack.c.b16 %v9574, %v9571
        %v10013 = vpack.c.b16 %v9575, %v9572
        %v10014 = vpack.c.b16 %v9576, %v9573
        %v10015 = vpack.c.b16 %v9580, %v9577
        %v10016 = vpack.c.b16 %v9581, %v9578
        %v10017 = vpack.c.b16 %v9582, %v9579
        %v10018 = vpack.c.b16 %v9586, %v9583
        %v10019 = vpack.c.b16 %v9587, %v9584
        %v10020 = vpack.c.b16 %v9588, %v9585
        %v10021 = vpack.c.b16 %v9592, %v9589
        %v10022 = vpack.c.b16 %v9593, %v9590
        %v10023 = vpack.c.b16 %v9594, %v9591
        %v10024 = vpack.c.b16 %v9598, %v9595
        %v10025 = vpack.c.b16 %v9599, %v9596
        %v10026 = vpack.c.b16 %v9600, %v9597
        %v10027 = vpack.c.b16 %v9604, %v9601
        %v10028 = vpack.c.b16 %v9605, %v9602
        %v10029 = vpack.c.b16 %v9606, %v9603
        %v10030 = vpack.c.b16 %v9610, %v9607
        %v10031 = vpack.c.b16 %v9611, %v9608
        %v10032 = vpack.c.b16 %v9612, %v9609
        %v10033 = vpack.c.b16 %v9616, %v9613
        %v10034 = vpack.c.b16 %v9617, %v9614
        %v10035 = vpack.c.b16 %v9618, %v9615
        %v10036 = vpack.c.b16 %v9622, %v9619
        %v10037 = vpack.c.b16 %v9623, %v9620
        %v10038 = vpack.c.b16 %v9624, %v9621
        %v10039 = vpack.c.b16 %v9628, %v9625
        %v10040 = vpack.c.b16 %v9629, %v9626
        %v10041 = vpack.c.b16 %v9630, %v9627
        %v10042 = vpack.c.b16 %v9634, %v9631
        %v10043 = vpack.c.b16 %v9635, %v9632
        %v10044 = vpack.c.b16 %v9636, %v9633
        %v10045 = vpack.c.b16 %v9640, %v9637
        %v10046 = vpack.c.b16 %v9641, %v9638
        %v10047 = vpack.c.b16 %v9642, %v9639
        %v10048 = vpack.c.b16 %v9646, %v9643
        %v10049 = vpack.c.b16 %v9647, %v9644
        %v10050 = vpack.c.b16 %v9648, %v9645
        %v10051 = vpack.c.b16 %v9652, %v9649
        %v10052 = vpack.c.b16 %v9653, %v9650
        %v10053 = vpack.c.b16 %v9654, %v9651
        %v10054 = vpack.c.b16 %v9658, %v9655
        %v10055 = vpack.c.b16 %v9659, %v9656
        %v10056 = vpack.c.b16 %v9660, %v9657
        %v10057 = vpack.c.b16 %v9664, %v9661
        %v10058 = vpack.c.b16 %v9665, %v9662
        %v10059 = vpack.c.b16 %v9666, %v9663
        %v10060 = vpack.c.b16 %v9670, %v9667
        %v10061 = vpack.c.b16 %v9671, %v9668
        %v10062 = vpack.c.b16 %v9672, %v9669
        %v10063 = vpack.c.b16 %v9676, %v9673
        %v10064 = vpack.c.b16 %v9677, %v9674
        %v10065 = vpack.c.b16 %v9678, %v9675
        %v10066 = vpack.c.b16 %v9682, %v9679
        %v10067 = vpack.c.b16 %v9683, %v9680
        %v10068 = vpack.c.b16 %v9684, %v9681
        %v10069 = vpack.c.b16 %v9688, %v9685
        %v10070 = vpack.c.b16 %v9689, %v9686
        %v10071 = vpack.c.b16 %v9690, %v9687
        %v10072 = vpack.c.b16 %v9694, %v9691
        %v10073 = vpack.c.b16 %v9695, %v9692
        %v10074 = vpack.c.b16 %v9696, %v9693
        %v10075 = vpack.c.b16 %v9700, %v9697
        %v10076 = vpack.c.b16 %v9701, %v9698
        %v10077 = vpack.c.b16 %v9702, %v9699
        %v10078 = vpack.c.b16 %v9706, %v9703
        %v10079 = vpack.c.b16 %v9707, %v9704
        %v10080 = vpack.c.b16 %v9708, %v9705
        %v10081 = vpack.c.b16 %v9712, %v9709
        %v10082 = vpack.c.b16 %v9713, %v9710
        %v10083 = vpack.c.b16 %v9714, %v9711
        %v10084 = vpack.c.b16 %v9718, %v9715
        %v10085 = vpack.c.b16 %v9719, %v9716
        %v10086 = vpack.c.b16 %v9720, %v9717
        %v10087 = vpack.c.b16 %v9724, %v9721
        %v10088 = vpack.c.b16 %v9725, %v9722
        %v10089 = vpack.c.b16 %v9726, %v9723
        %v10090 = vpack.c.b16 %v9730, %v9727
        %v10091 = vpack.c.b16 %v9731, %v9728
        %v10092 = vpack.c.b16 %v9732, %v9729
        %v10093 = vpack.c.b16 %v9736, %v9733
        %v10094 = vpack.c.b16 %v9737, %v9734
        %v10095 = vpack.c.b16 %v9738, %v9735
        %v10096 = vpack.c.b16 %v9742, %v9739
        %v10097 = vpack.c.b16 %v9743, %v9740
        %v10098 = vpack.c.b16 %v9744, %v9741
        %v10099 = vpack.c.b16 %v9748, %v9745
        %v10100 = vpack.c.b16 %v9749, %v9746
        %v10101 = vpack.c.b16 %v9750, %v9747
        %v10102 = vpack.c.b16 %v9754, %v9751
        %v10103 = vpack.c.b16 %v9755, %v9752
        %v10104 = vpack.c.b16 %v9756, %v9753
        %v10105 = vpack.c.b16 %v9760, %v9757
        %v10106 = vpack.c.b16 %v9761, %v9758
        %v10107 = vpack.c.b16 %v9762, %v9759
        %v10108 = vpack.c.b16 %v9766, %v9763
        %v10109 = vpack.c.b16 %v9767, %v9764
        %v10110 = vpack.c.b16 %v9768, %v9765
        %v10111 = vpack.c.b16 %v9772, %v9769
        %v10112 = vpack.c.b16 %v9773, %v9770
        %v10113 = vpack.c.b16 %v9774, %v9771
        %v10114 = vpack.c.b16 %v9778, %v9775
        %v10115 = vpack.c.b16 %v9779, %v9776
        %v10116 = vpack.c.b16 %v9780, %v9777
        %v10117 = vpack.c.b16 %v9784, %v9781
        %v10118 = vpack.c.b16 %v9785, %v9782
        %v10119 = vpack.c.b16 %v9786, %v9783
        %v10120 = vpack.c.b16 %v9790, %v9787
        %v10121 = vpack.c.b16 %v9791, %v9788
        %v10122 = vpack.c.b16 %v9792, %v9789
        %v10123 = vpack.c.b16 %v9796, %v9793
        %v10124 = vpack.c.b16 %v9797, %v9794
        %v10125 = vpack.c.b16 %v9798, %v9795
        %v10126 = vpack.c.b16 %v9802, %v9799
        %v10127 = vpack.c.b16 %v9803, %v9800
        %v10128 = vpack.c.b16 %v9804, %v9801
        %v10129 = vpack.c.b16 %v9808, %v9805
        %v10130 = vpack.c.b16 %v9809, %v9806
        %v10131 = vpack.c.b16 %v9810, %v9807
        %v10132 = vpack.c.b16 %v9814, %v9811
        %v10133 = vpack.c.b16 %v9815, %v9812
        %v10134 = vpack.c.b16 %v9816, %v9813
        %v10135 = vpack.c.b16 %v9820, %v9817
        %v10136 = vpack.c.b16 %v9821, %v9818
        %v10137 = vpack.c.b16 %v9822, %v9819
        %v10138 = vpack.c.b16 %v9826, %v9823
        %v10139 = vpack.c.b16 %v9827, %v9824
        %v10140 = vpack.c.b16 %v9828, %v9825
        %v10141 = vpack.c.b16 %v9832, %v9829
        %v10142 = vpack.c.b16 %v9833, %v9830
        %v10143 = vpack.c.b16 %v9834, %v9831
        %v10144 = vpack.c.b16 %v9838, %v9835
        %v10145 = vpack.c.b16 %v9839, %v9836
        %v10146 = vpack.c.b16 %v9840, %v9837
        %v10147 = vpack.c.b16 %v9844, %v9841
        %v10148 = vpack.c.b16 %v9845, %v9842
        %v10149 = vpack.c.b16 %v9846, %v9843
        %v10150 = vpack.c.b16 %v9850, %v9847
        %v10151 = vpack.c.b16 %v9851, %v9848
        %v10152 = vpack.c.b16 %v9852, %v9849
        %v10153 = vpack.c.b16 %v9856, %v9853
        %v10154 = vpack.c.b16 %v9857, %v9854
        %v10155 = vpack.c.b16 %v9858, %v9855
        %v10156 = vpack.c.b16 %v9862, %v9859
        %v10157 = vpack.c.b16 %v9863, %v9860
        %v10158 = vpack.c.b16 %v9864, %v9861
        %v10159 = vpack.c.b16 %v9868, %v9865
        %v10160 = vpack.c.b16 %v9869, %v9866
        %v10161 = vpack.c.b16 %v9870, %v9867
        %v10162 = vpack.c.b16 %v9874, %v9871
        %v10163 = vpack.c.b16 %v9875, %v9872
        %v10164 = vpack.c.b16 %v9876, %v9873
        %10453 = vmatprep.subr.bf16.mxu0 %v9899
        %10454 = vmatpush1.bf16.msra.mxu0 %v9898
        %10455 = vmatprep.subr.bf16.mxu0 %v9896
        %10456 = vmatpush1.bf16.msra.mxu0 %v9895
        %10457 = vmatprep.subr.bf16.mxu0 %v9893
        %10458 = vmatpush1.bf16.msra.mxu0 %v9892
        %10459 = vmatprep.subr.bf16.mxu0 %v9890
        %10460 = vmatpush1.bf16.msra.mxu0 %v9889
        %10461 = vmatprep.subr.bf16.mxu0 %v9887
        %10462 = vmatpush1.bf16.msra.mxu0 %v9886
        %10463 = vmatprep.subr.bf16.mxu0 %v9884
        %10464 = vmatpush1.bf16.msra.mxu0 %v9883
        %10465 = vmatprep.subr.bf16.mxu0 %v9881
        %10466 = vmatpush1.bf16.msra.mxu0 %v9880
        %10467 = vmatprep.subr.bf16.mxu0 %v9878
        %10468 = vmatpush1.bf16.msra.mxu0 %v9877
        %10469 = vmatprep.subr.bf16.mxu0 %v9923
        %10470 = vmatpush2.bf16.msra.mxu0 %v9922
        %10471 = vmatprep.subr.bf16.mxu0 %v9920
        %10472 = vmatpush2.bf16.msra.mxu0 %v9919
        %10473 = vmatprep.subr.bf16.mxu0 %v9917
        %10474 = vmatpush2.bf16.msra.mxu0 %v9916
        %10475 = vmatprep.subr.bf16.mxu0 %v9914
        %10476 = vmatpush2.bf16.msra.mxu0 %v9913
        %10477 = vmatprep.subr.bf16.mxu0 %v9911
        %10478 = vmatpush2.bf16.msra.mxu0 %v9910
        %10479 = vmatprep.subr.bf16.mxu0 %v9908
        %10480 = vmatpush2.bf16.msra.mxu0 %v9907
        %10481 = vmatprep.subr.bf16.mxu0 %v9905
        %10482 = vmatpush2.bf16.msra.mxu0 %v9904
        %10483 = vmatprep.subr.bf16.mxu0 %v9902
        %10484 = vmatpush2.bf16.msra.mxu0 %v9901
        %10485 = vmatprep.mubr.bf16.mxu0 %v8469
        %10486 = vmatmul.mubr.bf16.gmra.mxu0 %v8468
        %v10487 = vpop.f32.mrf.mxu0
        %v10488 = vadd.f32 %v8905, %v10487
        %v10489 = vpop.f32.mrf.mxu0
        %v10490 = vadd.f32 %v8909, %v10489
        %v10491 = vpop.f32.mrf.mxu0
        %v10492 = vadd.f32 %v8905, %v10491
        %v10493 = vpop.f32.mrf.mxu0
        %v10494 = vadd.f32 %v8909, %v10493
        %10495 = vmatprep.mubr.bf16.mxu0 %v8481
        %10496 = vmatmul.mubr.bf16.gmra.mxu0 %v8480
        %v10497 = vpop.f32.mrf.mxu0
        %v10498 = vadd.f32 %v8905, %v10497
        %v10499 = vpop.f32.mrf.mxu0
        %v10500 = vadd.f32 %v8909, %v10499
        %v10501 = vpop.f32.mrf.mxu0
        %v10502 = vadd.f32 %v8905, %v10501
        %v10503 = vpop.f32.mrf.mxu0
        %v10504 = vadd.f32 %v8909, %v10503
        %10505 = vmatprep.mubr.bf16.mxu0 %v8493
        %10506 = vmatmul.mubr.bf16.gmra.mxu0 %v8492
        %v10507 = vpop.f32.mrf.mxu0
        %v10508 = vadd.f32 %v8905, %v10507
        %v10509 = vpop.f32.mrf.mxu0
        %v10510 = vadd.f32 %v8909, %v10509
        %v10511 = vpop.f32.mrf.mxu0
        %v10512 = vadd.f32 %v8905, %v10511
        %v10513 = vpop.f32.mrf.mxu0
        %v10514 = vadd.f32 %v8909, %v10513
        %10515 = vmatprep.mubr.bf16.mxu0 %v8505
        %10516 = vmatmul.mubr.bf16.gmra.mxu0 %v8504
        %v10517 = vpop.f32.mrf.mxu0
        %v10518 = vadd.f32 %v8905, %v10517
        %v10519 = vpop.f32.mrf.mxu0
        %v10520 = vadd.f32 %v8909, %v10519
        %v10521 = vpop.f32.mrf.mxu0
        %v10522 = vpop.f32.mrf.mxu0
        %10523 = vdwg.mxu0
        %10524 = vmatprep.subr.bf16.mxu0 %v9947
        %10525 = vmatpush1.bf16.msra.mxu0 %v9946
        %10526 = vmatprep.subr.bf16.mxu0 %v9944
        %10527 = vmatpush1.bf16.msra.mxu0 %v9943
        %10528 = vmatprep.subr.bf16.mxu0 %v9941
        %10529 = vmatpush1.bf16.msra.mxu0 %v9940
        %10530 = vmatprep.subr.bf16.mxu0 %v9938
        %10531 = vmatpush1.bf16.msra.mxu0 %v9937
        %10532 = vmatprep.subr.bf16.mxu0 %v9935
        %10533 = vmatpush1.bf16.msra.mxu0 %v9934
        %10534 = vmatprep.subr.bf16.mxu0 %v9932
        %10535 = vmatpush1.bf16.msra.mxu0 %v9931
        %10536 = vmatprep.subr.bf16.mxu0 %v9929
        %10537 = vmatpush1.bf16.msra.mxu0 %v9928
        %10538 = vmatprep.subr.bf16.mxu0 %v9926
        %10539 = vmatpush1.bf16.msra.mxu0 %v9925
        %10540 = vmatprep.subr.bf16.mxu0 %v9971
        %10541 = vmatpush2.bf16.msra.mxu0 %v9970
        %10542 = vmatprep.subr.bf16.mxu0 %v9968
        %10543 = vmatpush2.bf16.msra.mxu0 %v9967
        %10544 = vmatprep.subr.bf16.mxu0 %v9965
        %10545 = vmatpush2.bf16.msra.mxu0 %v9964
        %10546 = vmatprep.subr.bf16.mxu0 %v9962
        %10547 = vmatpush2.bf16.msra.mxu0 %v9961
        %10548 = vmatprep.subr.bf16.mxu0 %v9959
        %10549 = vmatpush2.bf16.msra.mxu0 %v9958
        %10550 = vmatprep.subr.bf16.mxu0 %v9956
        %10551 = vmatpush2.bf16.msra.mxu0 %v9955
        %10552 = vmatprep.subr.bf16.mxu0 %v9953
        %10553 = vmatpush2.bf16.msra.mxu0 %v9952
        %10554 = vmatprep.subr.bf16.mxu0 %v9950
        %10555 = vmatpush2.bf16.msra.mxu0 %v9949
        %10556 = vmatprep.mubr.bf16.mxu0 %v8471
        %10557 = vmatmul.mubr.bf16.gmra.mxu0 %v8470
        %v10558 = vpop.f32.mrf.mxu0
        %v10559 = vadd.f32 %v10488, %v10558
        %v10560 = vpop.f32.mrf.mxu0
        %v10561 = vadd.f32 %v10490, %v10560
        %v10562 = vpop.f32.mrf.mxu0
        %v10563 = vadd.f32 %v10492, %v10562
        %v10564 = vpop.f32.mrf.mxu0
        %v10565 = vadd.f32 %v10494, %v10564
        %10566 = vmatprep.mubr.bf16.mxu0 %v8483
        %10567 = vmatmul.mubr.bf16.gmra.mxu0 %v8482
        %v10568 = vpop.f32.mrf.mxu0
        %v10569 = vadd.f32 %v10498, %v10568
        %v10570 = vpop.f32.mrf.mxu0
        %v10571 = vadd.f32 %v10500, %v10570
        %v10572 = vpop.f32.mrf.mxu0
        %v10573 = vadd.f32 %v10502, %v10572
        %v10574 = vpop.f32.mrf.mxu0
        %v10575 = vadd.f32 %v10504, %v10574
        %10576 = vmatprep.mubr.bf16.mxu0 %v8495
        %10577 = vmatmul.mubr.bf16.gmra.mxu0 %v8494
        %v10578 = vpop.f32.mrf.mxu0
        %v10579 = vadd.f32 %v10508, %v10578
        %v10580 = vpop.f32.mrf.mxu0
        %v10581 = vadd.f32 %v10510, %v10580
        %v10582 = vpop.f32.mrf.mxu0
        %v10583 = vadd.f32 %v10512, %v10582
        %v10584 = vpop.f32.mrf.mxu0
        %v10585 = vadd.f32 %v10514, %v10584
        %10586 = vmatprep.mubr.bf16.mxu0 %v8507
        %10587 = vmatmul.mubr.bf16.gmra.mxu0 %v8506
        %v10588 = vpop.f32.mrf.mxu0
        %v10589 = vadd.f32 %v10518, %v10588
        %v10590 = vpop.f32.mrf.mxu0
        %v10591 = vadd.f32 %v10520, %v10590
        %v10592 = vpop.f32.mrf.mxu0
        %v10593 = vpop.f32.mrf.mxu0
        %10594 = vdwg.mxu0
        %10595 = vmatprep.subr.bf16.mxu0 %v9995
        %10596 = vmatpush1.bf16.msra.mxu0 %v9994
        %10597 = vmatprep.subr.bf16.mxu0 %v9992
        %10598 = vmatpush1.bf16.msra.mxu0 %v9991
        %10599 = vmatprep.subr.bf16.mxu0 %v9989
        %10600 = vmatpush1.bf16.msra.mxu0 %v9988
        %10601 = vmatprep.subr.bf16.mxu0 %v9986
        %10602 = vmatpush1.bf16.msra.mxu0 %v9985
        %10603 = vmatprep.subr.bf16.mxu0 %v9983
        %10604 = vmatpush1.bf16.msra.mxu0 %v9982
        %10605 = vmatprep.subr.bf16.mxu0 %v9980
        %10606 = vmatpush1.bf16.msra.mxu0 %v9979
        %10607 = vmatprep.subr.bf16.mxu0 %v9977
        %10608 = vmatpush1.bf16.msra.mxu0 %v9976
        %10609 = vmatprep.subr.bf16.mxu0 %v9974
        %10610 = vmatpush1.bf16.msra.mxu0 %v9973
        %10611 = vmatprep.subr.bf16.mxu0 %v10019
        %10612 = vmatpush2.bf16.msra.mxu0 %v10018
        %10613 = vmatprep.subr.bf16.mxu0 %v10016
        %10614 = vmatpush2.bf16.msra.mxu0 %v10015
        %10615 = vmatprep.subr.bf16.mxu0 %v10013
        %10616 = vmatpush2.bf16.msra.mxu0 %v10012
        %10617 = vmatprep.subr.bf16.mxu0 %v10010
        %10618 = vmatpush2.bf16.msra.mxu0 %v10009
        %10619 = vmatprep.subr.bf16.mxu0 %v10007
        %10620 = vmatpush2.bf16.msra.mxu0 %v10006
        %10621 = vmatprep.subr.bf16.mxu0 %v10004
        %10622 = vmatpush2.bf16.msra.mxu0 %v10003
        %10623 = vmatprep.subr.bf16.mxu0 %v10001
        %10624 = vmatpush2.bf16.msra.mxu0 %v10000
        %10625 = vmatprep.subr.bf16.mxu0 %v9998
        %10626 = vmatpush2.bf16.msra.mxu0 %v9997
        %10627 = vmatprep.mubr.bf16.mxu0 %v8473
        %10628 = vmatmul.mubr.bf16.gmra.mxu0 %v8472
        %v10629 = vpop.f32.mrf.mxu0
        %v10630 = vadd.f32 %v10559, %v10629
        %v10631 = vpop.f32.mrf.mxu0
        %v10632 = vadd.f32 %v10561, %v10631
        %v10633 = vpop.f32.mrf.mxu0
        %v10634 = vadd.f32 %v10563, %v10633
        %v10635 = vpop.f32.mrf.mxu0
        %v10636 = vadd.f32 %v10565, %v10635
        %10637 = vmatprep.mubr.bf16.mxu0 %v8485
        %10638 = vmatmul.mubr.bf16.gmra.mxu0 %v8484
        %v10639 = vpop.f32.mrf.mxu0
        %v10640 = vadd.f32 %v10569, %v10639
        %v10641 = vpop.f32.mrf.mxu0
        %v10642 = vadd.f32 %v10571, %v10641
        %v10643 = vpop.f32.mrf.mxu0
        %v10644 = vadd.f32 %v10573, %v10643
        %v10645 = vpop.f32.mrf.mxu0
        %v10646 = vadd.f32 %v10575, %v10645
        %10647 = vmatprep.mubr.bf16.mxu0 %v8497
        %10648 = vmatmul.mubr.bf16.gmra.mxu0 %v8496
        %v10649 = vpop.f32.mrf.mxu0
        %v10650 = vadd.f32 %v10579, %v10649
        %v10651 = vpop.f32.mrf.mxu0
        %v10652 = vadd.f32 %v10581, %v10651
        %v10653 = vpop.f32.mrf.mxu0
        %v10654 = vadd.f32 %v10583, %v10653
        %v10655 = vpop.f32.mrf.mxu0
        %v10656 = vadd.f32 %v10585, %v10655
        %10657 = vmatprep.mubr.bf16.mxu0 %v8509
        %10658 = vmatmul.mubr.bf16.gmra.mxu0 %v8508
        %v10659 = vpop.f32.mrf.mxu0
        %v10660 = vadd.f32 %v10589, %v10659
        %v10661 = vpop.f32.mrf.mxu0
        %v10662 = vadd.f32 %v10591, %v10661
        %v10663 = vpop.f32.mrf.mxu0
        %v10664 = vpop.f32.mrf.mxu0
        %10665 = vdwg.mxu0
        %10666 = vmatprep.subr.bf16.mxu0 %v10043
        %10667 = vmatpush1.bf16.msra.mxu0 %v10042
        %10668 = vmatprep.subr.bf16.mxu0 %v10040
        %10669 = vmatpush1.bf16.msra.mxu0 %v10039
        %10670 = vmatprep.subr.bf16.mxu0 %v10037
        %10671 = vmatpush1.bf16.msra.mxu0 %v10036
        %10672 = vmatprep.subr.bf16.mxu0 %v10034
        %10673 = vmatpush1.bf16.msra.mxu0 %v10033
        %10674 = vmatprep.subr.bf16.mxu0 %v10031
        %10675 = vmatpush1.bf16.msra.mxu0 %v10030
        %10676 = vmatprep.subr.bf16.mxu0 %v10028
        %10677 = vmatpush1.bf16.msra.mxu0 %v10027
        %10678 = vmatprep.subr.bf16.mxu0 %v10025
        %10679 = vmatpush1.bf16.msra.mxu0 %v10024
        %10680 = vmatprep.subr.bf16.mxu0 %v10022
        %10681 = vmatpush1.bf16.msra.mxu0 %v10021
        %10682 = vmatprep.subr.bf16.mxu0 %v10067
        %10683 = vmatpush2.bf16.msra.mxu0 %v10066
        %10684 = vmatprep.subr.bf16.mxu0 %v10064
        %10685 = vmatpush2.bf16.msra.mxu0 %v10063
        %10686 = vmatprep.subr.bf16.mxu0 %v10061
        %10687 = vmatpush2.bf16.msra.mxu0 %v10060
        %10688 = vmatprep.subr.bf16.mxu0 %v10058
        %10689 = vmatpush2.bf16.msra.mxu0 %v10057
        %10690 = vmatprep.subr.bf16.mxu0 %v10055
        %10691 = vmatpush2.bf16.msra.mxu0 %v10054
        %10692 = vmatprep.subr.bf16.mxu0 %v10052
        %10693 = vmatpush2.bf16.msra.mxu0 %v10051
        %10694 = vmatprep.subr.bf16.mxu0 %v10049
        %10695 = vmatpush2.bf16.msra.mxu0 %v10048
        %10696 = vmatprep.subr.bf16.mxu0 %v10046
        %10697 = vmatpush2.bf16.msra.mxu0 %v10045
        %10698 = vmatprep.mubr.bf16.mxu0 %v8475
        %10699 = vmatmul.mubr.bf16.gmra.mxu0 %v8474
        %v10700 = vpop.f32.mrf.mxu0
        %v10701 = vadd.f32 %v10630, %v10700
        %v10702 = vpop.f32.mrf.mxu0
        %v10703 = vadd.f32 %v10632, %v10702
        %v10704 = vpop.f32.mrf.mxu0
        %v10705 = vadd.f32 %v10634, %v10704
        %v10706 = vpop.f32.mrf.mxu0
        %v10707 = vadd.f32 %v10636, %v10706
        %10708 = vmatprep.mubr.bf16.mxu0 %v8487
        %10709 = vmatmul.mubr.bf16.gmra.mxu0 %v8486
        %v10710 = vpop.f32.mrf.mxu0
        %v10711 = vadd.f32 %v10640, %v10710
        %v10712 = vpop.f32.mrf.mxu0
        %v10713 = vadd.f32 %v10642, %v10712
        %v10714 = vpop.f32.mrf.mxu0
        %v10715 = vadd.f32 %v10644, %v10714
        %v10716 = vpop.f32.mrf.mxu0
        %v10717 = vadd.f32 %v10646, %v10716
        %10718 = vmatprep.mubr.bf16.mxu0 %v8499
        %10719 = vmatmul.mubr.bf16.gmra.mxu0 %v8498
        %v10720 = vpop.f32.mrf.mxu0
        %v10721 = vadd.f32 %v10650, %v10720
        %v10722 = vpop.f32.mrf.mxu0
        %v10723 = vadd.f32 %v10652, %v10722
        %v10724 = vpop.f32.mrf.mxu0
        %v10725 = vadd.f32 %v10654, %v10724
        %v10726 = vpop.f32.mrf.mxu0
        %v10727 = vadd.f32 %v10656, %v10726
        %10728 = vmatprep.mubr.bf16.mxu0 %v8511
        %10729 = vmatmul.mubr.bf16.gmra.mxu0 %v8510
        %v10730 = vpop.f32.mrf.mxu0
        %v10731 = vadd.f32 %v10660, %v10730
        %v10732 = vpop.f32.mrf.mxu0
        %v10733 = vadd.f32 %v10662, %v10732
        %v10734 = vpop.f32.mrf.mxu0
        %v10735 = vpop.f32.mrf.mxu0
        %10736 = vdwg.mxu0
        %10737 = vmatprep.subr.bf16.mxu0 %v10091
        %10738 = vmatpush1.bf16.msra.mxu0 %v10090
        %10739 = vmatprep.subr.bf16.mxu0 %v10088
        %10740 = vmatpush1.bf16.msra.mxu0 %v10087
        %10741 = vmatprep.subr.bf16.mxu0 %v10085
        %10742 = vmatpush1.bf16.msra.mxu0 %v10084
        %10743 = vmatprep.subr.bf16.mxu0 %v10082
        %10744 = vmatpush1.bf16.msra.mxu0 %v10081
        %10745 = vmatprep.subr.bf16.mxu0 %v10079
        %10746 = vmatpush1.bf16.msra.mxu0 %v10078
        %10747 = vmatprep.subr.bf16.mxu0 %v10076
        %10748 = vmatpush1.bf16.msra.mxu0 %v10075
        %10749 = vmatprep.subr.bf16.mxu0 %v10073
        %10750 = vmatpush1.bf16.msra.mxu0 %v10072
        %10751 = vmatprep.subr.bf16.mxu0 %v10070
        %10752 = vmatpush1.bf16.msra.mxu0 %v10069
        %10753 = vmatprep.subr.bf16.mxu0 %v10115
        %10754 = vmatpush2.bf16.msra.mxu0 %v10114
        %10755 = vmatprep.subr.bf16.mxu0 %v10112
        %10756 = vmatpush2.bf16.msra.mxu0 %v10111
        %10757 = vmatprep.subr.bf16.mxu0 %v10109
        %10758 = vmatpush2.bf16.msra.mxu0 %v10108
        %10759 = vmatprep.subr.bf16.mxu0 %v10106
        %10760 = vmatpush2.bf16.msra.mxu0 %v10105
        %10761 = vmatprep.subr.bf16.mxu0 %v10103
        %10762 = vmatpush2.bf16.msra.mxu0 %v10102
        %10763 = vmatprep.subr.bf16.mxu0 %v10100
        %10764 = vmatpush2.bf16.msra.mxu0 %v10099
        %10765 = vmatprep.subr.bf16.mxu0 %v10097
        %10766 = vmatpush2.bf16.msra.mxu0 %v10096
        %10767 = vmatprep.subr.bf16.mxu0 %v10094
        %10768 = vmatpush2.bf16.msra.mxu0 %v10093
        %10769 = vmatprep.mubr.bf16.mxu0 %v8477
        %10770 = vmatmul.mubr.bf16.gmra.mxu0 %v8476
        %v10771 = vpop.f32.mrf.mxu0
        %v10772 = vadd.f32 %v10701, %v10771
        %v10773 = vpop.f32.mrf.mxu0
        %v10774 = vadd.f32 %v10703, %v10773
        %v10775 = vpop.f32.mrf.mxu0
        %v10776 = vadd.f32 %v10705, %v10775
        %v10777 = vpop.f32.mrf.mxu0
        %v10778 = vadd.f32 %v10707, %v10777
        %10779 = vmatprep.mubr.bf16.mxu0 %v8489
        %10780 = vmatmul.mubr.bf16.gmra.mxu0 %v8488
        %v10781 = vpop.f32.mrf.mxu0
        %v10782 = vadd.f32 %v10711, %v10781
        %v10783 = vpop.f32.mrf.mxu0
        %v10784 = vadd.f32 %v10713, %v10783
        %v10785 = vpop.f32.mrf.mxu0
        %v10786 = vadd.f32 %v10715, %v10785
        %v10787 = vpop.f32.mrf.mxu0
        %v10788 = vadd.f32 %v10717, %v10787
        %10789 = vmatprep.mubr.bf16.mxu0 %v8501
        %10790 = vmatmul.mubr.bf16.gmra.mxu0 %v8500
        %v10791 = vpop.f32.mrf.mxu0
        %v10792 = vadd.f32 %v10721, %v10791
        %v10793 = vpop.f32.mrf.mxu0
        %v10794 = vadd.f32 %v10723, %v10793
        %v10795 = vpop.f32.mrf.mxu0
        %v10796 = vadd.f32 %v10725, %v10795
        %v10797 = vpop.f32.mrf.mxu0
        %v10798 = vadd.f32 %v10727, %v10797
        %10799 = vmatprep.mubr.bf16.mxu0 %v8513
        %10800 = vmatmul.mubr.bf16.gmra.mxu0 %v8512
        %v10801 = vpop.f32.mrf.mxu0
        %v10802 = vadd.f32 %v10731, %v10801
        %v10803 = vpop.f32.mrf.mxu0
        %v10804 = vadd.f32 %v10733, %v10803
        %v10805 = vpop.f32.mrf.mxu0
        %v10806 = vpop.f32.mrf.mxu0
        %10807 = vdwg.mxu0
        %10808 = vmatprep.subr.bf16.mxu0 %v10139
        %10809 = vmatpush1.bf16.msra.mxu0 %v10138
        %10810 = vmatprep.subr.bf16.mxu0 %v10136
        %10811 = vmatpush1.bf16.msra.mxu0 %v10135
        %10812 = vmatprep.subr.bf16.mxu0 %v10133
        %10813 = vmatpush1.bf16.msra.mxu0 %v10132
        %10814 = vmatprep.subr.bf16.mxu0 %v10130
        %10815 = vmatpush1.bf16.msra.mxu0 %v10129
        %10816 = vmatprep.subr.bf16.mxu0 %v10127
        %10817 = vmatpush1.bf16.msra.mxu0 %v10126
        %10818 = vmatprep.subr.bf16.mxu0 %v10124
        %10819 = vmatpush1.bf16.msra.mxu0 %v10123
        %10820 = vmatprep.subr.bf16.mxu0 %v10121
        %10821 = vmatpush1.bf16.msra.mxu0 %v10120
        %10822 = vmatprep.subr.bf16.mxu0 %v10118
        %10823 = vmatpush1.bf16.msra.mxu0 %v10117
        %10824 = vmatprep.subr.bf16.mxu0 %v10163
        %10825 = vmatpush2.bf16.msra.mxu0 %v10162
        %10826 = vmatprep.subr.bf16.mxu0 %v10160
        %10827 = vmatpush2.bf16.msra.mxu0 %v10159
        %10828 = vmatprep.subr.bf16.mxu0 %v10157
        %10829 = vmatpush2.bf16.msra.mxu0 %v10156
        %10830 = vmatprep.subr.bf16.mxu0 %v10154
        %10831 = vmatpush2.bf16.msra.mxu0 %v10153
        %10832 = vmatprep.subr.bf16.mxu0 %v10151
        %10833 = vmatpush2.bf16.msra.mxu0 %v10150
        %10834 = vmatprep.subr.bf16.mxu0 %v10148
        %10835 = vmatpush2.bf16.msra.mxu0 %v10147
        %10836 = vmatprep.subr.bf16.mxu0 %v10145
        %10837 = vmatpush2.bf16.msra.mxu0 %v10144
        %10838 = vmatprep.subr.bf16.mxu0 %v10142
        %10839 = vmatpush2.bf16.msra.mxu0 %v10141
        %10840 = vmatprep.mubr.bf16.mxu0 %v8479
        %10841 = vmatmul.mubr.bf16.gmra.mxu0 %v8478
        %v10842 = vpop.f32.mrf.mxu0
        %v10843 = vadd.f32 %v10772, %v10842
        %v10844 = vpop.f32.mrf.mxu0
        %v10845 = vadd.f32 %v10774, %v10844
        %v10846 = vpop.f32.mrf.mxu0
        %v10847 = vadd.f32 %v10776, %v10846
        %v10848 = vpop.f32.mrf.mxu0
        %v10849 = vadd.f32 %v10778, %v10848
        %10850 = vmatprep.mubr.bf16.mxu0 %v8491
        %10851 = vmatmul.mubr.bf16.gmra.mxu0 %v8490
        %v10852 = vpop.f32.mrf.mxu0
        %v10853 = vadd.f32 %v10782, %v10852
        %v10854 = vpop.f32.mrf.mxu0
        %v10855 = vadd.f32 %v10784, %v10854
        %v10856 = vpop.f32.mrf.mxu0
        %v10857 = vadd.f32 %v10786, %v10856
        %v10858 = vpop.f32.mrf.mxu0
        %v10859 = vadd.f32 %v10788, %v10858
        %10860 = vmatprep.mubr.bf16.mxu0 %v8503
        %10861 = vmatmul.mubr.bf16.gmra.mxu0 %v8502
        %v10862 = vpop.f32.mrf.mxu0
        %v10863 = vadd.f32 %v10792, %v10862
        %v10864 = vpop.f32.mrf.mxu0
        %v10865 = vadd.f32 %v10794, %v10864
        %v10866 = vpop.f32.mrf.mxu0
        %v10867 = vadd.f32 %v10796, %v10866
        %v10868 = vpop.f32.mrf.mxu0
        %v10869 = vadd.f32 %v10798, %v10868
        %10870 = vmatprep.mubr.bf16.mxu0 %v8515
        %10871 = vmatmul.mubr.bf16.gmra.mxu0 %v8514
        %v10872 = vpop.f32.mrf.mxu0
        %v10873 = vadd.f32 %v10802, %v10872
        %v10874 = vpop.f32.mrf.mxu0
        %v10875 = vadd.f32 %v10804, %v10874
        %v10876 = vpop.f32.mrf.mxu0
        %v10877 = vpop.f32.mrf.mxu0
        %10878 = vdwg.mxu0
        %10879 = vmatprep.subr.bf16.mxu0 0
        %10880 = vmatpush1.bf16.msra.mxu0 %v9900
        %10881 = vmatprep.subr.bf16.mxu0 0
        %10882 = vmatpush1.bf16.msra.mxu0 %v9897
        %10883 = vmatprep.subr.bf16.mxu0 0
        %10884 = vmatpush1.bf16.msra.mxu0 %v9894
        %10885 = vmatprep.subr.bf16.mxu0 0
        %10886 = vmatpush1.bf16.msra.mxu0 %v9891
        %10887 = vmatprep.subr.bf16.mxu0 0
        %10888 = vmatpush1.bf16.msra.mxu0 %v9888
        %10889 = vmatprep.subr.bf16.mxu0 0
        %10890 = vmatpush1.bf16.msra.mxu0 %v9885
        %10891 = vmatprep.subr.bf16.mxu0 0
        %10892 = vmatpush1.bf16.msra.mxu0 %v9882
        %10893 = vmatprep.subr.bf16.mxu0 0
        %10894 = vmatpush1.bf16.msra.mxu0 %v9879
        %10895 = vmatprep.subr.bf16.mxu0 0
        %10896 = vmatpush2.bf16.msra.mxu0 %v9924
        %10897 = vmatprep.subr.bf16.mxu0 0
        %10898 = vmatpush2.bf16.msra.mxu0 %v9921
        %10899 = vmatprep.subr.bf16.mxu0 0
        %10900 = vmatpush2.bf16.msra.mxu0 %v9918
        %10901 = vmatprep.subr.bf16.mxu0 0
        %10902 = vmatpush2.bf16.msra.mxu0 %v9915
        %10903 = vmatprep.subr.bf16.mxu0 0
        %10904 = vmatpush2.bf16.msra.mxu0 %v9912
        %10905 = vmatprep.subr.bf16.mxu0 0
        %10906 = vmatpush2.bf16.msra.mxu0 %v9909
        %10907 = vmatprep.subr.bf16.mxu0 0
        %10908 = vmatpush2.bf16.msra.mxu0 %v9906
        %10909 = vmatprep.subr.bf16.mxu0 0
        %10910 = vmatpush2.bf16.msra.mxu0 %v9903
        %10911 = vmatprep.mubr.bf16.mxu0 %v8469
        %10912 = vmatmul.mubr.bf16.gmra.mxu0 %v8468
        %v10913 = vpop.f32.mrf.mxu0
        %v10914 = vadd.f32 %v8913, %v10913
        %v10915 = vpop.f32.mrf.mxu0
        %v10916 = vpop.f32.mrf.mxu0
        %v10917 = vadd.f32 %v8913, %v10916
        %v10918 = vpop.f32.mrf.mxu0
        %10919 = vmatprep.mubr.bf16.mxu0 %v8481
        %10920 = vmatmul.mubr.bf16.gmra.mxu0 %v8480
        %v10921 = vpop.f32.mrf.mxu0
        %v10922 = vadd.f32 %v8913, %v10921
        %v10923 = vpop.f32.mrf.mxu0
        %v10924 = vpop.f32.mrf.mxu0
        %v10925 = vadd.f32 %v8913, %v10924
        %v10926 = vpop.f32.mrf.mxu0
        %10927 = vmatprep.mubr.bf16.mxu0 %v8493
        %10928 = vmatmul.mubr.bf16.gmra.mxu0 %v8492
        %v10929 = vpop.f32.mrf.mxu0
        %v10930 = vadd.f32 %v8913, %v10929
        %v10931 = vpop.f32.mrf.mxu0
        %v10932 = vpop.f32.mrf.mxu0
        %v10933 = vadd.f32 %v8913, %v10932
        %v10934 = vpop.f32.mrf.mxu0
        %10935 = vmatprep.mubr.bf16.mxu0 %v8505
        %10936 = vmatmul.mubr.bf16.gmra.mxu0 %v8504
        %v10937 = vpop.f32.mrf.mxu0
        %v10938 = vadd.f32 %v8913, %v10937
        %v10939 = vpop.f32.mrf.mxu0
        %v10940 = vpop.f32.mrf.mxu0
        %v10941 = vpop.f32.mrf.mxu0
        %10942 = vdwg.mxu0
        %10943 = vmatprep.subr.bf16.mxu0 0
        %10944 = vmatpush1.bf16.msra.mxu0 %v9948
        %10945 = vmatprep.subr.bf16.mxu0 0
        %10946 = vmatpush1.bf16.msra.mxu0 %v9945
        %10947 = vmatprep.subr.bf16.mxu0 0
        %10948 = vmatpush1.bf16.msra.mxu0 %v9942
        %10949 = vmatprep.subr.bf16.mxu0 0
        %10950 = vmatpush1.bf16.msra.mxu0 %v9939
        %10951 = vmatprep.subr.bf16.mxu0 0
        %10952 = vmatpush1.bf16.msra.mxu0 %v9936
        %10953 = vmatprep.subr.bf16.mxu0 0
        %10954 = vmatpush1.bf16.msra.mxu0 %v9933
        %10955 = vmatprep.subr.bf16.mxu0 0
        %10956 = vmatpush1.bf16.msra.mxu0 %v9930
        %10957 = vmatprep.subr.bf16.mxu0 0
        %10958 = vmatpush1.bf16.msra.mxu0 %v9927
        %10959 = vmatprep.subr.bf16.mxu0 0
        %10960 = vmatpush2.bf16.msra.mxu0 %v9972
        %10961 = vmatprep.subr.bf16.mxu0 0
        %10962 = vmatpush2.bf16.msra.mxu0 %v9969
        %10963 = vmatprep.subr.bf16.mxu0 0
        %10964 = vmatpush2.bf16.msra.mxu0 %v9966
        %10965 = vmatprep.subr.bf16.mxu0 0
        %10966 = vmatpush2.bf16.msra.mxu0 %v9963
        %10967 = vmatprep.subr.bf16.mxu0 0
        %10968 = vmatpush2.bf16.msra.mxu0 %v9960
        %10969 = vmatprep.subr.bf16.mxu0 0
        %10970 = vmatpush2.bf16.msra.mxu0 %v9957
        %10971 = vmatprep.subr.bf16.mxu0 0
        %10972 = vmatpush2.bf16.msra.mxu0 %v9954
        %10973 = vmatprep.subr.bf16.mxu0 0
        %10974 = vmatpush2.bf16.msra.mxu0 %v9951
        %10975 = vmatprep.mubr.bf16.mxu0 %v8471
        %10976 = vmatmul.mubr.bf16.gmra.mxu0 %v8470
        %v10977 = vpop.f32.mrf.mxu0
        %v10978 = vadd.f32 %v10914, %v10977
        %v10979 = vpop.f32.mrf.mxu0
        %v10980 = vpop.f32.mrf.mxu0
        %v10981 = vadd.f32 %v10917, %v10980
        %v10982 = vpop.f32.mrf.mxu0
        %10983 = vmatprep.mubr.bf16.mxu0 %v8483
        %10984 = vmatmul.mubr.bf16.gmra.mxu0 %v8482
        %v10985 = vpop.f32.mrf.mxu0
        %v10986 = vadd.f32 %v10922, %v10985
        %v10987 = vpop.f32.mrf.mxu0
        %v10988 = vpop.f32.mrf.mxu0
        %v10989 = vadd.f32 %v10925, %v10988
        %v10990 = vpop.f32.mrf.mxu0
        %10991 = vmatprep.mubr.bf16.mxu0 %v8495
        %10992 = vmatmul.mubr.bf16.gmra.mxu0 %v8494
        %v10993 = vpop.f32.mrf.mxu0
        %v10994 = vadd.f32 %v10930, %v10993
        %v10995 = vpop.f32.mrf.mxu0
        %v10996 = vpop.f32.mrf.mxu0
        %v10997 = vadd.f32 %v10933, %v10996
        %v10998 = vpop.f32.mrf.mxu0
        %10999 = vmatprep.mubr.bf16.mxu0 %v8507
        %11000 = vmatmul.mubr.bf16.gmra.mxu0 %v8506
        %v11001 = vpop.f32.mrf.mxu0
        %v11002 = vadd.f32 %v10938, %v11001
        %v11003 = vpop.f32.mrf.mxu0
        %v11004 = vpop.f32.mrf.mxu0
        %v11005 = vpop.f32.mrf.mxu0
        %11006 = vdwg.mxu0
        %11007 = vmatprep.subr.bf16.mxu0 0
        %11008 = vmatpush1.bf16.msra.mxu0 %v9996
        %11009 = vmatprep.subr.bf16.mxu0 0
        %11010 = vmatpush1.bf16.msra.mxu0 %v9993
        %11011 = vmatprep.subr.bf16.mxu0 0
        %11012 = vmatpush1.bf16.msra.mxu0 %v9990
        %11013 = vmatprep.subr.bf16.mxu0 0
        %11014 = vmatpush1.bf16.msra.mxu0 %v9987
        %11015 = vmatprep.subr.bf16.mxu0 0
        %11016 = vmatpush1.bf16.msra.mxu0 %v9984
        %11017 = vmatprep.subr.bf16.mxu0 0
        %11018 = vmatpush1.bf16.msra.mxu0 %v9981
        %11019 = vmatprep.subr.bf16.mxu0 0
        %11020 = vmatpush1.bf16.msra.mxu0 %v9978
        %11021 = vmatprep.subr.bf16.mxu0 0
        %11022 = vmatpush1.bf16.msra.mxu0 %v9975
        %11023 = vmatprep.subr.bf16.mxu0 0
        %11024 = vmatpush2.bf16.msra.mxu0 %v10020
        %11025 = vmatprep.subr.bf16.mxu0 0
        %11026 = vmatpush2.bf16.msra.mxu0 %v10017
        %11027 = vmatprep.subr.bf16.mxu0 0
        %11028 = vmatpush2.bf16.msra.mxu0 %v10014
        %11029 = vmatprep.subr.bf16.mxu0 0
        %11030 = vmatpush2.bf16.msra.mxu0 %v10011
        %11031 = vmatprep.subr.bf16.mxu0 0
        %11032 = vmatpush2.bf16.msra.mxu0 %v10008
        %11033 = vmatprep.subr.bf16.mxu0 0
        %11034 = vmatpush2.bf16.msra.mxu0 %v10005
        %11035 = vmatprep.subr.bf16.mxu0 0
        %11036 = vmatpush2.bf16.msra.mxu0 %v10002
        %11037 = vmatprep.subr.bf16.mxu0 0
        %11038 = vmatpush2.bf16.msra.mxu0 %v9999
        %11039 = vmatprep.mubr.bf16.mxu0 %v8473
        %11040 = vmatmul.mubr.bf16.gmra.mxu0 %v8472
        %v11041 = vpop.f32.mrf.mxu0
        %v11042 = vadd.f32 %v10978, %v11041
        %v11043 = vpop.f32.mrf.mxu0
        %v11044 = vpop.f32.mrf.mxu0
        %v11045 = vadd.f32 %v10981, %v11044
        %v11046 = vpop.f32.mrf.mxu0
        %11047 = vmatprep.mubr.bf16.mxu0 %v8485
        %11048 = vmatmul.mubr.bf16.gmra.mxu0 %v8484
        %v11049 = vpop.f32.mrf.mxu0
        %v11050 = vadd.f32 %v10986, %v11049
        %v11051 = vpop.f32.mrf.mxu0
        %v11052 = vpop.f32.mrf.mxu0
        %v11053 = vadd.f32 %v10989, %v11052
        %v11054 = vpop.f32.mrf.mxu0
        %11055 = vmatprep.mubr.bf16.mxu0 %v8497
        %11056 = vmatmul.mubr.bf16.gmra.mxu0 %v8496
        %v11057 = vpop.f32.mrf.mxu0
        %v11058 = vadd.f32 %v10994, %v11057
        %v11059 = vpop.f32.mrf.mxu0
        %v11060 = vpop.f32.mrf.mxu0
        %v11061 = vadd.f32 %v10997, %v11060
        %v11062 = vpop.f32.mrf.mxu0
        %11063 = vmatprep.mubr.bf16.mxu0 %v8509
        %11064 = vmatmul.mubr.bf16.gmra.mxu0 %v8508
        %v11065 = vpop.f32.mrf.mxu0
        %v11066 = vadd.f32 %v11002, %v11065
        %v11067 = vpop.f32.mrf.mxu0
        %v11068 = vpop.f32.mrf.mxu0
        %v11069 = vpop.f32.mrf.mxu0
        %11070 = vdwg.mxu0
        %11071 = vmatprep.subr.bf16.mxu0 0
        %11072 = vmatpush1.bf16.msra.mxu0 %v10044
        %11073 = vmatprep.subr.bf16.mxu0 0
        %11074 = vmatpush1.bf16.msra.mxu0 %v10041
        %11075 = vmatprep.subr.bf16.mxu0 0
        %11076 = vmatpush1.bf16.msra.mxu0 %v10038
        %11077 = vmatprep.subr.bf16.mxu0 0
        %11078 = vmatpush1.bf16.msra.mxu0 %v10035
        %11079 = vmatprep.subr.bf16.mxu0 0
        %11080 = vmatpush1.bf16.msra.mxu0 %v10032
        %11081 = vmatprep.subr.bf16.mxu0 0
        %11082 = vmatpush1.bf16.msra.mxu0 %v10029
        %11083 = vmatprep.subr.bf16.mxu0 0
        %11084 = vmatpush1.bf16.msra.mxu0 %v10026
        %11085 = vmatprep.subr.bf16.mxu0 0
        %11086 = vmatpush1.bf16.msra.mxu0 %v10023
        %11087 = vmatprep.subr.bf16.mxu0 0
        %11088 = vmatpush2.bf16.msra.mxu0 %v10068
        %11089 = vmatprep.subr.bf16.mxu0 0
        %11090 = vmatpush2.bf16.msra.mxu0 %v10065
        %11091 = vmatprep.subr.bf16.mxu0 0
        %11092 = vmatpush2.bf16.msra.mxu0 %v10062
        %11093 = vmatprep.subr.bf16.mxu0 0
        %11094 = vmatpush2.bf16.msra.mxu0 %v10059
        %11095 = vmatprep.subr.bf16.mxu0 0
        %11096 = vmatpush2.bf16.msra.mxu0 %v10056
        %11097 = vmatprep.subr.bf16.mxu0 0
        %11098 = vmatpush2.bf16.msra.mxu0 %v10053
        %11099 = vmatprep.subr.bf16.mxu0 0
        %11100 = vmatpush2.bf16.msra.mxu0 %v10050
        %11101 = vmatprep.subr.bf16.mxu0 0
        %11102 = vmatpush2.bf16.msra.mxu0 %v10047
        %11103 = vmatprep.mubr.bf16.mxu0 %v8475
        %11104 = vmatmul.mubr.bf16.gmra.mxu0 %v8474
        %v11105 = vpop.f32.mrf.mxu0
        %v11106 = vadd.f32 %v11042, %v11105
        %v11107 = vpop.f32.mrf.mxu0
        %v11108 = vpop.f32.mrf.mxu0
        %v11109 = vadd.f32 %v11045, %v11108
        %v11110 = vpop.f32.mrf.mxu0
        %11111 = vmatprep.mubr.bf16.mxu0 %v8487
        %11112 = vmatmul.mubr.bf16.gmra.mxu0 %v8486
        %v11113 = vpop.f32.mrf.mxu0
        %v11114 = vadd.f32 %v11050, %v11113
        %v11115 = vpop.f32.mrf.mxu0
        %v11116 = vpop.f32.mrf.mxu0
        %v11117 = vadd.f32 %v11053, %v11116
        %v11118 = vpop.f32.mrf.mxu0
        %11119 = vmatprep.mubr.bf16.mxu0 %v8499
        %11120 = vmatmul.mubr.bf16.gmra.mxu0 %v8498
        %v11121 = vpop.f32.mrf.mxu0
        %v11122 = vadd.f32 %v11058, %v11121
        %v11123 = vpop.f32.mrf.mxu0
        %v11124 = vpop.f32.mrf.mxu0
        %v11125 = vadd.f32 %v11061, %v11124
        %v11126 = vpop.f32.mrf.mxu0
        %11127 = vmatprep.mubr.bf16.mxu0 %v8511
        %11128 = vmatmul.mubr.bf16.gmra.mxu0 %v8510
        %v11129 = vpop.f32.mrf.mxu0
        %v11130 = vadd.f32 %v11066, %v11129
        %v11131 = vpop.f32.mrf.mxu0
        %v11132 = vpop.f32.mrf.mxu0
        %v11133 = vpop.f32.mrf.mxu0
        %11134 = vdwg.mxu0
        %11135 = vmatprep.subr.bf16.mxu0 0
        %11136 = vmatpush1.bf16.msra.mxu0 %v10092
        %11137 = vmatprep.subr.bf16.mxu0 0
        %11138 = vmatpush1.bf16.msra.mxu0 %v10089
        %11139 = vmatprep.subr.bf16.mxu0 0
        %11140 = vmatpush1.bf16.msra.mxu0 %v10086
        %11141 = vmatprep.subr.bf16.mxu0 0
        %11142 = vmatpush1.bf16.msra.mxu0 %v10083
        %11143 = vmatprep.subr.bf16.mxu0 0
        %11144 = vmatpush1.bf16.msra.mxu0 %v10080
        %11145 = vmatprep.subr.bf16.mxu0 0
        %11146 = vmatpush1.bf16.msra.mxu0 %v10077
        %11147 = vmatprep.subr.bf16.mxu0 0
        %11148 = vmatpush1.bf16.msra.mxu0 %v10074
        %11149 = vmatprep.subr.bf16.mxu0 0
        %11150 = vmatpush1.bf16.msra.mxu0 %v10071
        %11151 = vmatprep.subr.bf16.mxu0 0
        %11152 = vmatpush2.bf16.msra.mxu0 %v10116
        %11153 = vmatprep.subr.bf16.mxu0 0
        %11154 = vmatpush2.bf16.msra.mxu0 %v10113
        %11155 = vmatprep.subr.bf16.mxu0 0
        %11156 = vmatpush2.bf16.msra.mxu0 %v10110
        %11157 = vmatprep.subr.bf16.mxu0 0
        %11158 = vmatpush2.bf16.msra.mxu0 %v10107
        %11159 = vmatprep.subr.bf16.mxu0 0
        %11160 = vmatpush2.bf16.msra.mxu0 %v10104
        %11161 = vmatprep.subr.bf16.mxu0 0
        %11162 = vmatpush2.bf16.msra.mxu0 %v10101
        %11163 = vmatprep.subr.bf16.mxu0 0
        %11164 = vmatpush2.bf16.msra.mxu0 %v10098
        %11165 = vmatprep.subr.bf16.mxu0 0
        %11166 = vmatpush2.bf16.msra.mxu0 %v10095
        %11167 = vmatprep.mubr.bf16.mxu0 %v8477
        %11168 = vmatmul.mubr.bf16.gmra.mxu0 %v8476
        %v11169 = vpop.f32.mrf.mxu0
        %v11170 = vadd.f32 %v11106, %v11169
        %v11171 = vpop.f32.mrf.mxu0
        %v11172 = vpop.f32.mrf.mxu0
        %v11173 = vadd.f32 %v11109, %v11172
        %v11174 = vpop.f32.mrf.mxu0
        %11175 = vmatprep.mubr.bf16.mxu0 %v8489
        %11176 = vmatmul.mubr.bf16.gmra.mxu0 %v8488
        %v11177 = vpop.f32.mrf.mxu0
        %v11178 = vadd.f32 %v11114, %v11177
        %v11179 = vpop.f32.mrf.mxu0
        %v11180 = vpop.f32.mrf.mxu0
        %v11181 = vadd.f32 %v11117, %v11180
        %v11182 = vpop.f32.mrf.mxu0
        %11183 = vmatprep.mubr.bf16.mxu0 %v8501
        %11184 = vmatmul.mubr.bf16.gmra.mxu0 %v8500
        %v11185 = vpop.f32.mrf.mxu0
        %v11186 = vadd.f32 %v11122, %v11185
        %v11187 = vpop.f32.mrf.mxu0
        %v11188 = vpop.f32.mrf.mxu0
        %v11189 = vadd.f32 %v11125, %v11188
        %v11190 = vpop.f32.mrf.mxu0
        %11191 = vmatprep.mubr.bf16.mxu0 %v8513
        %11192 = vmatmul.mubr.bf16.gmra.mxu0 %v8512
        %v11193 = vpop.f32.mrf.mxu0
        %v11194 = vadd.f32 %v11130, %v11193
        %v11195 = vpop.f32.mrf.mxu0
        %v11196 = vpop.f32.mrf.mxu0
        %v11197 = vpop.f32.mrf.mxu0
        %11198 = vdwg.mxu0
        %11199 = vmatprep.subr.bf16.mxu0 0
        %11200 = vmatpush1.bf16.msra.mxu0 %v10140
        %11201 = vmatprep.subr.bf16.mxu0 0
        %11202 = vmatpush1.bf16.msra.mxu0 %v10137
        %11203 = vmatprep.subr.bf16.mxu0 0
        %11204 = vmatpush1.bf16.msra.mxu0 %v10134
        %11205 = vmatprep.subr.bf16.mxu0 0
        %11206 = vmatpush1.bf16.msra.mxu0 %v10131
        %11207 = vmatprep.subr.bf16.mxu0 0
        %11208 = vmatpush1.bf16.msra.mxu0 %v10128
        %11209 = vmatprep.subr.bf16.mxu0 0
        %11210 = vmatpush1.bf16.msra.mxu0 %v10125
        %11211 = vmatprep.subr.bf16.mxu0 0
        %11212 = vmatpush1.bf16.msra.mxu0 %v10122
        %11213 = vmatprep.subr.bf16.mxu0 0
        %11214 = vmatpush1.bf16.msra.mxu0 %v10119
        %11215 = vmatprep.subr.bf16.mxu0 0
        %11216 = vmatpush2.bf16.msra.mxu0 %v10164
        %11217 = vmatprep.subr.bf16.mxu0 0
        %11218 = vmatpush2.bf16.msra.mxu0 %v10161
        %11219 = vmatprep.subr.bf16.mxu0 0
        %11220 = vmatpush2.bf16.msra.mxu0 %v10158
        %11221 = vmatprep.subr.bf16.mxu0 0
        %11222 = vmatpush2.bf16.msra.mxu0 %v10155
        %11223 = vmatprep.subr.bf16.mxu0 0
        %11224 = vmatpush2.bf16.msra.mxu0 %v10152
        %11225 = vmatprep.subr.bf16.mxu0 0
        %11226 = vmatpush2.bf16.msra.mxu0 %v10149
        %11227 = vmatprep.subr.bf16.mxu0 0
        %11228 = vmatpush2.bf16.msra.mxu0 %v10146
        %11229 = vmatprep.subr.bf16.mxu0 0
        %11230 = vmatpush2.bf16.msra.mxu0 %v10143
        %11231 = vmatprep.mubr.bf16.mxu0 %v8479
        %11232 = vmatmul.mubr.bf16.gmra.mxu0 %v8478
        %v11233 = vpop.f32.mrf.mxu0
        %v11234 = vadd.f32 %v11170, %v11233
        %v11235 = vpop.f32.mrf.mxu0
        %v11236 = vpop.f32.mrf.mxu0
        %v11237 = vadd.f32 %v11173, %v11236
        %v11238 = vpop.f32.mrf.mxu0
        %11239 = vmatprep.mubr.bf16.mxu0 %v8491
        %11240 = vmatmul.mubr.bf16.gmra.mxu0 %v8490
        %v11241 = vpop.f32.mrf.mxu0
        %v11242 = vadd.f32 %v11178, %v11241
        %v11243 = vpop.f32.mrf.mxu0
        %v11244 = vpop.f32.mrf.mxu0
        %v11245 = vadd.f32 %v11181, %v11244
        %v11246 = vpop.f32.mrf.mxu0
        %11247 = vmatprep.mubr.bf16.mxu0 %v8503
        %11248 = vmatmul.mubr.bf16.gmra.mxu0 %v8502
        %v11249 = vpop.f32.mrf.mxu0
        %v11250 = vadd.f32 %v11186, %v11249
        %v11251 = vpop.f32.mrf.mxu0
        %v11252 = vpop.f32.mrf.mxu0
        %v11253 = vadd.f32 %v11189, %v11252
        %v11254 = vpop.f32.mrf.mxu0
        %11255 = vmatprep.mubr.bf16.mxu0 %v8515
        %11256 = vmatmul.mubr.bf16.gmra.mxu0 %v8514
        %v11257 = vpop.f32.mrf.mxu0
        %v11258 = vadd.f32 %v11194, %v11257
        %v11259 = vpop.f32.mrf.mxu0
        %v11260 = vpop.f32.mrf.mxu0
        %v11261 = vpop.f32.mrf.mxu0
        %11262 = vdwg.mxu0
        %v11263 = vadd.f32 %v10843, %v5484
        %v11264 = vadd.f32 %v10845, %v5485
        %v11265 = vadd.f32 %v11234, %v5486
        %v11266 = vadd.f32 %v10847, %v5487
        %v11267 = vadd.f32 %v10849, %v5488
        %v11268 = vadd.f32 %v11237, %v5489
        %v11269 = vadd.f32 %v10853, %v5490
        %v11270 = vadd.f32 %v10855, %v5491
        %v11271 = vadd.f32 %v11242, %v5492
        %v11272 = vadd.f32 %v10857, %v5493
        %v11273 = vadd.f32 %v10859, %v5494
        %v11274 = vadd.f32 %v11245, %v5495
        %v11275 = vadd.f32 %v10863, %v5496
        %v11276 = vadd.f32 %v10865, %v5497
        %v11277 = vadd.f32 %v11250, %v5498
        %v11278 = vadd.f32 %v10867, %v5499
        %v11279 = vadd.f32 %v10869, %v5500
        %v11280 = vadd.f32 %v11253, %v5501
        %v11281 = vadd.f32 %v10873, %v5502
        %v11282 = vadd.f32 %v10875, %v5503
        %v11283 = vadd.f32 %v11258, %v5504
        %11284 = vst [vmem:[%s577] sm:$0xff] %v11263
        %11285 = vst [vmem:[%s577 + $0x8] sm:$0xff] %v11264
        %11286 = vst [vmem:[%s577 + $0x10] sm:$0xff] %v11265
        %11287 = vst [vmem:[%s577 + $0x18] sm:$0xff] %v11266
        %11288 = vst [vmem:[%s577 + $0x20] sm:$0xff] %v11267
        %11289 = vst [vmem:[%s577 + $0x28] sm:$0xff] %v11268
        %11290 = vst [vmem:[%s577 + $0x30] sm:$0xff] %v11269
        %11291 = vst [vmem:[%s577 + $0x38] sm:$0xff] %v11270
        %11292 = vst [vmem:[%s577 + $0x40] sm:$0xff] %v11271
        %11293 = vst [vmem:[%s577 + $0x48] sm:$0xff] %v11272
        %11294 = vst [vmem:[%s577 + $0x50] sm:$0xff] %v11273
        %11295 = vst [vmem:[%s577 + $0x58] sm:$0xff] %v11274
        %11296 = vst [vmem:[%s577 + $0x60] sm:$0xff] %v11275
        %11297 = vst [vmem:[%s577 + $0x68] sm:$0xff] %v11276
        %11298 = vst [vmem:[%s577 + $0x70] sm:$0xff] %v11277
        %11299 = vst [vmem:[%s577 + $0x78] sm:$0xff] %v11278
        %11300 = vst [vmem:[%s577 + $0x80] sm:$0xff] %v11279
        %11301 = vst [vmem:[%s577 + $0x88] sm:$0xff] %v11280
        %11302 = vst [vmem:[%s577 + $0x90] sm:$0xff] %v11281
        %11303 = vst [vmem:[%s577 + $0x98] sm:$0xff] %v11282
        %11304 = vst [vmem:[%s577 + $0xa0] sm:$0xff] %v11283
        %s11305 = sand.u32 %s300, 1
        %s11306 = scalar_lea.sflag [#allocation4], %s11305
        %s11307 = sand.u32 %s300, 1
        %s11308 = smul.addr %s11307, 168
        %s11309 = scalar_lea.vmem [#allocation22], %s11308
        // Predicated region
        $region117: #{tpu_custom_call.1} parent=67 // pred_check
          %p11310 = pneg %p310
        $region118: #{tpu_custom_call.1} parent=67 // pred_check_branch
          %11312 = sbr.rel (%p11310) target = $region120
        $region119: #{tpu_custom_call.1} parent=67 // pred_region
          %s11314 = ssub.s32 2688, 2688
          %11315 = vsyncadd %s11306, %s11314
          %s11316 = smul.addr %s35, 21
          %s11317 = smul.addr %s11316, 128
          %s11318 = scalar_lea.hbm %s12, %s11317
          %s11319 = sshll.u32 %s11309, 4
          %s11320 = int_to_ptr.vmem [resolvable:$true] %s11319
          %11325 = dma.vmem_to_hbm [thread:$0]  %s11320, 2688, %s11318, %s11306, 384, 384, 24
        $region120: #{tpu_custom_call.1} parent=67 // pred_fallthru
          _
      $region68: #{tpu_custom_call.1} parent=5 // pred_fallthru
        _
      %p11326 = scmp.le.s32.totalorder 2, %s30
      // Predicated region
      $region121: #{tpu_custom_call.1} parent=5 // pred_check
        %p11327 = pneg %p11326
      $region122: #{tpu_custom_call.1} parent=5 // pred_check_branch
        %11329 = sbr.rel (%p11327) target = $region124
      $region123: #{tpu_custom_call.1} parent=5 // pred_region
        %s11330 = ssub.s32 %s30, 2
        // Predicated region
        $region125: #{tpu_custom_call.1} parent=123 // pred_check
          %p11331 = pneg %p316
        $region126: #{tpu_custom_call.1} parent=123 // pred_check_branch
          %11333 = sbr.rel (%p11331) target = $region128
        $region127: #{tpu_custom_call.1} parent=123 // pred_region
          %s11334 = sand.u32 %s301, 1
          %s11335 = scalar_lea.sflag [#allocation4], %s11334
          %s11336 = sand.u32 %s301, 1
          %s11337 = smul.addr %s11336, 168
          %s11338 = scalar_lea.vmem [#allocation22], %s11337
          %11339 = dma.done %s11335, 2688
        $region128: #{tpu_custom_call.1} parent=123 // pred_fallthru
          _
      $region124: #{tpu_custom_call.1} parent=5 // pred_fallthru
        _
    $region6: #{tpu_custom_call.1} parent=1 // loop_footer
      %s34 = sadd.s32 1, %s30
    $region7: #{tpu_custom_call.1} parent=1 // loop_footer_branch
      %29 = sbr.rel target = $region3
    $region8: #{tpu_custom_call.1} parent=1 // loop_exit
      _
    %11340 = vsyncpa [#allocation3], 1
    %s11341 = scalar_lea.sflag [#allocation3], 1
    %11342 = vsyncpa %s11341, 1
    %11343 = vsyncpa [#allocation6], 1
    %11344 = vsyncpa [#allocation9], 1
    %11345 = vsyncpa [#allocation12], 1
    %11346 = vsyncpa [#allocation15], 1
    %11347 = vsyncpa [#allocation18], 1
    %11348 = vsyncpa [#allocation21], 1
    %11349 = vsyncpa [#allocation4], 1
    %s11350 = scalar_lea.sflag [#allocation4], 1
    %11351 = vsyncpa %s11350, 1

</llo_original>
